<compile_context>
chip_gen: v5e
topology: v5e:2x2
jax: 0.10.0
libtpu: 0.0.40
codegen_flags: <defaults>
</compile_context>

<pallas_src>
import math

import jax
import jax.numpy as jnp
from jax import lax
from jax.experimental import pallas as pl
from jax.experimental.pallas import tpu as pltpu

MXU_DTYPE = jnp.bfloat16       # MXU operand dtype (accumulation always f32)
STREAM_DTYPE = jnp.bfloat16    # inter-layer activation streams in HBM
VMEM_LIMIT_BYTES = 64 * 1024 * 1024


# ----------------------------- tiling helpers --------------------------------

def _pick_row_tile(n):
    """Largest row tile <= 1024 that divides n (sublane-friendly); falls back
    to the whole array for tiny/odd n (block == full dim is always legal)."""
    for c in (1024, 512, 256, 128, 64, 32, 16, 8):
        if n % c == 0:
            return c
    return n


def _pick_time_chunk(t):
    """Time chunk for streaming the recurrence: multiple of 8 dividing T,
    capped at 16 to bound VMEM and the unrolled step-loop code size."""
    for c in (16, 8):
        if t % c == 0:
            return c
    return t


def _pick_batch_tile(b):
    """Two sublane-aligned batch tiles when possible so a 2-TensorCore chip
    (v7x) can run one tile per core via the 'parallel' grid axis."""
    if b % 16 == 0:
        return b // 2
    return b


def _cparams(dims):
    return pltpu.CompilerParams(dimension_semantics=dims,
                                vmem_limit_bytes=VMEM_LIMIT_BYTES)


# ------------------------- dense (MXU) feed-forward kernels ------------------

def _fc1_kernel(x_ref, w_ref, b_ref, o_ref):
    acc = jnp.dot(x_ref[...].astype(MXU_DTYPE), w_ref[...],
                  preferred_element_type=jnp.float32)
    o_ref[...] = jnp.maximum(acc + b_ref[...], 0.0).astype(o_ref.dtype)


def fc1_relu(x2d, w, b):
    """relu(x @ W1 + b1), row-tiled over N = T*B, bf16 output stream."""
    n, din = x2d.shape
    h = w.shape[1]
    tn = _pick_row_tile(n)
    return pl.pallas_call(
        _fc1_kernel,
        out_shape=jax.ShapeDtypeStruct((n, h), STREAM_DTYPE),
        grid=(n // tn,),
        in_specs=[pl.BlockSpec((tn, din), lambda i: (i, 0)),
                  pl.BlockSpec((din, h), lambda i: (0, 0)),
                  pl.BlockSpec((1, h), lambda i: (0, 0))],
        out_specs=pl.BlockSpec((tn, h), lambda i: (i, 0)),
        compiler_params=_cparams(("parallel",)),
    )(x2d, w, b)


def _fc2_kernel(hf_ref, hb_ref, wt_ref, wb_ref, b_ref, o_ref):
    acc = jnp.dot(hf_ref[...], wt_ref[...], preferred_element_type=jnp.float32)
    acc = acc + jnp.dot(hb_ref[...], wb_ref[...],
                        preferred_element_type=jnp.float32)
    o_ref[...] = acc + b_ref[...]


def fc2_head(hf2d, hb2d, w_top, w_bot, b):
    """fc2 on the (implicit) concat of the two bf16 LSTM output streams."""
    n, h = hf2d.shape
    c = w_top.shape[1]
    tn = _pick_row_tile(n)
    return pl.pallas_call(
        _fc2_kernel,
        out_shape=jax.ShapeDtypeStruct((n, c), jnp.float32),
        grid=(n // tn,),
        in_specs=[pl.BlockSpec((tn, h), lambda i: (i, 0)),
                  pl.BlockSpec((tn, h), lambda i: (i, 0)),
                  pl.BlockSpec((h, c), lambda i: (0, 0)),
                  pl.BlockSpec((h, c), lambda i: (0, 0)),
                  pl.BlockSpec((1, c), lambda i: (0, 0))],
        out_specs=pl.BlockSpec((tn, c), lambda i: (i, 0)),
        compiler_params=_cparams(("parallel",)),
    )(hf2d, hb2d, w_top, w_bot, b)


# --------------------- fused bidirectional LSTM recurrence --------------------

def _lstm_cell(pre, c_prev, H):
    i_g = jax.nn.sigmoid(pre[:, 0 * H:1 * H])
    f_g = jax.nn.sigmoid(pre[:, 1 * H:2 * H])
    g_g = jnp.tanh(pre[:, 2 * H:3 * H])
    o_g = jax.nn.sigmoid(pre[:, 3 * H:4 * H])
    c_new = f_g * c_prev + i_g * g_g
    h_new = o_g * jnp.tanh(c_new)
    return h_new, c_new


def _make_bilstm_kernel(Tc, Bt, H, n_streams):
    G = 4 * H
    ns = n_streams

    def kernel(*refs):
        # inputs : per stream [fwd-chunk view, bwd-chunk view]  (2*ns)
        #          W_ih fwd per stream (ns), W_ih bwd per stream (ns)
        #          bias fwd, bias bwd, W_hh fwd, W_hh bwd
        # outputs: fwd chunk, bwd chunk  (time-major (Tc, Bt, H) bf16)
        # scratch: xp_f, xp_b (Tc*Bt, 4H) f32; h_f, c_f, h_b, c_b (Bt, H) f32
        xf_refs = refs[0:2 * ns:2]
        xb_refs = refs[1:2 * ns:2]
        wif_refs = refs[2 * ns:3 * ns]
        wib_refs = refs[3 * ns:4 * ns]
        bf_ref, bb_ref, whf_ref, whb_ref = refs[4 * ns:4 * ns + 4]
        of_ref, ob_ref = refs[4 * ns + 4:4 * ns + 6]
        xpf_sc, xpb_sc, hf_sc, cf_sc, hb_sc, cb_sc = refs[4 * ns + 6:]

        @pl.when(pl.program_id(1) == 0)          # new batch tile -> zero state
        def _init():
            for r in (hf_sc, cf_sc, hb_sc, cb_sc):
                r[...] = jnp.zeros_like(r)

        # Fused per-chunk input projection: one big MXU matmul per stream and
        # direction, parked in f32 VMEM scratch (no HBM round trip).
        def proj(x_refs, w_refs, b_ref):
            acc = jnp.dot(x_refs[0][...].reshape(Tc * Bt, x_refs[0].shape[-1]),
                          w_refs[0][...], preferred_element_type=jnp.float32)
            for s in range(1, ns):
                acc = acc + jnp.dot(
                    x_refs[s][...].reshape(Tc * Bt, x_refs[s].shape[-1]),
                    w_refs[s][...], preferred_element_type=jnp.float32)
            return acc + b_ref[...]

        xpf_sc[...] = proj(xf_refs, wif_refs, bf_ref)
        xpb_sc[...] = proj(xb_refs, wib_refs, bb_ref)

        whf = whf_ref[...]
        whb = whb_ref[...]
        h_f, c_f = hf_sc[...], cf_sc[...]
        h_b, c_b = hb_sc[...], cb_sc[...]

        # Statically unrolled chunk loop (Tc <= 16): each step is only the
        # small h @ W_hh matmul plus EUP/VPU gate math (the per-step floor).
        for j in range(Tc):
            jb = Tc - 1 - j                       # bwd walks its chunk in reverse
            pre_f = xpf_sc[j * Bt:(j + 1) * Bt, :] + jnp.dot(
                h_f.astype(MXU_DTYPE), whf, preferred_element_type=jnp.float32)
            pre_b = xpb_sc[jb * Bt:(jb + 1) * Bt, :] + jnp.dot(
                h_b.astype(MXU_DTYPE), whb, preferred_element_type=jnp.float32)
            h_f, c_f = _lstm_cell(pre_f, c_f, H)
            h_b, c_b = _lstm_cell(pre_b, c_b, H)
            of_ref[j, :, :] = h_f.astype(of_ref.dtype)
            ob_ref[jb, :, :] = h_b.astype(ob_ref.dtype)

        hf_sc[...] = h_f
        cf_sc[...] = c_f
        hb_sc[...] = h_b
        cb_sc[...] = c_b

    return kernel


def bilstm_layer(streams, wih_f, wih_b, bias_f, bias_b, whh_f, whh_b,
                 *, t_chunk=None, b_tile=None):
    """streams: list of time-major (T, B, H) bf16 arrays (layer input; for
    layer 1 the previous layer's fwd/bwd halves as separate streams).
    wih_f/wih_b: per-stream (H, 4H) bf16 input-projection weights.
    Returns (out_fwd, out_bwd), each (T, B, H) bf16, time-major."""
    T, B, H = streams[0].shape
    ns = len(streams)
    G = 4 * H
    Tc = t_chunk if t_chunk is not None else _pick_time_chunk(T)
    Bt = b_tile if b_tile is not None else _pick_batch_tile(B)
    assert T % Tc == 0 and B % Bt == 0, (T, Tc, B, Bt)
    nc = T // Tc
    nb = B // Bt

    fwd_map = lambda b, i: (i, b, 0)
    bwd_map = lambda b, i: (nc - 1 - i, b, 0)
    cst_map = lambda b, i: (0, 0)

    args, in_specs = [], []
    for s in streams:                       # same array twice: fwd & bwd views
        args += [s, s]
        in_specs += [pl.BlockSpec((Tc, Bt, H), fwd_map),
                     pl.BlockSpec((Tc, Bt, H), bwd_map)]
    for w in list(wih_f) + list(wih_b):
        args.append(w)
        in_specs.append(pl.BlockSpec((H, G), cst_map))
    for bvec in (bias_f, bias_b):
        args.append(bvec)
        in_specs.append(pl.BlockSpec((1, G), cst_map))
    for w in (whh_f, whh_b):
        args.append(w)
        in_specs.append(pl.BlockSpec((H, G), cst_map))

    return pl.pallas_call(
        _make_bilstm_kernel(Tc, Bt, H, ns),
        out_shape=(jax.ShapeDtypeStruct((T, B, H), STREAM_DTYPE),
                   jax.ShapeDtypeStruct((T, B, H), STREAM_DTYPE)),
        grid=(nb, nc),
        in_specs=in_specs,
        out_specs=(pl.BlockSpec((Tc, Bt, H), fwd_map),
                   pl.BlockSpec((Tc, Bt, H), bwd_map)),
        scratch_shapes=[
            pltpu.VMEM((Tc * Bt, G), jnp.float32),   # fwd chunk pre-activations
            pltpu.VMEM((Tc * Bt, G), jnp.float32),   # bwd chunk pre-activations
            pltpu.VMEM((Bt, H), jnp.float32),        # h_f
            pltpu.VMEM((Bt, H), jnp.float32),        # c_f
            pltpu.VMEM((Bt, H), jnp.float32),        # h_b
            pltpu.VMEM((Bt, H), jnp.float32),        # c_b
        ],
        compiler_params=_cparams(("parallel", "arbitrary")),
    )(*args)


# ------------------------------ parameters ------------------------------------

def init_params(key, input_size, hidden_size, num_classes):
    """PyTorch-style uniform init, stored pre-transposed, weights pre-cast to
    bf16.  Gate order (i, f, g, o); b_ih + b_hh folded into one f32 bias."""
    H = hidden_size

    def u(k, shape, bound):
        return jax.random.uniform(k, shape, jnp.float32, -bound, bound)

    keys = iter(jax.random.split(key, 24))
    p = {}

    bnd = 1.0 / math.sqrt(input_size)
    p["fc1_w"] = u(next(keys), (input_size, H), bnd).astype(MXU_DTYPE)
    p["fc1_b"] = u(next(keys), (1, H), bnd)

    bnd = 1.0 / math.sqrt(H)
    for layer in range(2):
        din = H if layer == 0 else 2 * H
        for tag in ("f", "b"):
            wih = u(next(keys), (din, 4 * H), bnd)
            bias = u(next(keys), (1, 4 * H), bnd) + u(next(keys), (1, 4 * H), bnd)
            p[f"b_l{layer}_{tag}"] = bias
            p[f"whh_l{layer}_{tag}"] = u(next(keys), (H, 4 * H), bnd).astype(MXU_DTYPE)
            if layer == 0:
                p[f"wih_l0_{tag}"] = wih.astype(MXU_DTYPE)
            else:
                p[f"wih_l1_{tag}_top"] = wih[:H, :].astype(MXU_DTYPE)  # fwd-half rows
                p[f"wih_l1_{tag}_bot"] = wih[H:, :].astype(MXU_DTYPE)  # bwd-half rows

    bnd = 1.0 / math.sqrt(2 * H)
    w2 = u(next(keys), (2 * H, num_classes), bnd)
    p["fc2_w_top"] = w2[:H, :].astype(MXU_DTYPE)
    p["fc2_w_bot"] = w2[H:, :].astype(MXU_DTYPE)
    p["fc2_b"] = u(next(keys), (1, num_classes), bnd)
    return p


# ------------------------------ full forward ----------------------------------

def _forward(params, x, *, t_chunk=None):
    """x: (B, T, input_size) -> (B, T, num_classes)."""
    B, T, Din = x.shape
    H = params["fc1_w"].shape[1]
    C = params["fc2_b"].shape[1]

    # One cheap time-major transpose up front; everything below streams
    # (T, B, ...) slabs so per-step access in the recurrence is a dense tile.
    x_tm = jnp.transpose(x, (1, 0, 2)).reshape(T * B, Din)

    h0 = fc1_relu(x_tm, params["fc1_w"], params["fc1_b"]).reshape(T, B, H)

    f0, r0 = bilstm_layer(
        [h0],
        [params["wih_l0_f"]], [params["wih_l0_b"]],
        params["b_l0_f"], params["b_l0_b"],
        params["whh_l0_f"], params["whh_l0_b"], t_chunk=t_chunk)

    f1, r1 = bilstm_layer(
        [f0, r0],
        [params["wih_l1_f_top"], params["wih_l1_f_bot"]],
        [params["wih_l1_b_top"], params["wih_l1_b_bot"]],
        params["b_l1_f"], params["b_l1_b"],
        params["whh_l1_f"], params["whh_l1_b"], t_chunk=t_chunk)

    logits = fc2_head(f1.reshape(T * B, H), r1.reshape(T * B, H),
                      params["fc2_w_top"], params["fc2_w_bot"], params["fc2_b"])
    return jnp.transpose(logits.reshape(T, B, C), (1, 0, 2))


modern_blstm_2_forward = jax.jit(_forward, static_argnames=("t_chunk",))


# ------------------------- pure-JAX reference (check) -------------------------

def _reference_forward(params, x):
    """Pure-JAX reference with identical mixed precision (bf16 MXU operands,
    f32 accumulation, f32 gate math)."""
    B, T, Din = x.shape
    H = params["fc1_w"].shape[1]

    def mm(a, w):
        return jnp.dot(a.astype(MXU_DTYPE), w.astype(MXU_DTYPE),
                       preferred_element_type=jnp.float32)

    h0 = jnp.maximum(mm(x.reshape(B * T, Din), params["fc1_w"]) + params["fc1_b"], 0.0)
    h0 = h0.reshape(B, T, H)

    def run_dir(streams, w_list, w_hh, bias, reverse):
        def step(carry, xs_t):
            h, c = carry
            g = bias + mm(h, w_hh)
            for x_t, w in zip(xs_t, w_list):
                g = g + mm(x_t, w)
            i_g = jax.nn.sigmoid(g[:, :H])
            f_g = jax.nn.sigmoid(g[:, H:2 * H])
            g_g = jnp.tanh(g[:, 2 * H:3 * H])
            o_g = jax.nn.sigmoid(g[:, 3 * H:])
            c = f_g * c + i_g * g_g
            h = o_g * jnp.tanh(c)
            return (h, c), h

        xs = tuple(jnp.transpose(s, (1, 0, 2)) for s in streams)
        if reverse:
            xs = tuple(s[::-1] for s in xs)
        init = (jnp.zeros((B, H), jnp.float32), jnp.zeros((B, H), jnp.float32))
        _, hs = lax.scan(step, init, xs)
        if reverse:
            hs = hs[::-1]
        return jnp.transpose(hs, (1, 0, 2))

    f0 = run_dir([h0], [params["wih_l0_f"]], params["whh_l0_f"], params["b_l0_f"], False)
    r0 = run_dir([h0], [params["wih_l0_b"]], params["whh_l0_b"], params["b_l0_b"], True)
    f1 = run_dir([f0, r0], [params["wih_l1_f_top"], params["wih_l1_f_bot"]],
                 params["whh_l1_f"], params["b_l1_f"], False)
    r1 = run_dir([f0, r0], [params["wih_l1_b_top"], params["wih_l1_b_bot"]],
                 params["whh_l1_b"], params["b_l1_b"], True)

    out = (mm(f1.reshape(B * T, H), params["fc2_w_top"]) +
           mm(r1.reshape(B * T, H), params["fc2_w_bot"]) + params["fc2_b"])
    return out.reshape(B, T, -1)


# ----------------------------------- main --------------------------------------

if __name__ == "__main__":
    batch = 2
    seq = 16            # multiple of 8 -> exercises the 2-chunk streamed path
    input_size = 16
    hidden_size = 32
    num_classes = 5

    key = jax.random.PRNGKey(0)
    k_x, k_p = jax.random.split(key)
    x = jax.random.normal(k_x, (batch, seq, input_size), jnp.float32)
    params = init_params(k_p, input_size, hidden_size, num_classes)

    out = modern_blstm_2_forward(params, x, t_chunk=8)
    jax.block_until_ready(out)
    assert out.shape == (batch, seq, num_classes), out.shape
    assert bool(jnp.all(jnp.isfinite(out)))

    ref = jax.jit(_reference_forward)(params, x)
    max_err = float(jnp.max(jnp.abs(out - ref)))
    assert bool(jnp.allclose(out, ref, rtol=2e-2, atol=2e-2)), max_err

    print("KERNEL_OK")
</pallas_src>

<mosaic_0001>
module attributes {stable_mosaic.version = 11 : i64} {
  func.func @_fc1_kernel(%arg0: i32, %arg1: memref<32x16xf32, #tpu.memory_space<vmem>>, %arg2: memref<16x32xbf16, #tpu.memory_space<vmem>>, %arg3: memref<1x32xf32, #tpu.memory_space<vmem>>, %arg4: memref<32x32xbf16, #tpu.memory_space<vmem>>) attributes {dimension_semantics = [#tpu.dimension_semantics<parallel>], iteration_bounds = array<i64: 1>, scalar_prefetch = 0 : i64, scratch_operands = 0 : i64, tpu.core_type = #tpu.core_type<tc>, window_params = [{transform_indices = @transform_0, window_bounds = array<i64: 32, 16>}, {pipeline_mode = #tpu.pipeline_mode<synchronous>, transform_indices = @transform_1, window_bounds = array<i64: 16, 32>}, {pipeline_mode = #tpu.pipeline_mode<synchronous>, transform_indices = @transform_2, window_bounds = array<i64: 1, 32>}, {transform_indices = @transform_3, window_bounds = array<i64: 32, 32>}]} {
    %c0 = arith.constant 0 : index
    %c0_0 = arith.constant 0 : index
    %0 = vector.load %arg1[%c0, %c0_0] : memref<32x16xf32, #tpu.memory_space<vmem>>, vector<32x16xf32>
    %1 = arith.truncf %0 : vector<32x16xf32> to vector<32x16xbf16>
    %c0_1 = arith.constant 0 : index
    %c0_2 = arith.constant 0 : index
    %2 = vector.load %arg2[%c0_1, %c0_2] : memref<16x32xbf16, #tpu.memory_space<vmem>>, vector<16x32xbf16>
    %cst = arith.constant dense<0.000000e+00> : vector<32x32xf32>
    %3 = tpu.matmul %1, %2, %cst {dimension_numbers = #tpu.dot_dimension_numbers<[1], [0], [0], [1], [0, 0, 1, 1], [], []>} : vector<32x16xbf16>, vector<16x32xbf16>, vector<32x32xf32> -> vector<32x32xf32>
    %c0_3 = arith.constant 0 : index
    %c0_4 = arith.constant 0 : index
    %4 = vector.load %arg3[%c0_3, %c0_4] : memref<1x32xf32, #tpu.memory_space<vmem>>, vector<1x32xf32>
    %5 = vector.broadcast %4 : vector<1x32xf32> to vector<32x32xf32>
    %6 = arith.addf %3, %5 : vector<32x32xf32>
    %cst_5 = arith.constant 0.000000e+00 : f32
    %7 = vector.broadcast %cst_5 : f32 to vector<32x32xf32>
    %8 = arith.maximumf %6, %7 : vector<32x32xf32>
    %9 = arith.truncf %8 : vector<32x32xf32> to vector<32x32xbf16>
    %c0_6 = arith.constant 0 : index
    %c0_7 = arith.constant 0 : index
    %10 = vector.load %arg4[%c0_6, %c0_7] : memref<32x32xbf16, #tpu.memory_space<vmem>>, vector<32x32xbf16>
    tpu.vector_store %arg4[%c0_6, %c0_7], %9 {strides = array<i32>} : memref<32x32xbf16, #tpu.memory_space<vmem>>, vector<32x32xbf16>,
    return
  }
  func.func @transform_0(%arg0: i32) -> (i32, i32) {
    %c0_i32 = arith.constant 0 : i32
    %c0_i32_0 = arith.constant 0 : i32
    return %arg0, %c0_i32 : i32, i32
  }
  func.func @transform_1(%arg0: i32) -> (i32, i32) {
    %c0_i32 = arith.constant 0 : i32
    %c0_i32_0 = arith.constant 0 : i32
    %c0_i32_1 = arith.constant 0 : i32
    return %c0_i32, %c0_i32_0 : i32, i32
  }
  func.func @transform_2(%arg0: i32) -> (i32, i32) {
    %c0_i32 = arith.constant 0 : i32
    %c0_i32_0 = arith.constant 0 : i32
    %c0_i32_1 = arith.constant 0 : i32
    return %c0_i32, %c0_i32_0 : i32, i32
  }
  func.func @transform_3(%arg0: i32) -> (i32, i32) {
    %c0_i32 = arith.constant 0 : i32
    %c0_i32_0 = arith.constant 0 : i32
    return %arg0, %c0_i32 : i32, i32
  }
}

module attributes {stable_mosaic.version = 11 : i64} {
  func.func @kernel(%arg0: i32, %arg1: i32, %arg2: memref<8x2x32xbf16, #tpu.memory_space<vmem>>, %arg3: memref<8x2x32xbf16, #tpu.memory_space<vmem>>, %arg4: memref<32x128xbf16, #tpu.memory_space<vmem>>, %arg5: memref<32x128xbf16, #tpu.memory_space<vmem>>, %arg6: memref<1x128xf32, #tpu.memory_space<vmem>>, %arg7: memref<1x128xf32, #tpu.memory_space<vmem>>, %arg8: memref<32x128xbf16, #tpu.memory_space<vmem>>, %arg9: memref<32x128xbf16, #tpu.memory_space<vmem>>, %arg10: memref<8x2x32xbf16, #tpu.memory_space<vmem>>, %arg11: memref<8x2x32xbf16, #tpu.memory_space<vmem>>, %arg12: memref<16x128xf32, #tpu.memory_space<vmem>>, %arg13: memref<16x128xf32, #tpu.memory_space<vmem>>, %arg14: memref<2x32xf32, #tpu.memory_space<vmem>>, %arg15: memref<2x32xf32, #tpu.memory_space<vmem>>, %arg16: memref<2x32xf32, #tpu.memory_space<vmem>>, %arg17: memref<2x32xf32, #tpu.memory_space<vmem>>) attributes {dimension_semantics = [#tpu.dimension_semantics<parallel>, #tpu.dimension_semantics<arbitrary>], iteration_bounds = array<i64: 1, 2>, scalar_prefetch = 0 : i64, scratch_operands = 6 : i64, tpu.core_type = #tpu.core_type<tc>, window_params = [{transform_indices = @transform_0, window_bounds = array<i64: 8, 2, 32>}, {transform_indices = @transform_1, window_bounds = array<i64: 8, 2, 32>}, {pipeline_mode = #tpu.pipeline_mode<synchronous>, transform_indices = @transform_2, window_bounds = array<i64: 32, 128>}, {pipeline_mode = #tpu.pipeline_mode<synchronous>, transform_indices = @transform_3, window_bounds = array<i64: 32, 128>}, {pipeline_mode = #tpu.pipeline_mode<synchronous>, transform_indices = @transform_4, window_bounds = array<i64: 1, 128>}, {pipeline_mode = #tpu.pipeline_mode<synchronous>, transform_indices = @transform_5, window_bounds = array<i64: 1, 128>}, {pipeline_mode = #tpu.pipeline_mode<synchronous>, transform_indices = @transform_6, window_bounds = array<i64: 32, 128>}, {pipeline_mode = #tpu.pipeline_mode<synchronous>, transform_indices = @transform_7, window_bounds = array<i64: 32, 128>}, {transform_indices = @transform_8, window_bounds = array<i64: 8, 2, 32>}, {transform_indices = @transform_9, window_bounds = array<i64: 8, 2, 32>}]} {
    %c0_i32 = arith.constant 0 : i32
    %0 = arith.cmpi eq, %arg1, %c0_i32 : i32
    %1 = arith.extui %0 : i1 to i32
    %c0_i32_0 = arith.constant 0 : i32
    %2 = arith.cmpi ne, %1, %c0_i32_0 : i32
    scf.if %2 {
      %cst_172 = arith.constant 0.000000e+00 : f32
      %557 = vector.broadcast %cst_172 : f32 to vector<2x32xf32>
      %c0_173 = arith.constant 0 : index
      %c0_174 = arith.constant 0 : index
      %558 = vector.load %arg14[%c0_173, %c0_174] : memref<2x32xf32, #tpu.memory_space<vmem>>, vector<2x32xf32>
      tpu.vector_store %arg14[%c0_173, %c0_174], %557 {strides = array<i32>} : memref<2x32xf32, #tpu.memory_space<vmem>>, vector<2x32xf32>,
      %cst_175 = arith.constant 0.000000e+00 : f32
      %559 = vector.broadcast %cst_175 : f32 to vector<2x32xf32>
      %c0_176 = arith.constant 0 : index
      %c0_177 = arith.constant 0 : index
      %560 = vector.load %arg15[%c0_176, %c0_177] : memref<2x32xf32, #tpu.memory_space<vmem>>, vector<2x32xf32>
      tpu.vector_store %arg15[%c0_176, %c0_177], %559 {strides = array<i32>} : memref<2x32xf32, #tpu.memory_space<vmem>>, vector<2x32xf32>,
      %cst_178 = arith.constant 0.000000e+00 : f32
      %561 = vector.broadcast %cst_178 : f32 to vector<2x32xf32>
      %c0_179 = arith.constant 0 : index
      %c0_180 = arith.constant 0 : index
      %562 = vector.load %arg16[%c0_179, %c0_180] : memref<2x32xf32, #tpu.memory_space<vmem>>, vector<2x32xf32>
      tpu.vector_store %arg16[%c0_179, %c0_180], %561 {strides = array<i32>} : memref<2x32xf32, #tpu.memory_space<vmem>>, vector<2x32xf32>,
      %cst_181 = arith.constant 0.000000e+00 : f32
      %563 = vector.broadcast %cst_181 : f32 to vector<2x32xf32>
      %c0_182 = arith.constant 0 : index
      %c0_183 = arith.constant 0 : index
      %564 = vector.load %arg17[%c0_182, %c0_183] : memref<2x32xf32, #tpu.memory_space<vmem>>, vector<2x32xf32>
      tpu.vector_store %arg17[%c0_182, %c0_183], %563 {strides = array<i32>} : memref<2x32xf32, #tpu.memory_space<vmem>>, vector<2x32xf32>,
    } else {
    }
    %c0 = arith.constant 0 : index
    %c0_1 = arith.constant 0 : index
    %c0_2 = arith.constant 0 : index
    %3 = vector.load %arg2[%c0, %c0_1, %c0_2] : memref<8x2x32xbf16, #tpu.memory_space<vmem>>, vector<8x2x32xbf16>
    %4 = vector.shape_cast %3 : vector<8x2x32xbf16> to vector<16x32xbf16>
    %c0_3 = arith.constant 0 : index
    %c0_4 = arith.constant 0 : index
    %5 = vector.load %arg4[%c0_3, %c0_4] : memref<32x128xbf16, #tpu.memory_space<vmem>>, vector<32x128xbf16>
    %cst = arith.constant dense<0.000000e+00> : vector<16x128xf32>
    %6 = tpu.matmul %4, %5, %cst {dimension_numbers = #tpu.dot_dimension_numbers<[1], [0], [0], [1], [0, 0, 1, 1], [], []>} : vector<16x32xbf16>, vector<32x128xbf16>, vector<16x128xf32> -> vector<16x128xf32>
    %c0_5 = arith.constant 0 : index
    %c0_6 = arith.constant 0 : index
    %7 = vector.load %arg6[%c0_5, %c0_6] : memref<1x128xf32, #tpu.memory_space<vmem>>, vector<1x128xf32>
    %8 = vector.broadcast %7 : vector<1x128xf32> to vector<16x128xf32>
    %9 = arith.addf %6, %8 : vector<16x128xf32>
    %c0_7 = arith.constant 0 : index
    %c0_8 = arith.constant 0 : index
    %10 = vector.load %arg12[%c0_7, %c0_8] : memref<16x128xf32, #tpu.memory_space<vmem>>, vector<16x128xf32>
    tpu.vector_store %arg12[%c0_7, %c0_8], %9 {strides = array<i32>} : memref<16x128xf32, #tpu.memory_space<vmem>>, vector<16x128xf32>,
    %c0_9 = arith.constant 0 : index
    %c0_10 = arith.constant 0 : index
    %c0_11 = arith.constant 0 : index
    %11 = vector.load %arg3[%c0_9, %c0_10, %c0_11] : memref<8x2x32xbf16, #tpu.memory_space<vmem>>, vector<8x2x32xbf16>
    %12 = vector.shape_cast %11 : vector<8x2x32xbf16> to vector<16x32xbf16>
    %c0_12 = arith.constant 0 : index
    %c0_13 = arith.constant 0 : index
    %13 = vector.load %arg5[%c0_12, %c0_13] : memref<32x128xbf16, #tpu.memory_space<vmem>>, vector<32x128xbf16>
    %cst_14 = arith.constant dense<0.000000e+00> : vector<16x128xf32>
    %14 = tpu.matmul %12, %13, %cst_14 {dimension_numbers = #tpu.dot_dimension_numbers<[1], [0], [0], [1], [0, 0, 1, 1], [], []>} : vector<16x32xbf16>, vector<32x128xbf16>, vector<16x128xf32> -> vector<16x128xf32>
    %c0_15 = arith.constant 0 : index
    %c0_16 = arith.constant 0 : index
    %15 = vector.load %arg7[%c0_15, %c0_16] : memref<1x128xf32, #tpu.memory_space<vmem>>, vector<1x128xf32>
    %16 = vector.broadcast %15 : vector<1x128xf32> to vector<16x128xf32>
    %17 = arith.addf %14, %16 : vector<16x128xf32>
    %c0_17 = arith.constant 0 : index
    %c0_18 = arith.constant 0 : index
    %18 = vector.load %arg13[%c0_17, %c0_18] : memref<16x128xf32, #tpu.memory_space<vmem>>, vector<16x128xf32>
    tpu.vector_store %arg13[%c0_17, %c0_18], %17 {strides = array<i32>} : memref<16x128xf32, #tpu.memory_space<vmem>>, vector<16x128xf32>,
    %c0_19 = arith.constant 0 : index
    %c0_20 = arith.constant 0 : index
    %19 = vector.load %arg8[%c0_19, %c0_20] : memref<32x128xbf16, #tpu.memory_space<vmem>>, vector<32x128xbf16>
    %c0_21 = arith.constant 0 : index
    %c0_22 = arith.constant 0 : index
    %20 = vector.load %arg9[%c0_21, %c0_22] : memref<32x128xbf16, #tpu.memory_space<vmem>>, vector<32x128xbf16>
    %c0_23 = arith.constant 0 : index
    %c0_24 = arith.constant 0 : index
    %21 = vector.load %arg14[%c0_23, %c0_24] : memref<2x32xf32, #tpu.memory_space<vmem>>, vector<2x32xf32>
    %c0_25 = arith.constant 0 : index
    %c0_26 = arith.constant 0 : index
    %22 = vector.load %arg15[%c0_25, %c0_26] : memref<2x32xf32, #tpu.memory_space<vmem>>, vector<2x32xf32>
    %c0_27 = arith.constant 0 : index
    %c0_28 = arith.constant 0 : index
    %23 = vector.load %arg16[%c0_27, %c0_28] : memref<2x32xf32, #tpu.memory_space<vmem>>, vector<2x32xf32>
    %c0_29 = arith.constant 0 : index
    %c0_30 = arith.constant 0 : index
    %24 = vector.load %arg17[%c0_29, %c0_30] : memref<2x32xf32, #tpu.memory_space<vmem>>, vector<2x32xf32>
    %c0_31 = arith.constant 0 : index
    %c0_32 = arith.constant 0 : index
    %25 = vector.load %arg12[%c0_31, %c0_32] : memref<16x128xf32, #tpu.memory_space<vmem>>, vector<2x128xf32>
    %26 = arith.truncf %21 : vector<2x32xf32> to vector<2x32xbf16>
    %cst_33 = arith.constant dense<0.000000e+00> : vector<2x128xf32>
    %27 = tpu.matmul %26, %19, %cst_33 {dimension_numbers = #tpu.dot_dimension_numbers<[1], [0], [0], [1], [0, 0, 1, 1], [], []>} : vector<2x32xbf16>, vector<32x128xbf16>, vector<2x128xf32> -> vector<2x128xf32>
    %28 = arith.addf %25, %27 : vector<2x128xf32>
    %c14 = arith.constant 14 : index
    %c0_34 = arith.constant 0 : index
    %29 = vector.load %arg13[%c14, %c0_34] : memref<16x128xf32, #tpu.memory_space<vmem>>, vector<2x128xf32>
    %30 = arith.truncf %23 : vector<2x32xf32> to vector<2x32xbf16>
    %cst_35 = arith.constant dense<0.000000e+00> : vector<2x128xf32>
    %31 = tpu.matmul %30, %20, %cst_35 {dimension_numbers = #tpu.dot_dimension_numbers<[1], [0], [0], [1], [0, 0, 1, 1], [], []>} : vector<2x32xbf16>, vector<32x128xbf16>, vector<2x128xf32> -> vector<2x128xf32>
    %32 = arith.addf %29, %31 : vector<2x128xf32>
    %33 = vector.extract_strided_slice %28 {offsets = [0, 0], sizes = [2, 32], strides = [1, 1]} : vector<2x128xf32> to vector<2x32xf32>
    %34 = arith.negf %33 : vector<2x32xf32>
    %35 = math.exp %34 : vector<2x32xf32>
    %cst_36 = arith.constant 1.000000e+00 : f32
    %36 = vector.broadcast %cst_36 : f32 to vector<2x32xf32>
    %37 = arith.addf %36, %35 : vector<2x32xf32>
    %38 = arith.divf %36, %37 : vector<2x32xf32>
    %39 = vector.extract_strided_slice %28 {offsets = [0, 32], sizes = [2, 32], strides = [1, 1]} : vector<2x128xf32> to vector<2x32xf32>
    %40 = arith.negf %39 : vector<2x32xf32>
    %41 = math.exp %40 : vector<2x32xf32>
    %cst_37 = arith.constant 1.000000e+00 : f32
    %42 = vector.broadcast %cst_37 : f32 to vector<2x32xf32>
    %43 = arith.addf %42, %41 : vector<2x32xf32>
    %44 = arith.divf %42, %43 : vector<2x32xf32>
    %45 = vector.extract_strided_slice %28 {offsets = [0, 64], sizes = [2, 32], strides = [1, 1]} : vector<2x128xf32> to vector<2x32xf32>
    %46 = math.tanh %45 : vector<2x32xf32>
    %47 = vector.extract_strided_slice %28 {offsets = [0, 96], sizes = [2, 32], strides = [1, 1]} : vector<2x128xf32> to vector<2x32xf32>
    %48 = arith.negf %47 : vector<2x32xf32>
    %49 = math.exp %48 : vector<2x32xf32>
    %cst_38 = arith.constant 1.000000e+00 : f32
    %50 = vector.broadcast %cst_38 : f32 to vector<2x32xf32>
    %51 = arith.addf %50, %49 : vector<2x32xf32>
    %52 = arith.divf %50, %51 : vector<2x32xf32>
    %53 = arith.mulf %44, %22 : vector<2x32xf32>
    %54 = arith.mulf %38, %46 : vector<2x32xf32>
    %55 = arith.addf %53, %54 : vector<2x32xf32>
    %56 = math.tanh %55 : vector<2x32xf32>
    %57 = arith.mulf %52, %56 : vector<2x32xf32>
    %58 = vector.extract_strided_slice %32 {offsets = [0, 0], sizes = [2, 32], strides = [1, 1]} : vector<2x128xf32> to vector<2x32xf32>
    %59 = arith.negf %58 : vector<2x32xf32>
    %60 = math.exp %59 : vector<2x32xf32>
    %cst_39 = arith.constant 1.000000e+00 : f32
    %61 = vector.broadcast %cst_39 : f32 to vector<2x32xf32>
    %62 = arith.addf %61, %60 : vector<2x32xf32>
    %63 = arith.divf %61, %62 : vector<2x32xf32>
    %64 = vector.extract_strided_slice %32 {offsets = [0, 32], sizes = [2, 32], strides = [1, 1]} : vector<2x128xf32> to vector<2x32xf32>
    %65 = arith.negf %64 : vector<2x32xf32>
    %66 = math.exp %65 : vector<2x32xf32>
    %cst_40 = arith.constant 1.000000e+00 : f32
    %67 = vector.broadcast %cst_40 : f32 to vector<2x32xf32>
    %68 = arith.addf %67, %66 : vector<2x32xf32>
    %69 = arith.divf %67, %68 : vector<2x32xf32>
    %70 = vector.extract_strided_slice %32 {offsets = [0, 64], sizes = [2, 32], strides = [1, 1]} : vector<2x128xf32> to vector<2x32xf32>
    %71 = math.tanh %70 : vector<2x32xf32>
    %72 = vector.extract_strided_slice %32 {offsets = [0, 96], sizes = [2, 32], strides = [1, 1]} : vector<2x128xf32> to vector<2x32xf32>
    %73 = arith.negf %72 : vector<2x32xf32>
    %74 = math.exp %73 : vector<2x32xf32>
    %cst_41 = arith.constant 1.000000e+00 : f32
    %75 = vector.broadcast %cst_41 : f32 to vector<2x32xf32>
    %76 = arith.addf %75, %74 : vector<2x32xf32>
    %77 = arith.divf %75, %76 : vector<2x32xf32>
    %78 = arith.mulf %69, %24 : vector<2x32xf32>
    %79 = arith.mulf %63, %71 : vector<2x32xf32>
    %80 = arith.addf %78, %79 : vector<2x32xf32>
    %81 = math.tanh %80 : vector<2x32xf32>
    %82 = arith.mulf %77, %81 : vector<2x32xf32>
    %83 = arith.truncf %57 : vector<2x32xf32> to vector<2x32xbf16>
    %c0_42 = arith.constant 0 : index
    %c0_43 = arith.constant 0 : index
    %c0_44 = arith.constant 0 : index
    %84 = vector.load %arg10[%c0_42, %c0_43, %c0_44] : memref<8x2x32xbf16, #tpu.memory_space<vmem>>, vector<1x2x32xbf16>
    %85 = vector.shape_cast %84 : vector<1x2x32xbf16> to vector<2x32xbf16>
    %86 = vector.shape_cast %83 : vector<2x32xbf16> to vector<1x2x32xbf16>
    tpu.vector_store %arg10[%c0_42, %c0_43, %c0_44], %86 {strides = array<i32>} : memref<8x2x32xbf16, #tpu.memory_space<vmem>>, vector<1x2x32xbf16>,
    %87 = arith.truncf %82 : vector<2x32xf32> to vector<2x32xbf16>
    %c7 = arith.constant 7 : index
    %c0_45 = arith.constant 0 : index
    %c0_46 = arith.constant 0 : index
    %88 = vector.load %arg11[%c7, %c0_45, %c0_46] : memref<8x2x32xbf16, #tpu.memory_space<vmem>>, vector<1x2x32xbf16>
    %89 = vector.shape_cast %88 : vector<1x2x32xbf16> to vector<2x32xbf16>
    %90 = vector.shape_cast %87 : vector<2x32xbf16> to vector<1x2x32xbf16>
    tpu.vector_store %arg11[%c7, %c0_45, %c0_46], %90 {strides = array<i32>} : memref<8x2x32xbf16, #tpu.memory_space<vmem>>, vector<1x2x32xbf16>,
    %c2 = arith.constant 2 : index
    %c0_47 = arith.constant 0 : index
    %91 = vector.load %arg12[%c2, %c0_47] : memref<16x128xf32, #tpu.memory_space<vmem>>, vector<2x128xf32>
    %92 = arith.truncf %57 : vector<2x32xf32> to vector<2x32xbf16>
    %cst_48 = arith.constant dense<0.000000e+00> : vector<2x128xf32>
    %93 = tpu.matmul %92, %19, %cst_48 {dimension_numbers = #tpu.dot_dimension_numbers<[1], [0], [0], [1], [0, 0, 1, 1], [], []>} : vector<2x32xbf16>, vector<32x128xbf16>, vector<2x128xf32> -> vector<2x128xf32>
    %94 = arith.addf %91, %93 : vector<2x128xf32>
    %c12 = arith.constant 12 : index
    %c0_49 = arith.constant 0 : index
    %95 = vector.load %arg13[%c12, %c0_49] : memref<16x128xf32, #tpu.memory_space<vmem>>, vector<2x128xf32>
    %96 = arith.truncf %82 : vector<2x32xf32> to vector<2x32xbf16>
    %cst_50 = arith.constant dense<0.000000e+00> : vector<2x128xf32>
    %97 = tpu.matmul %96, %20, %cst_50 {dimension_numbers = #tpu.dot_dimension_numbers<[1], [0], [0], [1], [0, 0, 1, 1], [], []>} : vector<2x32xbf16>, vector<32x128xbf16>, vector<2x128xf32> -> vector<2x128xf32>
    %98 = arith.addf %95, %97 : vector<2x128xf32>
    %99 = vector.extract_strided_slice %94 {offsets = [0, 0], sizes = [2, 32], strides = [1, 1]} : vector<2x128xf32> to vector<2x32xf32>
    %100 = arith.negf %99 : vector<2x32xf32>
    %101 = math.exp %100 : vector<2x32xf32>
    %cst_51 = arith.constant 1.000000e+00 : f32
    %102 = vector.broadcast %cst_51 : f32 to vector<2x32xf32>
    %103 = arith.addf %102, %101 : vector<2x32xf32>
    %104 = arith.divf %102, %103 : vector<2x32xf32>
    %105 = vector.extract_strided_slice %94 {offsets = [0, 32], sizes = [2, 32], strides = [1, 1]} : vector<2x128xf32> to vector<2x32xf32>
    %106 = arith.negf %105 : vector<2x32xf32>
    %107 = math.exp %106 : vector<2x32xf32>
    %cst_52 = arith.constant 1.000000e+00 : f32
    %108 = vector.broadcast %cst_52 : f32 to vector<2x32xf32>
    %109 = arith.addf %108, %107 : vector<2x32xf32>
    %110 = arith.divf %108, %109 : vector<2x32xf32>
    %111 = vector.extract_strided_slice %94 {offsets = [0, 64], sizes = [2, 32], strides = [1, 1]} : vector<2x128xf32> to vector<2x32xf32>
    %112 = math.tanh %111 : vector<2x32xf32>
    %113 = vector.extract_strided_slice %94 {offsets = [0, 96], sizes = [2, 32], strides = [1, 1]} : vector<2x128xf32> to vector<2x32xf32>
    %114 = arith.negf %113 : vector<2x32xf32>
    %115 = math.exp %114 : vector<2x32xf32>
    %cst_53 = arith.constant 1.000000e+00 : f32
    %116 = vector.broadcast %cst_53 : f32 to vector<2x32xf32>
    %117 = arith.addf %116, %115 : vector<2x32xf32>
    %118 = arith.divf %116, %117 : vector<2x32xf32>
    %119 = arith.mulf %110, %55 : vector<2x32xf32>
    %120 = arith.mulf %104, %112 : vector<2x32xf32>
    %121 = arith.addf %119, %120 : vector<2x32xf32>
    %122 = math.tanh %121 : vector<2x32xf32>
    %123 = arith.mulf %118, %122 : vector<2x32xf32>
    %124 = vector.extract_strided_slice %98 {offsets = [0, 0], sizes = [2, 32], strides = [1, 1]} : vector<2x128xf32> to vector<2x32xf32>
    %125 = arith.negf %124 : vector<2x32xf32>
    %126 = math.exp %125 : vector<2x32xf32>
    %cst_54 = arith.constant 1.000000e+00 : f32
    %127 = vector.broadcast %cst_54 : f32 to vector<2x32xf32>
    %128 = arith.addf %127, %126 : vector<2x32xf32>
    %129 = arith.divf %127, %128 : vector<2x32xf32>
    %130 = vector.extract_strided_slice %98 {offsets = [0, 32], sizes = [2, 32], strides = [1, 1]} : vector<2x128xf32> to vector<2x32xf32>
    %131 = arith.negf %130 : vector<2x32xf32>
    %132 = math.exp %131 : vector<2x32xf32>
    %cst_55 = arith.constant 1.000000e+00 : f32
    %133 = vector.broadcast %cst_55 : f32 to vector<2x32xf32>
    %134 = arith.addf %133, %132 : vector<2x32xf32>
    %135 = arith.divf %133, %134 : vector<2x32xf32>
    %136 = vector.extract_strided_slice %98 {offsets = [0, 64], sizes = [2, 32], strides = [1, 1]} : vector<2x128xf32> to vector<2x32xf32>
    %137 = math.tanh %136 : vector<2x32xf32>
    %138 = vector.extract_strided_slice %98 {offsets = [0, 96], sizes = [2, 32], strides = [1, 1]} : vector<2x128xf32> to vector<2x32xf32>
    %139 = arith.negf %138 : vector<2x32xf32>
    %140 = math.exp %139 : vector<2x32xf32>
    %cst_56 = arith.constant 1.000000e+00 : f32
    %141 = vector.broadcast %cst_56 : f32 to vector<2x32xf32>
    %142 = arith.addf %141, %140 : vector<2x32xf32>
    %143 = arith.divf %141, %142 : vector<2x32xf32>
    %144 = arith.mulf %135, %80 : vector<2x32xf32>
    %145 = arith.mulf %129, %137 : vector<2x32xf32>
    %146 = arith.addf %144, %145 : vector<2x32xf32>
    %147 = math.tanh %146 : vector<2x32xf32>
    %148 = arith.mulf %143, %147 : vector<2x32xf32>
    %149 = arith.truncf %123 : vector<2x32xf32> to vector<2x32xbf16>
    %c1 = arith.constant 1 : index
    %c0_57 = arith.constant 0 : index
    %c0_58 = arith.constant 0 : index
    %150 = vector.load %arg10[%c1, %c0_57, %c0_58] : memref<8x2x32xbf16, #tpu.memory_space<vmem>>, vector<1x2x32xbf16>
    %151 = vector.shape_cast %150 : vector<1x2x32xbf16> to vector<2x32xbf16>
    %152 = vector.shape_cast %149 : vector<2x32xbf16> to vector<1x2x32xbf16>
    tpu.vector_store %arg10[%c1, %c0_57, %c0_58], %152 {strides = array<i32>} : memref<8x2x32xbf16, #tpu.memory_space<vmem>>, vector<1x2x32xbf16>,
    %153 = arith.truncf %148 : vector<2x32xf32> to vector<2x32xbf16>
    %c6 = arith.constant 6 : index
    %c0_59 = arith.constant 0 : index
    %c0_60 = arith.constant 0 : index
    %154 = vector.load %arg11[%c6, %c0_59, %c0_60] : memref<8x2x32xbf16, #tpu.memory_space<vmem>>, vector<1x2x32xbf16>
    %155 = vector.shape_cast %154 : vector<1x2x32xbf16> to vector<2x32xbf16>
    %156 = vector.shape_cast %153 : vector<2x32xbf16> to vector<1x2x32xbf16>
    tpu.vector_store %arg11[%c6, %c0_59, %c0_60], %156 {strides = array<i32>} : memref<8x2x32xbf16, #tpu.memory_space<vmem>>, vector<1x2x32xbf16>,
    %c4 = arith.constant 4 : index
    %c0_61 = arith.constant 0 : index
    %157 = vector.load %arg12[%c4, %c0_61] : memref<16x128xf32, #tpu.memory_space<vmem>>, vector<2x128xf32>
    %158 = arith.truncf %123 : vector<2x32xf32> to vector<2x32xbf16>
    %cst_62 = arith.constant dense<0.000000e+00> : vector<2x128xf32>
    %159 = tpu.matmul %158, %19, %cst_62 {dimension_numbers = #tpu.dot_dimension_numbers<[1], [0], [0], [1], [0, 0, 1, 1], [], []>} : vector<2x32xbf16>, vector<32x128xbf16>, vector<2x128xf32> -> vector<2x128xf32>
    %160 = arith.addf %157, %159 : vector<2x128xf32>
    %c10 = arith.constant 10 : index
    %c0_63 = arith.constant 0 : index
    %161 = vector.load %arg13[%c10, %c0_63] : memref<16x128xf32, #tpu.memory_space<vmem>>, vector<2x128xf32>
    %162 = arith.truncf %148 : vector<2x32xf32> to vector<2x32xbf16>
    %cst_64 = arith.constant dense<0.000000e+00> : vector<2x128xf32>
    %163 = tpu.matmul %162, %20, %cst_64 {dimension_numbers = #tpu.dot_dimension_numbers<[1], [0], [0], [1], [0, 0, 1, 1], [], []>} : vector<2x32xbf16>, vector<32x128xbf16>, vector<2x128xf32> -> vector<2x128xf32>
    %164 = arith.addf %161, %163 : vector<2x128xf32>
    %165 = vector.extract_strided_slice %160 {offsets = [0, 0], sizes = [2, 32], strides = [1, 1]} : vector<2x128xf32> to vector<2x32xf32>
    %166 = arith.negf %165 : vector<2x32xf32>
    %167 = math.exp %166 : vector<2x32xf32>
    %cst_65 = arith.constant 1.000000e+00 : f32
    %168 = vector.broadcast %cst_65 : f32 to vector<2x32xf32>
    %169 = arith.addf %168, %167 : vector<2x32xf32>
    %170 = arith.divf %168, %169 : vector<2x32xf32>
    %171 = vector.extract_strided_slice %160 {offsets = [0, 32], sizes = [2, 32], strides = [1, 1]} : vector<2x128xf32> to vector<2x32xf32>
    %172 = arith.negf %171 : vector<2x32xf32>
    %173 = math.exp %172 : vector<2x32xf32>
    %cst_66 = arith.constant 1.000000e+00 : f32
    %174 = vector.broadcast %cst_66 : f32 to vector<2x32xf32>
    %175 = arith.addf %174, %173 : vector<2x32xf32>
    %176 = arith.divf %174, %175 : vector<2x32xf32>
    %177 = vector.extract_strided_slice %160 {offsets = [0, 64], sizes = [2, 32], strides = [1, 1]} : vector<2x128xf32> to vector<2x32xf32>
    %178 = math.tanh %177 : vector<2x32xf32>
    %179 = vector.extract_strided_slice %160 {offsets = [0, 96], sizes = [2, 32], strides = [1, 1]} : vector<2x128xf32> to vector<2x32xf32>
    %180 = arith.negf %179 : vector<2x32xf32>
    %181 = math.exp %180 : vector<2x32xf32>
    %cst_67 = arith.constant 1.000000e+00 : f32
    %182 = vector.broadcast %cst_67 : f32 to vector<2x32xf32>
    %183 = arith.addf %182, %181 : vector<2x32xf32>
    %184 = arith.divf %182, %183 : vector<2x32xf32>
    %185 = arith.mulf %176, %121 : vector<2x32xf32>
    %186 = arith.mulf %170, %178 : vector<2x32xf32>
    %187 = arith.addf %185, %186 : vector<2x32xf32>
    %188 = math.tanh %187 : vector<2x32xf32>
    %189 = arith.mulf %184, %188 : vector<2x32xf32>
    %190 = vector.extract_strided_slice %164 {offsets = [0, 0], sizes = [2, 32], strides = [1, 1]} : vector<2x128xf32> to vector<2x32xf32>
    %191 = arith.negf %190 : vector<2x32xf32>
    %192 = math.exp %191 : vector<2x32xf32>
    %cst_68 = arith.constant 1.000000e+00 : f32
    %193 = vector.broadcast %cst_68 : f32 to vector<2x32xf32>
    %194 = arith.addf %193, %192 : vector<2x32xf32>
    %195 = arith.divf %193, %194 : vector<2x32xf32>
    %196 = vector.extract_strided_slice %164 {offsets = [0, 32], sizes = [2, 32], strides = [1, 1]} : vector<2x128xf32> to vector<2x32xf32>
    %197 = arith.negf %196 : vector<2x32xf32>
    %198 = math.exp %197 : vector<2x32xf32>
    %cst_69 = arith.constant 1.000000e+00 : f32
    %199 = vector.broadcast %cst_69 : f32 to vector<2x32xf32>
    %200 = arith.addf %199, %198 : vector<2x32xf32>
    %201 = arith.divf %199, %200 : vector<2x32xf32>
    %202 = vector.extract_strided_slice %164 {offsets = [0, 64], sizes = [2, 32], strides = [1, 1]} : vector<2x128xf32> to vector<2x32xf32>
    %203 = math.tanh %202 : vector<2x32xf32>
    %204 = vector.extract_strided_slice %164 {offsets = [0, 96], sizes = [2, 32], strides = [1, 1]} : vector<2x128xf32> to vector<2x32xf32>
    %205 = arith.negf %204 : vector<2x32xf32>
    %206 = math.exp %205 : vector<2x32xf32>
    %cst_70 = arith.constant 1.000000e+00 : f32
    %207 = vector.broadcast %cst_70 : f32 to vector<2x32xf32>
    %208 = arith.addf %207, %206 : vector<2x32xf32>
    %209 = arith.divf %207, %208 : vector<2x32xf32>
    %210 = arith.mulf %201, %146 : vector<2x32xf32>
    %211 = arith.mulf %195, %203 : vector<2x32xf32>
    %212 = arith.addf %210, %211 : vector<2x32xf32>
    %213 = math.tanh %212 : vector<2x32xf32>
    %214 = arith.mulf %209, %213 : vector<2x32xf32>
    %215 = arith.truncf %189 : vector<2x32xf32> to vector<2x32xbf16>
    %c2_71 = arith.constant 2 : index
    %c0_72 = arith.constant 0 : index
    %c0_73 = arith.constant 0 : index
    %216 = vector.load %arg10[%c2_71, %c0_72, %c0_73] : memref<8x2x32xbf16, #tpu.memory_space<vmem>>, vector<1x2x32xbf16>
    %217 = vector.shape_cast %216 : vector<1x2x32xbf16> to vector<2x32xbf16>
    %218 = vector.shape_cast %215 : vector<2x32xbf16> to vector<1x2x32xbf16>
    tpu.vector_store %arg10[%c2_71, %c0_72, %c0_73], %218 {strides = array<i32>} : memref<8x2x32xbf16, #tpu.memory_space<vmem>>, vector<1x2x32xbf16>,
    %219 = arith.truncf %214 : vector<2x32xf32> to vector<2x32xbf16>
    %c5 = arith.constant 5 : index
    %c0_74 = arith.constant 0 : index
    %c0_75 = arith.constant 0 : index
    %220 = vector.load %arg11[%c5, %c0_74, %c0_75] : memref<8x2x32xbf16, #tpu.memory_space<vmem>>, vector<1x2x32xbf16>
    %221 = vector.shape_cast %220 : vector<1x2x32xbf16> to vector<2x32xbf16>
    %222 = vector.shape_cast %219 : vector<2x32xbf16> to vector<1x2x32xbf16>
    tpu.vector_store %arg11[%c5, %c0_74, %c0_75], %222 {strides = array<i32>} : memref<8x2x32xbf16, #tpu.memory_space<vmem>>, vector<1x2x32xbf16>,
    %c6_76 = arith.constant 6 : index
    %c0_77 = arith.constant 0 : index
    %223 = vector.load %arg12[%c6_76, %c0_77] : memref<16x128xf32, #tpu.memory_space<vmem>>, vector<2x128xf32>
    %224 = arith.truncf %189 : vector<2x32xf32> to vector<2x32xbf16>
    %cst_78 = arith.constant dense<0.000000e+00> : vector<2x128xf32>
    %225 = tpu.matmul %224, %19, %cst_78 {dimension_numbers = #tpu.dot_dimension_numbers<[1], [0], [0], [1], [0, 0, 1, 1], [], []>} : vector<2x32xbf16>, vector<32x128xbf16>, vector<2x128xf32> -> vector<2x128xf32>
    %226 = arith.addf %223, %225 : vector<2x128xf32>
    %c8 = arith.constant 8 : index
    %c0_79 = arith.constant 0 : index
    %227 = vector.load %arg13[%c8, %c0_79] : memref<16x128xf32, #tpu.memory_space<vmem>>, vector<2x128xf32>
    %228 = arith.truncf %214 : vector<2x32xf32> to vector<2x32xbf16>
    %cst_80 = arith.constant dense<0.000000e+00> : vector<2x128xf32>
    %229 = tpu.matmul %228, %20, %cst_80 {dimension_numbers = #tpu.dot_dimension_numbers<[1], [0], [0], [1], [0, 0, 1, 1], [], []>} : vector<2x32xbf16>, vector<32x128xbf16>, vector<2x128xf32> -> vector<2x128xf32>
    %230 = arith.addf %227, %229 : vector<2x128xf32>
    %231 = vector.extract_strided_slice %226 {offsets = [0, 0], sizes = [2, 32], strides = [1, 1]} : vector<2x128xf32> to vector<2x32xf32>
    %232 = arith.negf %231 : vector<2x32xf32>
    %233 = math.exp %232 : vector<2x32xf32>
    %cst_81 = arith.constant 1.000000e+00 : f32
    %234 = vector.broadcast %cst_81 : f32 to vector<2x32xf32>
    %235 = arith.addf %234, %233 : vector<2x32xf32>
    %236 = arith.divf %234, %235 : vector<2x32xf32>
    %237 = vector.extract_strided_slice %226 {offsets = [0, 32], sizes = [2, 32], strides = [1, 1]} : vector<2x128xf32> to vector<2x32xf32>
    %238 = arith.negf %237 : vector<2x32xf32>
    %239 = math.exp %238 : vector<2x32xf32>
    %cst_82 = arith.constant 1.000000e+00 : f32
    %240 = vector.broadcast %cst_82 : f32 to vector<2x32xf32>
    %241 = arith.addf %240, %239 : vector<2x32xf32>
    %242 = arith.divf %240, %241 : vector<2x32xf32>
    %243 = vector.extract_strided_slice %226 {offsets = [0, 64], sizes = [2, 32], strides = [1, 1]} : vector<2x128xf32> to vector<2x32xf32>
    %244 = math.tanh %243 : vector<2x32xf32>
    %245 = vector.extract_strided_slice %226 {offsets = [0, 96], sizes = [2, 32], strides = [1, 1]} : vector<2x128xf32> to vector<2x32xf32>
    %246 = arith.negf %245 : vector<2x32xf32>
    %247 = math.exp %246 : vector<2x32xf32>
    %cst_83 = arith.constant 1.000000e+00 : f32
    %248 = vector.broadcast %cst_83 : f32 to vector<2x32xf32>
    %249 = arith.addf %248, %247 : vector<2x32xf32>
    %250 = arith.divf %248, %249 : vector<2x32xf32>
    %251 = arith.mulf %242, %187 : vector<2x32xf32>
    %252 = arith.mulf %236, %244 : vector<2x32xf32>
    %253 = arith.addf %251, %252 : vector<2x32xf32>
    %254 = math.tanh %253 : vector<2x32xf32>
    %255 = arith.mulf %250, %254 : vector<2x32xf32>
    %256 = vector.extract_strided_slice %230 {offsets = [0, 0], sizes = [2, 32], strides = [1, 1]} : vector<2x128xf32> to vector<2x32xf32>
    %257 = arith.negf %256 : vector<2x32xf32>
    %258 = math.exp %257 : vector<2x32xf32>
    %cst_84 = arith.constant 1.000000e+00 : f32
    %259 = vector.broadcast %cst_84 : f32 to vector<2x32xf32>
    %260 = arith.addf %259, %258 : vector<2x32xf32>
    %261 = arith.divf %259, %260 : vector<2x32xf32>
    %262 = vector.extract_strided_slice %230 {offsets = [0, 32], sizes = [2, 32], strides = [1, 1]} : vector<2x128xf32> to vector<2x32xf32>
    %263 = arith.negf %262 : vector<2x32xf32>
    %264 = math.exp %263 : vector<2x32xf32>
    %cst_85 = arith.constant 1.000000e+00 : f32
    %265 = vector.broadcast %cst_85 : f32 to vector<2x32xf32>
    %266 = arith.addf %265, %264 : vector<2x32xf32>
    %267 = arith.divf %265, %266 : vector<2x32xf32>
    %268 = vector.extract_strided_slice %230 {offsets = [0, 64], sizes = [2, 32], strides = [1, 1]} : vector<2x128xf32> to vector<2x32xf32>
    %269 = math.tanh %268 : vector<2x32xf32>
    %270 = vector.extract_strided_slice %230 {offsets = [0, 96], sizes = [2, 32], strides = [1, 1]} : vector<2x128xf32> to vector<2x32xf32>
    %271 = arith.negf %270 : vector<2x32xf32>
    %272 = math.exp %271 : vector<2x32xf32>
    %cst_86 = arith.constant 1.000000e+00 : f32
    %273 = vector.broadcast %cst_86 : f32 to vector<2x32xf32>
    %274 = arith.addf %273, %272 : vector<2x32xf32>
    %275 = arith.divf %273, %274 : vector<2x32xf32>
    %276 = arith.mulf %267, %212 : vector<2x32xf32>
    %277 = arith.mulf %261, %269 : vector<2x32xf32>
    %278 = arith.addf %276, %277 : vector<2x32xf32>
    %279 = math.tanh %278 : vector<2x32xf32>
    %280 = arith.mulf %275, %279 : vector<2x32xf32>
    %281 = arith.truncf %255 : vector<2x32xf32> to vector<2x32xbf16>
    %c3 = arith.constant 3 : index
    %c0_87 = arith.constant 0 : index
    %c0_88 = arith.constant 0 : index
    %282 = vector.load %arg10[%c3, %c0_87, %c0_88] : memref<8x2x32xbf16, #tpu.memory_space<vmem>>, vector<1x2x32xbf16>
    %283 = vector.shape_cast %282 : vector<1x2x32xbf16> to vector<2x32xbf16>
    %284 = vector.shape_cast %281 : vector<2x32xbf16> to vector<1x2x32xbf16>
    tpu.vector_store %arg10[%c3, %c0_87, %c0_88], %284 {strides = array<i32>} : memref<8x2x32xbf16, #tpu.memory_space<vmem>>, vector<1x2x32xbf16>,
    %285 = arith.truncf %280 : vector<2x32xf32> to vector<2x32xbf16>
    %c4_89 = arith.constant 4 : index
    %c0_90 = arith.constant 0 : index
    %c0_91 = arith.constant 0 : index
    %286 = vector.load %arg11[%c4_89, %c0_90, %c0_91] : memref<8x2x32xbf16, #tpu.memory_space<vmem>>, vector<1x2x32xbf16>
    %287 = vector.shape_cast %286 : vector<1x2x32xbf16> to vector<2x32xbf16>
    %288 = vector.shape_cast %285 : vector<2x32xbf16> to vector<1x2x32xbf16>
    tpu.vector_store %arg11[%c4_89, %c0_90, %c0_91], %288 {strides = array<i32>} : memref<8x2x32xbf16, #tpu.memory_space<vmem>>, vector<1x2x32xbf16>,
    %c8_92 = arith.constant 8 : index
    %c0_93 = arith.constant 0 : index
    %289 = vector.load %arg12[%c8_92, %c0_93] : memref<16x128xf32, #tpu.memory_space<vmem>>, vector<2x128xf32>
    %290 = arith.truncf %255 : vector<2x32xf32> to vector<2x32xbf16>
    %cst_94 = arith.constant dense<0.000000e+00> : vector<2x128xf32>
    %291 = tpu.matmul %290, %19, %cst_94 {dimension_numbers = #tpu.dot_dimension_numbers<[1], [0], [0], [1], [0, 0, 1, 1], [], []>} : vector<2x32xbf16>, vector<32x128xbf16>, vector<2x128xf32> -> vector<2x128xf32>
    %292 = arith.addf %289, %291 : vector<2x128xf32>
    %c6_95 = arith.constant 6 : index
    %c0_96 = arith.constant 0 : index
    %293 = vector.load %arg13[%c6_95, %c0_96] : memref<16x128xf32, #tpu.memory_space<vmem>>, vector<2x128xf32>
    %294 = arith.truncf %280 : vector<2x32xf32> to vector<2x32xbf16>
    %cst_97 = arith.constant dense<0.000000e+00> : vector<2x128xf32>
    %295 = tpu.matmul %294, %20, %cst_97 {dimension_numbers = #tpu.dot_dimension_numbers<[1], [0], [0], [1], [0, 0, 1, 1], [], []>} : vector<2x32xbf16>, vector<32x128xbf16>, vector<2x128xf32> -> vector<2x128xf32>
    %296 = arith.addf %293, %295 : vector<2x128xf32>
    %297 = vector.extract_strided_slice %292 {offsets = [0, 0], sizes = [2, 32], strides = [1, 1]} : vector<2x128xf32> to vector<2x32xf32>
    %298 = arith.negf %297 : vector<2x32xf32>
    %299 = math.exp %298 : vector<2x32xf32>
    %cst_98 = arith.constant 1.000000e+00 : f32
    %300 = vector.broadcast %cst_98 : f32 to vector<2x32xf32>
    %301 = arith.addf %300, %299 : vector<2x32xf32>
    %302 = arith.divf %300, %301 : vector<2x32xf32>
    %303 = vector.extract_strided_slice %292 {offsets = [0, 32], sizes = [2, 32], strides = [1, 1]} : vector<2x128xf32> to vector<2x32xf32>
    %304 = arith.negf %303 : vector<2x32xf32>
    %305 = math.exp %304 : vector<2x32xf32>
    %cst_99 = arith.constant 1.000000e+00 : f32
    %306 = vector.broadcast %cst_99 : f32 to vector<2x32xf32>
    %307 = arith.addf %306, %305 : vector<2x32xf32>
    %308 = arith.divf %306, %307 : vector<2x32xf32>
    %309 = vector.extract_strided_slice %292 {offsets = [0, 64], sizes = [2, 32], strides = [1, 1]} : vector<2x128xf32> to vector<2x32xf32>
    %310 = math.tanh %309 : vector<2x32xf32>
    %311 = vector.extract_strided_slice %292 {offsets = [0, 96], sizes = [2, 32], strides = [1, 1]} : vector<2x128xf32> to vector<2x32xf32>
    %312 = arith.negf %311 : vector<2x32xf32>
    %313 = math.exp %312 : vector<2x32xf32>
    %cst_100 = arith.constant 1.000000e+00 : f32
    %314 = vector.broadcast %cst_100 : f32 to vector<2x32xf32>
    %315 = arith.addf %314, %313 : vector<2x32xf32>
    %316 = arith.divf %314, %315 : vector<2x32xf32>
    %317 = arith.mulf %308, %253 : vector<2x32xf32>
    %318 = arith.mulf %302, %310 : vector<2x32xf32>
    %319 = arith.addf %317, %318 : vector<2x32xf32>
    %320 = math.tanh %319 : vector<2x32xf32>
    %321 = arith.mulf %316, %320 : vector<2x32xf32>
    %322 = vector.extract_strided_slice %296 {offsets = [0, 0], sizes = [2, 32], strides = [1, 1]} : vector<2x128xf32> to vector<2x32xf32>
    %323 = arith.negf %322 : vector<2x32xf32>
    %324 = math.exp %323 : vector<2x32xf32>
    %cst_101 = arith.constant 1.000000e+00 : f32
    %325 = vector.broadcast %cst_101 : f32 to vector<2x32xf32>
    %326 = arith.addf %325, %324 : vector<2x32xf32>
    %327 = arith.divf %325, %326 : vector<2x32xf32>
    %328 = vector.extract_strided_slice %296 {offsets = [0, 32], sizes = [2, 32], strides = [1, 1]} : vector<2x128xf32> to vector<2x32xf32>
    %329 = arith.negf %328 : vector<2x32xf32>
    %330 = math.exp %329 : vector<2x32xf32>
    %cst_102 = arith.constant 1.000000e+00 : f32
    %331 = vector.broadcast %cst_102 : f32 to vector<2x32xf32>
    %332 = arith.addf %331, %330 : vector<2x32xf32>
    %333 = arith.divf %331, %332 : vector<2x32xf32>
    %334 = vector.extract_strided_slice %296 {offsets = [0, 64], sizes = [2, 32], strides = [1, 1]} : vector<2x128xf32> to vector<2x32xf32>
    %335 = math.tanh %334 : vector<2x32xf32>
    %336 = vector.extract_strided_slice %296 {offsets = [0, 96], sizes = [2, 32], strides = [1, 1]} : vector<2x128xf32> to vector<2x32xf32>
    %337 = arith.negf %336 : vector<2x32xf32>
    %338 = math.exp %337 : vector<2x32xf32>
    %cst_103 = arith.constant 1.000000e+00 : f32
    %339 = vector.broadcast %cst_103 : f32 to vector<2x32xf32>
    %340 = arith.addf %339, %338 : vector<2x32xf32>
    %341 = arith.divf %339, %340 : vector<2x32xf32>
    %342 = arith.mulf %333, %278 : vector<2x32xf32>
    %343 = arith.mulf %327, %335 : vector<2x32xf32>
    %344 = arith.addf %342, %343 : vector<2x32xf32>
    %345 = math.tanh %344 : vector<2x32xf32>
    %346 = arith.mulf %341, %345 : vector<2x32xf32>
    %347 = arith.truncf %321 : vector<2x32xf32> to vector<2x32xbf16>
    %c4_104 = arith.constant 4 : index
    %c0_105 = arith.constant 0 : index
    %c0_106 = arith.constant 0 : index
    %348 = vector.load %arg10[%c4_104, %c0_105, %c0_106] : memref<8x2x32xbf16, #tpu.memory_space<vmem>>, vector<1x2x32xbf16>
    %349 = vector.shape_cast %348 : vector<1x2x32xbf16> to vector<2x32xbf16>
    %350 = vector.shape_cast %347 : vector<2x32xbf16> to vector<1x2x32xbf16>
    tpu.vector_store %arg10[%c4_104, %c0_105, %c0_106], %350 {strides = array<i32>} : memref<8x2x32xbf16, #tpu.memory_space<vmem>>, vector<1x2x32xbf16>,
    %351 = arith.truncf %346 : vector<2x32xf32> to vector<2x32xbf16>
    %c3_107 = arith.constant 3 : index
    %c0_108 = arith.constant 0 : index
    %c0_109 = arith.constant 0 : index
    %352 = vector.load %arg11[%c3_107, %c0_108, %c0_109] : memref<8x2x32xbf16, #tpu.memory_space<vmem>>, vector<1x2x32xbf16>
    %353 = vector.shape_cast %352 : vector<1x2x32xbf16> to vector<2x32xbf16>
    %354 = vector.shape_cast %351 : vector<2x32xbf16> to vector<1x2x32xbf16>
    tpu.vector_store %arg11[%c3_107, %c0_108, %c0_109], %354 {strides = array<i32>} : memref<8x2x32xbf16, #tpu.memory_space<vmem>>, vector<1x2x32xbf16>,
    %c10_110 = arith.constant 10 : index
    %c0_111 = arith.constant 0 : index
    %355 = vector.load %arg12[%c10_110, %c0_111] : memref<16x128xf32, #tpu.memory_space<vmem>>, vector<2x128xf32>
    %356 = arith.truncf %321 : vector<2x32xf32> to vector<2x32xbf16>
    %cst_112 = arith.constant dense<0.000000e+00> : vector<2x128xf32>
    %357 = tpu.matmul %356, %19, %cst_112 {dimension_numbers = #tpu.dot_dimension_numbers<[1], [0], [0], [1], [0, 0, 1, 1], [], []>} : vector<2x32xbf16>, vector<32x128xbf16>, vector<2x128xf32> -> vector<2x128xf32>
    %358 = arith.addf %355, %357 : vector<2x128xf32>
    %c4_113 = arith.constant 4 : index
    %c0_114 = arith.constant 0 : index
    %359 = vector.load %arg13[%c4_113, %c0_114] : memref<16x128xf32, #tpu.memory_space<vmem>>, vector<2x128xf32>
    %360 = arith.truncf %346 : vector<2x32xf32> to vector<2x32xbf16>
    %cst_115 = arith.constant dense<0.000000e+00> : vector<2x128xf32>
    %361 = tpu.matmul %360, %20, %cst_115 {dimension_numbers = #tpu.dot_dimension_numbers<[1], [0], [0], [1], [0, 0, 1, 1], [], []>} : vector<2x32xbf16>, vector<32x128xbf16>, vector<2x128xf32> -> vector<2x128xf32>
    %362 = arith.addf %359, %361 : vector<2x128xf32>
    %363 = vector.extract_strided_slice %358 {offsets = [0, 0], sizes = [2, 32], strides = [1, 1]} : vector<2x128xf32> to vector<2x32xf32>
    %364 = arith.negf %363 : vector<2x32xf32>
    %365 = math.exp %364 : vector<2x32xf32>
    %cst_116 = arith.constant 1.000000e+00 : f32
    %366 = vector.broadcast %cst_116 : f32 to vector<2x32xf32>
    %367 = arith.addf %366, %365 : vector<2x32xf32>
    %368 = arith.divf %366, %367 : vector<2x32xf32>
    %369 = vector.extract_strided_slice %358 {offsets = [0, 32], sizes = [2, 32], strides = [1, 1]} : vector<2x128xf32> to vector<2x32xf32>
    %370 = arith.negf %369 : vector<2x32xf32>
    %371 = math.exp %370 : vector<2x32xf32>
    %cst_117 = arith.constant 1.000000e+00 : f32
    %372 = vector.broadcast %cst_117 : f32 to vector<2x32xf32>
    %373 = arith.addf %372, %371 : vector<2x32xf32>
    %374 = arith.divf %372, %373 : vector<2x32xf32>
    %375 = vector.extract_strided_slice %358 {offsets = [0, 64], sizes = [2, 32], strides = [1, 1]} : vector<2x128xf32> to vector<2x32xf32>
    %376 = math.tanh %375 : vector<2x32xf32>
    %377 = vector.extract_strided_slice %358 {offsets = [0, 96], sizes = [2, 32], strides = [1, 1]} : vector<2x128xf32> to vector<2x32xf32>
    %378 = arith.negf %377 : vector<2x32xf32>
    %379 = math.exp %378 : vector<2x32xf32>
    %cst_118 = arith.constant 1.000000e+00 : f32
    %380 = vector.broadcast %cst_118 : f32 to vector<2x32xf32>
    %381 = arith.addf %380, %379 : vector<2x32xf32>
    %382 = arith.divf %380, %381 : vector<2x32xf32>
    %383 = arith.mulf %374, %319 : vector<2x32xf32>
    %384 = arith.mulf %368, %376 : vector<2x32xf32>
    %385 = arith.addf %383, %384 : vector<2x32xf32>
    %386 = math.tanh %385 : vector<2x32xf32>
    %387 = arith.mulf %382, %386 : vector<2x32xf32>
    %388 = vector.extract_strided_slice %362 {offsets = [0, 0], sizes = [2, 32], strides = [1, 1]} : vector<2x128xf32> to vector<2x32xf32>
    %389 = arith.negf %388 : vector<2x32xf32>
    %390 = math.exp %389 : vector<2x32xf32>
    %cst_119 = arith.constant 1.000000e+00 : f32
    %391 = vector.broadcast %cst_119 : f32 to vector<2x32xf32>
    %392 = arith.addf %391, %390 : vector<2x32xf32>
    %393 = arith.divf %391, %392 : vector<2x32xf32>
    %394 = vector.extract_strided_slice %362 {offsets = [0, 32], sizes = [2, 32], strides = [1, 1]} : vector<2x128xf32> to vector<2x32xf32>
    %395 = arith.negf %394 : vector<2x32xf32>
    %396 = math.exp %395 : vector<2x32xf32>
    %cst_120 = arith.constant 1.000000e+00 : f32
    %397 = vector.broadcast %cst_120 : f32 to vector<2x32xf32>
    %398 = arith.addf %397, %396 : vector<2x32xf32>
    %399 = arith.divf %397, %398 : vector<2x32xf32>
    %400 = vector.extract_strided_slice %362 {offsets = [0, 64], sizes = [2, 32], strides = [1, 1]} : vector<2x128xf32> to vector<2x32xf32>
    %401 = math.tanh %400 : vector<2x32xf32>
    %402 = vector.extract_strided_slice %362 {offsets = [0, 96], sizes = [2, 32], strides = [1, 1]} : vector<2x128xf32> to vector<2x32xf32>
    %403 = arith.negf %402 : vector<2x32xf32>
    %404 = math.exp %403 : vector<2x32xf32>
    %cst_121 = arith.constant 1.000000e+00 : f32
    %405 = vector.broadcast %cst_121 : f32 to vector<2x32xf32>
    %406 = arith.addf %405, %404 : vector<2x32xf32>
    %407 = arith.divf %405, %406 : vector<2x32xf32>
    %408 = arith.mulf %399, %344 : vector<2x32xf32>
    %409 = arith.mulf %393, %401 : vector<2x32xf32>
    %410 = arith.addf %408, %409 : vector<2x32xf32>
    %411 = math.tanh %410 : vector<2x32xf32>
    %412 = arith.mulf %407, %411 : vector<2x32xf32>
    %413 = arith.truncf %387 : vector<2x32xf32> to vector<2x32xbf16>
    %c5_122 = arith.constant 5 : index
    %c0_123 = arith.constant 0 : index
    %c0_124 = arith.constant 0 : index
    %414 = vector.load %arg10[%c5_122, %c0_123, %c0_124] : memref<8x2x32xbf16, #tpu.memory_space<vmem>>, vector<1x2x32xbf16>
    %415 = vector.shape_cast %414 : vector<1x2x32xbf16> to vector<2x32xbf16>
    %416 = vector.shape_cast %413 : vector<2x32xbf16> to vector<1x2x32xbf16>
    tpu.vector_store %arg10[%c5_122, %c0_123, %c0_124], %416 {strides = array<i32>} : memref<8x2x32xbf16, #tpu.memory_space<vmem>>, vector<1x2x32xbf16>,
    %417 = arith.truncf %412 : vector<2x32xf32> to vector<2x32xbf16>
    %c2_125 = arith.constant 2 : index
    %c0_126 = arith.constant 0 : index
    %c0_127 = arith.constant 0 : index
    %418 = vector.load %arg11[%c2_125, %c0_126, %c0_127] : memref<8x2x32xbf16, #tpu.memory_space<vmem>>, vector<1x2x32xbf16>
    %419 = vector.shape_cast %418 : vector<1x2x32xbf16> to vector<2x32xbf16>
    %420 = vector.shape_cast %417 : vector<2x32xbf16> to vector<1x2x32xbf16>
    tpu.vector_store %arg11[%c2_125, %c0_126, %c0_127], %420 {strides = array<i32>} : memref<8x2x32xbf16, #tpu.memory_space<vmem>>, vector<1x2x32xbf16>,
    %c12_128 = arith.constant 12 : index
    %c0_129 = arith.constant 0 : index
    %421 = vector.load %arg12[%c12_128, %c0_129] : memref<16x128xf32, #tpu.memory_space<vmem>>, vector<2x128xf32>
    %422 = arith.truncf %387 : vector<2x32xf32> to vector<2x32xbf16>
    %cst_130 = arith.constant dense<0.000000e+00> : vector<2x128xf32>
    %423 = tpu.matmul %422, %19, %cst_130 {dimension_numbers = #tpu.dot_dimension_numbers<[1], [0], [0], [1], [0, 0, 1, 1], [], []>} : vector<2x32xbf16>, vector<32x128xbf16>, vector<2x128xf32> -> vector<2x128xf32>
    %424 = arith.addf %421, %423 : vector<2x128xf32>
    %c2_131 = arith.constant 2 : index
    %c0_132 = arith.constant 0 : index
    %425 = vector.load %arg13[%c2_131, %c0_132] : memref<16x128xf32, #tpu.memory_space<vmem>>, vector<2x128xf32>
    %426 = arith.truncf %412 : vector<2x32xf32> to vector<2x32xbf16>
    %cst_133 = arith.constant dense<0.000000e+00> : vector<2x128xf32>
    %427 = tpu.matmul %426, %20, %cst_133 {dimension_numbers = #tpu.dot_dimension_numbers<[1], [0], [0], [1], [0, 0, 1, 1], [], []>} : vector<2x32xbf16>, vector<32x128xbf16>, vector<2x128xf32> -> vector<2x128xf32>
    %428 = arith.addf %425, %427 : vector<2x128xf32>
    %429 = vector.extract_strided_slice %424 {offsets = [0, 0], sizes = [2, 32], strides = [1, 1]} : vector<2x128xf32> to vector<2x32xf32>
    %430 = arith.negf %429 : vector<2x32xf32>
    %431 = math.exp %430 : vector<2x32xf32>
    %cst_134 = arith.constant 1.000000e+00 : f32
    %432 = vector.broadcast %cst_134 : f32 to vector<2x32xf32>
    %433 = arith.addf %432, %431 : vector<2x32xf32>
    %434 = arith.divf %432, %433 : vector<2x32xf32>
    %435 = vector.extract_strided_slice %424 {offsets = [0, 32], sizes = [2, 32], strides = [1, 1]} : vector<2x128xf32> to vector<2x32xf32>
    %436 = arith.negf %435 : vector<2x32xf32>
    %437 = math.exp %436 : vector<2x32xf32>
    %cst_135 = arith.constant 1.000000e+00 : f32
    %438 = vector.broadcast %cst_135 : f32 to vector<2x32xf32>
    %439 = arith.addf %438, %437 : vector<2x32xf32>
    %440 = arith.divf %438, %439 : vector<2x32xf32>
    %441 = vector.extract_strided_slice %424 {offsets = [0, 64], sizes = [2, 32], strides = [1, 1]} : vector<2x128xf32> to vector<2x32xf32>
    %442 = math.tanh %441 : vector<2x32xf32>
    %443 = vector.extract_strided_slice %424 {offsets = [0, 96], sizes = [2, 32], strides = [1, 1]} : vector<2x128xf32> to vector<2x32xf32>
    %444 = arith.negf %443 : vector<2x32xf32>
    %445 = math.exp %444 : vector<2x32xf32>
    %cst_136 = arith.constant 1.000000e+00 : f32
    %446 = vector.broadcast %cst_136 : f32 to vector<2x32xf32>
    %447 = arith.addf %446, %445 : vector<2x32xf32>
    %448 = arith.divf %446, %447 : vector<2x32xf32>
    %449 = arith.mulf %440, %385 : vector<2x32xf32>
    %450 = arith.mulf %434, %442 : vector<2x32xf32>
    %451 = arith.addf %449, %450 : vector<2x32xf32>
    %452 = math.tanh %451 : vector<2x32xf32>
    %453 = arith.mulf %448, %452 : vector<2x32xf32>
    %454 = vector.extract_strided_slice %428 {offsets = [0, 0], sizes = [2, 32], strides = [1, 1]} : vector<2x128xf32> to vector<2x32xf32>
    %455 = arith.negf %454 : vector<2x32xf32>
    %456 = math.exp %455 : vector<2x32xf32>
    %cst_137 = arith.constant 1.000000e+00 : f32
    %457 = vector.broadcast %cst_137 : f32 to vector<2x32xf32>
    %458 = arith.addf %457, %456 : vector<2x32xf32>
    %459 = arith.divf %457, %458 : vector<2x32xf32>
    %460 = vector.extract_strided_slice %428 {offsets = [0, 32], sizes = [2, 32], strides = [1, 1]} : vector<2x128xf32> to vector<2x32xf32>
    %461 = arith.negf %460 : vector<2x32xf32>
    %462 = math.exp %461 : vector<2x32xf32>
    %cst_138 = arith.constant 1.000000e+00 : f32
    %463 = vector.broadcast %cst_138 : f32 to vector<2x32xf32>
    %464 = arith.addf %463, %462 : vector<2x32xf32>
    %465 = arith.divf %463, %464 : vector<2x32xf32>
    %466 = vector.extract_strided_slice %428 {offsets = [0, 64], sizes = [2, 32], strides = [1, 1]} : vector<2x128xf32> to vector<2x32xf32>
    %467 = math.tanh %466 : vector<2x32xf32>
    %468 = vector.extract_strided_slice %428 {offsets = [0, 96], sizes = [2, 32], strides = [1, 1]} : vector<2x128xf32> to vector<2x32xf32>
    %469 = arith.negf %468 : vector<2x32xf32>
    %470 = math.exp %469 : vector<2x32xf32>
    %cst_139 = arith.constant 1.000000e+00 : f32
    %471 = vector.broadcast %cst_139 : f32 to vector<2x32xf32>
    %472 = arith.addf %471, %470 : vector<2x32xf32>
    %473 = arith.divf %471, %472 : vector<2x32xf32>
    %474 = arith.mulf %465, %410 : vector<2x32xf32>
    %475 = arith.mulf %459, %467 : vector<2x32xf32>
    %476 = arith.addf %474, %475 : vector<2x32xf32>
    %477 = math.tanh %476 : vector<2x32xf32>
    %478 = arith.mulf %473, %477 : vector<2x32xf32>
    %479 = arith.truncf %453 : vector<2x32xf32> to vector<2x32xbf16>
    %c6_140 = arith.constant 6 : index
    %c0_141 = arith.constant 0 : index
    %c0_142 = arith.constant 0 : index
    %480 = vector.load %arg10[%c6_140, %c0_141, %c0_142] : memref<8x2x32xbf16, #tpu.memory_space<vmem>>, vector<1x2x32xbf16>
    %481 = vector.shape_cast %480 : vector<1x2x32xbf16> to vector<2x32xbf16>
    %482 = vector.shape_cast %479 : vector<2x32xbf16> to vector<1x2x32xbf16>
    tpu.vector_store %arg10[%c6_140, %c0_141, %c0_142], %482 {strides = array<i32>} : memref<8x2x32xbf16, #tpu.memory_space<vmem>>, vector<1x2x32xbf16>,
    %483 = arith.truncf %478 : vector<2x32xf32> to vector<2x32xbf16>
    %c1_143 = arith.constant 1 : index
    %c0_144 = arith.constant 0 : index
    %c0_145 = arith.constant 0 : index
    %484 = vector.load %arg11[%c1_143, %c0_144, %c0_145] : memref<8x2x32xbf16, #tpu.memory_space<vmem>>, vector<1x2x32xbf16>
    %485 = vector.shape_cast %484 : vector<1x2x32xbf16> to vector<2x32xbf16>
    %486 = vector.shape_cast %483 : vector<2x32xbf16> to vector<1x2x32xbf16>
    tpu.vector_store %arg11[%c1_143, %c0_144, %c0_145], %486 {strides = array<i32>} : memref<8x2x32xbf16, #tpu.memory_space<vmem>>, vector<1x2x32xbf16>,
    %c14_146 = arith.constant 14 : index
    %c0_147 = arith.constant 0 : index
    %487 = vector.load %arg12[%c14_146, %c0_147] : memref<16x128xf32, #tpu.memory_space<vmem>>, vector<2x128xf32>
    %488 = arith.truncf %453 : vector<2x32xf32> to vector<2x32xbf16>
    %cst_148 = arith.constant dense<0.000000e+00> : vector<2x128xf32>
    %489 = tpu.matmul %488, %19, %cst_148 {dimension_numbers = #tpu.dot_dimension_numbers<[1], [0], [0], [1], [0, 0, 1, 1], [], []>} : vector<2x32xbf16>, vector<32x128xbf16>, vector<2x128xf32> -> vector<2x128xf32>
    %490 = arith.addf %487, %489 : vector<2x128xf32>
    %c0_149 = arith.constant 0 : index
    %c0_150 = arith.constant 0 : index
    %491 = vector.load %arg13[%c0_149, %c0_150] : memref<16x128xf32, #tpu.memory_space<vmem>>, vector<2x128xf32>
    %492 = arith.truncf %478 : vector<2x32xf32> to vector<2x32xbf16>
    %cst_151 = arith.constant dense<0.000000e+00> : vector<2x128xf32>
    %493 = tpu.matmul %492, %20, %cst_151 {dimension_numbers = #tpu.dot_dimension_numbers<[1], [0], [0], [1], [0, 0, 1, 1], [], []>} : vector<2x32xbf16>, vector<32x128xbf16>, vector<2x128xf32> -> vector<2x128xf32>
    %494 = arith.addf %491, %493 : vector<2x128xf32>
    %495 = vector.extract_strided_slice %490 {offsets = [0, 0], sizes = [2, 32], strides = [1, 1]} : vector<2x128xf32> to vector<2x32xf32>
    %496 = arith.negf %495 : vector<2x32xf32>
    %497 = math.exp %496 : vector<2x32xf32>
    %cst_152 = arith.constant 1.000000e+00 : f32
    %498 = vector.broadcast %cst_152 : f32 to vector<2x32xf32>
    %499 = arith.addf %498, %497 : vector<2x32xf32>
    %500 = arith.divf %498, %499 : vector<2x32xf32>
    %501 = vector.extract_strided_slice %490 {offsets = [0, 32], sizes = [2, 32], strides = [1, 1]} : vector<2x128xf32> to vector<2x32xf32>
    %502 = arith.negf %501 : vector<2x32xf32>
    %503 = math.exp %502 : vector<2x32xf32>
    %cst_153 = arith.constant 1.000000e+00 : f32
    %504 = vector.broadcast %cst_153 : f32 to vector<2x32xf32>
    %505 = arith.addf %504, %503 : vector<2x32xf32>
    %506 = arith.divf %504, %505 : vector<2x32xf32>
    %507 = vector.extract_strided_slice %490 {offsets = [0, 64], sizes = [2, 32], strides = [1, 1]} : vector<2x128xf32> to vector<2x32xf32>
    %508 = math.tanh %507 : vector<2x32xf32>
    %509 = vector.extract_strided_slice %490 {offsets = [0, 96], sizes = [2, 32], strides = [1, 1]} : vector<2x128xf32> to vector<2x32xf32>
    %510 = arith.negf %509 : vector<2x32xf32>
    %511 = math.exp %510 : vector<2x32xf32>
    %cst_154 = arith.constant 1.000000e+00 : f32
    %512 = vector.broadcast %cst_154 : f32 to vector<2x32xf32>
    %513 = arith.addf %512, %511 : vector<2x32xf32>
    %514 = arith.divf %512, %513 : vector<2x32xf32>
    %515 = arith.mulf %506, %451 : vector<2x32xf32>
    %516 = arith.mulf %500, %508 : vector<2x32xf32>
    %517 = arith.addf %515, %516 : vector<2x32xf32>
    %518 = math.tanh %517 : vector<2x32xf32>
    %519 = arith.mulf %514, %518 : vector<2x32xf32>
    %520 = vector.extract_strided_slice %494 {offsets = [0, 0], sizes = [2, 32], strides = [1, 1]} : vector<2x128xf32> to vector<2x32xf32>
    %521 = arith.negf %520 : vector<2x32xf32>
    %522 = math.exp %521 : vector<2x32xf32>
    %cst_155 = arith.constant 1.000000e+00 : f32
    %523 = vector.broadcast %cst_155 : f32 to vector<2x32xf32>
    %524 = arith.addf %523, %522 : vector<2x32xf32>
    %525 = arith.divf %523, %524 : vector<2x32xf32>
    %526 = vector.extract_strided_slice %494 {offsets = [0, 32], sizes = [2, 32], strides = [1, 1]} : vector<2x128xf32> to vector<2x32xf32>
    %527 = arith.negf %526 : vector<2x32xf32>
    %528 = math.exp %527 : vector<2x32xf32>
    %cst_156 = arith.constant 1.000000e+00 : f32
    %529 = vector.broadcast %cst_156 : f32 to vector<2x32xf32>
    %530 = arith.addf %529, %528 : vector<2x32xf32>
    %531 = arith.divf %529, %530 : vector<2x32xf32>
    %532 = vector.extract_strided_slice %494 {offsets = [0, 64], sizes = [2, 32], strides = [1, 1]} : vector<2x128xf32> to vector<2x32xf32>
    %533 = math.tanh %532 : vector<2x32xf32>
    %534 = vector.extract_strided_slice %494 {offsets = [0, 96], sizes = [2, 32], strides = [1, 1]} : vector<2x128xf32> to vector<2x32xf32>
    %535 = arith.negf %534 : vector<2x32xf32>
    %536 = math.exp %535 : vector<2x32xf32>
    %cst_157 = arith.constant 1.000000e+00 : f32
    %537 = vector.broadcast %cst_157 : f32 to vector<2x32xf32>
    %538 = arith.addf %537, %536 : vector<2x32xf32>
    %539 = arith.divf %537, %538 : vector<2x32xf32>
    %540 = arith.mulf %531, %476 : vector<2x32xf32>
    %541 = arith.mulf %525, %533 : vector<2x32xf32>
    %542 = arith.addf %540, %541 : vector<2x32xf32>
    %543 = math.tanh %542 : vector<2x32xf32>
    %544 = arith.mulf %539, %543 : vector<2x32xf32>
    %545 = arith.truncf %519 : vector<2x32xf32> to vector<2x32xbf16>
    %c7_158 = arith.constant 7 : index
    %c0_159 = arith.constant 0 : index
    %c0_160 = arith.constant 0 : index
    %546 = vector.load %arg10[%c7_158, %c0_159, %c0_160] : memref<8x2x32xbf16, #tpu.memory_space<vmem>>, vector<1x2x32xbf16>
    %547 = vector.shape_cast %546 : vector<1x2x32xbf16> to vector<2x32xbf16>
    %548 = vector.shape_cast %545 : vector<2x32xbf16> to vector<1x2x32xbf16>
    tpu.vector_store %arg10[%c7_158, %c0_159, %c0_160], %548 {strides = array<i32>} : memref<8x2x32xbf16, #tpu.memory_space<vmem>>, vector<1x2x32xbf16>,
    %549 = arith.truncf %544 : vector<2x32xf32> to vector<2x32xbf16>
    %c0_161 = arith.constant 0 : index
    %c0_162 = arith.constant 0 : index
    %c0_163 = arith.constant 0 : index
    %550 = vector.load %arg11[%c0_161, %c0_162, %c0_163] : memref<8x2x32xbf16, #tpu.memory_space<vmem>>, vector<1x2x32xbf16>
    %551 = vector.shape_cast %550 : vector<1x2x32xbf16> to vector<2x32xbf16>
    %552 = vector.shape_cast %549 : vector<2x32xbf16> to vector<1x2x32xbf16>
    tpu.vector_store %arg11[%c0_161, %c0_162, %c0_163], %552 {strides = array<i32>} : memref<8x2x32xbf16, #tpu.memory_space<vmem>>, vector<1x2x32xbf16>,
    %c0_164 = arith.constant 0 : index
    %c0_165 = arith.constant 0 : index
    %553 = vector.load %arg14[%c0_164, %c0_165] : memref<2x32xf32, #tpu.memory_space<vmem>>, vector<2x32xf32>
    tpu.vector_store %arg14[%c0_164, %c0_165], %519 {strides = array<i32>} : memref<2x32xf32, #tpu.memory_space<vmem>>, vector<2x32xf32>,
    %c0_166 = arith.constant 0 : index
    %c0_167 = arith.constant 0 : index
    %554 = vector.load %arg15[%c0_166, %c0_167] : memref<2x32xf32, #tpu.memory_space<vmem>>, vector<2x32xf32>
    tpu.vector_store %arg15[%c0_166, %c0_167], %517 {strides = array<i32>} : memref<2x32xf32, #tpu.memory_space<vmem>>, vector<2x32xf32>,
    %c0_168 = arith.constant 0 : index
    %c0_169 = arith.constant 0 : index
    %555 = vector.load %arg16[%c0_168, %c0_169] : memref<2x32xf32, #tpu.memory_space<vmem>>, vector<2x32xf32>
    tpu.vector_store %arg16[%c0_168, %c0_169], %544 {strides = array<i32>} : memref<2x32xf32, #tpu.memory_space<vmem>>, vector<2x32xf32>,
    %c0_170 = arith.constant 0 : index
    %c0_171 = arith.constant 0 : index
    %556 = vector.load %arg17[%c0_170, %c0_171] : memref<2x32xf32, #tpu.memory_space<vmem>>, vector<2x32xf32>
    tpu.vector_store %arg17[%c0_170, %c0_171], %542 {strides = array<i32>} : memref<2x32xf32, #tpu.memory_space<vmem>>, vector<2x32xf32>,
    return
  }
  func.func @transform_0(%arg0: i32, %arg1: i32) -> (i32, i32, i32) {
    %c0_i32 = arith.constant 0 : i32
    %c0_i32_0 = arith.constant 0 : i32
    return %arg1, %arg0, %c0_i32 : i32, i32, i32
  }
  func.func @transform_1(%arg0: i32, %arg1: i32) -> (i32, i32, i32) {
    %c1_i32 = arith.constant 1 : i32
    %0 = arith.subi %c1_i32, %arg1 : i32
    %c0_i32 = arith.constant 0 : i32
    %c0_i32_0 = arith.constant 0 : i32
    return %0, %arg0, %c0_i32 : i32, i32, i32
  }
  func.func @transform_2(%arg0: i32, %arg1: i32) -> (i32, i32) {
    %c0_i32 = arith.constant 0 : i32
    %c0_i32_0 = arith.constant 0 : i32
    %c0_i32_1 = arith.constant 0 : i32
    return %c0_i32, %c0_i32_0 : i32, i32
  }
  func.func @transform_3(%arg0: i32, %arg1: i32) -> (i32, i32) {
    %c0_i32 = arith.constant 0 : i32
    %c0_i32_0 = arith.constant 0 : i32
    %c0_i32_1 = arith.constant 0 : i32
    return %c0_i32, %c0_i32_0 : i32, i32
  }
  func.func @transform_4(%arg0: i32, %arg1: i32) -> (i32, i32) {
    %c0_i32 = arith.constant 0 : i32
    %c0_i32_0 = arith.constant 0 : i32
    %c0_i32_1 = arith.constant 0 : i32
    return %c0_i32, %c0_i32_0 : i32, i32
  }
  func.func @transform_5(%arg0: i32, %arg1: i32) -> (i32, i32) {
    %c0_i32 = arith.constant 0 : i32
    %c0_i32_0 = arith.constant 0 : i32
    %c0_i32_1 = arith.constant 0 : i32
    return %c0_i32, %c0_i32_0 : i32, i32
  }
  func.func @transform_6(%arg0: i32, %arg1: i32) -> (i32, i32) {
    %c0_i32 = arith.constant 0 : i32
    %c0_i32_0 = arith.constant 0 : i32
    %c0_i32_1 = arith.constant 0 : i32
    return %c0_i32, %c0_i32_0 : i32, i32
  }
  func.func @transform_7(%arg0: i32, %arg1: i32) -> (i32, i32) {
    %c0_i32 = arith.constant 0 : i32
    %c0_i32_0 = arith.constant 0 : i32
    %c0_i32_1 = arith.constant 0 : i32
    return %c0_i32, %c0_i32_0 : i32, i32
  }
  func.func @transform_8(%arg0: i32, %arg1: i32) -> (i32, i32, i32) {
    %c0_i32 = arith.constant 0 : i32
    %c0_i32_0 = arith.constant 0 : i32
    return %arg1, %arg0, %c0_i32 : i32, i32, i32
  }
  func.func @transform_9(%arg0: i32, %arg1: i32) -> (i32, i32, i32) {
    %c1_i32 = arith.constant 1 : i32
    %0 = arith.subi %c1_i32, %arg1 : i32
    %c0_i32 = arith.constant 0 : i32
    %c0_i32_0 = arith.constant 0 : i32
    return %0, %arg0, %c0_i32 : i32, i32, i32
  }
}

module attributes {stable_mosaic.version = 11 : i64} {
  func.func @kernel(%arg0: i32, %arg1: i32, %arg2: memref<8x2x32xbf16, #tpu.memory_space<vmem>>, %arg3: memref<8x2x32xbf16, #tpu.memory_space<vmem>>, %arg4: memref<8x2x32xbf16, #tpu.memory_space<vmem>>, %arg5: memref<8x2x32xbf16, #tpu.memory_space<vmem>>, %arg6: memref<32x128xbf16, #tpu.memory_space<vmem>>, %arg7: memref<32x128xbf16, #tpu.memory_space<vmem>>, %arg8: memref<32x128xbf16, #tpu.memory_space<vmem>>, %arg9: memref<32x128xbf16, #tpu.memory_space<vmem>>, %arg10: memref<1x128xf32, #tpu.memory_space<vmem>>, %arg11: memref<1x128xf32, #tpu.memory_space<vmem>>, %arg12: memref<32x128xbf16, #tpu.memory_space<vmem>>, %arg13: memref<32x128xbf16, #tpu.memory_space<vmem>>, %arg14: memref<8x2x32xbf16, #tpu.memory_space<vmem>>, %arg15: memref<8x2x32xbf16, #tpu.memory_space<vmem>>, %arg16: memref<16x128xf32, #tpu.memory_space<vmem>>, %arg17: memref<16x128xf32, #tpu.memory_space<vmem>>, %arg18: memref<2x32xf32, #tpu.memory_space<vmem>>, %arg19: memref<2x32xf32, #tpu.memory_space<vmem>>, %arg20: memref<2x32xf32, #tpu.memory_space<vmem>>, %arg21: memref<2x32xf32, #tpu.memory_space<vmem>>) attributes {dimension_semantics = [#tpu.dimension_semantics<parallel>, #tpu.dimension_semantics<arbitrary>], iteration_bounds = array<i64: 1, 2>, scalar_prefetch = 0 : i64, scratch_operands = 6 : i64, tpu.core_type = #tpu.core_type<tc>, window_params = [{transform_indices = @transform_0, window_bounds = array<i64: 8, 2, 32>}, {transform_indices = @transform_1, window_bounds = array<i64: 8, 2, 32>}, {transform_indices = @transform_2, window_bounds = array<i64: 8, 2, 32>}, {transform_indices = @transform_3, window_bounds = array<i64: 8, 2, 32>}, {pipeline_mode = #tpu.pipeline_mode<synchronous>, transform_indices = @transform_4, window_bounds = array<i64: 32, 128>}, {pipeline_mode = #tpu.pipeline_mode<synchronous>, transform_indices = @transform_5, window_bounds = array<i64: 32, 128>}, {pipeline_mode = #tpu.pipeline_mode<synchronous>, transform_indices = @transform_6, window_bounds = array<i64: 32, 128>}, {pipeline_mode = #tpu.pipeline_mode<synchronous>, transform_indices = @transform_7, window_bounds = array<i64: 32, 128>}, {pipeline_mode = #tpu.pipeline_mode<synchronous>, transform_indices = @transform_8, window_bounds = array<i64: 1, 128>}, {pipeline_mode = #tpu.pipeline_mode<synchronous>, transform_indices = @transform_9, window_bounds = array<i64: 1, 128>}, {pipeline_mode = #tpu.pipeline_mode<synchronous>, transform_indices = @transform_10, window_bounds = array<i64: 32, 128>}, {pipeline_mode = #tpu.pipeline_mode<synchronous>, transform_indices = @transform_11, window_bounds = array<i64: 32, 128>}, {transform_indices = @transform_12, window_bounds = array<i64: 8, 2, 32>}, {transform_indices = @transform_13, window_bounds = array<i64: 8, 2, 32>}]} {
    %c0_i32 = arith.constant 0 : i32
    %0 = arith.cmpi eq, %arg1, %c0_i32 : i32
    %1 = arith.extui %0 : i1 to i32
    %c0_i32_0 = arith.constant 0 : i32
    %2 = arith.cmpi ne, %1, %c0_i32_0 : i32
    scf.if %2 {
      %cst_184 = arith.constant 0.000000e+00 : f32
      %567 = vector.broadcast %cst_184 : f32 to vector<2x32xf32>
      %c0_185 = arith.constant 0 : index
      %c0_186 = arith.constant 0 : index
      %568 = vector.load %arg18[%c0_185, %c0_186] : memref<2x32xf32, #tpu.memory_space<vmem>>, vector<2x32xf32>
      tpu.vector_store %arg18[%c0_185, %c0_186], %567 {strides = array<i32>} : memref<2x32xf32, #tpu.memory_space<vmem>>, vector<2x32xf32>,
      %cst_187 = arith.constant 0.000000e+00 : f32
      %569 = vector.broadcast %cst_187 : f32 to vector<2x32xf32>
      %c0_188 = arith.constant 0 : index
      %c0_189 = arith.constant 0 : index
      %570 = vector.load %arg19[%c0_188, %c0_189] : memref<2x32xf32, #tpu.memory_space<vmem>>, vector<2x32xf32>
      tpu.vector_store %arg19[%c0_188, %c0_189], %569 {strides = array<i32>} : memref<2x32xf32, #tpu.memory_space<vmem>>, vector<2x32xf32>,
      %cst_190 = arith.constant 0.000000e+00 : f32
      %571 = vector.broadcast %cst_190 : f32 to vector<2x32xf32>
      %c0_191 = arith.constant 0 : index
      %c0_192 = arith.constant 0 : index
      %572 = vector.load %arg20[%c0_191, %c0_192] : memref<2x32xf32, #tpu.memory_space<vmem>>, vector<2x32xf32>
      tpu.vector_store %arg20[%c0_191, %c0_192], %571 {strides = array<i32>} : memref<2x32xf32, #tpu.memory_space<vmem>>, vector<2x32xf32>,
      %cst_193 = arith.constant 0.000000e+00 : f32
      %573 = vector.broadcast %cst_193 : f32 to vector<2x32xf32>
      %c0_194 = arith.constant 0 : index
      %c0_195 = arith.constant 0 : index
      %574 = vector.load %arg21[%c0_194, %c0_195] : memref<2x32xf32, #tpu.memory_space<vmem>>, vector<2x32xf32>
      tpu.vector_store %arg21[%c0_194, %c0_195], %573 {strides = array<i32>} : memref<2x32xf32, #tpu.memory_space<vmem>>, vector<2x32xf32>,
    } else {
    }
    %c0 = arith.constant 0 : index
    %c0_1 = arith.constant 0 : index
    %c0_2 = arith.constant 0 : index
    %3 = vector.load %arg2[%c0, %c0_1, %c0_2] : memref<8x2x32xbf16, #tpu.memory_space<vmem>>, vector<8x2x32xbf16>
    %4 = vector.shape_cast %3 : vector<8x2x32xbf16> to vector<16x32xbf16>
    %c0_3 = arith.constant 0 : index
    %c0_4 = arith.constant 0 : index
    %5 = vector.load %arg6[%c0_3, %c0_4] : memref<32x128xbf16, #tpu.memory_space<vmem>>, vector<32x128xbf16>
    %cst = arith.constant dense<0.000000e+00> : vector<16x128xf32>
    %6 = tpu.matmul %4, %5, %cst {dimension_numbers = #tpu.dot_dimension_numbers<[1], [0], [0], [1], [0, 0, 1, 1], [], []>} : vector<16x32xbf16>, vector<32x128xbf16>, vector<16x128xf32> -> vector<16x128xf32>
    %c0_5 = arith.constant 0 : index
    %c0_6 = arith.constant 0 : index
    %c0_7 = arith.constant 0 : index
    %7 = vector.load %arg4[%c0_5, %c0_6, %c0_7] : memref<8x2x32xbf16, #tpu.memory_space<vmem>>, vector<8x2x32xbf16>
    %8 = vector.shape_cast %7 : vector<8x2x32xbf16> to vector<16x32xbf16>
    %c0_8 = arith.constant 0 : index
    %c0_9 = arith.constant 0 : index
    %9 = vector.load %arg7[%c0_8, %c0_9] : memref<32x128xbf16, #tpu.memory_space<vmem>>, vector<32x128xbf16>
    %cst_10 = arith.constant dense<0.000000e+00> : vector<16x128xf32>
    %10 = tpu.matmul %8, %9, %cst_10 {dimension_numbers = #tpu.dot_dimension_numbers<[1], [0], [0], [1], [0, 0, 1, 1], [], []>} : vector<16x32xbf16>, vector<32x128xbf16>, vector<16x128xf32> -> vector<16x128xf32>
    %11 = arith.addf %6, %10 : vector<16x128xf32>
    %c0_11 = arith.constant 0 : index
    %c0_12 = arith.constant 0 : index
    %12 = vector.load %arg10[%c0_11, %c0_12] : memref<1x128xf32, #tpu.memory_space<vmem>>, vector<1x128xf32>
    %13 = vector.broadcast %12 : vector<1x128xf32> to vector<16x128xf32>
    %14 = arith.addf %11, %13 : vector<16x128xf32>
    %c0_13 = arith.constant 0 : index
    %c0_14 = arith.constant 0 : index
    %15 = vector.load %arg16[%c0_13, %c0_14] : memref<16x128xf32, #tpu.memory_space<vmem>>, vector<16x128xf32>
    tpu.vector_store %arg16[%c0_13, %c0_14], %14 {strides = array<i32>} : memref<16x128xf32, #tpu.memory_space<vmem>>, vector<16x128xf32>,
    %c0_15 = arith.constant 0 : index
    %c0_16 = arith.constant 0 : index
    %c0_17 = arith.constant 0 : index
    %16 = vector.load %arg3[%c0_15, %c0_16, %c0_17] : memref<8x2x32xbf16, #tpu.memory_space<vmem>>, vector<8x2x32xbf16>
    %17 = vector.shape_cast %16 : vector<8x2x32xbf16> to vector<16x32xbf16>
    %c0_18 = arith.constant 0 : index
    %c0_19 = arith.constant 0 : index
    %18 = vector.load %arg8[%c0_18, %c0_19] : memref<32x128xbf16, #tpu.memory_space<vmem>>, vector<32x128xbf16>
    %cst_20 = arith.constant dense<0.000000e+00> : vector<16x128xf32>
    %19 = tpu.matmul %17, %18, %cst_20 {dimension_numbers = #tpu.dot_dimension_numbers<[1], [0], [0], [1], [0, 0, 1, 1], [], []>} : vector<16x32xbf16>, vector<32x128xbf16>, vector<16x128xf32> -> vector<16x128xf32>
    %c0_21 = arith.constant 0 : index
    %c0_22 = arith.constant 0 : index
    %c0_23 = arith.constant 0 : index
    %20 = vector.load %arg5[%c0_21, %c0_22, %c0_23] : memref<8x2x32xbf16, #tpu.memory_space<vmem>>, vector<8x2x32xbf16>
    %21 = vector.shape_cast %20 : vector<8x2x32xbf16> to vector<16x32xbf16>
    %c0_24 = arith.constant 0 : index
    %c0_25 = arith.constant 0 : index
    %22 = vector.load %arg9[%c0_24, %c0_25] : memref<32x128xbf16, #tpu.memory_space<vmem>>, vector<32x128xbf16>
    %cst_26 = arith.constant dense<0.000000e+00> : vector<16x128xf32>
    %23 = tpu.matmul %21, %22, %cst_26 {dimension_numbers = #tpu.dot_dimension_numbers<[1], [0], [0], [1], [0, 0, 1, 1], [], []>} : vector<16x32xbf16>, vector<32x128xbf16>, vector<16x128xf32> -> vector<16x128xf32>
    %24 = arith.addf %19, %23 : vector<16x128xf32>
    %c0_27 = arith.constant 0 : index
    %c0_28 = arith.constant 0 : index
    %25 = vector.load %arg11[%c0_27, %c0_28] : memref<1x128xf32, #tpu.memory_space<vmem>>, vector<1x128xf32>
    %26 = vector.broadcast %25 : vector<1x128xf32> to vector<16x128xf32>
    %27 = arith.addf %24, %26 : vector<16x128xf32>
    %c0_29 = arith.constant 0 : index
    %c0_30 = arith.constant 0 : index
    %28 = vector.load %arg17[%c0_29, %c0_30] : memref<16x128xf32, #tpu.memory_space<vmem>>, vector<16x128xf32>
    tpu.vector_store %arg17[%c0_29, %c0_30], %27 {strides = array<i32>} : memref<16x128xf32, #tpu.memory_space<vmem>>, vector<16x128xf32>,
    %c0_31 = arith.constant 0 : index
    %c0_32 = arith.constant 0 : index
    %29 = vector.load %arg12[%c0_31, %c0_32] : memref<32x128xbf16, #tpu.memory_space<vmem>>, vector<32x128xbf16>
    %c0_33 = arith.constant 0 : index
    %c0_34 = arith.constant 0 : index
    %30 = vector.load %arg13[%c0_33, %c0_34] : memref<32x128xbf16, #tpu.memory_space<vmem>>, vector<32x128xbf16>
    %c0_35 = arith.constant 0 : index
    %c0_36 = arith.constant 0 : index
    %31 = vector.load %arg18[%c0_35, %c0_36] : memref<2x32xf32, #tpu.memory_space<vmem>>, vector<2x32xf32>
    %c0_37 = arith.constant 0 : index
    %c0_38 = arith.constant 0 : index
    %32 = vector.load %arg19[%c0_37, %c0_38] : memref<2x32xf32, #tpu.memory_space<vmem>>, vector<2x32xf32>
    %c0_39 = arith.constant 0 : index
    %c0_40 = arith.constant 0 : index
    %33 = vector.load %arg20[%c0_39, %c0_40] : memref<2x32xf32, #tpu.memory_space<vmem>>, vector<2x32xf32>
    %c0_41 = arith.constant 0 : index
    %c0_42 = arith.constant 0 : index
    %34 = vector.load %arg21[%c0_41, %c0_42] : memref<2x32xf32, #tpu.memory_space<vmem>>, vector<2x32xf32>
    %c0_43 = arith.constant 0 : index
    %c0_44 = arith.constant 0 : index
    %35 = vector.load %arg16[%c0_43, %c0_44] : memref<16x128xf32, #tpu.memory_space<vmem>>, vector<2x128xf32>
    %36 = arith.truncf %31 : vector<2x32xf32> to vector<2x32xbf16>
    %cst_45 = arith.constant dense<0.000000e+00> : vector<2x128xf32>
    %37 = tpu.matmul %36, %29, %cst_45 {dimension_numbers = #tpu.dot_dimension_numbers<[1], [0], [0], [1], [0, 0, 1, 1], [], []>} : vector<2x32xbf16>, vector<32x128xbf16>, vector<2x128xf32> -> vector<2x128xf32>
    %38 = arith.addf %35, %37 : vector<2x128xf32>
    %c14 = arith.constant 14 : index
    %c0_46 = arith.constant 0 : index
    %39 = vector.load %arg17[%c14, %c0_46] : memref<16x128xf32, #tpu.memory_space<vmem>>, vector<2x128xf32>
    %40 = arith.truncf %33 : vector<2x32xf32> to vector<2x32xbf16>
    %cst_47 = arith.constant dense<0.000000e+00> : vector<2x128xf32>
    %41 = tpu.matmul %40, %30, %cst_47 {dimension_numbers = #tpu.dot_dimension_numbers<[1], [0], [0], [1], [0, 0, 1, 1], [], []>} : vector<2x32xbf16>, vector<32x128xbf16>, vector<2x128xf32> -> vector<2x128xf32>
    %42 = arith.addf %39, %41 : vector<2x128xf32>
    %43 = vector.extract_strided_slice %38 {offsets = [0, 0], sizes = [2, 32], strides = [1, 1]} : vector<2x128xf32> to vector<2x32xf32>
    %44 = arith.negf %43 : vector<2x32xf32>
    %45 = math.exp %44 : vector<2x32xf32>
    %cst_48 = arith.constant 1.000000e+00 : f32
    %46 = vector.broadcast %cst_48 : f32 to vector<2x32xf32>
    %47 = arith.addf %46, %45 : vector<2x32xf32>
    %48 = arith.divf %46, %47 : vector<2x32xf32>
    %49 = vector.extract_strided_slice %38 {offsets = [0, 32], sizes = [2, 32], strides = [1, 1]} : vector<2x128xf32> to vector<2x32xf32>
    %50 = arith.negf %49 : vector<2x32xf32>
    %51 = math.exp %50 : vector<2x32xf32>
    %cst_49 = arith.constant 1.000000e+00 : f32
    %52 = vector.broadcast %cst_49 : f32 to vector<2x32xf32>
    %53 = arith.addf %52, %51 : vector<2x32xf32>
    %54 = arith.divf %52, %53 : vector<2x32xf32>
    %55 = vector.extract_strided_slice %38 {offsets = [0, 64], sizes = [2, 32], strides = [1, 1]} : vector<2x128xf32> to vector<2x32xf32>
    %56 = math.tanh %55 : vector<2x32xf32>
    %57 = vector.extract_strided_slice %38 {offsets = [0, 96], sizes = [2, 32], strides = [1, 1]} : vector<2x128xf32> to vector<2x32xf32>
    %58 = arith.negf %57 : vector<2x32xf32>
    %59 = math.exp %58 : vector<2x32xf32>
    %cst_50 = arith.constant 1.000000e+00 : f32
    %60 = vector.broadcast %cst_50 : f32 to vector<2x32xf32>
    %61 = arith.addf %60, %59 : vector<2x32xf32>
    %62 = arith.divf %60, %61 : vector<2x32xf32>
    %63 = arith.mulf %54, %32 : vector<2x32xf32>
    %64 = arith.mulf %48, %56 : vector<2x32xf32>
    %65 = arith.addf %63, %64 : vector<2x32xf32>
    %66 = math.tanh %65 : vector<2x32xf32>
    %67 = arith.mulf %62, %66 : vector<2x32xf32>
    %68 = vector.extract_strided_slice %42 {offsets = [0, 0], sizes = [2, 32], strides = [1, 1]} : vector<2x128xf32> to vector<2x32xf32>
    %69 = arith.negf %68 : vector<2x32xf32>
    %70 = math.exp %69 : vector<2x32xf32>
    %cst_51 = arith.constant 1.000000e+00 : f32
    %71 = vector.broadcast %cst_51 : f32 to vector<2x32xf32>
    %72 = arith.addf %71, %70 : vector<2x32xf32>
    %73 = arith.divf %71, %72 : vector<2x32xf32>
    %74 = vector.extract_strided_slice %42 {offsets = [0, 32], sizes = [2, 32], strides = [1, 1]} : vector<2x128xf32> to vector<2x32xf32>
    %75 = arith.negf %74 : vector<2x32xf32>
    %76 = math.exp %75 : vector<2x32xf32>
    %cst_52 = arith.constant 1.000000e+00 : f32
    %77 = vector.broadcast %cst_52 : f32 to vector<2x32xf32>
    %78 = arith.addf %77, %76 : vector<2x32xf32>
    %79 = arith.divf %77, %78 : vector<2x32xf32>
    %80 = vector.extract_strided_slice %42 {offsets = [0, 64], sizes = [2, 32], strides = [1, 1]} : vector<2x128xf32> to vector<2x32xf32>
    %81 = math.tanh %80 : vector<2x32xf32>
    %82 = vector.extract_strided_slice %42 {offsets = [0, 96], sizes = [2, 32], strides = [1, 1]} : vector<2x128xf32> to vector<2x32xf32>
    %83 = arith.negf %82 : vector<2x32xf32>
    %84 = math.exp %83 : vector<2x32xf32>
    %cst_53 = arith.constant 1.000000e+00 : f32
    %85 = vector.broadcast %cst_53 : f32 to vector<2x32xf32>
    %86 = arith.addf %85, %84 : vector<2x32xf32>
    %87 = arith.divf %85, %86 : vector<2x32xf32>
    %88 = arith.mulf %79, %34 : vector<2x32xf32>
    %89 = arith.mulf %73, %81 : vector<2x32xf32>
    %90 = arith.addf %88, %89 : vector<2x32xf32>
    %91 = math.tanh %90 : vector<2x32xf32>
    %92 = arith.mulf %87, %91 : vector<2x32xf32>
    %93 = arith.truncf %67 : vector<2x32xf32> to vector<2x32xbf16>
    %c0_54 = arith.constant 0 : index
    %c0_55 = arith.constant 0 : index
    %c0_56 = arith.constant 0 : index
    %94 = vector.load %arg14[%c0_54, %c0_55, %c0_56] : memref<8x2x32xbf16, #tpu.memory_space<vmem>>, vector<1x2x32xbf16>
    %95 = vector.shape_cast %94 : vector<1x2x32xbf16> to vector<2x32xbf16>
    %96 = vector.shape_cast %93 : vector<2x32xbf16> to vector<1x2x32xbf16>
    tpu.vector_store %arg14[%c0_54, %c0_55, %c0_56], %96 {strides = array<i32>} : memref<8x2x32xbf16, #tpu.memory_space<vmem>>, vector<1x2x32xbf16>,
    %97 = arith.truncf %92 : vector<2x32xf32> to vector<2x32xbf16>
    %c7 = arith.constant 7 : index
    %c0_57 = arith.constant 0 : index
    %c0_58 = arith.constant 0 : index
    %98 = vector.load %arg15[%c7, %c0_57, %c0_58] : memref<8x2x32xbf16, #tpu.memory_space<vmem>>, vector<1x2x32xbf16>
    %99 = vector.shape_cast %98 : vector<1x2x32xbf16> to vector<2x32xbf16>
    %100 = vector.shape_cast %97 : vector<2x32xbf16> to vector<1x2x32xbf16>
    tpu.vector_store %arg15[%c7, %c0_57, %c0_58], %100 {strides = array<i32>} : memref<8x2x32xbf16, #tpu.memory_space<vmem>>, vector<1x2x32xbf16>,
    %c2 = arith.constant 2 : index
    %c0_59 = arith.constant 0 : index
    %101 = vector.load %arg16[%c2, %c0_59] : memref<16x128xf32, #tpu.memory_space<vmem>>, vector<2x128xf32>
    %102 = arith.truncf %67 : vector<2x32xf32> to vector<2x32xbf16>
    %cst_60 = arith.constant dense<0.000000e+00> : vector<2x128xf32>
    %103 = tpu.matmul %102, %29, %cst_60 {dimension_numbers = #tpu.dot_dimension_numbers<[1], [0], [0], [1], [0, 0, 1, 1], [], []>} : vector<2x32xbf16>, vector<32x128xbf16>, vector<2x128xf32> -> vector<2x128xf32>
    %104 = arith.addf %101, %103 : vector<2x128xf32>
    %c12 = arith.constant 12 : index
    %c0_61 = arith.constant 0 : index
    %105 = vector.load %arg17[%c12, %c0_61] : memref<16x128xf32, #tpu.memory_space<vmem>>, vector<2x128xf32>
    %106 = arith.truncf %92 : vector<2x32xf32> to vector<2x32xbf16>
    %cst_62 = arith.constant dense<0.000000e+00> : vector<2x128xf32>
    %107 = tpu.matmul %106, %30, %cst_62 {dimension_numbers = #tpu.dot_dimension_numbers<[1], [0], [0], [1], [0, 0, 1, 1], [], []>} : vector<2x32xbf16>, vector<32x128xbf16>, vector<2x128xf32> -> vector<2x128xf32>
    %108 = arith.addf %105, %107 : vector<2x128xf32>
    %109 = vector.extract_strided_slice %104 {offsets = [0, 0], sizes = [2, 32], strides = [1, 1]} : vector<2x128xf32> to vector<2x32xf32>
    %110 = arith.negf %109 : vector<2x32xf32>
    %111 = math.exp %110 : vector<2x32xf32>
    %cst_63 = arith.constant 1.000000e+00 : f32
    %112 = vector.broadcast %cst_63 : f32 to vector<2x32xf32>
    %113 = arith.addf %112, %111 : vector<2x32xf32>
    %114 = arith.divf %112, %113 : vector<2x32xf32>
    %115 = vector.extract_strided_slice %104 {offsets = [0, 32], sizes = [2, 32], strides = [1, 1]} : vector<2x128xf32> to vector<2x32xf32>
    %116 = arith.negf %115 : vector<2x32xf32>
    %117 = math.exp %116 : vector<2x32xf32>
    %cst_64 = arith.constant 1.000000e+00 : f32
    %118 = vector.broadcast %cst_64 : f32 to vector<2x32xf32>
    %119 = arith.addf %118, %117 : vector<2x32xf32>
    %120 = arith.divf %118, %119 : vector<2x32xf32>
    %121 = vector.extract_strided_slice %104 {offsets = [0, 64], sizes = [2, 32], strides = [1, 1]} : vector<2x128xf32> to vector<2x32xf32>
    %122 = math.tanh %121 : vector<2x32xf32>
    %123 = vector.extract_strided_slice %104 {offsets = [0, 96], sizes = [2, 32], strides = [1, 1]} : vector<2x128xf32> to vector<2x32xf32>
    %124 = arith.negf %123 : vector<2x32xf32>
    %125 = math.exp %124 : vector<2x32xf32>
    %cst_65 = arith.constant 1.000000e+00 : f32
    %126 = vector.broadcast %cst_65 : f32 to vector<2x32xf32>
    %127 = arith.addf %126, %125 : vector<2x32xf32>
    %128 = arith.divf %126, %127 : vector<2x32xf32>
    %129 = arith.mulf %120, %65 : vector<2x32xf32>
    %130 = arith.mulf %114, %122 : vector<2x32xf32>
    %131 = arith.addf %129, %130 : vector<2x32xf32>
    %132 = math.tanh %131 : vector<2x32xf32>
    %133 = arith.mulf %128, %132 : vector<2x32xf32>
    %134 = vector.extract_strided_slice %108 {offsets = [0, 0], sizes = [2, 32], strides = [1, 1]} : vector<2x128xf32> to vector<2x32xf32>
    %135 = arith.negf %134 : vector<2x32xf32>
    %136 = math.exp %135 : vector<2x32xf32>
    %cst_66 = arith.constant 1.000000e+00 : f32
    %137 = vector.broadcast %cst_66 : f32 to vector<2x32xf32>
    %138 = arith.addf %137, %136 : vector<2x32xf32>
    %139 = arith.divf %137, %138 : vector<2x32xf32>
    %140 = vector.extract_strided_slice %108 {offsets = [0, 32], sizes = [2, 32], strides = [1, 1]} : vector<2x128xf32> to vector<2x32xf32>
    %141 = arith.negf %140 : vector<2x32xf32>
    %142 = math.exp %141 : vector<2x32xf32>
    %cst_67 = arith.constant 1.000000e+00 : f32
    %143 = vector.broadcast %cst_67 : f32 to vector<2x32xf32>
    %144 = arith.addf %143, %142 : vector<2x32xf32>
    %145 = arith.divf %143, %144 : vector<2x32xf32>
    %146 = vector.extract_strided_slice %108 {offsets = [0, 64], sizes = [2, 32], strides = [1, 1]} : vector<2x128xf32> to vector<2x32xf32>
    %147 = math.tanh %146 : vector<2x32xf32>
    %148 = vector.extract_strided_slice %108 {offsets = [0, 96], sizes = [2, 32], strides = [1, 1]} : vector<2x128xf32> to vector<2x32xf32>
    %149 = arith.negf %148 : vector<2x32xf32>
    %150 = math.exp %149 : vector<2x32xf32>
    %cst_68 = arith.constant 1.000000e+00 : f32
    %151 = vector.broadcast %cst_68 : f32 to vector<2x32xf32>
    %152 = arith.addf %151, %150 : vector<2x32xf32>
    %153 = arith.divf %151, %152 : vector<2x32xf32>
    %154 = arith.mulf %145, %90 : vector<2x32xf32>
    %155 = arith.mulf %139, %147 : vector<2x32xf32>
    %156 = arith.addf %154, %155 : vector<2x32xf32>
    %157 = math.tanh %156 : vector<2x32xf32>
    %158 = arith.mulf %153, %157 : vector<2x32xf32>
    %159 = arith.truncf %133 : vector<2x32xf32> to vector<2x32xbf16>
    %c1 = arith.constant 1 : index
    %c0_69 = arith.constant 0 : index
    %c0_70 = arith.constant 0 : index
    %160 = vector.load %arg14[%c1, %c0_69, %c0_70] : memref<8x2x32xbf16, #tpu.memory_space<vmem>>, vector<1x2x32xbf16>
    %161 = vector.shape_cast %160 : vector<1x2x32xbf16> to vector<2x32xbf16>
    %162 = vector.shape_cast %159 : vector<2x32xbf16> to vector<1x2x32xbf16>
    tpu.vector_store %arg14[%c1, %c0_69, %c0_70], %162 {strides = array<i32>} : memref<8x2x32xbf16, #tpu.memory_space<vmem>>, vector<1x2x32xbf16>,
    %163 = arith.truncf %158 : vector<2x32xf32> to vector<2x32xbf16>
    %c6 = arith.constant 6 : index
    %c0_71 = arith.constant 0 : index
    %c0_72 = arith.constant 0 : index
    %164 = vector.load %arg15[%c6, %c0_71, %c0_72] : memref<8x2x32xbf16, #tpu.memory_space<vmem>>, vector<1x2x32xbf16>
    %165 = vector.shape_cast %164 : vector<1x2x32xbf16> to vector<2x32xbf16>
    %166 = vector.shape_cast %163 : vector<2x32xbf16> to vector<1x2x32xbf16>
    tpu.vector_store %arg15[%c6, %c0_71, %c0_72], %166 {strides = array<i32>} : memref<8x2x32xbf16, #tpu.memory_space<vmem>>, vector<1x2x32xbf16>,
    %c4 = arith.constant 4 : index
    %c0_73 = arith.constant 0 : index
    %167 = vector.load %arg16[%c4, %c0_73] : memref<16x128xf32, #tpu.memory_space<vmem>>, vector<2x128xf32>
    %168 = arith.truncf %133 : vector<2x32xf32> to vector<2x32xbf16>
    %cst_74 = arith.constant dense<0.000000e+00> : vector<2x128xf32>
    %169 = tpu.matmul %168, %29, %cst_74 {dimension_numbers = #tpu.dot_dimension_numbers<[1], [0], [0], [1], [0, 0, 1, 1], [], []>} : vector<2x32xbf16>, vector<32x128xbf16>, vector<2x128xf32> -> vector<2x128xf32>
    %170 = arith.addf %167, %169 : vector<2x128xf32>
    %c10 = arith.constant 10 : index
    %c0_75 = arith.constant 0 : index
    %171 = vector.load %arg17[%c10, %c0_75] : memref<16x128xf32, #tpu.memory_space<vmem>>, vector<2x128xf32>
    %172 = arith.truncf %158 : vector<2x32xf32> to vector<2x32xbf16>
    %cst_76 = arith.constant dense<0.000000e+00> : vector<2x128xf32>
    %173 = tpu.matmul %172, %30, %cst_76 {dimension_numbers = #tpu.dot_dimension_numbers<[1], [0], [0], [1], [0, 0, 1, 1], [], []>} : vector<2x32xbf16>, vector<32x128xbf16>, vector<2x128xf32> -> vector<2x128xf32>
    %174 = arith.addf %171, %173 : vector<2x128xf32>
    %175 = vector.extract_strided_slice %170 {offsets = [0, 0], sizes = [2, 32], strides = [1, 1]} : vector<2x128xf32> to vector<2x32xf32>
    %176 = arith.negf %175 : vector<2x32xf32>
    %177 = math.exp %176 : vector<2x32xf32>
    %cst_77 = arith.constant 1.000000e+00 : f32
    %178 = vector.broadcast %cst_77 : f32 to vector<2x32xf32>
    %179 = arith.addf %178, %177 : vector<2x32xf32>
    %180 = arith.divf %178, %179 : vector<2x32xf32>
    %181 = vector.extract_strided_slice %170 {offsets = [0, 32], sizes = [2, 32], strides = [1, 1]} : vector<2x128xf32> to vector<2x32xf32>
    %182 = arith.negf %181 : vector<2x32xf32>
    %183 = math.exp %182 : vector<2x32xf32>
    %cst_78 = arith.constant 1.000000e+00 : f32
    %184 = vector.broadcast %cst_78 : f32 to vector<2x32xf32>
    %185 = arith.addf %184, %183 : vector<2x32xf32>
    %186 = arith.divf %184, %185 : vector<2x32xf32>
    %187 = vector.extract_strided_slice %170 {offsets = [0, 64], sizes = [2, 32], strides = [1, 1]} : vector<2x128xf32> to vector<2x32xf32>
    %188 = math.tanh %187 : vector<2x32xf32>
    %189 = vector.extract_strided_slice %170 {offsets = [0, 96], sizes = [2, 32], strides = [1, 1]} : vector<2x128xf32> to vector<2x32xf32>
    %190 = arith.negf %189 : vector<2x32xf32>
    %191 = math.exp %190 : vector<2x32xf32>
    %cst_79 = arith.constant 1.000000e+00 : f32
    %192 = vector.broadcast %cst_79 : f32 to vector<2x32xf32>
    %193 = arith.addf %192, %191 : vector<2x32xf32>
    %194 = arith.divf %192, %193 : vector<2x32xf32>
    %195 = arith.mulf %186, %131 : vector<2x32xf32>
    %196 = arith.mulf %180, %188 : vector<2x32xf32>
    %197 = arith.addf %195, %196 : vector<2x32xf32>
    %198 = math.tanh %197 : vector<2x32xf32>
    %199 = arith.mulf %194, %198 : vector<2x32xf32>
    %200 = vector.extract_strided_slice %174 {offsets = [0, 0], sizes = [2, 32], strides = [1, 1]} : vector<2x128xf32> to vector<2x32xf32>
    %201 = arith.negf %200 : vector<2x32xf32>
    %202 = math.exp %201 : vector<2x32xf32>
    %cst_80 = arith.constant 1.000000e+00 : f32
    %203 = vector.broadcast %cst_80 : f32 to vector<2x32xf32>
    %204 = arith.addf %203, %202 : vector<2x32xf32>
    %205 = arith.divf %203, %204 : vector<2x32xf32>
    %206 = vector.extract_strided_slice %174 {offsets = [0, 32], sizes = [2, 32], strides = [1, 1]} : vector<2x128xf32> to vector<2x32xf32>
    %207 = arith.negf %206 : vector<2x32xf32>
    %208 = math.exp %207 : vector<2x32xf32>
    %cst_81 = arith.constant 1.000000e+00 : f32
    %209 = vector.broadcast %cst_81 : f32 to vector<2x32xf32>
    %210 = arith.addf %209, %208 : vector<2x32xf32>
    %211 = arith.divf %209, %210 : vector<2x32xf32>
    %212 = vector.extract_strided_slice %174 {offsets = [0, 64], sizes = [2, 32], strides = [1, 1]} : vector<2x128xf32> to vector<2x32xf32>
    %213 = math.tanh %212 : vector<2x32xf32>
    %214 = vector.extract_strided_slice %174 {offsets = [0, 96], sizes = [2, 32], strides = [1, 1]} : vector<2x128xf32> to vector<2x32xf32>
    %215 = arith.negf %214 : vector<2x32xf32>
    %216 = math.exp %215 : vector<2x32xf32>
    %cst_82 = arith.constant 1.000000e+00 : f32
    %217 = vector.broadcast %cst_82 : f32 to vector<2x32xf32>
    %218 = arith.addf %217, %216 : vector<2x32xf32>
    %219 = arith.divf %217, %218 : vector<2x32xf32>
    %220 = arith.mulf %211, %156 : vector<2x32xf32>
    %221 = arith.mulf %205, %213 : vector<2x32xf32>
    %222 = arith.addf %220, %221 : vector<2x32xf32>
    %223 = math.tanh %222 : vector<2x32xf32>
    %224 = arith.mulf %219, %223 : vector<2x32xf32>
    %225 = arith.truncf %199 : vector<2x32xf32> to vector<2x32xbf16>
    %c2_83 = arith.constant 2 : index
    %c0_84 = arith.constant 0 : index
    %c0_85 = arith.constant 0 : index
    %226 = vector.load %arg14[%c2_83, %c0_84, %c0_85] : memref<8x2x32xbf16, #tpu.memory_space<vmem>>, vector<1x2x32xbf16>
    %227 = vector.shape_cast %226 : vector<1x2x32xbf16> to vector<2x32xbf16>
    %228 = vector.shape_cast %225 : vector<2x32xbf16> to vector<1x2x32xbf16>
    tpu.vector_store %arg14[%c2_83, %c0_84, %c0_85], %228 {strides = array<i32>} : memref<8x2x32xbf16, #tpu.memory_space<vmem>>, vector<1x2x32xbf16>,
    %229 = arith.truncf %224 : vector<2x32xf32> to vector<2x32xbf16>
    %c5 = arith.constant 5 : index
    %c0_86 = arith.constant 0 : index
    %c0_87 = arith.constant 0 : index
    %230 = vector.load %arg15[%c5, %c0_86, %c0_87] : memref<8x2x32xbf16, #tpu.memory_space<vmem>>, vector<1x2x32xbf16>
    %231 = vector.shape_cast %230 : vector<1x2x32xbf16> to vector<2x32xbf16>
    %232 = vector.shape_cast %229 : vector<2x32xbf16> to vector<1x2x32xbf16>
    tpu.vector_store %arg15[%c5, %c0_86, %c0_87], %232 {strides = array<i32>} : memref<8x2x32xbf16, #tpu.memory_space<vmem>>, vector<1x2x32xbf16>,
    %c6_88 = arith.constant 6 : index
    %c0_89 = arith.constant 0 : index
    %233 = vector.load %arg16[%c6_88, %c0_89] : memref<16x128xf32, #tpu.memory_space<vmem>>, vector<2x128xf32>
    %234 = arith.truncf %199 : vector<2x32xf32> to vector<2x32xbf16>
    %cst_90 = arith.constant dense<0.000000e+00> : vector<2x128xf32>
    %235 = tpu.matmul %234, %29, %cst_90 {dimension_numbers = #tpu.dot_dimension_numbers<[1], [0], [0], [1], [0, 0, 1, 1], [], []>} : vector<2x32xbf16>, vector<32x128xbf16>, vector<2x128xf32> -> vector<2x128xf32>
    %236 = arith.addf %233, %235 : vector<2x128xf32>
    %c8 = arith.constant 8 : index
    %c0_91 = arith.constant 0 : index
    %237 = vector.load %arg17[%c8, %c0_91] : memref<16x128xf32, #tpu.memory_space<vmem>>, vector<2x128xf32>
    %238 = arith.truncf %224 : vector<2x32xf32> to vector<2x32xbf16>
    %cst_92 = arith.constant dense<0.000000e+00> : vector<2x128xf32>
    %239 = tpu.matmul %238, %30, %cst_92 {dimension_numbers = #tpu.dot_dimension_numbers<[1], [0], [0], [1], [0, 0, 1, 1], [], []>} : vector<2x32xbf16>, vector<32x128xbf16>, vector<2x128xf32> -> vector<2x128xf32>
    %240 = arith.addf %237, %239 : vector<2x128xf32>
    %241 = vector.extract_strided_slice %236 {offsets = [0, 0], sizes = [2, 32], strides = [1, 1]} : vector<2x128xf32> to vector<2x32xf32>
    %242 = arith.negf %241 : vector<2x32xf32>
    %243 = math.exp %242 : vector<2x32xf32>
    %cst_93 = arith.constant 1.000000e+00 : f32
    %244 = vector.broadcast %cst_93 : f32 to vector<2x32xf32>
    %245 = arith.addf %244, %243 : vector<2x32xf32>
    %246 = arith.divf %244, %245 : vector<2x32xf32>
    %247 = vector.extract_strided_slice %236 {offsets = [0, 32], sizes = [2, 32], strides = [1, 1]} : vector<2x128xf32> to vector<2x32xf32>
    %248 = arith.negf %247 : vector<2x32xf32>
    %249 = math.exp %248 : vector<2x32xf32>
    %cst_94 = arith.constant 1.000000e+00 : f32
    %250 = vector.broadcast %cst_94 : f32 to vector<2x32xf32>
    %251 = arith.addf %250, %249 : vector<2x32xf32>
    %252 = arith.divf %250, %251 : vector<2x32xf32>
    %253 = vector.extract_strided_slice %236 {offsets = [0, 64], sizes = [2, 32], strides = [1, 1]} : vector<2x128xf32> to vector<2x32xf32>
    %254 = math.tanh %253 : vector<2x32xf32>
    %255 = vector.extract_strided_slice %236 {offsets = [0, 96], sizes = [2, 32], strides = [1, 1]} : vector<2x128xf32> to vector<2x32xf32>
    %256 = arith.negf %255 : vector<2x32xf32>
    %257 = math.exp %256 : vector<2x32xf32>
    %cst_95 = arith.constant 1.000000e+00 : f32
    %258 = vector.broadcast %cst_95 : f32 to vector<2x32xf32>
    %259 = arith.addf %258, %257 : vector<2x32xf32>
    %260 = arith.divf %258, %259 : vector<2x32xf32>
    %261 = arith.mulf %252, %197 : vector<2x32xf32>
    %262 = arith.mulf %246, %254 : vector<2x32xf32>
    %263 = arith.addf %261, %262 : vector<2x32xf32>
    %264 = math.tanh %263 : vector<2x32xf32>
    %265 = arith.mulf %260, %264 : vector<2x32xf32>
    %266 = vector.extract_strided_slice %240 {offsets = [0, 0], sizes = [2, 32], strides = [1, 1]} : vector<2x128xf32> to vector<2x32xf32>
    %267 = arith.negf %266 : vector<2x32xf32>
    %268 = math.exp %267 : vector<2x32xf32>
    %cst_96 = arith.constant 1.000000e+00 : f32
    %269 = vector.broadcast %cst_96 : f32 to vector<2x32xf32>
    %270 = arith.addf %269, %268 : vector<2x32xf32>
    %271 = arith.divf %269, %270 : vector<2x32xf32>
    %272 = vector.extract_strided_slice %240 {offsets = [0, 32], sizes = [2, 32], strides = [1, 1]} : vector<2x128xf32> to vector<2x32xf32>
    %273 = arith.negf %272 : vector<2x32xf32>
    %274 = math.exp %273 : vector<2x32xf32>
    %cst_97 = arith.constant 1.000000e+00 : f32
    %275 = vector.broadcast %cst_97 : f32 to vector<2x32xf32>
    %276 = arith.addf %275, %274 : vector<2x32xf32>
    %277 = arith.divf %275, %276 : vector<2x32xf32>
    %278 = vector.extract_strided_slice %240 {offsets = [0, 64], sizes = [2, 32], strides = [1, 1]} : vector<2x128xf32> to vector<2x32xf32>
    %279 = math.tanh %278 : vector<2x32xf32>
    %280 = vector.extract_strided_slice %240 {offsets = [0, 96], sizes = [2, 32], strides = [1, 1]} : vector<2x128xf32> to vector<2x32xf32>
    %281 = arith.negf %280 : vector<2x32xf32>
    %282 = math.exp %281 : vector<2x32xf32>
    %cst_98 = arith.constant 1.000000e+00 : f32
    %283 = vector.broadcast %cst_98 : f32 to vector<2x32xf32>
    %284 = arith.addf %283, %282 : vector<2x32xf32>
    %285 = arith.divf %283, %284 : vector<2x32xf32>
    %286 = arith.mulf %277, %222 : vector<2x32xf32>
    %287 = arith.mulf %271, %279 : vector<2x32xf32>
    %288 = arith.addf %286, %287 : vector<2x32xf32>
    %289 = math.tanh %288 : vector<2x32xf32>
    %290 = arith.mulf %285, %289 : vector<2x32xf32>
    %291 = arith.truncf %265 : vector<2x32xf32> to vector<2x32xbf16>
    %c3 = arith.constant 3 : index
    %c0_99 = arith.constant 0 : index
    %c0_100 = arith.constant 0 : index
    %292 = vector.load %arg14[%c3, %c0_99, %c0_100] : memref<8x2x32xbf16, #tpu.memory_space<vmem>>, vector<1x2x32xbf16>
    %293 = vector.shape_cast %292 : vector<1x2x32xbf16> to vector<2x32xbf16>
    %294 = vector.shape_cast %291 : vector<2x32xbf16> to vector<1x2x32xbf16>
    tpu.vector_store %arg14[%c3, %c0_99, %c0_100], %294 {strides = array<i32>} : memref<8x2x32xbf16, #tpu.memory_space<vmem>>, vector<1x2x32xbf16>,
    %295 = arith.truncf %290 : vector<2x32xf32> to vector<2x32xbf16>
    %c4_101 = arith.constant 4 : index
    %c0_102 = arith.constant 0 : index
    %c0_103 = arith.constant 0 : index
    %296 = vector.load %arg15[%c4_101, %c0_102, %c0_103] : memref<8x2x32xbf16, #tpu.memory_space<vmem>>, vector<1x2x32xbf16>
    %297 = vector.shape_cast %296 : vector<1x2x32xbf16> to vector<2x32xbf16>
    %298 = vector.shape_cast %295 : vector<2x32xbf16> to vector<1x2x32xbf16>
    tpu.vector_store %arg15[%c4_101, %c0_102, %c0_103], %298 {strides = array<i32>} : memref<8x2x32xbf16, #tpu.memory_space<vmem>>, vector<1x2x32xbf16>,
    %c8_104 = arith.constant 8 : index
    %c0_105 = arith.constant 0 : index
    %299 = vector.load %arg16[%c8_104, %c0_105] : memref<16x128xf32, #tpu.memory_space<vmem>>, vector<2x128xf32>
    %300 = arith.truncf %265 : vector<2x32xf32> to vector<2x32xbf16>
    %cst_106 = arith.constant dense<0.000000e+00> : vector<2x128xf32>
    %301 = tpu.matmul %300, %29, %cst_106 {dimension_numbers = #tpu.dot_dimension_numbers<[1], [0], [0], [1], [0, 0, 1, 1], [], []>} : vector<2x32xbf16>, vector<32x128xbf16>, vector<2x128xf32> -> vector<2x128xf32>
    %302 = arith.addf %299, %301 : vector<2x128xf32>
    %c6_107 = arith.constant 6 : index
    %c0_108 = arith.constant 0 : index
    %303 = vector.load %arg17[%c6_107, %c0_108] : memref<16x128xf32, #tpu.memory_space<vmem>>, vector<2x128xf32>
    %304 = arith.truncf %290 : vector<2x32xf32> to vector<2x32xbf16>
    %cst_109 = arith.constant dense<0.000000e+00> : vector<2x128xf32>
    %305 = tpu.matmul %304, %30, %cst_109 {dimension_numbers = #tpu.dot_dimension_numbers<[1], [0], [0], [1], [0, 0, 1, 1], [], []>} : vector<2x32xbf16>, vector<32x128xbf16>, vector<2x128xf32> -> vector<2x128xf32>
    %306 = arith.addf %303, %305 : vector<2x128xf32>
    %307 = vector.extract_strided_slice %302 {offsets = [0, 0], sizes = [2, 32], strides = [1, 1]} : vector<2x128xf32> to vector<2x32xf32>
    %308 = arith.negf %307 : vector<2x32xf32>
    %309 = math.exp %308 : vector<2x32xf32>
    %cst_110 = arith.constant 1.000000e+00 : f32
    %310 = vector.broadcast %cst_110 : f32 to vector<2x32xf32>
    %311 = arith.addf %310, %309 : vector<2x32xf32>
    %312 = arith.divf %310, %311 : vector<2x32xf32>
    %313 = vector.extract_strided_slice %302 {offsets = [0, 32], sizes = [2, 32], strides = [1, 1]} : vector<2x128xf32> to vector<2x32xf32>
    %314 = arith.negf %313 : vector<2x32xf32>
    %315 = math.exp %314 : vector<2x32xf32>
    %cst_111 = arith.constant 1.000000e+00 : f32
    %316 = vector.broadcast %cst_111 : f32 to vector<2x32xf32>
    %317 = arith.addf %316, %315 : vector<2x32xf32>
    %318 = arith.divf %316, %317 : vector<2x32xf32>
    %319 = vector.extract_strided_slice %302 {offsets = [0, 64], sizes = [2, 32], strides = [1, 1]} : vector<2x128xf32> to vector<2x32xf32>
    %320 = math.tanh %319 : vector<2x32xf32>
    %321 = vector.extract_strided_slice %302 {offsets = [0, 96], sizes = [2, 32], strides = [1, 1]} : vector<2x128xf32> to vector<2x32xf32>
    %322 = arith.negf %321 : vector<2x32xf32>
    %323 = math.exp %322 : vector<2x32xf32>
    %cst_112 = arith.constant 1.000000e+00 : f32
    %324 = vector.broadcast %cst_112 : f32 to vector<2x32xf32>
    %325 = arith.addf %324, %323 : vector<2x32xf32>
    %326 = arith.divf %324, %325 : vector<2x32xf32>
    %327 = arith.mulf %318, %263 : vector<2x32xf32>
    %328 = arith.mulf %312, %320 : vector<2x32xf32>
    %329 = arith.addf %327, %328 : vector<2x32xf32>
    %330 = math.tanh %329 : vector<2x32xf32>
    %331 = arith.mulf %326, %330 : vector<2x32xf32>
    %332 = vector.extract_strided_slice %306 {offsets = [0, 0], sizes = [2, 32], strides = [1, 1]} : vector<2x128xf32> to vector<2x32xf32>
    %333 = arith.negf %332 : vector<2x32xf32>
    %334 = math.exp %333 : vector<2x32xf32>
    %cst_113 = arith.constant 1.000000e+00 : f32
    %335 = vector.broadcast %cst_113 : f32 to vector<2x32xf32>
    %336 = arith.addf %335, %334 : vector<2x32xf32>
    %337 = arith.divf %335, %336 : vector<2x32xf32>
    %338 = vector.extract_strided_slice %306 {offsets = [0, 32], sizes = [2, 32], strides = [1, 1]} : vector<2x128xf32> to vector<2x32xf32>
    %339 = arith.negf %338 : vector<2x32xf32>
    %340 = math.exp %339 : vector<2x32xf32>
    %cst_114 = arith.constant 1.000000e+00 : f32
    %341 = vector.broadcast %cst_114 : f32 to vector<2x32xf32>
    %342 = arith.addf %341, %340 : vector<2x32xf32>
    %343 = arith.divf %341, %342 : vector<2x32xf32>
    %344 = vector.extract_strided_slice %306 {offsets = [0, 64], sizes = [2, 32], strides = [1, 1]} : vector<2x128xf32> to vector<2x32xf32>
    %345 = math.tanh %344 : vector<2x32xf32>
    %346 = vector.extract_strided_slice %306 {offsets = [0, 96], sizes = [2, 32], strides = [1, 1]} : vector<2x128xf32> to vector<2x32xf32>
    %347 = arith.negf %346 : vector<2x32xf32>
    %348 = math.exp %347 : vector<2x32xf32>
    %cst_115 = arith.constant 1.000000e+00 : f32
    %349 = vector.broadcast %cst_115 : f32 to vector<2x32xf32>
    %350 = arith.addf %349, %348 : vector<2x32xf32>
    %351 = arith.divf %349, %350 : vector<2x32xf32>
    %352 = arith.mulf %343, %288 : vector<2x32xf32>
    %353 = arith.mulf %337, %345 : vector<2x32xf32>
    %354 = arith.addf %352, %353 : vector<2x32xf32>
    %355 = math.tanh %354 : vector<2x32xf32>
    %356 = arith.mulf %351, %355 : vector<2x32xf32>
    %357 = arith.truncf %331 : vector<2x32xf32> to vector<2x32xbf16>
    %c4_116 = arith.constant 4 : index
    %c0_117 = arith.constant 0 : index
    %c0_118 = arith.constant 0 : index
    %358 = vector.load %arg14[%c4_116, %c0_117, %c0_118] : memref<8x2x32xbf16, #tpu.memory_space<vmem>>, vector<1x2x32xbf16>
    %359 = vector.shape_cast %358 : vector<1x2x32xbf16> to vector<2x32xbf16>
    %360 = vector.shape_cast %357 : vector<2x32xbf16> to vector<1x2x32xbf16>
    tpu.vector_store %arg14[%c4_116, %c0_117, %c0_118], %360 {strides = array<i32>} : memref<8x2x32xbf16, #tpu.memory_space<vmem>>, vector<1x2x32xbf16>,
    %361 = arith.truncf %356 : vector<2x32xf32> to vector<2x32xbf16>
    %c3_119 = arith.constant 3 : index
    %c0_120 = arith.constant 0 : index
    %c0_121 = arith.constant 0 : index
    %362 = vector.load %arg15[%c3_119, %c0_120, %c0_121] : memref<8x2x32xbf16, #tpu.memory_space<vmem>>, vector<1x2x32xbf16>
    %363 = vector.shape_cast %362 : vector<1x2x32xbf16> to vector<2x32xbf16>
    %364 = vector.shape_cast %361 : vector<2x32xbf16> to vector<1x2x32xbf16>
    tpu.vector_store %arg15[%c3_119, %c0_120, %c0_121], %364 {strides = array<i32>} : memref<8x2x32xbf16, #tpu.memory_space<vmem>>, vector<1x2x32xbf16>,
    %c10_122 = arith.constant 10 : index
    %c0_123 = arith.constant 0 : index
    %365 = vector.load %arg16[%c10_122, %c0_123] : memref<16x128xf32, #tpu.memory_space<vmem>>, vector<2x128xf32>
    %366 = arith.truncf %331 : vector<2x32xf32> to vector<2x32xbf16>
    %cst_124 = arith.constant dense<0.000000e+00> : vector<2x128xf32>
    %367 = tpu.matmul %366, %29, %cst_124 {dimension_numbers = #tpu.dot_dimension_numbers<[1], [0], [0], [1], [0, 0, 1, 1], [], []>} : vector<2x32xbf16>, vector<32x128xbf16>, vector<2x128xf32> -> vector<2x128xf32>
    %368 = arith.addf %365, %367 : vector<2x128xf32>
    %c4_125 = arith.constant 4 : index
    %c0_126 = arith.constant 0 : index
    %369 = vector.load %arg17[%c4_125, %c0_126] : memref<16x128xf32, #tpu.memory_space<vmem>>, vector<2x128xf32>
    %370 = arith.truncf %356 : vector<2x32xf32> to vector<2x32xbf16>
    %cst_127 = arith.constant dense<0.000000e+00> : vector<2x128xf32>
    %371 = tpu.matmul %370, %30, %cst_127 {dimension_numbers = #tpu.dot_dimension_numbers<[1], [0], [0], [1], [0, 0, 1, 1], [], []>} : vector<2x32xbf16>, vector<32x128xbf16>, vector<2x128xf32> -> vector<2x128xf32>
    %372 = arith.addf %369, %371 : vector<2x128xf32>
    %373 = vector.extract_strided_slice %368 {offsets = [0, 0], sizes = [2, 32], strides = [1, 1]} : vector<2x128xf32> to vector<2x32xf32>
    %374 = arith.negf %373 : vector<2x32xf32>
    %375 = math.exp %374 : vector<2x32xf32>
    %cst_128 = arith.constant 1.000000e+00 : f32
    %376 = vector.broadcast %cst_128 : f32 to vector<2x32xf32>
    %377 = arith.addf %376, %375 : vector<2x32xf32>
    %378 = arith.divf %376, %377 : vector<2x32xf32>
    %379 = vector.extract_strided_slice %368 {offsets = [0, 32], sizes = [2, 32], strides = [1, 1]} : vector<2x128xf32> to vector<2x32xf32>
    %380 = arith.negf %379 : vector<2x32xf32>
    %381 = math.exp %380 : vector<2x32xf32>
    %cst_129 = arith.constant 1.000000e+00 : f32
    %382 = vector.broadcast %cst_129 : f32 to vector<2x32xf32>
    %383 = arith.addf %382, %381 : vector<2x32xf32>
    %384 = arith.divf %382, %383 : vector<2x32xf32>
    %385 = vector.extract_strided_slice %368 {offsets = [0, 64], sizes = [2, 32], strides = [1, 1]} : vector<2x128xf32> to vector<2x32xf32>
    %386 = math.tanh %385 : vector<2x32xf32>
    %387 = vector.extract_strided_slice %368 {offsets = [0, 96], sizes = [2, 32], strides = [1, 1]} : vector<2x128xf32> to vector<2x32xf32>
    %388 = arith.negf %387 : vector<2x32xf32>
    %389 = math.exp %388 : vector<2x32xf32>
    %cst_130 = arith.constant 1.000000e+00 : f32
    %390 = vector.broadcast %cst_130 : f32 to vector<2x32xf32>
    %391 = arith.addf %390, %389 : vector<2x32xf32>
    %392 = arith.divf %390, %391 : vector<2x32xf32>
    %393 = arith.mulf %384, %329 : vector<2x32xf32>
    %394 = arith.mulf %378, %386 : vector<2x32xf32>
    %395 = arith.addf %393, %394 : vector<2x32xf32>
    %396 = math.tanh %395 : vector<2x32xf32>
    %397 = arith.mulf %392, %396 : vector<2x32xf32>
    %398 = vector.extract_strided_slice %372 {offsets = [0, 0], sizes = [2, 32], strides = [1, 1]} : vector<2x128xf32> to vector<2x32xf32>
    %399 = arith.negf %398 : vector<2x32xf32>
    %400 = math.exp %399 : vector<2x32xf32>
    %cst_131 = arith.constant 1.000000e+00 : f32
    %401 = vector.broadcast %cst_131 : f32 to vector<2x32xf32>
    %402 = arith.addf %401, %400 : vector<2x32xf32>
    %403 = arith.divf %401, %402 : vector<2x32xf32>
    %404 = vector.extract_strided_slice %372 {offsets = [0, 32], sizes = [2, 32], strides = [1, 1]} : vector<2x128xf32> to vector<2x32xf32>
    %405 = arith.negf %404 : vector<2x32xf32>
    %406 = math.exp %405 : vector<2x32xf32>
    %cst_132 = arith.constant 1.000000e+00 : f32
    %407 = vector.broadcast %cst_132 : f32 to vector<2x32xf32>
    %408 = arith.addf %407, %406 : vector<2x32xf32>
    %409 = arith.divf %407, %408 : vector<2x32xf32>
    %410 = vector.extract_strided_slice %372 {offsets = [0, 64], sizes = [2, 32], strides = [1, 1]} : vector<2x128xf32> to vector<2x32xf32>
    %411 = math.tanh %410 : vector<2x32xf32>
    %412 = vector.extract_strided_slice %372 {offsets = [0, 96], sizes = [2, 32], strides = [1, 1]} : vector<2x128xf32> to vector<2x32xf32>
    %413 = arith.negf %412 : vector<2x32xf32>
    %414 = math.exp %413 : vector<2x32xf32>
    %cst_133 = arith.constant 1.000000e+00 : f32
    %415 = vector.broadcast %cst_133 : f32 to vector<2x32xf32>
    %416 = arith.addf %415, %414 : vector<2x32xf32>
    %417 = arith.divf %415, %416 : vector<2x32xf32>
    %418 = arith.mulf %409, %354 : vector<2x32xf32>
    %419 = arith.mulf %403, %411 : vector<2x32xf32>
    %420 = arith.addf %418, %419 : vector<2x32xf32>
    %421 = math.tanh %420 : vector<2x32xf32>
    %422 = arith.mulf %417, %421 : vector<2x32xf32>
    %423 = arith.truncf %397 : vector<2x32xf32> to vector<2x32xbf16>
    %c5_134 = arith.constant 5 : index
    %c0_135 = arith.constant 0 : index
    %c0_136 = arith.constant 0 : index
    %424 = vector.load %arg14[%c5_134, %c0_135, %c0_136] : memref<8x2x32xbf16, #tpu.memory_space<vmem>>, vector<1x2x32xbf16>
    %425 = vector.shape_cast %424 : vector<1x2x32xbf16> to vector<2x32xbf16>
    %426 = vector.shape_cast %423 : vector<2x32xbf16> to vector<1x2x32xbf16>
    tpu.vector_store %arg14[%c5_134, %c0_135, %c0_136], %426 {strides = array<i32>} : memref<8x2x32xbf16, #tpu.memory_space<vmem>>, vector<1x2x32xbf16>,
    %427 = arith.truncf %422 : vector<2x32xf32> to vector<2x32xbf16>
    %c2_137 = arith.constant 2 : index
    %c0_138 = arith.constant 0 : index
    %c0_139 = arith.constant 0 : index
    %428 = vector.load %arg15[%c2_137, %c0_138, %c0_139] : memref<8x2x32xbf16, #tpu.memory_space<vmem>>, vector<1x2x32xbf16>
    %429 = vector.shape_cast %428 : vector<1x2x32xbf16> to vector<2x32xbf16>
    %430 = vector.shape_cast %427 : vector<2x32xbf16> to vector<1x2x32xbf16>
    tpu.vector_store %arg15[%c2_137, %c0_138, %c0_139], %430 {strides = array<i32>} : memref<8x2x32xbf16, #tpu.memory_space<vmem>>, vector<1x2x32xbf16>,
    %c12_140 = arith.constant 12 : index
    %c0_141 = arith.constant 0 : index
    %431 = vector.load %arg16[%c12_140, %c0_141] : memref<16x128xf32, #tpu.memory_space<vmem>>, vector<2x128xf32>
    %432 = arith.truncf %397 : vector<2x32xf32> to vector<2x32xbf16>
    %cst_142 = arith.constant dense<0.000000e+00> : vector<2x128xf32>
    %433 = tpu.matmul %432, %29, %cst_142 {dimension_numbers = #tpu.dot_dimension_numbers<[1], [0], [0], [1], [0, 0, 1, 1], [], []>} : vector<2x32xbf16>, vector<32x128xbf16>, vector<2x128xf32> -> vector<2x128xf32>
    %434 = arith.addf %431, %433 : vector<2x128xf32>
    %c2_143 = arith.constant 2 : index
    %c0_144 = arith.constant 0 : index
    %435 = vector.load %arg17[%c2_143, %c0_144] : memref<16x128xf32, #tpu.memory_space<vmem>>, vector<2x128xf32>
    %436 = arith.truncf %422 : vector<2x32xf32> to vector<2x32xbf16>
    %cst_145 = arith.constant dense<0.000000e+00> : vector<2x128xf32>
    %437 = tpu.matmul %436, %30, %cst_145 {dimension_numbers = #tpu.dot_dimension_numbers<[1], [0], [0], [1], [0, 0, 1, 1], [], []>} : vector<2x32xbf16>, vector<32x128xbf16>, vector<2x128xf32> -> vector<2x128xf32>
    %438 = arith.addf %435, %437 : vector<2x128xf32>
    %439 = vector.extract_strided_slice %434 {offsets = [0, 0], sizes = [2, 32], strides = [1, 1]} : vector<2x128xf32> to vector<2x32xf32>
    %440 = arith.negf %439 : vector<2x32xf32>
    %441 = math.exp %440 : vector<2x32xf32>
    %cst_146 = arith.constant 1.000000e+00 : f32
    %442 = vector.broadcast %cst_146 : f32 to vector<2x32xf32>
    %443 = arith.addf %442, %441 : vector<2x32xf32>
    %444 = arith.divf %442, %443 : vector<2x32xf32>
    %445 = vector.extract_strided_slice %434 {offsets = [0, 32], sizes = [2, 32], strides = [1, 1]} : vector<2x128xf32> to vector<2x32xf32>
    %446 = arith.negf %445 : vector<2x32xf32>
    %447 = math.exp %446 : vector<2x32xf32>
    %cst_147 = arith.constant 1.000000e+00 : f32
    %448 = vector.broadcast %cst_147 : f32 to vector<2x32xf32>
    %449 = arith.addf %448, %447 : vector<2x32xf32>
    %450 = arith.divf %448, %449 : vector<2x32xf32>
    %451 = vector.extract_strided_slice %434 {offsets = [0, 64], sizes = [2, 32], strides = [1, 1]} : vector<2x128xf32> to vector<2x32xf32>
    %452 = math.tanh %451 : vector<2x32xf32>
    %453 = vector.extract_strided_slice %434 {offsets = [0, 96], sizes = [2, 32], strides = [1, 1]} : vector<2x128xf32> to vector<2x32xf32>
    %454 = arith.negf %453 : vector<2x32xf32>
    %455 = math.exp %454 : vector<2x32xf32>
    %cst_148 = arith.constant 1.000000e+00 : f32
    %456 = vector.broadcast %cst_148 : f32 to vector<2x32xf32>
    %457 = arith.addf %456, %455 : vector<2x32xf32>
    %458 = arith.divf %456, %457 : vector<2x32xf32>
    %459 = arith.mulf %450, %395 : vector<2x32xf32>
    %460 = arith.mulf %444, %452 : vector<2x32xf32>
    %461 = arith.addf %459, %460 : vector<2x32xf32>
    %462 = math.tanh %461 : vector<2x32xf32>
    %463 = arith.mulf %458, %462 : vector<2x32xf32>
    %464 = vector.extract_strided_slice %438 {offsets = [0, 0], sizes = [2, 32], strides = [1, 1]} : vector<2x128xf32> to vector<2x32xf32>
    %465 = arith.negf %464 : vector<2x32xf32>
    %466 = math.exp %465 : vector<2x32xf32>
    %cst_149 = arith.constant 1.000000e+00 : f32
    %467 = vector.broadcast %cst_149 : f32 to vector<2x32xf32>
    %468 = arith.addf %467, %466 : vector<2x32xf32>
    %469 = arith.divf %467, %468 : vector<2x32xf32>
    %470 = vector.extract_strided_slice %438 {offsets = [0, 32], sizes = [2, 32], strides = [1, 1]} : vector<2x128xf32> to vector<2x32xf32>
    %471 = arith.negf %470 : vector<2x32xf32>
    %472 = math.exp %471 : vector<2x32xf32>
    %cst_150 = arith.constant 1.000000e+00 : f32
    %473 = vector.broadcast %cst_150 : f32 to vector<2x32xf32>
    %474 = arith.addf %473, %472 : vector<2x32xf32>
    %475 = arith.divf %473, %474 : vector<2x32xf32>
    %476 = vector.extract_strided_slice %438 {offsets = [0, 64], sizes = [2, 32], strides = [1, 1]} : vector<2x128xf32> to vector<2x32xf32>
    %477 = math.tanh %476 : vector<2x32xf32>
    %478 = vector.extract_strided_slice %438 {offsets = [0, 96], sizes = [2, 32], strides = [1, 1]} : vector<2x128xf32> to vector<2x32xf32>
    %479 = arith.negf %478 : vector<2x32xf32>
    %480 = math.exp %479 : vector<2x32xf32>
    %cst_151 = arith.constant 1.000000e+00 : f32
    %481 = vector.broadcast %cst_151 : f32 to vector<2x32xf32>
    %482 = arith.addf %481, %480 : vector<2x32xf32>
    %483 = arith.divf %481, %482 : vector<2x32xf32>
    %484 = arith.mulf %475, %420 : vector<2x32xf32>
    %485 = arith.mulf %469, %477 : vector<2x32xf32>
    %486 = arith.addf %484, %485 : vector<2x32xf32>
    %487 = math.tanh %486 : vector<2x32xf32>
    %488 = arith.mulf %483, %487 : vector<2x32xf32>
    %489 = arith.truncf %463 : vector<2x32xf32> to vector<2x32xbf16>
    %c6_152 = arith.constant 6 : index
    %c0_153 = arith.constant 0 : index
    %c0_154 = arith.constant 0 : index
    %490 = vector.load %arg14[%c6_152, %c0_153, %c0_154] : memref<8x2x32xbf16, #tpu.memory_space<vmem>>, vector<1x2x32xbf16>
    %491 = vector.shape_cast %490 : vector<1x2x32xbf16> to vector<2x32xbf16>
    %492 = vector.shape_cast %489 : vector<2x32xbf16> to vector<1x2x32xbf16>
    tpu.vector_store %arg14[%c6_152, %c0_153, %c0_154], %492 {strides = array<i32>} : memref<8x2x32xbf16, #tpu.memory_space<vmem>>, vector<1x2x32xbf16>,
    %493 = arith.truncf %488 : vector<2x32xf32> to vector<2x32xbf16>
    %c1_155 = arith.constant 1 : index
    %c0_156 = arith.constant 0 : index
    %c0_157 = arith.constant 0 : index
    %494 = vector.load %arg15[%c1_155, %c0_156, %c0_157] : memref<8x2x32xbf16, #tpu.memory_space<vmem>>, vector<1x2x32xbf16>
    %495 = vector.shape_cast %494 : vector<1x2x32xbf16> to vector<2x32xbf16>
    %496 = vector.shape_cast %493 : vector<2x32xbf16> to vector<1x2x32xbf16>
    tpu.vector_store %arg15[%c1_155, %c0_156, %c0_157], %496 {strides = array<i32>} : memref<8x2x32xbf16, #tpu.memory_space<vmem>>, vector<1x2x32xbf16>,
    %c14_158 = arith.constant 14 : index
    %c0_159 = arith.constant 0 : index
    %497 = vector.load %arg16[%c14_158, %c0_159] : memref<16x128xf32, #tpu.memory_space<vmem>>, vector<2x128xf32>
    %498 = arith.truncf %463 : vector<2x32xf32> to vector<2x32xbf16>
    %cst_160 = arith.constant dense<0.000000e+00> : vector<2x128xf32>
    %499 = tpu.matmul %498, %29, %cst_160 {dimension_numbers = #tpu.dot_dimension_numbers<[1], [0], [0], [1], [0, 0, 1, 1], [], []>} : vector<2x32xbf16>, vector<32x128xbf16>, vector<2x128xf32> -> vector<2x128xf32>
    %500 = arith.addf %497, %499 : vector<2x128xf32>
    %c0_161 = arith.constant 0 : index
    %c0_162 = arith.constant 0 : index
    %501 = vector.load %arg17[%c0_161, %c0_162] : memref<16x128xf32, #tpu.memory_space<vmem>>, vector<2x128xf32>
    %502 = arith.truncf %488 : vector<2x32xf32> to vector<2x32xbf16>
    %cst_163 = arith.constant dense<0.000000e+00> : vector<2x128xf32>
    %503 = tpu.matmul %502, %30, %cst_163 {dimension_numbers = #tpu.dot_dimension_numbers<[1], [0], [0], [1], [0, 0, 1, 1], [], []>} : vector<2x32xbf16>, vector<32x128xbf16>, vector<2x128xf32> -> vector<2x128xf32>
    %504 = arith.addf %501, %503 : vector<2x128xf32>
    %505 = vector.extract_strided_slice %500 {offsets = [0, 0], sizes = [2, 32], strides = [1, 1]} : vector<2x128xf32> to vector<2x32xf32>
    %506 = arith.negf %505 : vector<2x32xf32>
    %507 = math.exp %506 : vector<2x32xf32>
    %cst_164 = arith.constant 1.000000e+00 : f32
    %508 = vector.broadcast %cst_164 : f32 to vector<2x32xf32>
    %509 = arith.addf %508, %507 : vector<2x32xf32>
    %510 = arith.divf %508, %509 : vector<2x32xf32>
    %511 = vector.extract_strided_slice %500 {offsets = [0, 32], sizes = [2, 32], strides = [1, 1]} : vector<2x128xf32> to vector<2x32xf32>
    %512 = arith.negf %511 : vector<2x32xf32>
    %513 = math.exp %512 : vector<2x32xf32>
    %cst_165 = arith.constant 1.000000e+00 : f32
    %514 = vector.broadcast %cst_165 : f32 to vector<2x32xf32>
    %515 = arith.addf %514, %513 : vector<2x32xf32>
    %516 = arith.divf %514, %515 : vector<2x32xf32>
    %517 = vector.extract_strided_slice %500 {offsets = [0, 64], sizes = [2, 32], strides = [1, 1]} : vector<2x128xf32> to vector<2x32xf32>
    %518 = math.tanh %517 : vector<2x32xf32>
    %519 = vector.extract_strided_slice %500 {offsets = [0, 96], sizes = [2, 32], strides = [1, 1]} : vector<2x128xf32> to vector<2x32xf32>
    %520 = arith.negf %519 : vector<2x32xf32>
    %521 = math.exp %520 : vector<2x32xf32>
    %cst_166 = arith.constant 1.000000e+00 : f32
    %522 = vector.broadcast %cst_166 : f32 to vector<2x32xf32>
    %523 = arith.addf %522, %521 : vector<2x32xf32>
    %524 = arith.divf %522, %523 : vector<2x32xf32>
    %525 = arith.mulf %516, %461 : vector<2x32xf32>
    %526 = arith.mulf %510, %518 : vector<2x32xf32>
    %527 = arith.addf %525, %526 : vector<2x32xf32>
    %528 = math.tanh %527 : vector<2x32xf32>
    %529 = arith.mulf %524, %528 : vector<2x32xf32>
    %530 = vector.extract_strided_slice %504 {offsets = [0, 0], sizes = [2, 32], strides = [1, 1]} : vector<2x128xf32> to vector<2x32xf32>
    %531 = arith.negf %530 : vector<2x32xf32>
    %532 = math.exp %531 : vector<2x32xf32>
    %cst_167 = arith.constant 1.000000e+00 : f32
    %533 = vector.broadcast %cst_167 : f32 to vector<2x32xf32>
    %534 = arith.addf %533, %532 : vector<2x32xf32>
    %535 = arith.divf %533, %534 : vector<2x32xf32>
    %536 = vector.extract_strided_slice %504 {offsets = [0, 32], sizes = [2, 32], strides = [1, 1]} : vector<2x128xf32> to vector<2x32xf32>
    %537 = arith.negf %536 : vector<2x32xf32>
    %538 = math.exp %537 : vector<2x32xf32>
    %cst_168 = arith.constant 1.000000e+00 : f32
    %539 = vector.broadcast %cst_168 : f32 to vector<2x32xf32>
    %540 = arith.addf %539, %538 : vector<2x32xf32>
    %541 = arith.divf %539, %540 : vector<2x32xf32>
    %542 = vector.extract_strided_slice %504 {offsets = [0, 64], sizes = [2, 32], strides = [1, 1]} : vector<2x128xf32> to vector<2x32xf32>
    %543 = math.tanh %542 : vector<2x32xf32>
    %544 = vector.extract_strided_slice %504 {offsets = [0, 96], sizes = [2, 32], strides = [1, 1]} : vector<2x128xf32> to vector<2x32xf32>
    %545 = arith.negf %544 : vector<2x32xf32>
    %546 = math.exp %545 : vector<2x32xf32>
    %cst_169 = arith.constant 1.000000e+00 : f32
    %547 = vector.broadcast %cst_169 : f32 to vector<2x32xf32>
    %548 = arith.addf %547, %546 : vector<2x32xf32>
    %549 = arith.divf %547, %548 : vector<2x32xf32>
    %550 = arith.mulf %541, %486 : vector<2x32xf32>
    %551 = arith.mulf %535, %543 : vector<2x32xf32>
    %552 = arith.addf %550, %551 : vector<2x32xf32>
    %553 = math.tanh %552 : vector<2x32xf32>
    %554 = arith.mulf %549, %553 : vector<2x32xf32>
    %555 = arith.truncf %529 : vector<2x32xf32> to vector<2x32xbf16>
    %c7_170 = arith.constant 7 : index
    %c0_171 = arith.constant 0 : index
    %c0_172 = arith.constant 0 : index
    %556 = vector.load %arg14[%c7_170, %c0_171, %c0_172] : memref<8x2x32xbf16, #tpu.memory_space<vmem>>, vector<1x2x32xbf16>
    %557 = vector.shape_cast %556 : vector<1x2x32xbf16> to vector<2x32xbf16>
    %558 = vector.shape_cast %555 : vector<2x32xbf16> to vector<1x2x32xbf16>
    tpu.vector_store %arg14[%c7_170, %c0_171, %c0_172], %558 {strides = array<i32>} : memref<8x2x32xbf16, #tpu.memory_space<vmem>>, vector<1x2x32xbf16>,
    %559 = arith.truncf %554 : vector<2x32xf32> to vector<2x32xbf16>
    %c0_173 = arith.constant 0 : index
    %c0_174 = arith.constant 0 : index
    %c0_175 = arith.constant 0 : index
    %560 = vector.load %arg15[%c0_173, %c0_174, %c0_175] : memref<8x2x32xbf16, #tpu.memory_space<vmem>>, vector<1x2x32xbf16>
    %561 = vector.shape_cast %560 : vector<1x2x32xbf16> to vector<2x32xbf16>
    %562 = vector.shape_cast %559 : vector<2x32xbf16> to vector<1x2x32xbf16>
    tpu.vector_store %arg15[%c0_173, %c0_174, %c0_175], %562 {strides = array<i32>} : memref<8x2x32xbf16, #tpu.memory_space<vmem>>, vector<1x2x32xbf16>,
    %c0_176 = arith.constant 0 : index
    %c0_177 = arith.constant 0 : index
    %563 = vector.load %arg18[%c0_176, %c0_177] : memref<2x32xf32, #tpu.memory_space<vmem>>, vector<2x32xf32>
    tpu.vector_store %arg18[%c0_176, %c0_177], %529 {strides = array<i32>} : memref<2x32xf32, #tpu.memory_space<vmem>>, vector<2x32xf32>,
    %c0_178 = arith.constant 0 : index
    %c0_179 = arith.constant 0 : index
    %564 = vector.load %arg19[%c0_178, %c0_179] : memref<2x32xf32, #tpu.memory_space<vmem>>, vector<2x32xf32>
    tpu.vector_store %arg19[%c0_178, %c0_179], %527 {strides = array<i32>} : memref<2x32xf32, #tpu.memory_space<vmem>>, vector<2x32xf32>,
    %c0_180 = arith.constant 0 : index
    %c0_181 = arith.constant 0 : index
    %565 = vector.load %arg20[%c0_180, %c0_181] : memref<2x32xf32, #tpu.memory_space<vmem>>, vector<2x32xf32>
    tpu.vector_store %arg20[%c0_180, %c0_181], %554 {strides = array<i32>} : memref<2x32xf32, #tpu.memory_space<vmem>>, vector<2x32xf32>,
    %c0_182 = arith.constant 0 : index
    %c0_183 = arith.constant 0 : index
    %566 = vector.load %arg21[%c0_182, %c0_183] : memref<2x32xf32, #tpu.memory_space<vmem>>, vector<2x32xf32>
    tpu.vector_store %arg21[%c0_182, %c0_183], %552 {strides = array<i32>} : memref<2x32xf32, #tpu.memory_space<vmem>>, vector<2x32xf32>,
    return
  }
  func.func @transform_0(%arg0: i32, %arg1: i32) -> (i32, i32, i32) {
    %c0_i32 = arith.constant 0 : i32
    %c0_i32_0 = arith.constant 0 : i32
    return %arg1, %arg0, %c0_i32 : i32, i32, i32
  }
  func.func @transform_1(%arg0: i32, %arg1: i32) -> (i32, i32, i32) {
    %c1_i32 = arith.constant 1 : i32
    %0 = arith.subi %c1_i32, %arg1 : i32
    %c0_i32 = arith.constant 0 : i32
    %c0_i32_0 = arith.constant 0 : i32
    return %0, %arg0, %c0_i32 : i32, i32, i32
  }
  func.func @transform_2(%arg0: i32, %arg1: i32) -> (i32, i32, i32) {
    %c0_i32 = arith.constant 0 : i32
    %c0_i32_0 = arith.constant 0 : i32
    return %arg1, %arg0, %c0_i32 : i32, i32, i32
  }
  func.func @transform_3(%arg0: i32, %arg1: i32) -> (i32, i32, i32) {
    %c1_i32 = arith.constant 1 : i32
    %0 = arith.subi %c1_i32, %arg1 : i32
    %c0_i32 = arith.constant 0 : i32
    %c0_i32_0 = arith.constant 0 : i32
    return %0, %arg0, %c0_i32 : i32, i32, i32
  }
  func.func @transform_4(%arg0: i32, %arg1: i32) -> (i32, i32) {
    %c0_i32 = arith.constant 0 : i32
    %c0_i32_0 = arith.constant 0 : i32
    %c0_i32_1 = arith.constant 0 : i32
    return %c0_i32, %c0_i32_0 : i32, i32
  }
  func.func @transform_5(%arg0: i32, %arg1: i32) -> (i32, i32) {
    %c0_i32 = arith.constant 0 : i32
    %c0_i32_0 = arith.constant 0 : i32
    %c0_i32_1 = arith.constant 0 : i32
    return %c0_i32, %c0_i32_0 : i32, i32
  }
  func.func @transform_6(%arg0: i32, %arg1: i32) -> (i32, i32) {
    %c0_i32 = arith.constant 0 : i32
    %c0_i32_0 = arith.constant 0 : i32
    %c0_i32_1 = arith.constant 0 : i32
    return %c0_i32, %c0_i32_0 : i32, i32
  }
  func.func @transform_7(%arg0: i32, %arg1: i32) -> (i32, i32) {
    %c0_i32 = arith.constant 0 : i32
    %c0_i32_0 = arith.constant 0 : i32
    %c0_i32_1 = arith.constant 0 : i32
    return %c0_i32, %c0_i32_0 : i32, i32
  }
  func.func @transform_8(%arg0: i32, %arg1: i32) -> (i32, i32) {
    %c0_i32 = arith.constant 0 : i32
    %c0_i32_0 = arith.constant 0 : i32
    %c0_i32_1 = arith.constant 0 : i32
    return %c0_i32, %c0_i32_0 : i32, i32
  }
  func.func @transform_9(%arg0: i32, %arg1: i32) -> (i32, i32) {
    %c0_i32 = arith.constant 0 : i32
    %c0_i32_0 = arith.constant 0 : i32
    %c0_i32_1 = arith.constant 0 : i32
    return %c0_i32, %c0_i32_0 : i32, i32
  }
  func.func @transform_10(%arg0: i32, %arg1: i32) -> (i32, i32) {
    %c0_i32 = arith.constant 0 : i32
    %c0_i32_0 = arith.constant 0 : i32
    %c0_i32_1 = arith.constant 0 : i32
    return %c0_i32, %c0_i32_0 : i32, i32
  }
  func.func @transform_11(%arg0: i32, %arg1: i32) -> (i32, i32) {
    %c0_i32 = arith.constant 0 : i32
    %c0_i32_0 = arith.constant 0 : i32
    %c0_i32_1 = arith.constant 0 : i32
    return %c0_i32, %c0_i32_0 : i32, i32
  }
  func.func @transform_12(%arg0: i32, %arg1: i32) -> (i32, i32, i32) {
    %c0_i32 = arith.constant 0 : i32
    %c0_i32_0 = arith.constant 0 : i32
    return %arg1, %arg0, %c0_i32 : i32, i32, i32
  }
  func.func @transform_13(%arg0: i32, %arg1: i32) -> (i32, i32, i32) {
    %c1_i32 = arith.constant 1 : i32
    %0 = arith.subi %c1_i32, %arg1 : i32
    %c0_i32 = arith.constant 0 : i32
    %c0_i32_0 = arith.constant 0 : i32
    return %0, %arg0, %c0_i32 : i32, i32, i32
  }
}

module attributes {stable_mosaic.version = 11 : i64} {
  func.func @_fc2_kernel(%arg0: i32, %arg1: memref<32x32xbf16, #tpu.memory_space<vmem>>, %arg2: memref<32x32xbf16, #tpu.memory_space<vmem>>, %arg3: memref<32x5xbf16, #tpu.memory_space<vmem>>, %arg4: memref<32x5xbf16, #tpu.memory_space<vmem>>, %arg5: memref<1x5xf32, #tpu.memory_space<vmem>>, %arg6: memref<32x5xf32, #tpu.memory_space<vmem>>) attributes {dimension_semantics = [#tpu.dimension_semantics<parallel>], iteration_bounds = array<i64: 1>, scalar_prefetch = 0 : i64, scratch_operands = 0 : i64, tpu.core_type = #tpu.core_type<tc>, window_params = [{transform_indices = @transform_0, window_bounds = array<i64: 32, 32>}, {transform_indices = @transform_1, window_bounds = array<i64: 32, 32>}, {pipeline_mode = #tpu.pipeline_mode<synchronous>, transform_indices = @transform_2, window_bounds = array<i64: 32, 5>}, {pipeline_mode = #tpu.pipeline_mode<synchronous>, transform_indices = @transform_3, window_bounds = array<i64: 32, 5>}, {pipeline_mode = #tpu.pipeline_mode<synchronous>, transform_indices = @transform_4, window_bounds = array<i64: 1, 5>}, {transform_indices = @transform_5, window_bounds = array<i64: 32, 5>}]} {
    %c0 = arith.constant 0 : index
    %c0_0 = arith.constant 0 : index
    %0 = vector.load %arg1[%c0, %c0_0] : memref<32x32xbf16, #tpu.memory_space<vmem>>, vector<32x32xbf16>
    %c0_1 = arith.constant 0 : index
    %c0_2 = arith.constant 0 : index
    %1 = vector.load %arg3[%c0_1, %c0_2] : memref<32x5xbf16, #tpu.memory_space<vmem>>, vector<32x5xbf16>
    %cst = arith.constant dense<0.000000e+00> : vector<32x5xf32>
    %2 = tpu.matmul %0, %1, %cst {dimension_numbers = #tpu.dot_dimension_numbers<[1], [0], [0], [1], [0, 0, 1, 1], [], []>} : vector<32x32xbf16>, vector<32x5xbf16>, vector<32x5xf32> -> vector<32x5xf32>
    %c0_3 = arith.constant 0 : index
    %c0_4 = arith.constant 0 : index
    %3 = vector.load %arg2[%c0_3, %c0_4] : memref<32x32xbf16, #tpu.memory_space<vmem>>, vector<32x32xbf16>
    %c0_5 = arith.constant 0 : index
    %c0_6 = arith.constant 0 : index
    %4 = vector.load %arg4[%c0_5, %c0_6] : memref<32x5xbf16, #tpu.memory_space<vmem>>, vector<32x5xbf16>
    %cst_7 = arith.constant dense<0.000000e+00> : vector<32x5xf32>
    %5 = tpu.matmul %3, %4, %cst_7 {dimension_numbers = #tpu.dot_dimension_numbers<[1], [0], [0], [1], [0, 0, 1, 1], [], []>} : vector<32x32xbf16>, vector<32x5xbf16>, vector<32x5xf32> -> vector<32x5xf32>
    %6 = arith.addf %2, %5 : vector<32x5xf32>
    %c0_8 = arith.constant 0 : index
    %c0_9 = arith.constant 0 : index
    %7 = vector.load %arg5[%c0_8, %c0_9] : memref<1x5xf32, #tpu.memory_space<vmem>>, vector<1x5xf32>
    %8 = vector.broadcast %7 : vector<1x5xf32> to vector<32x5xf32>
    %9 = arith.addf %6, %8 : vector<32x5xf32>
    %c0_10 = arith.constant 0 : index
    %c0_11 = arith.constant 0 : index
    %10 = vector.load %arg6[%c0_10, %c0_11] : memref<32x5xf32, #tpu.memory_space<vmem>>, vector<32x5xf32>
    tpu.vector_store %arg6[%c0_10, %c0_11], %9 {strides = array<i32>} : memref<32x5xf32, #tpu.memory_space<vmem>>, vector<32x5xf32>,
    return
  }
  func.func @transform_0(%arg0: i32) -> (i32, i32) {
    %c0_i32 = arith.constant 0 : i32
    %c0_i32_0 = arith.constant 0 : i32
    return %arg0, %c0_i32 : i32, i32
  }
  func.func @transform_1(%arg0: i32) -> (i32, i32) {
    %c0_i32 = arith.constant 0 : i32
    %c0_i32_0 = arith.constant 0 : i32
    return %arg0, %c0_i32 : i32, i32
  }
  func.func @transform_2(%arg0: i32) -> (i32, i32) {
    %c0_i32 = arith.constant 0 : i32
    %c0_i32_0 = arith.constant 0 : i32
    %c0_i32_1 = arith.constant 0 : i32
    return %c0_i32, %c0_i32_0 : i32, i32
  }
  func.func @transform_3(%arg0: i32) -> (i32, i32) {
    %c0_i32 = arith.constant 0 : i32
    %c0_i32_0 = arith.constant 0 : i32
    %c0_i32_1 = arith.constant 0 : i32
    return %c0_i32, %c0_i32_0 : i32, i32
  }
  func.func @transform_4(%arg0: i32) -> (i32, i32) {
    %c0_i32 = arith.constant 0 : i32
    %c0_i32_0 = arith.constant 0 : i32
    %c0_i32_1 = arith.constant 0 : i32
    return %c0_i32, %c0_i32_0 : i32, i32
  }
  func.func @transform_5(%arg0: i32) -> (i32, i32) {
    %c0_i32 = arith.constant 0 : i32
    %c0_i32_0 = arith.constant 0 : i32
    return %arg0, %c0_i32 : i32, i32
  }
}

</mosaic_0001>

<llo_original>
// kernel: _forward.4
$region0: #{_forward.4}
  #allocation0 [shape = 'u32[]', space=smem, size = 0x4, offset = 0x4, fixed_abs, tag = 'smem constant byte address 0x4 - core index']
  #allocation1 [shape = 'u32[72,128]{1,0:T(1,128)}', space=vmem, size = 0x9000, scoped, tag = 'internal scratch']
  %s0 = inlined_call_operand.vmem [shape: f32[32,16], index: 0, kind: input, shape index: {}]
  %s1 = inlined_call_operand.vmem [shape: bf16[16,32], index: 1, kind: input, shape index: {}]
  %s2 = inlined_call_operand.vmem [shape: f32[1,32], index: 2, kind: input, shape index: {}]
  %s3 = inlined_call_operand.vmem [shape: bf16[32,32], index: 3, kind: output, shape index: {}]
  %s4 = sld [smem:[#allocation0]]
  $region22: #{_forward.4} parent=0
    _
  %s6 = ssub.s32 1, %s4
  %s7 = scalar_select 0, %s6, %s4
  // Predicated region
  $region2: #{_forward.4} parent=0 // pred_check
    _
  $region3: #{_forward.4} parent=0 // pred_check_branch
    %9 = sbr.rel (0) target = $region5
  $region4: #{_forward.4} parent=0 // pred_region
    _
  $region5: #{_forward.4} parent=0 // pred_fallthru
    _
  // Predicated region
  $region6: #{_forward.4} parent=0 // pred_check
    _
  $region7: #{_forward.4} parent=0 // pred_check_branch
    %11 = sbr.rel (0) target = $region9
  $region8: #{_forward.4} parent=0 // pred_region
    _
  $region9: #{_forward.4} parent=0 // pred_fallthru
    _
  // Predicated region
  $region10: #{_forward.4} parent=0 // pred_check
    _
  $region11: #{_forward.4} parent=0 // pred_check_branch
    %13 = sbr.rel (0) target = $region13
  $region12: #{_forward.4} parent=0 // pred_region
    _
  $region13: #{_forward.4} parent=0 // pred_fallthru
    _
  %v15 = vld [vmem:[%s0] sm:$0xff]
  %v16 = vld [vmem:[%s0 + $0x8] sm:$0xff]
  %v17 = vld [vmem:[%s0 + $0x10] sm:$0xff]
  %v18 = vld [vmem:[%s0 + $0x18] sm:$0xff]
  %v19 = vpack.c.bf16 %v16, %v15
  %v20 = vpack.c.bf16 %v18, %v17
  %v21 = vld [vmem:[%s1] sm:$0xf]
  %v22 = vld [vmem:[%s1 + $0x4] sm:$0xf]
  %v23 = vld [vmem:[%s2] sm:$0x1]
  %v25 = vperm.slane %v23, 0
  %v29 = vunpack.c.l.b16 %v21
  %v30 = vunpack.c.l.b16 %v22
  %v31 = vpack.c.b16 %v30, %v29
  %vm33 = vcmask 130048
  %v35 = vsel %vm33, %v19, 0
  %v38 = vsel %vm33, %v20, 0
  %40 = vmatpush.bf16.msra.mxu0 0
  %41 = vmatpush.bf16.msra.mxu0 0
  %42 = vmatpush.bf16.msra.mxu0 0
  %43 = vmatpush.bf16.msra.mxu0 0
  %44 = vmatpush.bf16.msra.mxu0 0
  %45 = vmatpush.bf16.msra.mxu0 0
  %46 = vmatpush.bf16.msra.mxu0 0
  %47 = vmatpush.bf16.msra.mxu0 %v31
  %48 = vmatmul.bf16.gmra.mxu0 %v35
  %v49 = vpop.f32.mrf.mxu0
  %v50 = vadd.f32 %v25, %v49
  %v51 = vpop.f32.mrf.mxu0
  %v52 = vadd.f32 %v25, %v51
  %53 = vmatmul.bf16.gmra.mxu0 %v38
  %v54 = vpop.f32.mrf.mxu0
  %v55 = vadd.f32 %v25, %v54
  %v56 = vpop.f32.mrf.mxu0
  %v57 = vadd.f32 %v25, %v56
  %58 = vdwg.mxu0
  %v59 = vmax.f32 %v50, 0.0
  %v60 = vmax.f32 %v52, 0.0
  %v61 = vmax.f32 %v55, 0.0
  %v62 = vmax.f32 %v57, 0.0
  %v63 = vpack.c.bf16 %v59, %v59
  %v64 = vpack.c.bf16 %v60, %v60
  %v65 = vpack.c.bf16 %v61, %v61
  %v66 = vpack.c.bf16 %v62, %v62
  %vm67 = vcmask 257024
  %68 = vst.msk [vmem:[%s3] sm:$0xf] %vm67, %v63
  %69 = vst.msk [vmem:[%s3 + $0x4] sm:$0xf] %vm67, %v64
  %70 = vst.msk [vmem:[%s3 + $0x8] sm:$0xf] %vm67, %v65
  %71 = vst.msk [vmem:[%s3 + $0xc] sm:$0xf] %vm67, %v66
  // Predicated region
  $region14: #{_forward.4} parent=0 // pred_check
    _
  $region15: #{_forward.4} parent=0 // pred_check_branch
    %73 = sbr.rel (0) target = $region17
  $region16: #{_forward.4} parent=0 // pred_region
    _
  $region17: #{_forward.4} parent=0 // pred_fallthru
    _
  // Predicated region
  $region18: #{_forward.4} parent=0 // pred_check
    _
  $region19: #{_forward.4} parent=0 // pred_check_branch
    %75 = sbr.rel (0) target = $region21
  $region20: #{_forward.4} parent=0 // pred_region
    _
  $region21: #{_forward.4} parent=0 // pred_fallthru
    _

// kernel: _forward.7
$region0: #{_forward.7}
  #allocation0 [shape = 'u32[]', space=smem, size = 0x4, offset = 0x4, fixed_abs, tag = 'smem constant byte address 0x4 - core index']
  #allocation1 [shape = 'u32[72,128]{1,0:T(1,128)}', space=vmem, size = 0x9000, scoped, tag = 'internal scratch']
  %s0 = inlined_call_operand.vmem [shape: bf16[32,32], index: 0, kind: input, shape index: {}]
  %s1 = inlined_call_operand.vmem [shape: bf16[32,32], index: 1, kind: input, shape index: {}]
  %s2 = inlined_call_operand.vmem [shape: bf16[32,5], index: 2, kind: input, shape index: {}]
  %s3 = inlined_call_operand.vmem [shape: bf16[32,5], index: 3, kind: input, shape index: {}]
  %s4 = inlined_call_operand.vmem [shape: f32[1,5], index: 4, kind: input, shape index: {}]
  %s5 = inlined_call_operand.vmem [shape: f32[32,5], index: 5, kind: output, shape index: {}]
  %s6 = sld [smem:[#allocation0]]
  $region30: #{_forward.7} parent=0
    _
  %s8 = ssub.s32 1, %s6
  %s9 = scalar_select 0, %s8, %s6
  // Predicated region
  $region2: #{_forward.7} parent=0 // pred_check
    _
  $region3: #{_forward.7} parent=0 // pred_check_branch
    %11 = sbr.rel (0) target = $region5
  $region4: #{_forward.7} parent=0 // pred_region
    _
  $region5: #{_forward.7} parent=0 // pred_fallthru
    _
  // Predicated region
  $region6: #{_forward.7} parent=0 // pred_check
    _
  $region7: #{_forward.7} parent=0 // pred_check_branch
    %13 = sbr.rel (0) target = $region9
  $region8: #{_forward.7} parent=0 // pred_region
    _
  $region9: #{_forward.7} parent=0 // pred_fallthru
    _
  // Predicated region
  $region10: #{_forward.7} parent=0 // pred_check
    _
  $region11: #{_forward.7} parent=0 // pred_check_branch
    %15 = sbr.rel (0) target = $region13
  $region12: #{_forward.7} parent=0 // pred_region
    _
  $region13: #{_forward.7} parent=0 // pred_fallthru
    _
  // Predicated region
  $region14: #{_forward.7} parent=0 // pred_check
    _
  $region15: #{_forward.7} parent=0 // pred_check_branch
    %17 = sbr.rel (0) target = $region17
  $region16: #{_forward.7} parent=0 // pred_region
    _
  $region17: #{_forward.7} parent=0 // pred_fallthru
    _
  // Predicated region
  $region18: #{_forward.7} parent=0 // pred_check
    _
  $region19: #{_forward.7} parent=0 // pred_check_branch
    %19 = sbr.rel (0) target = $region21
  $region20: #{_forward.7} parent=0 // pred_region
    _
  $region21: #{_forward.7} parent=0 // pred_fallthru
    _
  %v21 = vld [vmem:[%s0] sm:$0xf]
  %v22 = vld [vmem:[%s0 + $0x4] sm:$0xf]
  %v23 = vld [vmem:[%s0 + $0x8] sm:$0xf]
  %v24 = vld [vmem:[%s0 + $0xc] sm:$0xf]
  %v25 = vld [vmem:[%s2] sm:$0xf]
  %v26 = vld [vmem:[%s2 + $0x4] sm:$0xf]
  %v27 = vld [vmem:[%s2 + $0x8] sm:$0xf]
  %v28 = vld [vmem:[%s2 + $0xc] sm:$0xf]
  %v29 = vld [vmem:[%s1] sm:$0xf]
  %v30 = vld [vmem:[%s1 + $0x4] sm:$0xf]
  %v31 = vld [vmem:[%s1 + $0x8] sm:$0xf]
  %v32 = vld [vmem:[%s1 + $0xc] sm:$0xf]
  %v33 = vld [vmem:[%s3] sm:$0xf]
  %v34 = vld [vmem:[%s3 + $0x4] sm:$0xf]
  %v35 = vld [vmem:[%s3 + $0x8] sm:$0xf]
  %v36 = vld [vmem:[%s3 + $0xc] sm:$0xf]
  %v41 = vunpack.c.l.b16 %v29
  %v42 = vunpack.c.l.b16 %v30
  %v43 = vunpack.c.l.b16 %v31
  %v44 = vunpack.c.l.b16 %v32
  %v45 = vpack.c.b16 %v42, %v41
  %v46 = vpack.c.b16 %v44, %v43
  %v51 = vunpack.c.l.b16 %v33
  %v52 = vunpack.c.l.b16 %v34
  %v53 = vunpack.c.l.b16 %v35
  %v54 = vunpack.c.l.b16 %v36
  %v55 = vpack.c.b16 %v52, %v51
  %v56 = vpack.c.b16 %v54, %v53
  %vm59 = vcmask 261120
  %v61 = vsel %vm59, %v45, 0
  %v64 = vsel %vm59, %v46, 0
  %66 = vmatpush.bf16.msra.mxu0 0
  %67 = vmatpush.bf16.msra.mxu0 0
  %68 = vmatpush.bf16.msra.mxu0 0
  %69 = vmatpush.bf16.msra.mxu0 0
  %70 = vmatpush.bf16.msra.mxu0 0
  %71 = vmatpush.bf16.msra.mxu0 0
  %72 = vmatpush.bf16.msra.mxu0 %v56
  %73 = vmatpush.bf16.msra.mxu0 %v55
  %74 = vmatmul.bf16.gmra.mxu0 %v61
  %v75 = vpop.f32.mrf.mxu0
  %v76 = vadd.f32 0.0, %v75
  %v77 = vpop.f32.mrf.mxu0
  %v78 = vadd.f32 0.0, %v77
  %79 = vmatmul.bf16.gmra.mxu0 %v64
  %v80 = vpop.f32.mrf.mxu0
  %v81 = vadd.f32 0.0, %v80
  %v82 = vpop.f32.mrf.mxu0
  %v83 = vadd.f32 0.0, %v82
  %84 = vdwg.mxu0
  %v89 = vunpack.c.l.b16 %v21
  %v90 = vunpack.c.l.b16 %v22
  %v91 = vunpack.c.l.b16 %v23
  %v92 = vunpack.c.l.b16 %v24
  %v93 = vpack.c.b16 %v90, %v89
  %v94 = vpack.c.b16 %v92, %v91
  %v99 = vunpack.c.l.b16 %v25
  %v100 = vunpack.c.l.b16 %v26
  %v101 = vunpack.c.l.b16 %v27
  %v102 = vunpack.c.l.b16 %v28
  %v103 = vpack.c.b16 %v100, %v99
  %v104 = vpack.c.b16 %v102, %v101
  %v108 = vsel %vm59, %v93, 0
  %v111 = vsel %vm59, %v94, 0
  %113 = vmatpush.bf16.msra.mxu0 0
  %114 = vmatpush.bf16.msra.mxu0 0
  %115 = vmatpush.bf16.msra.mxu0 0
  %116 = vmatpush.bf16.msra.mxu0 0
  %117 = vmatpush.bf16.msra.mxu0 0
  %118 = vmatpush.bf16.msra.mxu0 0
  %119 = vmatpush.bf16.msra.mxu0 %v104
  %120 = vmatpush.bf16.msra.mxu0 %v103
  %121 = vmatmul.bf16.gmra.mxu0 %v108
  %v122 = vpop.f32.mrf.mxu0
  %v123 = vadd.f32 %v76, %v122
  %v124 = vpop.f32.mrf.mxu0
  %v125 = vadd.f32 %v78, %v124
  %126 = vmatmul.bf16.gmra.mxu0 %v111
  %v127 = vpop.f32.mrf.mxu0
  %v128 = vadd.f32 %v81, %v127
  %v129 = vpop.f32.mrf.mxu0
  %v130 = vadd.f32 %v83, %v129
  %131 = vdwg.mxu0
  %v132 = vld [vmem:[%s4] sm:$0x1]
  %v134 = vperm.slane %v132, 0
  %v136 = vadd.f32 %v123, %v134
  %v137 = vadd.f32 %v125, %v134
  %v138 = vadd.f32 %v128, %v134
  %v139 = vadd.f32 %v130, %v134
  %vm140 = vcmask 39936
  %141 = vst.msk [vmem:[%s5] sm:$0xff] %vm140, %v136
  %142 = vst.msk [vmem:[%s5 + $0x8] sm:$0xff] %vm140, %v137
  %143 = vst.msk [vmem:[%s5 + $0x10] sm:$0xff] %vm140, %v138
  %144 = vst.msk [vmem:[%s5 + $0x18] sm:$0xff] %vm140, %v139
  // Predicated region
  $region22: #{_forward.7} parent=0 // pred_check
    _
  $region23: #{_forward.7} parent=0 // pred_check_branch
    %146 = sbr.rel (0) target = $region25
  $region24: #{_forward.7} parent=0 // pred_region
    _
  $region25: #{_forward.7} parent=0 // pred_fallthru
    _
  // Predicated region
  $region26: #{_forward.7} parent=0 // pred_check
    _
  $region27: #{_forward.7} parent=0 // pred_check_branch
    %148 = sbr.rel (0) target = $region29
  $region28: #{_forward.7} parent=0 // pred_region
    _
  $region29: #{_forward.7} parent=0 // pred_fallthru
    _

// kernel: _forward.5
$region0: #{_forward.5}
  #allocation0 [shape = 'u32[]', space=smem, size = 0x4, offset = 0x4, fixed_abs, tag = 'smem constant byte address 0x4 - core index']
  #allocation1 [shape = 'u32[72,128]{1,0:T(1,128)}', space=vmem, size = 0x9000, scoped, tag = 'internal scratch']
  #allocation2 [shape = 'f32[16,128]{1,0:T(8,128)}', space=vmem, size = 0x2000, scoped, tag = 'scratch operand']
  #allocation3 [shape = 'f32[16,128]{1,0:T(8,128)}', space=vmem, size = 0x2000, scoped, tag = 'scratch operand']
  #allocation4 [shape = 'f32[2,32]{1,0:T(2,128)}', space=vmem, size = 0x400, scoped, tag = 'scratch operand']
  #allocation5 [shape = 'f32[2,32]{1,0:T(2,128)}', space=vmem, size = 0x400, scoped, tag = 'scratch operand']
  #allocation6 [shape = 'f32[2,32]{1,0:T(2,128)}', space=vmem, size = 0x400, scoped, tag = 'scratch operand']
  #allocation7 [shape = 'f32[2,32]{1,0:T(2,128)}', space=vmem, size = 0x400, scoped, tag = 'scratch operand']
  %s0 = inlined_call_operand.vmem [shape: bf16[16,2,32], index: 0, kind: input, shape index: {}, may-alias: {0,1}]
  %s1 = inlined_call_operand.vmem [shape: bf16[16,2,32], index: 1, kind: input, shape index: {}, may-alias: {0,1}]
  %s2 = inlined_call_operand.vmem [shape: bf16[32,128], index: 2, kind: input, shape index: {}]
  %s3 = inlined_call_operand.vmem [shape: bf16[32,128], index: 3, kind: input, shape index: {}]
  %s4 = inlined_call_operand.vmem [shape: f32[1,128], index: 4, kind: input, shape index: {}]
  %s5 = inlined_call_operand.vmem [shape: f32[1,128], index: 5, kind: input, shape index: {}]
  %s6 = inlined_call_operand.vmem [shape: bf16[32,128], index: 6, kind: input, shape index: {}]
  %s7 = inlined_call_operand.vmem [shape: bf16[32,128], index: 7, kind: input, shape index: {}]
  %s8 = inlined_call_operand.vmem [shape: bf16[16,2,32], index: 8, kind: output, shape index: {0}]
  %s9 = inlined_call_operand.vmem [shape: bf16[16,2,32], index: 9, kind: output, shape index: {1}]
  %10 = xla_tuple %s8, %s9
  %s11 = sld [smem:[#allocation0]]
  $region77: #{_forward.5} parent=0
    _
  %s13 = ssub.s32 1, %s11
  %s14 = scalar_select 0, %s13, %s11
  loop: start=0, step=1, limit=4
  $region2: #{_forward.5} parent=0 // loop_pre_header
    _
  $region3: #{_forward.5} parent=0 // loop_header
    %s16 = sphi 0, %s20
    %p17 = scmp.ge.s32.totalorder %s16, 4
    %s23 = sphi 0, %s35
    %s24 = sphi 0, %s31
    %s25 = sphi 0, %s23
    %s26 = sphi 0, %s24
    %s27 = sphi 0, %s25
    %s28 = sphi 0, %s26
    %s40 = sphi 0, %s42
    %s43 = sphi 0, %s40
    %s44 = sphi 0, %s43
    %s60 = sphi 0, %s44
    %s70 = sphi 0, %s72
    %s73 = sphi 0, %s70
    %s74 = sphi 0, %s73
    %s90 = sphi 0, %s74
    %s94 = sphi 0, %s94
    %s96 = sphi 0, %s94
    %s97 = sphi 0, %s96
    %s111 = sphi 0, %s97
    %s115 = sphi 0, %s115
    %s117 = sphi 0, %s115
    %s118 = sphi 0, %s117
    %s132 = sphi 0, %s118
    %s136 = sphi 0, %s136
    %s138 = sphi 0, %s136
    %s139 = sphi 0, %s138
    %s153 = sphi 0, %s139
    %s157 = sphi 0, %s157
    %s159 = sphi 0, %s157
    %s160 = sphi 0, %s159
    %s174 = sphi 0, %s160
    %s178 = sphi 0, %s178
    %s180 = sphi 0, %s178
    %s181 = sphi 0, %s180
    %s195 = sphi 0, %s181
    %s199 = sphi 0, %s199
    %s201 = sphi 0, %s199
    %s202 = sphi 0, %s201
    %s216 = sphi 0, %s202
    %s224 = sphi 0, %s226
    %s227 = sphi 0, %s224
    %s228 = sphi 0, %s227
    %s244 = sphi 0, %s228
    %s254 = sphi 0, %s256
    %s257 = sphi 0, %s254
    %s258 = sphi 0, %s257
    %s274 = sphi 0, %s258
  $region4: #{_forward.5} parent=0 // loop_header_branch
    %19 = sbr.rel (%p17) target = $region8
  $region5: #{_forward.5} parent=0 // loop_body
    %s21 = ssub.s32 %s16, 1
    %s22 = ssub.s32 %s16, 2
    %s29 = sadd.s32 1, %s24
    %p30 = scmp.ge.s32.totalorder %s29, 2
    %s31 = scalar_select %p30, 0, %s29
    %s32 = sadd.s32 1, %s23
    %s33 = scalar_select %p30, %s32, %s23
    %p34 = scmp.ge.s32.totalorder %s33, 1
    %s35 = scalar_select %p34, 0, %s33
    %s36 = ssub.s32 %s24, %s31
    %s37 = ssub.s32 %s23, %s35
    %s38 = sor.u32 %s36, %s37
    %p39 = scmp.eq.s32.totalorder %s38, 0
    %s41 = sadd.s32 %s40, 1
    %s42 = scalar_select %p39, %s40, %s41
    %p45 = pneg %p39
    %p46 = scmp.eq.s32.totalorder %s16, 1
    %p47 = por %p45, %p46
    %p48 = scmp.ne.s32.totalorder %s40, %s43
    %p49 = scmp.eq.s32.totalorder %s16, 0
    %p50 = por %p48, %p49
    %p51 = scmp.ne.s32.totalorder %s40, %s43
    %p52 = scmp.eq.s32.totalorder %s21, 1
    %p53 = por %p51, %p52
    %p54 = scmp.ne.s32.totalorder %s43, %s44
    %p55 = scmp.eq.s32.totalorder %s21, 0
    %p56 = por %p54, %p55
    %p57 = scmp.ne.s32.totalorder %s43, %s44
    %p58 = scmp.eq.s32.totalorder %s22, 1
    %p59 = por %p57, %p58
    %p61 = scmp.ne.s32.totalorder %s44, %s60
    %p62 = scmp.eq.s32.totalorder %s22, 0
    %p63 = por %p61, %p62
    %s64 = ssub.s32 1, %s24
    %s65 = ssub.s32 1, %s31
    %s66 = ssub.s32 %s64, %s65
    %s67 = ssub.s32 %s23, %s35
    %s68 = sor.u32 %s66, %s67
    %p69 = scmp.eq.s32.totalorder %s68, 0
    %s71 = sadd.s32 %s70, 1
    %s72 = scalar_select %p69, %s70, %s71
    %p75 = pneg %p69
    %p76 = scmp.eq.s32.totalorder %s16, 1
    %p77 = por %p75, %p76
    %p78 = scmp.ne.s32.totalorder %s70, %s73
    %p79 = scmp.eq.s32.totalorder %s16, 0
    %p80 = por %p78, %p79
    %p81 = scmp.ne.s32.totalorder %s70, %s73
    %p82 = scmp.eq.s32.totalorder %s21, 1
    %p83 = por %p81, %p82
    %p84 = scmp.ne.s32.totalorder %s73, %s74
    %p85 = scmp.eq.s32.totalorder %s21, 0
    %p86 = por %p84, %p85
    %p87 = scmp.ne.s32.totalorder %s73, %s74
    %p88 = scmp.eq.s32.totalorder %s22, 1
    %p89 = por %p87, %p88
    %p91 = scmp.ne.s32.totalorder %s74, %s90
    %p92 = scmp.eq.s32.totalorder %s22, 0
    %p93 = por %p91, %p92
    %s95 = sadd.s32 %s94, 1
    %p98 = scmp.eq.s32.totalorder %s16, 1
    %p99 = scmp.ne.s32.totalorder %s94, %s96
    %p100 = scmp.eq.s32.totalorder %s16, 0
    %p101 = por %p99, %p100
    %p102 = scmp.ne.s32.totalorder %s94, %s96
    %p103 = scmp.eq.s32.totalorder %s21, 1
    %p104 = por %p102, %p103
    %p105 = scmp.ne.s32.totalorder %s96, %s97
    %p106 = scmp.eq.s32.totalorder %s21, 0
    %p107 = por %p105, %p106
    %p108 = scmp.ne.s32.totalorder %s96, %s97
    %p109 = scmp.eq.s32.totalorder %s22, 1
    %p110 = por %p108, %p109
    %p112 = scmp.ne.s32.totalorder %s97, %s111
    %p113 = scmp.eq.s32.totalorder %s22, 0
    %p114 = por %p112, %p113
    %s116 = sadd.s32 %s115, 1
    %p119 = scmp.eq.s32.totalorder %s16, 1
    %p120 = scmp.ne.s32.totalorder %s115, %s117
    %p121 = scmp.eq.s32.totalorder %s16, 0
    %p122 = por %p120, %p121
    %p123 = scmp.ne.s32.totalorder %s115, %s117
    %p124 = scmp.eq.s32.totalorder %s21, 1
    %p125 = por %p123, %p124
    %p126 = scmp.ne.s32.totalorder %s117, %s118
    %p127 = scmp.eq.s32.totalorder %s21, 0
    %p128 = por %p126, %p127
    %p129 = scmp.ne.s32.totalorder %s117, %s118
    %p130 = scmp.eq.s32.totalorder %s22, 1
    %p131 = por %p129, %p130
    %p133 = scmp.ne.s32.totalorder %s118, %s132
    %p134 = scmp.eq.s32.totalorder %s22, 0
    %p135 = por %p133, %p134
    %s137 = sadd.s32 %s136, 1
    %p140 = scmp.eq.s32.totalorder %s16, 1
    %p141 = scmp.ne.s32.totalorder %s136, %s138
    %p142 = scmp.eq.s32.totalorder %s16, 0
    %p143 = por %p141, %p142
    %p144 = scmp.ne.s32.totalorder %s136, %s138
    %p145 = scmp.eq.s32.totalorder %s21, 1
    %p146 = por %p144, %p145
    %p147 = scmp.ne.s32.totalorder %s138, %s139
    %p148 = scmp.eq.s32.totalorder %s21, 0
    %p149 = por %p147, %p148
    %p150 = scmp.ne.s32.totalorder %s138, %s139
    %p151 = scmp.eq.s32.totalorder %s22, 1
    %p152 = por %p150, %p151
    %p154 = scmp.ne.s32.totalorder %s139, %s153
    %p155 = scmp.eq.s32.totalorder %s22, 0
    %p156 = por %p154, %p155
    %s158 = sadd.s32 %s157, 1
    %p161 = scmp.eq.s32.totalorder %s16, 1
    %p162 = scmp.ne.s32.totalorder %s157, %s159
    %p163 = scmp.eq.s32.totalorder %s16, 0
    %p164 = por %p162, %p163
    %p165 = scmp.ne.s32.totalorder %s157, %s159
    %p166 = scmp.eq.s32.totalorder %s21, 1
    %p167 = por %p165, %p166
    %p168 = scmp.ne.s32.totalorder %s159, %s160
    %p169 = scmp.eq.s32.totalorder %s21, 0
    %p170 = por %p168, %p169
    %p171 = scmp.ne.s32.totalorder %s159, %s160
    %p172 = scmp.eq.s32.totalorder %s22, 1
    %p173 = por %p171, %p172
    %p175 = scmp.ne.s32.totalorder %s160, %s174
    %p176 = scmp.eq.s32.totalorder %s22, 0
    %p177 = por %p175, %p176
    %s179 = sadd.s32 %s178, 1
    %p182 = scmp.eq.s32.totalorder %s16, 1
    %p183 = scmp.ne.s32.totalorder %s178, %s180
    %p184 = scmp.eq.s32.totalorder %s16, 0
    %p185 = por %p183, %p184
    %p186 = scmp.ne.s32.totalorder %s178, %s180
    %p187 = scmp.eq.s32.totalorder %s21, 1
    %p188 = por %p186, %p187
    %p189 = scmp.ne.s32.totalorder %s180, %s181
    %p190 = scmp.eq.s32.totalorder %s21, 0
    %p191 = por %p189, %p190
    %p192 = scmp.ne.s32.totalorder %s180, %s181
    %p193 = scmp.eq.s32.totalorder %s22, 1
    %p194 = por %p192, %p193
    %p196 = scmp.ne.s32.totalorder %s181, %s195
    %p197 = scmp.eq.s32.totalorder %s22, 0
    %p198 = por %p196, %p197
    %s200 = sadd.s32 %s199, 1
    %p203 = scmp.eq.s32.totalorder %s16, 1
    %p204 = scmp.ne.s32.totalorder %s199, %s201
    %p205 = scmp.eq.s32.totalorder %s16, 0
    %p206 = por %p204, %p205
    %p207 = scmp.ne.s32.totalorder %s199, %s201
    %p208 = scmp.eq.s32.totalorder %s21, 1
    %p209 = por %p207, %p208
    %p210 = scmp.ne.s32.totalorder %s201, %s202
    %p211 = scmp.eq.s32.totalorder %s21, 0
    %p212 = por %p210, %p211
    %p213 = scmp.ne.s32.totalorder %s201, %s202
    %p214 = scmp.eq.s32.totalorder %s22, 1
    %p215 = por %p213, %p214
    %p217 = scmp.ne.s32.totalorder %s202, %s216
    %p218 = scmp.eq.s32.totalorder %s22, 0
    %p219 = por %p217, %p218
    %s220 = ssub.s32 %s24, %s31
    %s221 = ssub.s32 %s23, %s35
    %s222 = sor.u32 %s220, %s221
    %p223 = scmp.eq.s32.totalorder %s222, 0
    %s225 = sadd.s32 %s224, 1
    %s226 = scalar_select %p223, %s224, %s225
    %p229 = pneg %p223
    %p230 = scmp.eq.s32.totalorder %s16, 1
    %p231 = por %p229, %p230
    %p232 = scmp.ne.s32.totalorder %s224, %s227
    %p233 = scmp.eq.s32.totalorder %s16, 0
    %p234 = por %p232, %p233
    %p235 = scmp.ne.s32.totalorder %s224, %s227
    %p236 = scmp.eq.s32.totalorder %s21, 1
    %p237 = por %p235, %p236
    %p238 = scmp.ne.s32.totalorder %s227, %s228
    %p239 = scmp.eq.s32.totalorder %s21, 0
    %p240 = por %p238, %p239
    %p241 = scmp.ne.s32.totalorder %s227, %s228
    %p242 = scmp.eq.s32.totalorder %s22, 1
    %p243 = por %p241, %p242
    %p245 = scmp.ne.s32.totalorder %s228, %s244
    %p246 = scmp.eq.s32.totalorder %s22, 0
    %p247 = por %p245, %p246
    %s248 = ssub.s32 1, %s24
    %s249 = ssub.s32 1, %s31
    %s250 = ssub.s32 %s248, %s249
    %s251 = ssub.s32 %s23, %s35
    %s252 = sor.u32 %s250, %s251
    %p253 = scmp.eq.s32.totalorder %s252, 0
    %s255 = sadd.s32 %s254, 1
    %s256 = scalar_select %p253, %s254, %s255
    %p259 = pneg %p253
    %p260 = scmp.eq.s32.totalorder %s16, 1
    %p261 = por %p259, %p260
    %p262 = scmp.ne.s32.totalorder %s254, %s257
    %p263 = scmp.eq.s32.totalorder %s16, 0
    %p264 = por %p262, %p263
    %p265 = scmp.ne.s32.totalorder %s254, %s257
    %p266 = scmp.eq.s32.totalorder %s21, 1
    %p267 = por %p265, %p266
    %p268 = scmp.ne.s32.totalorder %s257, %s258
    %p269 = scmp.eq.s32.totalorder %s21, 0
    %p270 = por %p268, %p269
    %p271 = scmp.ne.s32.totalorder %s257, %s258
    %p272 = scmp.eq.s32.totalorder %s22, 1
    %p273 = por %p271, %p272
    %p275 = scmp.ne.s32.totalorder %s258, %s274
    %p276 = scmp.eq.s32.totalorder %s22, 0
    %p277 = por %p275, %p276
    %p278 = scmp.le.s32.totalorder 1, %s16
    %p279 = scmp.lt.s32.totalorder %s16, 3
    %p280 = pnand %p278, %p279
    %p281 = pneg %p280
    // Predicated region
    $region9: #{_forward.5} parent=5 // pred_check
      _
    $region10: #{_forward.5} parent=5 // pred_check_branch
      %283 = sbr.rel (%p280) target = $region12
    $region11: #{_forward.5} parent=5 // pred_region
      %s284 = ssub.s32 %s16, 1
      // Predicated region
      $region13: #{_forward.5} parent=11 // pred_check
        %p285 = pneg %p107
      $region14: #{_forward.5} parent=11 // pred_check_branch
        %287 = sbr.rel (%p285) target = $region16
      $region15: #{_forward.5} parent=11 // pred_region
        _
      $region16: #{_forward.5} parent=11 // pred_fallthru
        _
      // Predicated region
      $region17: #{_forward.5} parent=11 // pred_check
        %p288 = pneg %p128
      $region18: #{_forward.5} parent=11 // pred_check_branch
        %290 = sbr.rel (%p288) target = $region20
      $region19: #{_forward.5} parent=11 // pred_region
        _
      $region20: #{_forward.5} parent=11 // pred_fallthru
        _
      // Predicated region
      $region21: #{_forward.5} parent=11 // pred_check
        %p291 = pneg %p149
      $region22: #{_forward.5} parent=11 // pred_check_branch
        %293 = sbr.rel (%p291) target = $region24
      $region23: #{_forward.5} parent=11 // pred_region
        _
      $region24: #{_forward.5} parent=11 // pred_fallthru
        _
      // Predicated region
      $region25: #{_forward.5} parent=11 // pred_check
        %p294 = pneg %p170
      $region26: #{_forward.5} parent=11 // pred_check_branch
        %296 = sbr.rel (%p294) target = $region28
      $region27: #{_forward.5} parent=11 // pred_region
        _
      $region28: #{_forward.5} parent=11 // pred_fallthru
        _
      // Predicated region
      $region29: #{_forward.5} parent=11 // pred_check
        %p297 = pneg %p191
      $region30: #{_forward.5} parent=11 // pred_check_branch
        %299 = sbr.rel (%p297) target = $region32
      $region31: #{_forward.5} parent=11 // pred_region
        _
      $region32: #{_forward.5} parent=11 // pred_fallthru
        _
      // Predicated region
      $region33: #{_forward.5} parent=11 // pred_check
        %p300 = pneg %p212
      $region34: #{_forward.5} parent=11 // pred_check_branch
        %302 = sbr.rel (%p300) target = $region36
      $region35: #{_forward.5} parent=11 // pred_region
        _
      $region36: #{_forward.5} parent=11 // pred_fallthru
        _
    $region12: #{_forward.5} parent=5 // pred_fallthru
      _
    %p303 = scmp.lt.s32.totalorder %s16, 2
    // Predicated region
    $region37: #{_forward.5} parent=5 // pred_check
      %p304 = pneg %p303
    $region38: #{_forward.5} parent=5 // pred_check_branch
      %306 = sbr.rel (%p304) target = $region40
    $region39: #{_forward.5} parent=5 // pred_region
      // Predicated region
      $region41: #{_forward.5} parent=39 // pred_check
        %p307 = pneg %p50
      $region42: #{_forward.5} parent=39 // pred_check_branch
        %309 = sbr.rel (%p307) target = $region44
      $region43: #{_forward.5} parent=39 // pred_region
        %s310 = smul.u32 8, %s24
        %p311 = scmp.lt.s32.totalorder %s310, 15
        %s312 = scalar_select %p311, %s310, 15
        %p313 = scmp.lt.s32.totalorder %s23, 0
        %s314 = scalar_select %p313, %s23, 0
        %s315 = sadd.s32 %s314, %s312
        %s316 = scalar_lea.vmem %s0, %s315
        %s317 = smul.u32 8, %s24
      $region44: #{_forward.5} parent=39 // pred_fallthru
        _
      // Predicated region
      $region45: #{_forward.5} parent=39 // pred_check
        %p318 = pneg %p80
      $region46: #{_forward.5} parent=39 // pred_check_branch
        %320 = sbr.rel (%p318) target = $region48
      $region47: #{_forward.5} parent=39 // pred_region
        %s321 = ssub.s32 1, %s24
        %s322 = smul.u32 8, %s321
        %p323 = scmp.lt.s32.totalorder %s322, 15
        %s324 = scalar_select %p323, %s322, 15
        %p325 = scmp.lt.s32.totalorder %s23, 0
        %s326 = scalar_select %p325, %s23, 0
        %s327 = sadd.s32 %s326, %s324
        %s328 = scalar_lea.vmem %s1, %s327
        %s329 = ssub.s32 1, %s24
        %s330 = smul.u32 8, %s329
      $region48: #{_forward.5} parent=39 // pred_fallthru
        _
    $region40: #{_forward.5} parent=5 // pred_fallthru
      _
    %p331 = scmp.le.s32.totalorder 1, %s16
    %p332 = scmp.lt.s32.totalorder %s16, 3
    %p333 = pnand %p331, %p332
    %p334 = pneg %p333
    // Predicated region
    $region49: #{_forward.5} parent=5 // pred_check
      _
    $region50: #{_forward.5} parent=5 // pred_check_branch
      %336 = sbr.rel (%p333) target = $region52
    $region51: #{_forward.5} parent=5 // pred_region
      %s337 = ssub.s32 %s16, 1
      %s338 = smul.u32 8, %s26
      %p339 = scmp.lt.s32.totalorder %s338, 15
      %s340 = scalar_select %p339, %s338, 15
      %p341 = scmp.lt.s32.totalorder %s25, 0
      %s342 = scalar_select %p341, %s25, 0
      %s343 = sadd.s32 %s342, %s340
      %s344 = scalar_lea.vmem %s0, %s343
      %p345 = pneg %p56
      %p346 = pneg %p53
      %s347 = ssub.s32 1, %s26
      %s348 = smul.u32 8, %s347
      %p349 = scmp.lt.s32.totalorder %s348, 15
      %s350 = scalar_select %p349, %s348, 15
      %p351 = scmp.lt.s32.totalorder %s25, 0
      %s352 = scalar_select %p351, %s25, 0
      %s353 = sadd.s32 %s352, %s350
      %s354 = scalar_lea.vmem %s1, %s353
      %p355 = pneg %p86
      %p356 = pneg %p83
      %p357 = pneg %p107
      %p358 = pneg %p104
      %p359 = pneg %p128
      %p360 = pneg %p125
      %p361 = pneg %p149
      %p362 = pneg %p146
      %p363 = pneg %p170
      %p364 = pneg %p167
      %p365 = pneg %p191
      %p366 = pneg %p188
      %p367 = pneg %p212
      %p368 = pneg %p209
      %p369 = pneg %p240
      %p370 = pneg %p237
      %s371 = smul.u32 8, %s26
      %p372 = scmp.lt.s32.totalorder %s371, 15
      %s373 = scalar_select %p372, %s371, 15
      %p374 = scmp.lt.s32.totalorder %s25, 0
      %s375 = scalar_select %p374, %s25, 0
      %s376 = sadd.s32 %s375, %s373
      %s377 = scalar_lea.vmem %s8, %s376
      %p378 = pneg %p270
      %p379 = pneg %p267
      %s380 = ssub.s32 1, %s26
      %s381 = smul.u32 8, %s380
      %p382 = scmp.lt.s32.totalorder %s381, 15
      %s383 = scalar_select %p382, %s381, 15
      %p384 = scmp.lt.s32.totalorder %s25, 0
      %s385 = scalar_select %p384, %s25, 0
      %s386 = sadd.s32 %s385, %s383
      %s387 = scalar_lea.vmem %s9, %s386
      %s388 = smul.u32 8, %s26
      %p389 = scmp.lt.s32.totalorder %s388, 15
      %s390 = scalar_select %p389, %s388, 15
      %p391 = scmp.lt.s32.totalorder %s25, 0
      %s392 = scalar_select %p391, %s25, 0
      %s393 = sadd.s32 %s392, %s390
      %s394 = scalar_lea.vmem %s0, %s393
      %s395 = smul.u32 8, %s26
      %s396 = ssub.s32 1, %s26
      %s397 = smul.u32 8, %s396
      %p398 = scmp.lt.s32.totalorder %s397, 15
      %s399 = scalar_select %p398, %s397, 15
      %p400 = scmp.lt.s32.totalorder %s25, 0
      %s401 = scalar_select %p400, %s25, 0
      %s402 = sadd.s32 %s401, %s399
      %s403 = scalar_lea.vmem %s1, %s402
      %s404 = ssub.s32 1, %s26
      %s405 = smul.u32 8, %s404
      %s406 = smul.u32 8, %s26
      %p407 = scmp.lt.s32.totalorder %s406, 15
      %s408 = scalar_select %p407, %s406, 15
      %p409 = scmp.lt.s32.totalorder %s25, 0
      %s410 = scalar_select %p409, %s25, 0
      %s411 = sadd.s32 %s410, %s408
      %s412 = scalar_lea.vmem %s8, %s411
      %s413 = smul.u32 8, %s26
      %s414 = ssub.s32 1, %s26
      %s415 = smul.u32 8, %s414
      %p416 = scmp.lt.s32.totalorder %s415, 15
      %s417 = scalar_select %p416, %s415, 15
      %p418 = scmp.lt.s32.totalorder %s25, 0
      %s419 = scalar_select %p418, %s25, 0
      %s420 = sadd.s32 %s419, %s417
      %s421 = scalar_lea.vmem %s9, %s420
      %s422 = ssub.s32 1, %s26
      %s423 = smul.u32 8, %s422
      %p425 = scmp.eq.s32.totalorder %s26, 0
      // Predicated region
      $region53: #{_forward.5} parent=51 // pred_check
        %p426 = pneg %p425
      $region54: #{_forward.5} parent=51 // pred_check_branch
        %428 = sbr.rel (%p426) target = $region56
      $region55: #{_forward.5} parent=51 // pred_region
        %vm429 = vcmask 254976
        %430 = vst.msk [vmem:[#allocation4] sm:$0x3] %vm429, 0.0
        %431 = vst.msk [vmem:[#allocation5] sm:$0x3] %vm429, 0.0
        %432 = vst.msk [vmem:[#allocation6] sm:$0x3] %vm429, 0.0
        %433 = vst.msk [vmem:[#allocation7] sm:$0x3] %vm429, 0.0
      $region56: #{_forward.5} parent=51 // pred_fallthru
        _
      %v434 = vld [vmem:[%s394] sm:$0x1]
      %v435 = vld [vmem:[%s394 + $0x1] sm:$0x1]
      %v436 = vld [vmem:[%s394 + $0x2] sm:$0x1]
      %v437 = vld [vmem:[%s394 + $0x3] sm:$0x1]
      %v438 = vld [vmem:[%s394 + $0x4] sm:$0x1]
      %v439 = vld [vmem:[%s394 + $0x5] sm:$0x1]
      %v440 = vld [vmem:[%s394 + $0x6] sm:$0x1]
      %v441 = vld [vmem:[%s394 + $0x7] sm:$0x1]
      %v442 = vld [vmem:[%s2] sm:$0xf]
      %v443 = vld [vmem:[%s2 + $0x4] sm:$0xf]
      %v444 = vld [vmem:[%s2 + $0x8] sm:$0xf]
      %v445 = vld [vmem:[%s2 + $0xc] sm:$0xf]
      %v446 = vld [vmem:[%s4] sm:$0x1]
      %v448 = vperm.slane %v446, 0
      %451 = vst [vmem:[#allocation1] ss:$9 sm:$0xff] %v434
      %s453 = scalar_lea.vmem [#allocation1], 1
      %454 = vst [vmem:[%s453] ss:$9 sm:$0xff] %v435
      %s456 = scalar_lea.vmem [#allocation1], 2
      %457 = vst [vmem:[%s456] ss:$9 sm:$0xff] %v436
      %s459 = scalar_lea.vmem [#allocation1], 3
      %460 = vst [vmem:[%s459] ss:$9 sm:$0xff] %v437
      %s462 = scalar_lea.vmem [#allocation1], 4
      %463 = vst [vmem:[%s462] ss:$9 sm:$0xff] %v438
      %s465 = scalar_lea.vmem [#allocation1], 5
      %466 = vst [vmem:[%s465] ss:$9 sm:$0xff] %v439
      %s468 = scalar_lea.vmem [#allocation1], 6
      %469 = vst [vmem:[%s468] ss:$9 sm:$0xff] %v440
      %s471 = scalar_lea.vmem [#allocation1], 7
      %472 = vst [vmem:[%s471] ss:$9 sm:$0xff] %v441
      %v473 = vld [vmem:[#allocation1] sm:$0xff]
      %v478 = vunpack.c.l.b16 %v442
      %v479 = vunpack.c.l.b16 %v443
      %v480 = vunpack.c.l.b16 %v444
      %v481 = vunpack.c.l.b16 %v445
      %v482 = vpack.c.b16 %v479, %v478
      %v483 = vpack.c.b16 %v481, %v480
      %vm486 = vcmask 261120
      %v487 = vsel %vm486, %v473, 0
      %489 = vmatpush.bf16.msra.mxu0 0
      %490 = vmatpush.bf16.msra.mxu0 0
      %491 = vmatpush.bf16.msra.mxu0 0
      %492 = vmatpush.bf16.msra.mxu0 0
      %493 = vmatpush.bf16.msra.mxu0 0
      %494 = vmatpush.bf16.msra.mxu0 0
      %495 = vmatpush.bf16.msra.mxu0 %v483
      %496 = vmatpush.bf16.msra.mxu0 %v482
      %497 = vmatmul.bf16.gmra.mxu0 %v487
      %v498 = vpop.f32.mrf.mxu0
      %v499 = vadd.f32 %v448, %v498
      %v500 = vpop.f32.mrf.mxu0
      %v501 = vadd.f32 %v448, %v500
      %502 = vdwg.mxu0
      %503 = vst [vmem:[#allocation2] sm:$0xff] %v499
      %504 = vst [vmem:[#allocation2 + $0x8] sm:$0xff] %v501
      %v505 = vld [vmem:[%s403] sm:$0x1]
      %v506 = vld [vmem:[%s403 + $0x1] sm:$0x1]
      %v507 = vld [vmem:[%s403 + $0x2] sm:$0x1]
      %v508 = vld [vmem:[%s403 + $0x3] sm:$0x1]
      %v509 = vld [vmem:[%s403 + $0x4] sm:$0x1]
      %v510 = vld [vmem:[%s403 + $0x5] sm:$0x1]
      %v511 = vld [vmem:[%s403 + $0x6] sm:$0x1]
      %v512 = vld [vmem:[%s403 + $0x7] sm:$0x1]
      %v513 = vld [vmem:[%s3] sm:$0xf]
      %v514 = vld [vmem:[%s3 + $0x4] sm:$0xf]
      %v515 = vld [vmem:[%s3 + $0x8] sm:$0xf]
      %v516 = vld [vmem:[%s3 + $0xc] sm:$0xf]
      %v517 = vld [vmem:[%s5] sm:$0x1]
      %v519 = vperm.slane %v517, 0
      %522 = vst [vmem:[#allocation1] ss:$9 sm:$0xff] %v505
      %s524 = scalar_lea.vmem [#allocation1], 1
      %525 = vst [vmem:[%s524] ss:$9 sm:$0xff] %v506
      %s527 = scalar_lea.vmem [#allocation1], 2
      %528 = vst [vmem:[%s527] ss:$9 sm:$0xff] %v507
      %s530 = scalar_lea.vmem [#allocation1], 3
      %531 = vst [vmem:[%s530] ss:$9 sm:$0xff] %v508
      %s533 = scalar_lea.vmem [#allocation1], 4
      %534 = vst [vmem:[%s533] ss:$9 sm:$0xff] %v509
      %s536 = scalar_lea.vmem [#allocation1], 5
      %537 = vst [vmem:[%s536] ss:$9 sm:$0xff] %v510
      %s539 = scalar_lea.vmem [#allocation1], 6
      %540 = vst [vmem:[%s539] ss:$9 sm:$0xff] %v511
      %s542 = scalar_lea.vmem [#allocation1], 7
      %543 = vst [vmem:[%s542] ss:$9 sm:$0xff] %v512
      %v544 = vld [vmem:[#allocation1] sm:$0xff]
      %v549 = vunpack.c.l.b16 %v513
      %v550 = vunpack.c.l.b16 %v514
      %v551 = vunpack.c.l.b16 %v515
      %v552 = vunpack.c.l.b16 %v516
      %v553 = vpack.c.b16 %v550, %v549
      %v554 = vpack.c.b16 %v552, %v551
      %v557 = vsel %vm486, %v544, 0
      %559 = vmatpush.bf16.msra.mxu0 0
      %560 = vmatpush.bf16.msra.mxu0 0
      %561 = vmatpush.bf16.msra.mxu0 0
      %562 = vmatpush.bf16.msra.mxu0 0
      %563 = vmatpush.bf16.msra.mxu0 0
      %564 = vmatpush.bf16.msra.mxu0 0
      %565 = vmatpush.bf16.msra.mxu0 %v554
      %566 = vmatpush.bf16.msra.mxu0 %v553
      %567 = vmatmul.bf16.gmra.mxu0 %v557
      %v568 = vpop.f32.mrf.mxu0
      %v569 = vadd.f32 %v519, %v568
      %v570 = vpop.f32.mrf.mxu0
      %v571 = vadd.f32 %v519, %v570
      %572 = vdwg.mxu0
      %573 = vst [vmem:[#allocation3] sm:$0xff] %v569
      %574 = vst [vmem:[#allocation3 + $0x8] sm:$0xff] %v571
      %v575 = vld [vmem:[%s6] sm:$0xf]
      %v576 = vld [vmem:[%s6 + $0x4] sm:$0xf]
      %v577 = vld [vmem:[%s6 + $0x8] sm:$0xf]
      %v578 = vld [vmem:[%s6 + $0xc] sm:$0xf]
      %v579 = vld [vmem:[%s7] sm:$0xf]
      %v580 = vld [vmem:[%s7 + $0x4] sm:$0xf]
      %v581 = vld [vmem:[%s7 + $0x8] sm:$0xf]
      %v582 = vld [vmem:[%s7 + $0xc] sm:$0xf]
      %v583 = vld [vmem:[#allocation4] sm:$0x3]
      %v584 = vld [vmem:[#allocation5] sm:$0x3]
      %v585 = vld [vmem:[#allocation6] sm:$0x3]
      %v586 = vld [vmem:[#allocation7] sm:$0x3]
      %v587 = vld [vmem:[#allocation2] sm:$0x3]
      %v588 = vpack.c.bf16 %v583, %v583
      %v593 = vunpack.c.l.b16 %v575
      %v594 = vunpack.c.l.b16 %v576
      %v595 = vunpack.c.l.b16 %v577
      %v596 = vunpack.c.l.b16 %v578
      %v597 = vpack.c.b16 %v594, %v593
      %v598 = vpack.c.b16 %v596, %v595
      %v602 = vsel %vm486, %v588, 0
      %604 = vmatpush.bf16.msra.mxu0 0
      %605 = vmatpush.bf16.msra.mxu0 0
      %606 = vmatpush.bf16.msra.mxu0 0
      %607 = vmatpush.bf16.msra.mxu0 0
      %608 = vmatpush.bf16.msra.mxu0 0
      %609 = vmatpush.bf16.msra.mxu0 0
      %610 = vmatpush.bf16.msra.mxu0 %v598
      %611 = vmatpush.bf16.msra.mxu0 %v597
      %612 = vmatmul.bf16.gmra.mxu0 %v602
      %v613 = vpop.f32.mrf.mxu0
      %v614 = vadd.f32 0.0, %v613
      %v615 = vpop.f32.mrf.mxu0
      %616 = vdwg.mxu0
      %v617 = vadd.f32 %v587, %v614
      %v618 = vld [vmem:[#allocation3 + $0xe] sm:$0x3]
      %v619 = vpack.c.bf16 %v585, %v585
      %v624 = vunpack.c.l.b16 %v579
      %v625 = vunpack.c.l.b16 %v580
      %v626 = vunpack.c.l.b16 %v581
      %v627 = vunpack.c.l.b16 %v582
      %v628 = vpack.c.b16 %v625, %v624
      %v629 = vpack.c.b16 %v627, %v626
      %v633 = vsel %vm486, %v619, 0
      %635 = vmatpush.bf16.msra.mxu0 0
      %636 = vmatpush.bf16.msra.mxu0 0
      %637 = vmatpush.bf16.msra.mxu0 0
      %638 = vmatpush.bf16.msra.mxu0 0
      %639 = vmatpush.bf16.msra.mxu0 0
      %640 = vmatpush.bf16.msra.mxu0 0
      %641 = vmatpush.bf16.msra.mxu0 %v629
      %642 = vmatpush.bf16.msra.mxu0 %v628
      %643 = vmatmul.bf16.gmra.mxu0 %v633
      %v644 = vpop.f32.mrf.mxu0
      %v645 = vadd.f32 0.0, %v644
      %v646 = vpop.f32.mrf.mxu0
      %647 = vdwg.mxu0
      %v648 = vadd.f32 %v618, %v645
      %v649 = vxor.u32 %v617, 2147483648
      %v650 = vmul.f32 %v649, 1.442695
      %v651 = vpow.pop %v650
      %v652 = vadd.f32 %v651, 1.0
      %v653 = vrcp.pop %v652
      %v654 = vmul.f32 %v652, %v653
      %v655 = vsub.f32 1.0, %v654
      %v656 = vmul.f32 %v653, %v655
      %v657 = vadd.f32 %v653, %v656
      %vm658 = vweird.f32 %v652
      %vm659 = vweird.f32 %v653
      %vm660 = vmor %vm658, %vm659
      %v661 = vsel %vm660, %v653, %v657
      %v662 = vand.u32 2147483647, %v652
      %vm663 = vcmp.eq.f32.partialorder %v662, 8.507059e+37
      %v664 = vand.u32 %v652, 2147483648
      %v665 = vor.u32 1.1754944e-38, %v664
      %v666 = vsel %vm663, %v665, %v661
      %v667 = vmul.f32 1.0, %v666
      %v668 = vtanh.pop %v617
      %670 = vrot.lane.b32.xlu0 %v584, 32
      %v671 = vpop.permute.xlu0 %670
      %v673 = vmul.f32 %v667, %v671
      %675 = vrot.lane.b32.xlu0 %v668, 64
      %v676 = vpop.permute.xlu0 %675
      %v678 = vmul.f32 %v667, %v676
      %680 = vrot.lane.b32.xlu0 %v678, 32
      %v681 = vpop.permute.xlu0 %680
      %v683 = vadd.f32 %v673, %v681
      %v684 = vtanh.pop %v683
      %686 = vrot.lane.b32.xlu0 %v684, 64
      %v687 = vpop.permute.xlu0 %686
      %v689 = vmul.f32 %v667, %v687
      %v690 = vxor.u32 %v648, 2147483648
      %v691 = vmul.f32 %v690, 1.442695
      %v692 = vpow.pop %v691
      %v693 = vadd.f32 %v692, 1.0
      %v694 = vrcp.pop %v693
      %v695 = vmul.f32 %v693, %v694
      %v696 = vsub.f32 1.0, %v695
      %v697 = vmul.f32 %v694, %v696
      %v698 = vadd.f32 %v694, %v697
      %vm699 = vweird.f32 %v693
      %vm700 = vweird.f32 %v694
      %vm701 = vmor %vm699, %vm700
      %v702 = vsel %vm701, %v694, %v698
      %v703 = vand.u32 2147483647, %v693
      %vm704 = vcmp.eq.f32.partialorder %v703, 8.507059e+37
      %v705 = vand.u32 %v693, 2147483648
      %v706 = vor.u32 1.1754944e-38, %v705
      %v707 = vsel %vm704, %v706, %v702
      %v708 = vmul.f32 1.0, %v707
      %v709 = vtanh.pop %v648
      %711 = vrot.lane.b32.xlu0 %v586, 32
      %v712 = vpop.permute.xlu0 %711
      %v714 = vmul.f32 %v708, %v712
      %716 = vrot.lane.b32.xlu0 %v709, 64
      %v717 = vpop.permute.xlu0 %716
      %v719 = vmul.f32 %v708, %v717
      %721 = vrot.lane.b32.xlu0 %v719, 32
      %v722 = vpop.permute.xlu0 %721
      %v724 = vadd.f32 %v714, %v722
      %v725 = vtanh.pop %v724
      %727 = vrot.lane.b32.xlu0 %v725, 64
      %v728 = vpop.permute.xlu0 %727
      %v730 = vmul.f32 %v708, %v728
      %v731 = vpack.c.bf16 %v689, %v689
      %v733 = vrot.slane %v731, 3
      %vm734 = vcmask 1040384
      %v737 = vsel %vm734, %v731, %v733
      %739 = vrot.lane.b32.xlu0 %v737, 32
      %v740 = vpop.permute.xlu0 %739
      %vm742 = vcmask 253952
      %743 = vst.msk [vmem:[%s412] sm:$0x1] %vm742, %v740
      %v744 = vpack.c.bf16 %v730, %v730
      %v746 = vrot.slane %v744, 3
      %v749 = vsel %vm734, %v744, %v746
      %751 = vrot.lane.b32.xlu0 %v749, 32
      %v752 = vpop.permute.xlu0 %751
      %s754 = scalar_lea.vmem %s421, 7
      %755 = vst.msk [vmem:[%s754] sm:$0x1] %vm742, %v752
      %v756 = vld [vmem:[#allocation2 + $0x2] sm:$0x3]
      %v757 = vunpack.c.l.b16 %v731
      %v758 = vpack.c.b16 %v757, %v757
      %759 = vrot.lane.b32.xlu0 %v758, 32
      %v760 = vpop.permute.xlu0 %759
      %v762 = vsel %vm486, %v760, 0
      %764 = vmatpush.bf16.msra.mxu0 0
      %765 = vmatpush.bf16.msra.mxu0 0
      %766 = vmatpush.bf16.msra.mxu0 0
      %767 = vmatpush.bf16.msra.mxu0 0
      %768 = vmatpush.bf16.msra.mxu0 0
      %769 = vmatpush.bf16.msra.mxu0 0
      %770 = vmatpush.bf16.msra.mxu0 %v598
      %771 = vmatpush.bf16.msra.mxu0 %v597
      %772 = vmatmul.bf16.gmra.mxu0 %v762
      %v773 = vpop.f32.mrf.mxu0
      %v774 = vadd.f32 0.0, %v773
      %v775 = vpop.f32.mrf.mxu0
      %776 = vdwg.mxu0
      %v777 = vadd.f32 %v756, %v774
      %v778 = vld [vmem:[#allocation3 + $0xc] sm:$0x3]
      %v779 = vunpack.c.l.b16 %v744
      %v780 = vpack.c.b16 %v779, %v779
      %781 = vrot.lane.b32.xlu0 %v780, 32
      %v782 = vpop.permute.xlu0 %781
      %v784 = vsel %vm486, %v782, 0
      %786 = vmatpush.bf16.msra.mxu0 0
      %787 = vmatpush.bf16.msra.mxu0 0
      %788 = vmatpush.bf16.msra.mxu0 0
      %789 = vmatpush.bf16.msra.mxu0 0
      %790 = vmatpush.bf16.msra.mxu0 0
      %791 = vmatpush.bf16.msra.mxu0 0
      %792 = vmatpush.bf16.msra.mxu0 %v629
      %793 = vmatpush.bf16.msra.mxu0 %v628
      %794 = vmatmul.bf16.gmra.mxu0 %v784
      %v795 = vpop.f32.mrf.mxu0
      %v796 = vadd.f32 0.0, %v795
      %v797 = vpop.f32.mrf.mxu0
      %798 = vdwg.mxu0
      %v799 = vadd.f32 %v778, %v796
      %v800 = vxor.u32 %v777, 2147483648
      %v801 = vmul.f32 %v800, 1.442695
      %v802 = vpow.pop %v801
      %v803 = vadd.f32 %v802, 1.0
      %v804 = vrcp.pop %v803
      %v805 = vmul.f32 %v803, %v804
      %v806 = vsub.f32 1.0, %v805
      %v807 = vmul.f32 %v804, %v806
      %v808 = vadd.f32 %v804, %v807
      %vm809 = vweird.f32 %v803
      %vm810 = vweird.f32 %v804
      %vm811 = vmor %vm809, %vm810
      %v812 = vsel %vm811, %v804, %v808
      %v813 = vand.u32 2147483647, %v803
      %vm814 = vcmp.eq.f32.partialorder %v813, 8.507059e+37
      %v815 = vand.u32 %v803, 2147483648
      %v816 = vor.u32 1.1754944e-38, %v815
      %v817 = vsel %vm814, %v816, %v812
      %v818 = vmul.f32 1.0, %v817
      %v819 = vtanh.pop %v777
      %v820 = vmul.f32 %v818, %v683
      %822 = vrot.lane.b32.xlu0 %v819, 64
      %v823 = vpop.permute.xlu0 %822
      %v825 = vmul.f32 %v818, %v823
      %827 = vrot.lane.b32.xlu0 %v825, 32
      %v828 = vpop.permute.xlu0 %827
      %v830 = vadd.f32 %v820, %v828
      %v831 = vtanh.pop %v830
      %833 = vrot.lane.b32.xlu0 %v831, 64
      %v834 = vpop.permute.xlu0 %833
      %v836 = vmul.f32 %v818, %v834
      %v837 = vxor.u32 %v799, 2147483648
      %v838 = vmul.f32 %v837, 1.442695
      %v839 = vpow.pop %v838
      %v840 = vadd.f32 %v839, 1.0
      %v841 = vrcp.pop %v840
      %v842 = vmul.f32 %v840, %v841
      %v843 = vsub.f32 1.0, %v842
      %v844 = vmul.f32 %v841, %v843
      %v845 = vadd.f32 %v841, %v844
      %vm846 = vweird.f32 %v840
      %vm847 = vweird.f32 %v841
      %vm848 = vmor %vm846, %vm847
      %v849 = vsel %vm848, %v841, %v845
      %v850 = vand.u32 2147483647, %v840
      %vm851 = vcmp.eq.f32.partialorder %v850, 8.507059e+37
      %v852 = vand.u32 %v840, 2147483648
      %v853 = vor.u32 1.1754944e-38, %v852
      %v854 = vsel %vm851, %v853, %v849
      %v855 = vmul.f32 1.0, %v854
      %v856 = vtanh.pop %v799
      %v857 = vmul.f32 %v855, %v724
      %859 = vrot.lane.b32.xlu0 %v856, 64
      %v860 = vpop.permute.xlu0 %859
      %v862 = vmul.f32 %v855, %v860
      %864 = vrot.lane.b32.xlu0 %v862, 32
      %v865 = vpop.permute.xlu0 %864
      %v867 = vadd.f32 %v857, %v865
      %v868 = vtanh.pop %v867
      %870 = vrot.lane.b32.xlu0 %v868, 64
      %v871 = vpop.permute.xlu0 %870
      %v873 = vmul.f32 %v855, %v871
      %v874 = vpack.c.bf16 %v836, %v836
      %v876 = vrot.slane %v874, 3
      %v879 = vsel %vm734, %v874, %v876
      %881 = vrot.lane.b32.xlu0 %v879, 32
      %v882 = vpop.permute.xlu0 %881
      %s884 = scalar_lea.vmem %s412, 1
      %885 = vst.msk [vmem:[%s884] sm:$0x1] %vm742, %v882
      %v886 = vpack.c.bf16 %v873, %v873
      %v888 = vrot.slane %v886, 3
      %v891 = vsel %vm734, %v886, %v888
      %893 = vrot.lane.b32.xlu0 %v891, 32
      %v894 = vpop.permute.xlu0 %893
      %s896 = scalar_lea.vmem %s421, 6
      %897 = vst.msk [vmem:[%s896] sm:$0x1] %vm742, %v894
      %v898 = vld [vmem:[#allocation2 + $0x4] sm:$0x3]
      %v899 = vunpack.c.l.b16 %v874
      %v900 = vpack.c.b16 %v899, %v899
      %901 = vrot.lane.b32.xlu0 %v900, 32
      %v902 = vpop.permute.xlu0 %901
      %v904 = vsel %vm486, %v902, 0
      %906 = vmatpush.bf16.msra.mxu0 0
      %907 = vmatpush.bf16.msra.mxu0 0
      %908 = vmatpush.bf16.msra.mxu0 0
      %909 = vmatpush.bf16.msra.mxu0 0
      %910 = vmatpush.bf16.msra.mxu0 0
      %911 = vmatpush.bf16.msra.mxu0 0
      %912 = vmatpush.bf16.msra.mxu0 %v598
      %913 = vmatpush.bf16.msra.mxu0 %v597
      %914 = vmatmul.bf16.gmra.mxu0 %v904
      %v915 = vpop.f32.mrf.mxu0
      %v916 = vadd.f32 0.0, %v915
      %v917 = vpop.f32.mrf.mxu0
      %918 = vdwg.mxu0
      %v919 = vadd.f32 %v898, %v916
      %v920 = vld [vmem:[#allocation3 + $0xa] sm:$0x3]
      %v921 = vunpack.c.l.b16 %v886
      %v922 = vpack.c.b16 %v921, %v921
      %923 = vrot.lane.b32.xlu0 %v922, 32
      %v924 = vpop.permute.xlu0 %923
      %v926 = vsel %vm486, %v924, 0
      %928 = vmatpush.bf16.msra.mxu0 0
      %929 = vmatpush.bf16.msra.mxu0 0
      %930 = vmatpush.bf16.msra.mxu0 0
      %931 = vmatpush.bf16.msra.mxu0 0
      %932 = vmatpush.bf16.msra.mxu0 0
      %933 = vmatpush.bf16.msra.mxu0 0
      %934 = vmatpush.bf16.msra.mxu0 %v629
      %935 = vmatpush.bf16.msra.mxu0 %v628
      %936 = vmatmul.bf16.gmra.mxu0 %v926
      %v937 = vpop.f32.mrf.mxu0
      %v938 = vadd.f32 0.0, %v937
      %v939 = vpop.f32.mrf.mxu0
      %940 = vdwg.mxu0
      %v941 = vadd.f32 %v920, %v938
      %v942 = vxor.u32 %v919, 2147483648
      %v943 = vmul.f32 %v942, 1.442695
      %v944 = vpow.pop %v943
      %v945 = vadd.f32 %v944, 1.0
      %v946 = vrcp.pop %v945
      %v947 = vmul.f32 %v945, %v946
      %v948 = vsub.f32 1.0, %v947
      %v949 = vmul.f32 %v946, %v948
      %v950 = vadd.f32 %v946, %v949
      %vm951 = vweird.f32 %v945
      %vm952 = vweird.f32 %v946
      %vm953 = vmor %vm951, %vm952
      %v954 = vsel %vm953, %v946, %v950
      %v955 = vand.u32 2147483647, %v945
      %vm956 = vcmp.eq.f32.partialorder %v955, 8.507059e+37
      %v957 = vand.u32 %v945, 2147483648
      %v958 = vor.u32 1.1754944e-38, %v957
      %v959 = vsel %vm956, %v958, %v954
      %v960 = vmul.f32 1.0, %v959
      %v961 = vtanh.pop %v919
      %v962 = vmul.f32 %v960, %v830
      %964 = vrot.lane.b32.xlu0 %v961, 64
      %v965 = vpop.permute.xlu0 %964
      %v967 = vmul.f32 %v960, %v965
      %969 = vrot.lane.b32.xlu0 %v967, 32
      %v970 = vpop.permute.xlu0 %969
      %v972 = vadd.f32 %v962, %v970
      %v973 = vtanh.pop %v972
      %975 = vrot.lane.b32.xlu0 %v973, 64
      %v976 = vpop.permute.xlu0 %975
      %v978 = vmul.f32 %v960, %v976
      %v979 = vxor.u32 %v941, 2147483648
      %v980 = vmul.f32 %v979, 1.442695
      %v981 = vpow.pop %v980
      %v982 = vadd.f32 %v981, 1.0
      %v983 = vrcp.pop %v982
      %v984 = vmul.f32 %v982, %v983
      %v985 = vsub.f32 1.0, %v984
      %v986 = vmul.f32 %v983, %v985
      %v987 = vadd.f32 %v983, %v986
      %vm988 = vweird.f32 %v982
      %vm989 = vweird.f32 %v983
      %vm990 = vmor %vm988, %vm989
      %v991 = vsel %vm990, %v983, %v987
      %v992 = vand.u32 2147483647, %v982
      %vm993 = vcmp.eq.f32.partialorder %v992, 8.507059e+37
      %v994 = vand.u32 %v982, 2147483648
      %v995 = vor.u32 1.1754944e-38, %v994
      %v996 = vsel %vm993, %v995, %v991
      %v997 = vmul.f32 1.0, %v996
      %v998 = vtanh.pop %v941
      %v999 = vmul.f32 %v997, %v867
      %1001 = vrot.lane.b32.xlu0 %v998, 64
      %v1002 = vpop.permute.xlu0 %1001
      %v1004 = vmul.f32 %v997, %v1002
      %1006 = vrot.lane.b32.xlu0 %v1004, 32
      %v1007 = vpop.permute.xlu0 %1006
      %v1009 = vadd.f32 %v999, %v1007
      %v1010 = vtanh.pop %v1009
      %1012 = vrot.lane.b32.xlu0 %v1010, 64
      %v1013 = vpop.permute.xlu0 %1012
      %v1015 = vmul.f32 %v997, %v1013
      %v1016 = vpack.c.bf16 %v978, %v978
      %v1018 = vrot.slane %v1016, 3
      %v1021 = vsel %vm734, %v1016, %v1018
      %1023 = vrot.lane.b32.xlu0 %v1021, 32
      %v1024 = vpop.permute.xlu0 %1023
      %s1026 = scalar_lea.vmem %s412, 2
      %1027 = vst.msk [vmem:[%s1026] sm:$0x1] %vm742, %v1024
      %v1028 = vpack.c.bf16 %v1015, %v1015
      %v1030 = vrot.slane %v1028, 3
      %v1033 = vsel %vm734, %v1028, %v1030
      %1035 = vrot.lane.b32.xlu0 %v1033, 32
      %v1036 = vpop.permute.xlu0 %1035
      %s1038 = scalar_lea.vmem %s421, 5
      %1039 = vst.msk [vmem:[%s1038] sm:$0x1] %vm742, %v1036
      %v1040 = vld [vmem:[#allocation2 + $0x6] sm:$0x3]
      %v1041 = vunpack.c.l.b16 %v1016
      %v1042 = vpack.c.b16 %v1041, %v1041
      %1043 = vrot.lane.b32.xlu0 %v1042, 32
      %v1044 = vpop.permute.xlu0 %1043
      %v1046 = vsel %vm486, %v1044, 0
      %1048 = vmatpush.bf16.msra.mxu0 0
      %1049 = vmatpush.bf16.msra.mxu0 0
      %1050 = vmatpush.bf16.msra.mxu0 0
      %1051 = vmatpush.bf16.msra.mxu0 0
      %1052 = vmatpush.bf16.msra.mxu0 0
      %1053 = vmatpush.bf16.msra.mxu0 0
      %1054 = vmatpush.bf16.msra.mxu0 %v598
      %1055 = vmatpush.bf16.msra.mxu0 %v597
      %1056 = vmatmul.bf16.gmra.mxu0 %v1046
      %v1057 = vpop.f32.mrf.mxu0
      %v1058 = vadd.f32 0.0, %v1057
      %v1059 = vpop.f32.mrf.mxu0
      %1060 = vdwg.mxu0
      %v1061 = vadd.f32 %v1040, %v1058
      %v1062 = vld [vmem:[#allocation3 + $0x8] sm:$0x3]
      %v1063 = vunpack.c.l.b16 %v1028
      %v1064 = vpack.c.b16 %v1063, %v1063
      %1065 = vrot.lane.b32.xlu0 %v1064, 32
      %v1066 = vpop.permute.xlu0 %1065
      %v1068 = vsel %vm486, %v1066, 0
      %1070 = vmatpush.bf16.msra.mxu0 0
      %1071 = vmatpush.bf16.msra.mxu0 0
      %1072 = vmatpush.bf16.msra.mxu0 0
      %1073 = vmatpush.bf16.msra.mxu0 0
      %1074 = vmatpush.bf16.msra.mxu0 0
      %1075 = vmatpush.bf16.msra.mxu0 0
      %1076 = vmatpush.bf16.msra.mxu0 %v629
      %1077 = vmatpush.bf16.msra.mxu0 %v628
      %1078 = vmatmul.bf16.gmra.mxu0 %v1068
      %v1079 = vpop.f32.mrf.mxu0
      %v1080 = vadd.f32 0.0, %v1079
      %v1081 = vpop.f32.mrf.mxu0
      %1082 = vdwg.mxu0
      %v1083 = vadd.f32 %v1062, %v1080
      %v1084 = vxor.u32 %v1061, 2147483648
      %v1085 = vmul.f32 %v1084, 1.442695
      %v1086 = vpow.pop %v1085
      %v1087 = vadd.f32 %v1086, 1.0
      %v1088 = vrcp.pop %v1087
      %v1089 = vmul.f32 %v1087, %v1088
      %v1090 = vsub.f32 1.0, %v1089
      %v1091 = vmul.f32 %v1088, %v1090
      %v1092 = vadd.f32 %v1088, %v1091
      %vm1093 = vweird.f32 %v1087
      %vm1094 = vweird.f32 %v1088
      %vm1095 = vmor %vm1093, %vm1094
      %v1096 = vsel %vm1095, %v1088, %v1092
      %v1097 = vand.u32 2147483647, %v1087
      %vm1098 = vcmp.eq.f32.partialorder %v1097, 8.507059e+37
      %v1099 = vand.u32 %v1087, 2147483648
      %v1100 = vor.u32 1.1754944e-38, %v1099
      %v1101 = vsel %vm1098, %v1100, %v1096
      %v1102 = vmul.f32 1.0, %v1101
      %v1103 = vtanh.pop %v1061
      %v1104 = vmul.f32 %v1102, %v972
      %1106 = vrot.lane.b32.xlu0 %v1103, 64
      %v1107 = vpop.permute.xlu0 %1106
      %v1109 = vmul.f32 %v1102, %v1107
      %1111 = vrot.lane.b32.xlu0 %v1109, 32
      %v1112 = vpop.permute.xlu0 %1111
      %v1114 = vadd.f32 %v1104, %v1112
      %v1115 = vtanh.pop %v1114
      %1117 = vrot.lane.b32.xlu0 %v1115, 64
      %v1118 = vpop.permute.xlu0 %1117
      %v1120 = vmul.f32 %v1102, %v1118
      %v1121 = vxor.u32 %v1083, 2147483648
      %v1122 = vmul.f32 %v1121, 1.442695
      %v1123 = vpow.pop %v1122
      %v1124 = vadd.f32 %v1123, 1.0
      %v1125 = vrcp.pop %v1124
      %v1126 = vmul.f32 %v1124, %v1125
      %v1127 = vsub.f32 1.0, %v1126
      %v1128 = vmul.f32 %v1125, %v1127
      %v1129 = vadd.f32 %v1125, %v1128
      %vm1130 = vweird.f32 %v1124
      %vm1131 = vweird.f32 %v1125
      %vm1132 = vmor %vm1130, %vm1131
      %v1133 = vsel %vm1132, %v1125, %v1129
      %v1134 = vand.u32 2147483647, %v1124
      %vm1135 = vcmp.eq.f32.partialorder %v1134, 8.507059e+37
      %v1136 = vand.u32 %v1124, 2147483648
      %v1137 = vor.u32 1.1754944e-38, %v1136
      %v1138 = vsel %vm1135, %v1137, %v1133
      %v1139 = vmul.f32 1.0, %v1138
      %v1140 = vtanh.pop %v1083
      %v1141 = vmul.f32 %v1139, %v1009
      %1143 = vrot.lane.b32.xlu0 %v1140, 64
      %v1144 = vpop.permute.xlu0 %1143
      %v1146 = vmul.f32 %v1139, %v1144
      %1148 = vrot.lane.b32.xlu0 %v1146, 32
      %v1149 = vpop.permute.xlu0 %1148
      %v1151 = vadd.f32 %v1141, %v1149
      %v1152 = vtanh.pop %v1151
      %1154 = vrot.lane.b32.xlu0 %v1152, 64
      %v1155 = vpop.permute.xlu0 %1154
      %v1157 = vmul.f32 %v1139, %v1155
      %v1158 = vpack.c.bf16 %v1120, %v1120
      %v1160 = vrot.slane %v1158, 3
      %v1163 = vsel %vm734, %v1158, %v1160
      %1165 = vrot.lane.b32.xlu0 %v1163, 32
      %v1166 = vpop.permute.xlu0 %1165
      %s1168 = scalar_lea.vmem %s412, 3
      %1169 = vst.msk [vmem:[%s1168] sm:$0x1] %vm742, %v1166
      %v1170 = vpack.c.bf16 %v1157, %v1157
      %v1172 = vrot.slane %v1170, 3
      %v1175 = vsel %vm734, %v1170, %v1172
      %1177 = vrot.lane.b32.xlu0 %v1175, 32
      %v1178 = vpop.permute.xlu0 %1177
      %s1180 = scalar_lea.vmem %s421, 4
      %1181 = vst.msk [vmem:[%s1180] sm:$0x1] %vm742, %v1178
      %v1182 = vld [vmem:[#allocation2 + $0x8] sm:$0x3]
      %v1183 = vunpack.c.l.b16 %v1158
      %v1184 = vpack.c.b16 %v1183, %v1183
      %1185 = vrot.lane.b32.xlu0 %v1184, 32
      %v1186 = vpop.permute.xlu0 %1185
      %v1188 = vsel %vm486, %v1186, 0
      %1190 = vmatpush.bf16.msra.mxu0 0
      %1191 = vmatpush.bf16.msra.mxu0 0
      %1192 = vmatpush.bf16.msra.mxu0 0
      %1193 = vmatpush.bf16.msra.mxu0 0
      %1194 = vmatpush.bf16.msra.mxu0 0
      %1195 = vmatpush.bf16.msra.mxu0 0
      %1196 = vmatpush.bf16.msra.mxu0 %v598
      %1197 = vmatpush.bf16.msra.mxu0 %v597
      %1198 = vmatmul.bf16.gmra.mxu0 %v1188
      %v1199 = vpop.f32.mrf.mxu0
      %v1200 = vadd.f32 0.0, %v1199
      %v1201 = vpop.f32.mrf.mxu0
      %1202 = vdwg.mxu0
      %v1203 = vadd.f32 %v1182, %v1200
      %v1204 = vld [vmem:[#allocation3 + $0x6] sm:$0x3]
      %v1205 = vunpack.c.l.b16 %v1170
      %v1206 = vpack.c.b16 %v1205, %v1205
      %1207 = vrot.lane.b32.xlu0 %v1206, 32
      %v1208 = vpop.permute.xlu0 %1207
      %v1210 = vsel %vm486, %v1208, 0
      %1212 = vmatpush.bf16.msra.mxu0 0
      %1213 = vmatpush.bf16.msra.mxu0 0
      %1214 = vmatpush.bf16.msra.mxu0 0
      %1215 = vmatpush.bf16.msra.mxu0 0
      %1216 = vmatpush.bf16.msra.mxu0 0
      %1217 = vmatpush.bf16.msra.mxu0 0
      %1218 = vmatpush.bf16.msra.mxu0 %v629
      %1219 = vmatpush.bf16.msra.mxu0 %v628
      %1220 = vmatmul.bf16.gmra.mxu0 %v1210
      %v1221 = vpop.f32.mrf.mxu0
      %v1222 = vadd.f32 0.0, %v1221
      %v1223 = vpop.f32.mrf.mxu0
      %1224 = vdwg.mxu0
      %v1225 = vadd.f32 %v1204, %v1222
      %v1226 = vxor.u32 %v1203, 2147483648
      %v1227 = vmul.f32 %v1226, 1.442695
      %v1228 = vpow.pop %v1227
      %v1229 = vadd.f32 %v1228, 1.0
      %v1230 = vrcp.pop %v1229
      %v1231 = vmul.f32 %v1229, %v1230
      %v1232 = vsub.f32 1.0, %v1231
      %v1233 = vmul.f32 %v1230, %v1232
      %v1234 = vadd.f32 %v1230, %v1233
      %vm1235 = vweird.f32 %v1229
      %vm1236 = vweird.f32 %v1230
      %vm1237 = vmor %vm1235, %vm1236
      %v1238 = vsel %vm1237, %v1230, %v1234
      %v1239 = vand.u32 2147483647, %v1229
      %vm1240 = vcmp.eq.f32.partialorder %v1239, 8.507059e+37
      %v1241 = vand.u32 %v1229, 2147483648
      %v1242 = vor.u32 1.1754944e-38, %v1241
      %v1243 = vsel %vm1240, %v1242, %v1238
      %v1244 = vmul.f32 1.0, %v1243
      %v1245 = vtanh.pop %v1203
      %v1246 = vmul.f32 %v1244, %v1114
      %1248 = vrot.lane.b32.xlu0 %v1245, 64
      %v1249 = vpop.permute.xlu0 %1248
      %v1251 = vmul.f32 %v1244, %v1249
      %1253 = vrot.lane.b32.xlu0 %v1251, 32
      %v1254 = vpop.permute.xlu0 %1253
      %v1256 = vadd.f32 %v1246, %v1254
      %v1257 = vtanh.pop %v1256
      %1259 = vrot.lane.b32.xlu0 %v1257, 64
      %v1260 = vpop.permute.xlu0 %1259
      %v1262 = vmul.f32 %v1244, %v1260
      %v1263 = vxor.u32 %v1225, 2147483648
      %v1264 = vmul.f32 %v1263, 1.442695
      %v1265 = vpow.pop %v1264
      %v1266 = vadd.f32 %v1265, 1.0
      %v1267 = vrcp.pop %v1266
      %v1268 = vmul.f32 %v1266, %v1267
      %v1269 = vsub.f32 1.0, %v1268
      %v1270 = vmul.f32 %v1267, %v1269
      %v1271 = vadd.f32 %v1267, %v1270
      %vm1272 = vweird.f32 %v1266
      %vm1273 = vweird.f32 %v1267
      %vm1274 = vmor %vm1272, %vm1273
      %v1275 = vsel %vm1274, %v1267, %v1271
      %v1276 = vand.u32 2147483647, %v1266
      %vm1277 = vcmp.eq.f32.partialorder %v1276, 8.507059e+37
      %v1278 = vand.u32 %v1266, 2147483648
      %v1279 = vor.u32 1.1754944e-38, %v1278
      %v1280 = vsel %vm1277, %v1279, %v1275
      %v1281 = vmul.f32 1.0, %v1280
      %v1282 = vtanh.pop %v1225
      %v1283 = vmul.f32 %v1281, %v1151
      %1285 = vrot.lane.b32.xlu0 %v1282, 64
      %v1286 = vpop.permute.xlu0 %1285
      %v1288 = vmul.f32 %v1281, %v1286
      %1290 = vrot.lane.b32.xlu0 %v1288, 32
      %v1291 = vpop.permute.xlu0 %1290
      %v1293 = vadd.f32 %v1283, %v1291
      %v1294 = vtanh.pop %v1293
      %1296 = vrot.lane.b32.xlu0 %v1294, 64
      %v1297 = vpop.permute.xlu0 %1296
      %v1299 = vmul.f32 %v1281, %v1297
      %v1300 = vpack.c.bf16 %v1262, %v1262
      %v1302 = vrot.slane %v1300, 3
      %v1305 = vsel %vm734, %v1300, %v1302
      %1307 = vrot.lane.b32.xlu0 %v1305, 32
      %v1308 = vpop.permute.xlu0 %1307
      %s1310 = scalar_lea.vmem %s412, 4
      %1311 = vst.msk [vmem:[%s1310] sm:$0x1] %vm742, %v1308
      %v1312 = vpack.c.bf16 %v1299, %v1299
      %v1314 = vrot.slane %v1312, 3
      %v1317 = vsel %vm734, %v1312, %v1314
      %1319 = vrot.lane.b32.xlu0 %v1317, 32
      %v1320 = vpop.permute.xlu0 %1319
      %s1322 = scalar_lea.vmem %s421, 3
      %1323 = vst.msk [vmem:[%s1322] sm:$0x1] %vm742, %v1320
      %v1324 = vld [vmem:[#allocation2 + $0xa] sm:$0x3]
      %v1325 = vunpack.c.l.b16 %v1300
      %v1326 = vpack.c.b16 %v1325, %v1325
      %1327 = vrot.lane.b32.xlu0 %v1326, 32
      %v1328 = vpop.permute.xlu0 %1327
      %v1330 = vsel %vm486, %v1328, 0
      %1332 = vmatpush.bf16.msra.mxu0 0
      %1333 = vmatpush.bf16.msra.mxu0 0
      %1334 = vmatpush.bf16.msra.mxu0 0
      %1335 = vmatpush.bf16.msra.mxu0 0
      %1336 = vmatpush.bf16.msra.mxu0 0
      %1337 = vmatpush.bf16.msra.mxu0 0
      %1338 = vmatpush.bf16.msra.mxu0 %v598
      %1339 = vmatpush.bf16.msra.mxu0 %v597
      %1340 = vmatmul.bf16.gmra.mxu0 %v1330
      %v1341 = vpop.f32.mrf.mxu0
      %v1342 = vadd.f32 0.0, %v1341
      %v1343 = vpop.f32.mrf.mxu0
      %1344 = vdwg.mxu0
      %v1345 = vadd.f32 %v1324, %v1342
      %v1346 = vld [vmem:[#allocation3 + $0x4] sm:$0x3]
      %v1347 = vunpack.c.l.b16 %v1312
      %v1348 = vpack.c.b16 %v1347, %v1347
      %1349 = vrot.lane.b32.xlu0 %v1348, 32
      %v1350 = vpop.permute.xlu0 %1349
      %v1352 = vsel %vm486, %v1350, 0
      %1354 = vmatpush.bf16.msra.mxu0 0
      %1355 = vmatpush.bf16.msra.mxu0 0
      %1356 = vmatpush.bf16.msra.mxu0 0
      %1357 = vmatpush.bf16.msra.mxu0 0
      %1358 = vmatpush.bf16.msra.mxu0 0
      %1359 = vmatpush.bf16.msra.mxu0 0
      %1360 = vmatpush.bf16.msra.mxu0 %v629
      %1361 = vmatpush.bf16.msra.mxu0 %v628
      %1362 = vmatmul.bf16.gmra.mxu0 %v1352
      %v1363 = vpop.f32.mrf.mxu0
      %v1364 = vadd.f32 0.0, %v1363
      %v1365 = vpop.f32.mrf.mxu0
      %1366 = vdwg.mxu0
      %v1367 = vadd.f32 %v1346, %v1364
      %v1368 = vxor.u32 %v1345, 2147483648
      %v1369 = vmul.f32 %v1368, 1.442695
      %v1370 = vpow.pop %v1369
      %v1371 = vadd.f32 %v1370, 1.0
      %v1372 = vrcp.pop %v1371
      %v1373 = vmul.f32 %v1371, %v1372
      %v1374 = vsub.f32 1.0, %v1373
      %v1375 = vmul.f32 %v1372, %v1374
      %v1376 = vadd.f32 %v1372, %v1375
      %vm1377 = vweird.f32 %v1371
      %vm1378 = vweird.f32 %v1372
      %vm1379 = vmor %vm1377, %vm1378
      %v1380 = vsel %vm1379, %v1372, %v1376
      %v1381 = vand.u32 2147483647, %v1371
      %vm1382 = vcmp.eq.f32.partialorder %v1381, 8.507059e+37
      %v1383 = vand.u32 %v1371, 2147483648
      %v1384 = vor.u32 1.1754944e-38, %v1383
      %v1385 = vsel %vm1382, %v1384, %v1380
      %v1386 = vmul.f32 1.0, %v1385
      %v1387 = vtanh.pop %v1345
      %v1388 = vmul.f32 %v1386, %v1256
      %1390 = vrot.lane.b32.xlu0 %v1387, 64
      %v1391 = vpop.permute.xlu0 %1390
      %v1393 = vmul.f32 %v1386, %v1391
      %1395 = vrot.lane.b32.xlu0 %v1393, 32
      %v1396 = vpop.permute.xlu0 %1395
      %v1398 = vadd.f32 %v1388, %v1396
      %v1399 = vtanh.pop %v1398
      %1401 = vrot.lane.b32.xlu0 %v1399, 64
      %v1402 = vpop.permute.xlu0 %1401
      %v1404 = vmul.f32 %v1386, %v1402
      %v1405 = vxor.u32 %v1367, 2147483648
      %v1406 = vmul.f32 %v1405, 1.442695
      %v1407 = vpow.pop %v1406
      %v1408 = vadd.f32 %v1407, 1.0
      %v1409 = vrcp.pop %v1408
      %v1410 = vmul.f32 %v1408, %v1409
      %v1411 = vsub.f32 1.0, %v1410
      %v1412 = vmul.f32 %v1409, %v1411
      %v1413 = vadd.f32 %v1409, %v1412
      %vm1414 = vweird.f32 %v1408
      %vm1415 = vweird.f32 %v1409
      %vm1416 = vmor %vm1414, %vm1415
      %v1417 = vsel %vm1416, %v1409, %v1413
      %v1418 = vand.u32 2147483647, %v1408
      %vm1419 = vcmp.eq.f32.partialorder %v1418, 8.507059e+37
      %v1420 = vand.u32 %v1408, 2147483648
      %v1421 = vor.u32 1.1754944e-38, %v1420
      %v1422 = vsel %vm1419, %v1421, %v1417
      %v1423 = vmul.f32 1.0, %v1422
      %v1424 = vtanh.pop %v1367
      %v1425 = vmul.f32 %v1423, %v1293
      %1427 = vrot.lane.b32.xlu0 %v1424, 64
      %v1428 = vpop.permute.xlu0 %1427
      %v1430 = vmul.f32 %v1423, %v1428
      %1432 = vrot.lane.b32.xlu0 %v1430, 32
      %v1433 = vpop.permute.xlu0 %1432
      %v1435 = vadd.f32 %v1425, %v1433
      %v1436 = vtanh.pop %v1435
      %1438 = vrot.lane.b32.xlu0 %v1436, 64
      %v1439 = vpop.permute.xlu0 %1438
      %v1441 = vmul.f32 %v1423, %v1439
      %v1442 = vpack.c.bf16 %v1404, %v1404
      %v1444 = vrot.slane %v1442, 3
      %v1447 = vsel %vm734, %v1442, %v1444
      %1449 = vrot.lane.b32.xlu0 %v1447, 32
      %v1450 = vpop.permute.xlu0 %1449
      %s1452 = scalar_lea.vmem %s412, 5
      %1453 = vst.msk [vmem:[%s1452] sm:$0x1] %vm742, %v1450
      %v1454 = vpack.c.bf16 %v1441, %v1441
      %v1456 = vrot.slane %v1454, 3
      %v1459 = vsel %vm734, %v1454, %v1456
      %1461 = vrot.lane.b32.xlu0 %v1459, 32
      %v1462 = vpop.permute.xlu0 %1461
      %s1464 = scalar_lea.vmem %s421, 2
      %1465 = vst.msk [vmem:[%s1464] sm:$0x1] %vm742, %v1462
      %v1466 = vld [vmem:[#allocation2 + $0xc] sm:$0x3]
      %v1467 = vunpack.c.l.b16 %v1442
      %v1468 = vpack.c.b16 %v1467, %v1467
      %1469 = vrot.lane.b32.xlu0 %v1468, 32
      %v1470 = vpop.permute.xlu0 %1469
      %v1472 = vsel %vm486, %v1470, 0
      %1474 = vmatpush.bf16.msra.mxu0 0
      %1475 = vmatpush.bf16.msra.mxu0 0
      %1476 = vmatpush.bf16.msra.mxu0 0
      %1477 = vmatpush.bf16.msra.mxu0 0
      %1478 = vmatpush.bf16.msra.mxu0 0
      %1479 = vmatpush.bf16.msra.mxu0 0
      %1480 = vmatpush.bf16.msra.mxu0 %v598
      %1481 = vmatpush.bf16.msra.mxu0 %v597
      %1482 = vmatmul.bf16.gmra.mxu0 %v1472
      %v1483 = vpop.f32.mrf.mxu0
      %v1484 = vadd.f32 0.0, %v1483
      %v1485 = vpop.f32.mrf.mxu0
      %1486 = vdwg.mxu0
      %v1487 = vadd.f32 %v1466, %v1484
      %v1488 = vld [vmem:[#allocation3 + $0x2] sm:$0x3]
      %v1489 = vunpack.c.l.b16 %v1454
      %v1490 = vpack.c.b16 %v1489, %v1489
      %1491 = vrot.lane.b32.xlu0 %v1490, 32
      %v1492 = vpop.permute.xlu0 %1491
      %v1494 = vsel %vm486, %v1492, 0
      %1496 = vmatpush.bf16.msra.mxu0 0
      %1497 = vmatpush.bf16.msra.mxu0 0
      %1498 = vmatpush.bf16.msra.mxu0 0
      %1499 = vmatpush.bf16.msra.mxu0 0
      %1500 = vmatpush.bf16.msra.mxu0 0
      %1501 = vmatpush.bf16.msra.mxu0 0
      %1502 = vmatpush.bf16.msra.mxu0 %v629
      %1503 = vmatpush.bf16.msra.mxu0 %v628
      %1504 = vmatmul.bf16.gmra.mxu0 %v1494
      %v1505 = vpop.f32.mrf.mxu0
      %v1506 = vadd.f32 0.0, %v1505
      %v1507 = vpop.f32.mrf.mxu0
      %1508 = vdwg.mxu0
      %v1509 = vadd.f32 %v1488, %v1506
      %v1510 = vxor.u32 %v1487, 2147483648
      %v1511 = vmul.f32 %v1510, 1.442695
      %v1512 = vpow.pop %v1511
      %v1513 = vadd.f32 %v1512, 1.0
      %v1514 = vrcp.pop %v1513
      %v1515 = vmul.f32 %v1513, %v1514
      %v1516 = vsub.f32 1.0, %v1515
      %v1517 = vmul.f32 %v1514, %v1516
      %v1518 = vadd.f32 %v1514, %v1517
      %vm1519 = vweird.f32 %v1513
      %vm1520 = vweird.f32 %v1514
      %vm1521 = vmor %vm1519, %vm1520
      %v1522 = vsel %vm1521, %v1514, %v1518
      %v1523 = vand.u32 2147483647, %v1513
      %vm1524 = vcmp.eq.f32.partialorder %v1523, 8.507059e+37
      %v1525 = vand.u32 %v1513, 2147483648
      %v1526 = vor.u32 1.1754944e-38, %v1525
      %v1527 = vsel %vm1524, %v1526, %v1522
      %v1528 = vmul.f32 1.0, %v1527
      %v1529 = vtanh.pop %v1487
      %v1530 = vmul.f32 %v1528, %v1398
      %1532 = vrot.lane.b32.xlu0 %v1529, 64
      %v1533 = vpop.permute.xlu0 %1532
      %v1535 = vmul.f32 %v1528, %v1533
      %1537 = vrot.lane.b32.xlu0 %v1535, 32
      %v1538 = vpop.permute.xlu0 %1537
      %v1540 = vadd.f32 %v1530, %v1538
      %v1541 = vtanh.pop %v1540
      %1543 = vrot.lane.b32.xlu0 %v1541, 64
      %v1544 = vpop.permute.xlu0 %1543
      %v1546 = vmul.f32 %v1528, %v1544
      %v1547 = vxor.u32 %v1509, 2147483648
      %v1548 = vmul.f32 %v1547, 1.442695
      %v1549 = vpow.pop %v1548
      %v1550 = vadd.f32 %v1549, 1.0
      %v1551 = vrcp.pop %v1550
      %v1552 = vmul.f32 %v1550, %v1551
      %v1553 = vsub.f32 1.0, %v1552
      %v1554 = vmul.f32 %v1551, %v1553
      %v1555 = vadd.f32 %v1551, %v1554
      %vm1556 = vweird.f32 %v1550
      %vm1557 = vweird.f32 %v1551
      %vm1558 = vmor %vm1556, %vm1557
      %v1559 = vsel %vm1558, %v1551, %v1555
      %v1560 = vand.u32 2147483647, %v1550
      %vm1561 = vcmp.eq.f32.partialorder %v1560, 8.507059e+37
      %v1562 = vand.u32 %v1550, 2147483648
      %v1563 = vor.u32 1.1754944e-38, %v1562
      %v1564 = vsel %vm1561, %v1563, %v1559
      %v1565 = vmul.f32 1.0, %v1564
      %v1566 = vtanh.pop %v1509
      %v1567 = vmul.f32 %v1565, %v1435
      %1569 = vrot.lane.b32.xlu0 %v1566, 64
      %v1570 = vpop.permute.xlu0 %1569
      %v1572 = vmul.f32 %v1565, %v1570
      %1574 = vrot.lane.b32.xlu0 %v1572, 32
      %v1575 = vpop.permute.xlu0 %1574
      %v1577 = vadd.f32 %v1567, %v1575
      %v1578 = vtanh.pop %v1577
      %1580 = vrot.lane.b32.xlu0 %v1578, 64
      %v1581 = vpop.permute.xlu0 %1580
      %v1583 = vmul.f32 %v1565, %v1581
      %v1584 = vpack.c.bf16 %v1546, %v1546
      %v1586 = vrot.slane %v1584, 3
      %v1589 = vsel %vm734, %v1584, %v1586
      %1591 = vrot.lane.b32.xlu0 %v1589, 32
      %v1592 = vpop.permute.xlu0 %1591
      %s1594 = scalar_lea.vmem %s412, 6
      %1595 = vst.msk [vmem:[%s1594] sm:$0x1] %vm742, %v1592
      %v1596 = vpack.c.bf16 %v1583, %v1583
      %v1598 = vrot.slane %v1596, 3
      %v1601 = vsel %vm734, %v1596, %v1598
      %1603 = vrot.lane.b32.xlu0 %v1601, 32
      %v1604 = vpop.permute.xlu0 %1603
      %s1606 = scalar_lea.vmem %s421, 1
      %1607 = vst.msk [vmem:[%s1606] sm:$0x1] %vm742, %v1604
      %v1608 = vld [vmem:[#allocation2 + $0xe] sm:$0x3]
      %v1609 = vunpack.c.l.b16 %v1584
      %v1610 = vpack.c.b16 %v1609, %v1609
      %1611 = vrot.lane.b32.xlu0 %v1610, 32
      %v1612 = vpop.permute.xlu0 %1611
      %v1614 = vsel %vm486, %v1612, 0
      %1616 = vmatpush.bf16.msra.mxu0 0
      %1617 = vmatpush.bf16.msra.mxu0 0
      %1618 = vmatpush.bf16.msra.mxu0 0
      %1619 = vmatpush.bf16.msra.mxu0 0
      %1620 = vmatpush.bf16.msra.mxu0 0
      %1621 = vmatpush.bf16.msra.mxu0 0
      %1622 = vmatpush.bf16.msra.mxu0 %v598
      %1623 = vmatpush.bf16.msra.mxu0 %v597
      %1624 = vmatmul.bf16.gmra.mxu0 %v1614
      %v1625 = vpop.f32.mrf.mxu0
      %v1626 = vadd.f32 0.0, %v1625
      %v1627 = vpop.f32.mrf.mxu0
      %1628 = vdwg.mxu0
      %v1629 = vadd.f32 %v1608, %v1626
      %v1630 = vld [vmem:[#allocation3] sm:$0x3]
      %v1631 = vunpack.c.l.b16 %v1596
      %v1632 = vpack.c.b16 %v1631, %v1631
      %1633 = vrot.lane.b32.xlu0 %v1632, 32
      %v1634 = vpop.permute.xlu0 %1633
      %v1636 = vsel %vm486, %v1634, 0
      %1638 = vmatpush.bf16.msra.mxu0 0
      %1639 = vmatpush.bf16.msra.mxu0 0
      %1640 = vmatpush.bf16.msra.mxu0 0
      %1641 = vmatpush.bf16.msra.mxu0 0
      %1642 = vmatpush.bf16.msra.mxu0 0
      %1643 = vmatpush.bf16.msra.mxu0 0
      %1644 = vmatpush.bf16.msra.mxu0 %v629
      %1645 = vmatpush.bf16.msra.mxu0 %v628
      %1646 = vmatmul.bf16.gmra.mxu0 %v1636
      %v1647 = vpop.f32.mrf.mxu0
      %v1648 = vadd.f32 0.0, %v1647
      %v1649 = vpop.f32.mrf.mxu0
      %1650 = vdwg.mxu0
      %v1651 = vadd.f32 %v1630, %v1648
      %v1652 = vxor.u32 %v1629, 2147483648
      %v1653 = vmul.f32 %v1652, 1.442695
      %v1654 = vpow.pop %v1653
      %v1655 = vadd.f32 %v1654, 1.0
      %v1656 = vrcp.pop %v1655
      %v1657 = vmul.f32 %v1655, %v1656
      %v1658 = vsub.f32 1.0, %v1657
      %v1659 = vmul.f32 %v1656, %v1658
      %v1660 = vadd.f32 %v1656, %v1659
      %vm1661 = vweird.f32 %v1655
      %vm1662 = vweird.f32 %v1656
      %vm1663 = vmor %vm1661, %vm1662
      %v1664 = vsel %vm1663, %v1656, %v1660
      %v1665 = vand.u32 2147483647, %v1655
      %vm1666 = vcmp.eq.f32.partialorder %v1665, 8.507059e+37
      %v1667 = vand.u32 %v1655, 2147483648
      %v1668 = vor.u32 1.1754944e-38, %v1667
      %v1669 = vsel %vm1666, %v1668, %v1664
      %v1670 = vmul.f32 1.0, %v1669
      %v1671 = vtanh.pop %v1629
      %v1672 = vmul.f32 %v1670, %v1540
      %1674 = vrot.lane.b32.xlu0 %v1671, 64
      %v1675 = vpop.permute.xlu0 %1674
      %v1677 = vmul.f32 %v1670, %v1675
      %1679 = vrot.lane.b32.xlu0 %v1677, 32
      %v1680 = vpop.permute.xlu0 %1679
      %v1682 = vadd.f32 %v1672, %v1680
      %v1683 = vtanh.pop %v1682
      %1685 = vrot.lane.b32.xlu0 %v1683, 64
      %v1686 = vpop.permute.xlu0 %1685
      %v1688 = vmul.f32 %v1670, %v1686
      %v1689 = vxor.u32 %v1651, 2147483648
      %v1690 = vmul.f32 %v1689, 1.442695
      %v1691 = vpow.pop %v1690
      %v1692 = vadd.f32 %v1691, 1.0
      %v1693 = vrcp.pop %v1692
      %v1694 = vmul.f32 %v1692, %v1693
      %v1695 = vsub.f32 1.0, %v1694
      %v1696 = vmul.f32 %v1693, %v1695
      %v1697 = vadd.f32 %v1693, %v1696
      %vm1698 = vweird.f32 %v1692
      %vm1699 = vweird.f32 %v1693
      %vm1700 = vmor %vm1698, %vm1699
      %v1701 = vsel %vm1700, %v1693, %v1697
      %v1702 = vand.u32 2147483647, %v1692
      %vm1703 = vcmp.eq.f32.partialorder %v1702, 8.507059e+37
      %v1704 = vand.u32 %v1692, 2147483648
      %v1705 = vor.u32 1.1754944e-38, %v1704
      %v1706 = vsel %vm1703, %v1705, %v1701
      %v1707 = vmul.f32 1.0, %v1706
      %v1708 = vtanh.pop %v1651
      %v1709 = vmul.f32 %v1707, %v1577
      %1711 = vrot.lane.b32.xlu0 %v1708, 64
      %v1712 = vpop.permute.xlu0 %1711
      %v1714 = vmul.f32 %v1707, %v1712
      %1716 = vrot.lane.b32.xlu0 %v1714, 32
      %v1717 = vpop.permute.xlu0 %1716
      %v1719 = vadd.f32 %v1709, %v1717
      %v1720 = vtanh.pop %v1719
      %1722 = vrot.lane.b32.xlu0 %v1720, 64
      %v1723 = vpop.permute.xlu0 %1722
      %v1725 = vmul.f32 %v1707, %v1723
      %v1726 = vpack.c.bf16 %v1688, %v1688
      %v1728 = vrot.slane %v1726, 3
      %v1731 = vsel %vm734, %v1726, %v1728
      %1733 = vrot.lane.b32.xlu0 %v1731, 32
      %v1734 = vpop.permute.xlu0 %1733
      %s1736 = scalar_lea.vmem %s412, 7
      %1737 = vst.msk [vmem:[%s1736] sm:$0x1] %vm742, %v1734
      %v1738 = vpack.c.bf16 %v1725, %v1725
      %v1740 = vrot.slane %v1738, 3
      %v1743 = vsel %vm734, %v1738, %v1740
      %1745 = vrot.lane.b32.xlu0 %v1743, 32
      %v1746 = vpop.permute.xlu0 %1745
      %1748 = vst.msk [vmem:[%s421] sm:$0x1] %vm742, %v1746
      %1750 = vrot.lane.b32.xlu0 %v1688, 32
      %v1751 = vpop.permute.xlu0 %1750
      %vm1753 = vcmask 254976
      %1754 = vst.msk [vmem:[#allocation4] sm:$0x3] %vm1753, %v1751
      %1756 = vrot.lane.b32.xlu0 %v1682, 96
      %v1757 = vpop.permute.xlu0 %1756
      %1759 = vst.msk [vmem:[#allocation5] sm:$0x3] %vm1753, %v1757
      %1761 = vrot.lane.b32.xlu0 %v1725, 32
      %v1762 = vpop.permute.xlu0 %1761
      %1764 = vst.msk [vmem:[#allocation6] sm:$0x3] %vm1753, %v1762
      %1766 = vrot.lane.b32.xlu0 %v1719, 96
      %v1767 = vpop.permute.xlu0 %1766
      %1769 = vst.msk [vmem:[#allocation7] sm:$0x3] %vm1753, %v1767
      %s1770 = smul.u32 8, %s26
      %p1771 = scmp.lt.s32.totalorder %s1770, 15
      %s1772 = scalar_select %p1771, %s1770, 15
      %p1773 = scmp.lt.s32.totalorder %s25, 0
      %s1774 = scalar_select %p1773, %s25, 0
      %s1775 = sadd.s32 %s1774, %s1772
      %s1776 = scalar_lea.vmem %s8, %s1775
      %s1777 = ssub.s32 1, %s26
      %s1778 = smul.u32 8, %s1777
      %p1779 = scmp.lt.s32.totalorder %s1778, 15
      %s1780 = scalar_select %p1779, %s1778, 15
      %p1781 = scmp.lt.s32.totalorder %s25, 0
      %s1782 = scalar_select %p1781, %s25, 0
      %s1783 = sadd.s32 %s1782, %s1780
      %s1784 = scalar_lea.vmem %s9, %s1783
      // Predicated region
      $region57: #{_forward.5} parent=51 // pred_check
        %p1785 = pneg %p237
      $region58: #{_forward.5} parent=51 // pred_check_branch
        %1787 = sbr.rel (%p1785) target = $region60
      $region59: #{_forward.5} parent=51 // pred_region
        %s1788 = smul.u32 8, %s26
      $region60: #{_forward.5} parent=51 // pred_fallthru
        _
      // Predicated region
      $region61: #{_forward.5} parent=51 // pred_check
        %p1789 = pneg %p267
      $region62: #{_forward.5} parent=51 // pred_check_branch
        %1791 = sbr.rel (%p1789) target = $region64
      $region63: #{_forward.5} parent=51 // pred_region
        %s1792 = ssub.s32 1, %s26
        %s1793 = smul.u32 8, %s1792
      $region64: #{_forward.5} parent=51 // pred_fallthru
        _
    $region52: #{_forward.5} parent=5 // pred_fallthru
      _
    %p1794 = scmp.le.s32.totalorder 2, %s16
    // Predicated region
    $region65: #{_forward.5} parent=5 // pred_check
      %p1795 = pneg %p1794
    $region66: #{_forward.5} parent=5 // pred_check_branch
      %1797 = sbr.rel (%p1795) target = $region68
    $region67: #{_forward.5} parent=5 // pred_region
      %s1798 = ssub.s32 %s16, 2
      // Predicated region
      $region69: #{_forward.5} parent=67 // pred_check
        %p1799 = pneg %p243
      $region70: #{_forward.5} parent=67 // pred_check_branch
        %1801 = sbr.rel (%p1799) target = $region72
      $region71: #{_forward.5} parent=67 // pred_region
        %s1802 = smul.u32 8, %s28
        %p1803 = scmp.lt.s32.totalorder %s1802, 15
        %s1804 = scalar_select %p1803, %s1802, 15
        %p1805 = scmp.lt.s32.totalorder %s27, 0
        %s1806 = scalar_select %p1805, %s27, 0
        %s1807 = sadd.s32 %s1806, %s1804
        %s1808 = scalar_lea.vmem %s8, %s1807
      $region72: #{_forward.5} parent=67 // pred_fallthru
        _
      // Predicated region
      $region73: #{_forward.5} parent=67 // pred_check
        %p1809 = pneg %p273
      $region74: #{_forward.5} parent=67 // pred_check_branch
        %1811 = sbr.rel (%p1809) target = $region76
      $region75: #{_forward.5} parent=67 // pred_region
        %s1812 = ssub.s32 1, %s28
        %s1813 = smul.u32 8, %s1812
        %p1814 = scmp.lt.s32.totalorder %s1813, 15
        %s1815 = scalar_select %p1814, %s1813, 15
        %p1816 = scmp.lt.s32.totalorder %s27, 0
        %s1817 = scalar_select %p1816, %s27, 0
        %s1818 = sadd.s32 %s1817, %s1815
        %s1819 = scalar_lea.vmem %s9, %s1818
      $region76: #{_forward.5} parent=67 // pred_fallthru
        _
    $region68: #{_forward.5} parent=5 // pred_fallthru
      _
  $region6: #{_forward.5} parent=0 // loop_footer
    %s20 = sadd.s32 1, %s16
  $region7: #{_forward.5} parent=0 // loop_footer_branch
    %15 = sbr.rel target = $region3
  $region8: #{_forward.5} parent=0 // loop_exit
    _

// kernel: _forward.6
$region0: #{_forward.6}
  #allocation0 [shape = 'u32[]', space=smem, size = 0x4, offset = 0x4, fixed_abs, tag = 'smem constant byte address 0x4 - core index']
  #allocation1 [shape = 'u32[72,128]{1,0:T(1,128)}', space=vmem, size = 0x9000, scoped, tag = 'internal scratch']
  #allocation2 [shape = 'f32[16,128]{1,0:T(8,128)}', space=vmem, size = 0x2000, scoped, tag = 'scratch operand']
  #allocation3 [shape = 'f32[16,128]{1,0:T(8,128)}', space=vmem, size = 0x2000, scoped, tag = 'scratch operand']
  #allocation4 [shape = 'f32[2,32]{1,0:T(2,128)}', space=vmem, size = 0x400, scoped, tag = 'scratch operand']
  #allocation5 [shape = 'f32[2,32]{1,0:T(2,128)}', space=vmem, size = 0x400, scoped, tag = 'scratch operand']
  #allocation6 [shape = 'f32[2,32]{1,0:T(2,128)}', space=vmem, size = 0x400, scoped, tag = 'scratch operand']
  #allocation7 [shape = 'f32[2,32]{1,0:T(2,128)}', space=vmem, size = 0x400, scoped, tag = 'scratch operand']
  %s0 = inlined_call_operand.vmem [shape: bf16[16,2,32], index: 0, kind: input, shape index: {}, may-alias: {0,1}]
  %s1 = inlined_call_operand.vmem [shape: bf16[16,2,32], index: 1, kind: input, shape index: {}, may-alias: {0,1}]
  %s2 = inlined_call_operand.vmem [shape: bf16[16,2,32], index: 2, kind: input, shape index: {}, may-alias: {2,3}]
  %s3 = inlined_call_operand.vmem [shape: bf16[16,2,32], index: 3, kind: input, shape index: {}, may-alias: {2,3}]
  %s4 = inlined_call_operand.hbm [shape: bf16[32,128], index: 4, kind: input, shape index: {}]
  %s5 = inlined_call_operand.hbm [shape: bf16[32,128], index: 5, kind: input, shape index: {}]
  %s6 = inlined_call_operand.hbm [shape: bf16[32,128], index: 6, kind: input, shape index: {}]
  %s7 = inlined_call_operand.hbm [shape: bf16[32,128], index: 7, kind: input, shape index: {}]
  %s8 = inlined_call_operand.vmem [shape: f32[1,128], index: 8, kind: input, shape index: {}]
  %s9 = inlined_call_operand.vmem [shape: f32[1,128], index: 9, kind: input, shape index: {}]
  %s10 = inlined_call_operand.hbm [shape: bf16[32,128], index: 10, kind: input, shape index: {}]
  %s11 = inlined_call_operand.hbm [shape: bf16[32,128], index: 11, kind: input, shape index: {}]
  %s12 = inlined_call_operand.vmem [shape: bf16[16,2,32], index: 12, kind: output, shape index: {0}]
  %s13 = inlined_call_operand.vmem [shape: bf16[16,2,32], index: 13, kind: output, shape index: {1}]
  %14 = xla_tuple %s12, %s13
  %s15 = sld [smem:[#allocation0]]
  $region117: #{_forward.6} parent=0
    _
  %s17 = ssub.s32 1, %s15
  %s18 = scalar_select 0, %s17, %s15
  $region1: #{_forward.6} parent=0
    #allocation8 [shape = 'u8[8192]{0}', space=vmem, size = 0x2000, scoped, tag = 'input window, operand 4, single buffered']
    #allocation9 [shape = 's32[2]{0}', space=sflag, size = 0x8, scoped, tag = 'scoped memory for _forward.6']
    #allocation10 [shape = 'u8[8192]{0}', space=vmem, size = 0x2000, scoped, tag = 'input window, operand 5, single buffered']
    #allocation11 [shape = 's32[1]{0}', space=sflag, size = 0x4, scoped, tag = 'scoped memory for _forward.6']
    #allocation12 [shape = 'u8[8192]{0}', space=vmem, size = 0x2000, scoped, tag = 'input window, operand 6, single buffered']
    #allocation13 [shape = 'u8[8192]{0}', space=vmem, size = 0x2000, scoped, tag = 'input window, operand 7, single buffered']
    #allocation14 [shape = 's32[1]{0}', space=sflag, size = 0x4, scoped, tag = 'scoped memory for _forward.6']
    #allocation15 [shape = 'u8[8192]{0}', space=vmem, size = 0x2000, scoped, tag = 'input window, operand 10, single buffered']
    #allocation16 [shape = 'u8[8192]{0}', space=vmem, size = 0x2000, scoped, tag = 'input window, operand 11, single buffered']
    #allocation17 [shape = 's32[1]{0}', space=sflag, size = 0x4, scoped, tag = 'scoped memory for _forward.6']
    %19 = vsyncpa [#allocation9], 0
    %20 = vsyncpa [#allocation11], 0
    %21 = vsyncpa [#allocation14], 0
    %22 = vsyncpa [#allocation17], 0
    loop: start=0, step=1, limit=4
    $region2: #{_forward.6} parent=1 // loop_pre_header
      _
    $region3: #{_forward.6} parent=1 // loop_header
      %s24 = sphi 0, %s28
      %p25 = scmp.ge.s32.totalorder %s24, 4
      %s31 = sphi 0, %s43
      %s32 = sphi 0, %s39
      %s33 = sphi 0, %s31
      %s34 = sphi 0, %s32
      %s35 = sphi 0, %s33
      %s36 = sphi 0, %s34
      %s48 = sphi 0, %s50
      %s51 = sphi 0, %s48
      %s52 = sphi 0, %s51
      %s68 = sphi 0, %s52
      %s78 = sphi 0, %s80
      %s81 = sphi 0, %s78
      %s82 = sphi 0, %s81
      %s98 = sphi 0, %s82
      %s106 = sphi 0, %s108
      %s109 = sphi 0, %s106
      %s110 = sphi 0, %s109
      %s126 = sphi 0, %s110
      %s136 = sphi 0, %s138
      %s139 = sphi 0, %s136
      %s140 = sphi 0, %s139
      %s156 = sphi 0, %s140
      %s160 = sphi 0, %s160
      %s162 = sphi 0, %s160
      %s163 = sphi 0, %s162
      %s177 = sphi 0, %s163
      %s181 = sphi 0, %s181
      %s183 = sphi 0, %s181
      %s184 = sphi 0, %s183
      %s198 = sphi 0, %s184
      %s202 = sphi 0, %s202
      %s204 = sphi 0, %s202
      %s205 = sphi 0, %s204
      %s219 = sphi 0, %s205
      %s223 = sphi 0, %s223
      %s225 = sphi 0, %s223
      %s226 = sphi 0, %s225
      %s240 = sphi 0, %s226
      %s244 = sphi 0, %s244
      %s246 = sphi 0, %s244
      %s247 = sphi 0, %s246
      %s261 = sphi 0, %s247
      %s265 = sphi 0, %s265
      %s267 = sphi 0, %s265
      %s268 = sphi 0, %s267
      %s282 = sphi 0, %s268
      %s286 = sphi 0, %s286
      %s288 = sphi 0, %s286
      %s289 = sphi 0, %s288
      %s303 = sphi 0, %s289
      %s307 = sphi 0, %s307
      %s309 = sphi 0, %s307
      %s310 = sphi 0, %s309
      %s324 = sphi 0, %s310
      %s332 = sphi 0, %s334
      %s335 = sphi 0, %s332
      %s336 = sphi 0, %s335
      %s352 = sphi 0, %s336
      %s362 = sphi 0, %s364
      %s365 = sphi 0, %s362
      %s366 = sphi 0, %s365
      %s382 = sphi 0, %s366
    $region4: #{_forward.6} parent=1 // loop_header_branch
      %27 = sbr.rel (%p25) target = $region8
    $region5: #{_forward.6} parent=1 // loop_body
      %s29 = ssub.s32 %s24, 1
      %s30 = ssub.s32 %s24, 2
      %s37 = sadd.s32 1, %s32
      %p38 = scmp.ge.s32.totalorder %s37, 2
      %s39 = scalar_select %p38, 0, %s37
      %s40 = sadd.s32 1, %s31
      %s41 = scalar_select %p38, %s40, %s31
      %p42 = scmp.ge.s32.totalorder %s41, 1
      %s43 = scalar_select %p42, 0, %s41
      %s44 = ssub.s32 %s32, %s39
      %s45 = ssub.s32 %s31, %s43
      %s46 = sor.u32 %s44, %s45
      %p47 = scmp.eq.s32.totalorder %s46, 0
      %s49 = sadd.s32 %s48, 1
      %s50 = scalar_select %p47, %s48, %s49
      %p53 = pneg %p47
      %p54 = scmp.eq.s32.totalorder %s24, 1
      %p55 = por %p53, %p54
      %p56 = scmp.ne.s32.totalorder %s48, %s51
      %p57 = scmp.eq.s32.totalorder %s24, 0
      %p58 = por %p56, %p57
      %p59 = scmp.ne.s32.totalorder %s48, %s51
      %p60 = scmp.eq.s32.totalorder %s29, 1
      %p61 = por %p59, %p60
      %p62 = scmp.ne.s32.totalorder %s51, %s52
      %p63 = scmp.eq.s32.totalorder %s29, 0
      %p64 = por %p62, %p63
      %p65 = scmp.ne.s32.totalorder %s51, %s52
      %p66 = scmp.eq.s32.totalorder %s30, 1
      %p67 = por %p65, %p66
      %p69 = scmp.ne.s32.totalorder %s52, %s68
      %p70 = scmp.eq.s32.totalorder %s30, 0
      %p71 = por %p69, %p70
      %s72 = ssub.s32 1, %s32
      %s73 = ssub.s32 1, %s39
      %s74 = ssub.s32 %s72, %s73
      %s75 = ssub.s32 %s31, %s43
      %s76 = sor.u32 %s74, %s75
      %p77 = scmp.eq.s32.totalorder %s76, 0
      %s79 = sadd.s32 %s78, 1
      %s80 = scalar_select %p77, %s78, %s79
      %p83 = pneg %p77
      %p84 = scmp.eq.s32.totalorder %s24, 1
      %p85 = por %p83, %p84
      %p86 = scmp.ne.s32.totalorder %s78, %s81
      %p87 = scmp.eq.s32.totalorder %s24, 0
      %p88 = por %p86, %p87
      %p89 = scmp.ne.s32.totalorder %s78, %s81
      %p90 = scmp.eq.s32.totalorder %s29, 1
      %p91 = por %p89, %p90
      %p92 = scmp.ne.s32.totalorder %s81, %s82
      %p93 = scmp.eq.s32.totalorder %s29, 0
      %p94 = por %p92, %p93
      %p95 = scmp.ne.s32.totalorder %s81, %s82
      %p96 = scmp.eq.s32.totalorder %s30, 1
      %p97 = por %p95, %p96
      %p99 = scmp.ne.s32.totalorder %s82, %s98
      %p100 = scmp.eq.s32.totalorder %s30, 0
      %p101 = por %p99, %p100
      %s102 = ssub.s32 %s32, %s39
      %s103 = ssub.s32 %s31, %s43
      %s104 = sor.u32 %s102, %s103
      %p105 = scmp.eq.s32.totalorder %s104, 0
      %s107 = sadd.s32 %s106, 1
      %s108 = scalar_select %p105, %s106, %s107
      %p111 = pneg %p105
      %p112 = scmp.eq.s32.totalorder %s24, 1
      %p113 = por %p111, %p112
      %p114 = scmp.ne.s32.totalorder %s106, %s109
      %p115 = scmp.eq.s32.totalorder %s24, 0
      %p116 = por %p114, %p115
      %p117 = scmp.ne.s32.totalorder %s106, %s109
      %p118 = scmp.eq.s32.totalorder %s29, 1
      %p119 = por %p117, %p118
      %p120 = scmp.ne.s32.totalorder %s109, %s110
      %p121 = scmp.eq.s32.totalorder %s29, 0
      %p122 = por %p120, %p121
      %p123 = scmp.ne.s32.totalorder %s109, %s110
      %p124 = scmp.eq.s32.totalorder %s30, 1
      %p125 = por %p123, %p124
      %p127 = scmp.ne.s32.totalorder %s110, %s126
      %p128 = scmp.eq.s32.totalorder %s30, 0
      %p129 = por %p127, %p128
      %s130 = ssub.s32 1, %s32
      %s131 = ssub.s32 1, %s39
      %s132 = ssub.s32 %s130, %s131
      %s133 = ssub.s32 %s31, %s43
      %s134 = sor.u32 %s132, %s133
      %p135 = scmp.eq.s32.totalorder %s134, 0
      %s137 = sadd.s32 %s136, 1
      %s138 = scalar_select %p135, %s136, %s137
      %p141 = pneg %p135
      %p142 = scmp.eq.s32.totalorder %s24, 1
      %p143 = por %p141, %p142
      %p144 = scmp.ne.s32.totalorder %s136, %s139
      %p145 = scmp.eq.s32.totalorder %s24, 0
      %p146 = por %p144, %p145
      %p147 = scmp.ne.s32.totalorder %s136, %s139
      %p148 = scmp.eq.s32.totalorder %s29, 1
      %p149 = por %p147, %p148
      %p150 = scmp.ne.s32.totalorder %s139, %s140
      %p151 = scmp.eq.s32.totalorder %s29, 0
      %p152 = por %p150, %p151
      %p153 = scmp.ne.s32.totalorder %s139, %s140
      %p154 = scmp.eq.s32.totalorder %s30, 1
      %p155 = por %p153, %p154
      %p157 = scmp.ne.s32.totalorder %s140, %s156
      %p158 = scmp.eq.s32.totalorder %s30, 0
      %p159 = por %p157, %p158
      %s161 = sadd.s32 %s160, 1
      %p164 = scmp.eq.s32.totalorder %s24, 1
      %p165 = scmp.ne.s32.totalorder %s160, %s162
      %p166 = scmp.eq.s32.totalorder %s24, 0
      %p167 = por %p165, %p166
      %p168 = scmp.ne.s32.totalorder %s160, %s162
      %p169 = scmp.eq.s32.totalorder %s29, 1
      %p170 = por %p168, %p169
      %p171 = scmp.ne.s32.totalorder %s162, %s163
      %p172 = scmp.eq.s32.totalorder %s29, 0
      %p173 = por %p171, %p172
      %p174 = scmp.ne.s32.totalorder %s162, %s163
      %p175 = scmp.eq.s32.totalorder %s30, 1
      %p176 = por %p174, %p175
      %p178 = scmp.ne.s32.totalorder %s163, %s177
      %p179 = scmp.eq.s32.totalorder %s30, 0
      %p180 = por %p178, %p179
      %s182 = sadd.s32 %s181, 1
      %p185 = scmp.eq.s32.totalorder %s24, 1
      %p186 = scmp.ne.s32.totalorder %s181, %s183
      %p187 = scmp.eq.s32.totalorder %s24, 0
      %p188 = por %p186, %p187
      %p189 = scmp.ne.s32.totalorder %s181, %s183
      %p190 = scmp.eq.s32.totalorder %s29, 1
      %p191 = por %p189, %p190
      %p192 = scmp.ne.s32.totalorder %s183, %s184
      %p193 = scmp.eq.s32.totalorder %s29, 0
      %p194 = por %p192, %p193
      %p195 = scmp.ne.s32.totalorder %s183, %s184
      %p196 = scmp.eq.s32.totalorder %s30, 1
      %p197 = por %p195, %p196
      %p199 = scmp.ne.s32.totalorder %s184, %s198
      %p200 = scmp.eq.s32.totalorder %s30, 0
      %p201 = por %p199, %p200
      %s203 = sadd.s32 %s202, 1
      %p206 = scmp.eq.s32.totalorder %s24, 1
      %p207 = scmp.ne.s32.totalorder %s202, %s204
      %p208 = scmp.eq.s32.totalorder %s24, 0
      %p209 = por %p207, %p208
      %p210 = scmp.ne.s32.totalorder %s202, %s204
      %p211 = scmp.eq.s32.totalorder %s29, 1
      %p212 = por %p210, %p211
      %p213 = scmp.ne.s32.totalorder %s204, %s205
      %p214 = scmp.eq.s32.totalorder %s29, 0
      %p215 = por %p213, %p214
      %p216 = scmp.ne.s32.totalorder %s204, %s205
      %p217 = scmp.eq.s32.totalorder %s30, 1
      %p218 = por %p216, %p217
      %p220 = scmp.ne.s32.totalorder %s205, %s219
      %p221 = scmp.eq.s32.totalorder %s30, 0
      %p222 = por %p220, %p221
      %s224 = sadd.s32 %s223, 1
      %p227 = scmp.eq.s32.totalorder %s24, 1
      %p228 = scmp.ne.s32.totalorder %s223, %s225
      %p229 = scmp.eq.s32.totalorder %s24, 0
      %p230 = por %p228, %p229
      %p231 = scmp.ne.s32.totalorder %s223, %s225
      %p232 = scmp.eq.s32.totalorder %s29, 1
      %p233 = por %p231, %p232
      %p234 = scmp.ne.s32.totalorder %s225, %s226
      %p235 = scmp.eq.s32.totalorder %s29, 0
      %p236 = por %p234, %p235
      %p237 = scmp.ne.s32.totalorder %s225, %s226
      %p238 = scmp.eq.s32.totalorder %s30, 1
      %p239 = por %p237, %p238
      %p241 = scmp.ne.s32.totalorder %s226, %s240
      %p242 = scmp.eq.s32.totalorder %s30, 0
      %p243 = por %p241, %p242
      %s245 = sadd.s32 %s244, 1
      %p248 = scmp.eq.s32.totalorder %s24, 1
      %p249 = scmp.ne.s32.totalorder %s244, %s246
      %p250 = scmp.eq.s32.totalorder %s24, 0
      %p251 = por %p249, %p250
      %p252 = scmp.ne.s32.totalorder %s244, %s246
      %p253 = scmp.eq.s32.totalorder %s29, 1
      %p254 = por %p252, %p253
      %p255 = scmp.ne.s32.totalorder %s246, %s247
      %p256 = scmp.eq.s32.totalorder %s29, 0
      %p257 = por %p255, %p256
      %p258 = scmp.ne.s32.totalorder %s246, %s247
      %p259 = scmp.eq.s32.totalorder %s30, 1
      %p260 = por %p258, %p259
      %p262 = scmp.ne.s32.totalorder %s247, %s261
      %p263 = scmp.eq.s32.totalorder %s30, 0
      %p264 = por %p262, %p263
      %s266 = sadd.s32 %s265, 1
      %p269 = scmp.eq.s32.totalorder %s24, 1
      %p270 = scmp.ne.s32.totalorder %s265, %s267
      %p271 = scmp.eq.s32.totalorder %s24, 0
      %p272 = por %p270, %p271
      %p273 = scmp.ne.s32.totalorder %s265, %s267
      %p274 = scmp.eq.s32.totalorder %s29, 1
      %p275 = por %p273, %p274
      %p276 = scmp.ne.s32.totalorder %s267, %s268
      %p277 = scmp.eq.s32.totalorder %s29, 0
      %p278 = por %p276, %p277
      %p279 = scmp.ne.s32.totalorder %s267, %s268
      %p280 = scmp.eq.s32.totalorder %s30, 1
      %p281 = por %p279, %p280
      %p283 = scmp.ne.s32.totalorder %s268, %s282
      %p284 = scmp.eq.s32.totalorder %s30, 0
      %p285 = por %p283, %p284
      %s287 = sadd.s32 %s286, 1
      %p290 = scmp.eq.s32.totalorder %s24, 1
      %p291 = scmp.ne.s32.totalorder %s286, %s288
      %p292 = scmp.eq.s32.totalorder %s24, 0
      %p293 = por %p291, %p292
      %p294 = scmp.ne.s32.totalorder %s286, %s288
      %p295 = scmp.eq.s32.totalorder %s29, 1
      %p296 = por %p294, %p295
      %p297 = scmp.ne.s32.totalorder %s288, %s289
      %p298 = scmp.eq.s32.totalorder %s29, 0
      %p299 = por %p297, %p298
      %p300 = scmp.ne.s32.totalorder %s288, %s289
      %p301 = scmp.eq.s32.totalorder %s30, 1
      %p302 = por %p300, %p301
      %p304 = scmp.ne.s32.totalorder %s289, %s303
      %p305 = scmp.eq.s32.totalorder %s30, 0
      %p306 = por %p304, %p305
      %s308 = sadd.s32 %s307, 1
      %p311 = scmp.eq.s32.totalorder %s24, 1
      %p312 = scmp.ne.s32.totalorder %s307, %s309
      %p313 = scmp.eq.s32.totalorder %s24, 0
      %p314 = por %p312, %p313
      %p315 = scmp.ne.s32.totalorder %s307, %s309
      %p316 = scmp.eq.s32.totalorder %s29, 1
      %p317 = por %p315, %p316
      %p318 = scmp.ne.s32.totalorder %s309, %s310
      %p319 = scmp.eq.s32.totalorder %s29, 0
      %p320 = por %p318, %p319
      %p321 = scmp.ne.s32.totalorder %s309, %s310
      %p322 = scmp.eq.s32.totalorder %s30, 1
      %p323 = por %p321, %p322
      %p325 = scmp.ne.s32.totalorder %s310, %s324
      %p326 = scmp.eq.s32.totalorder %s30, 0
      %p327 = por %p325, %p326
      %s328 = ssub.s32 %s32, %s39
      %s329 = ssub.s32 %s31, %s43
      %s330 = sor.u32 %s328, %s329
      %p331 = scmp.eq.s32.totalorder %s330, 0
      %s333 = sadd.s32 %s332, 1
      %s334 = scalar_select %p331, %s332, %s333
      %p337 = pneg %p331
      %p338 = scmp.eq.s32.totalorder %s24, 1
      %p339 = por %p337, %p338
      %p340 = scmp.ne.s32.totalorder %s332, %s335
      %p341 = scmp.eq.s32.totalorder %s24, 0
      %p342 = por %p340, %p341
      %p343 = scmp.ne.s32.totalorder %s332, %s335
      %p344 = scmp.eq.s32.totalorder %s29, 1
      %p345 = por %p343, %p344
      %p346 = scmp.ne.s32.totalorder %s335, %s336
      %p347 = scmp.eq.s32.totalorder %s29, 0
      %p348 = por %p346, %p347
      %p349 = scmp.ne.s32.totalorder %s335, %s336
      %p350 = scmp.eq.s32.totalorder %s30, 1
      %p351 = por %p349, %p350
      %p353 = scmp.ne.s32.totalorder %s336, %s352
      %p354 = scmp.eq.s32.totalorder %s30, 0
      %p355 = por %p353, %p354
      %s356 = ssub.s32 1, %s32
      %s357 = ssub.s32 1, %s39
      %s358 = ssub.s32 %s356, %s357
      %s359 = ssub.s32 %s31, %s43
      %s360 = sor.u32 %s358, %s359
      %p361 = scmp.eq.s32.totalorder %s360, 0
      %s363 = sadd.s32 %s362, 1
      %s364 = scalar_select %p361, %s362, %s363
      %p367 = pneg %p361
      %p368 = scmp.eq.s32.totalorder %s24, 1
      %p369 = por %p367, %p368
      %p370 = scmp.ne.s32.totalorder %s362, %s365
      %p371 = scmp.eq.s32.totalorder %s24, 0
      %p372 = por %p370, %p371
      %p373 = scmp.ne.s32.totalorder %s362, %s365
      %p374 = scmp.eq.s32.totalorder %s29, 1
      %p375 = por %p373, %p374
      %p376 = scmp.ne.s32.totalorder %s365, %s366
      %p377 = scmp.eq.s32.totalorder %s29, 0
      %p378 = por %p376, %p377
      %p379 = scmp.ne.s32.totalorder %s365, %s366
      %p380 = scmp.eq.s32.totalorder %s30, 1
      %p381 = por %p379, %p380
      %p383 = scmp.ne.s32.totalorder %s366, %s382
      %p384 = scmp.eq.s32.totalorder %s30, 0
      %p385 = por %p383, %p384
      %p386 = scmp.le.s32.totalorder 1, %s24
      %p387 = scmp.lt.s32.totalorder %s24, 3
      %p388 = pnand %p386, %p387
      %p389 = pneg %p388
      // Predicated region
      $region9: #{_forward.6} parent=5 // pred_check
        _
      $region10: #{_forward.6} parent=5 // pred_check_branch
        %391 = sbr.rel (%p388) target = $region12
      $region11: #{_forward.6} parent=5 // pred_region
        %s392 = ssub.s32 %s24, 1
        // Predicated region
        $region13: #{_forward.6} parent=11 // pred_check
          %p393 = pneg %p173
        $region14: #{_forward.6} parent=11 // pred_check_branch
          %395 = sbr.rel (%p393) target = $region16
        $region15: #{_forward.6} parent=11 // pred_region
          %397 = vsyncadd [#allocation9], 0
          %s398 = sshll.u32 %s4, 4
          %s399 = int_to_ptr.hbm [resolvable:$true] %s398
          %s400 = sshll.u32 [#allocation8], 4
          %s401 = int_to_ptr.vmem [resolvable:$true] %s400
          %406 = dma.hbm_to_vmem [thread:$0]  %s399, 256, %s401, [#allocation9], 64, 64, 4
        $region16: #{_forward.6} parent=11 // pred_fallthru
          _
        // Predicated region
        $region17: #{_forward.6} parent=11 // pred_check
          %p407 = pneg %p194
        $region18: #{_forward.6} parent=11 // pred_check_branch
          %409 = sbr.rel (%p407) target = $region20
        $region19: #{_forward.6} parent=11 // pred_region
          %411 = vsyncadd [#allocation11], 0
          %s412 = sshll.u32 %s5, 4
          %s413 = int_to_ptr.hbm [resolvable:$true] %s412
          %s414 = sshll.u32 [#allocation10], 4
          %s415 = int_to_ptr.vmem [resolvable:$true] %s414
          %420 = dma.hbm_to_vmem [thread:$0]  %s413, 256, %s415, [#allocation11], 64, 64, 4
        $region20: #{_forward.6} parent=11 // pred_fallthru
          _
        // Predicated region
        $region21: #{_forward.6} parent=11 // pred_check
          %p421 = pneg %p215
        $region22: #{_forward.6} parent=11 // pred_check_branch
          %423 = sbr.rel (%p421) target = $region24
        $region23: #{_forward.6} parent=11 // pred_region
          %425 = vsyncadd [#allocation11], 0
          %s426 = sshll.u32 %s6, 4
          %s427 = int_to_ptr.hbm [resolvable:$true] %s426
          %s428 = sshll.u32 [#allocation12], 4
          %s429 = int_to_ptr.vmem [resolvable:$true] %s428
          %434 = dma.hbm_to_vmem [thread:$0]  %s427, 256, %s429, [#allocation11], 64, 64, 4
        $region24: #{_forward.6} parent=11 // pred_fallthru
          _
        // Predicated region
        $region25: #{_forward.6} parent=11 // pred_check
          %p435 = pneg %p236
        $region26: #{_forward.6} parent=11 // pred_check_branch
          %437 = sbr.rel (%p435) target = $region28
        $region27: #{_forward.6} parent=11 // pred_region
          %439 = vsyncadd [#allocation14], 0
          %s440 = sshll.u32 %s7, 4
          %s441 = int_to_ptr.hbm [resolvable:$true] %s440
          %s442 = sshll.u32 [#allocation13], 4
          %s443 = int_to_ptr.vmem [resolvable:$true] %s442
          %448 = dma.hbm_to_vmem [thread:$0]  %s441, 256, %s443, [#allocation14], 64, 64, 4
        $region28: #{_forward.6} parent=11 // pred_fallthru
          _
        // Predicated region
        $region29: #{_forward.6} parent=11 // pred_check
          %p449 = pneg %p257
        $region30: #{_forward.6} parent=11 // pred_check_branch
          %451 = sbr.rel (%p449) target = $region32
        $region31: #{_forward.6} parent=11 // pred_region
          _
        $region32: #{_forward.6} parent=11 // pred_fallthru
          _
        // Predicated region
        $region33: #{_forward.6} parent=11 // pred_check
          %p452 = pneg %p278
        $region34: #{_forward.6} parent=11 // pred_check_branch
          %454 = sbr.rel (%p452) target = $region36
        $region35: #{_forward.6} parent=11 // pred_region
          _
        $region36: #{_forward.6} parent=11 // pred_fallthru
          _
        // Predicated region
        $region37: #{_forward.6} parent=11 // pred_check
          %p455 = pneg %p299
        $region38: #{_forward.6} parent=11 // pred_check_branch
          %457 = sbr.rel (%p455) target = $region40
        $region39: #{_forward.6} parent=11 // pred_region
          %459 = vsyncadd [#allocation14], 0
          %s460 = sshll.u32 %s10, 4
          %s461 = int_to_ptr.hbm [resolvable:$true] %s460
          %s462 = sshll.u32 [#allocation15], 4
          %s463 = int_to_ptr.vmem [resolvable:$true] %s462
          %468 = dma.hbm_to_vmem [thread:$0]  %s461, 256, %s463, [#allocation14], 64, 64, 4
        $region40: #{_forward.6} parent=11 // pred_fallthru
          _
        // Predicated region
        $region41: #{_forward.6} parent=11 // pred_check
          %p469 = pneg %p320
        $region42: #{_forward.6} parent=11 // pred_check_branch
          %471 = sbr.rel (%p469) target = $region44
        $region43: #{_forward.6} parent=11 // pred_region
          %473 = vsyncadd [#allocation17], 0
          %s474 = sshll.u32 %s11, 4
          %s475 = int_to_ptr.hbm [resolvable:$true] %s474
          %s476 = sshll.u32 [#allocation16], 4
          %s477 = int_to_ptr.vmem [resolvable:$true] %s476
          %482 = dma.hbm_to_vmem [thread:$0]  %s475, 256, %s477, [#allocation17], 64, 64, 4
        $region44: #{_forward.6} parent=11 // pred_fallthru
          _
      $region12: #{_forward.6} parent=5 // pred_fallthru
        _
      %p483 = scmp.lt.s32.totalorder %s24, 2
      // Predicated region
      $region45: #{_forward.6} parent=5 // pred_check
        %p484 = pneg %p483
      $region46: #{_forward.6} parent=5 // pred_check_branch
        %486 = sbr.rel (%p484) target = $region48
      $region47: #{_forward.6} parent=5 // pred_region
        // Predicated region
        $region49: #{_forward.6} parent=47 // pred_check
          %p487 = pneg %p58
        $region50: #{_forward.6} parent=47 // pred_check_branch
          %489 = sbr.rel (%p487) target = $region52
        $region51: #{_forward.6} parent=47 // pred_region
          %s490 = smul.u32 8, %s32
          %p491 = scmp.lt.s32.totalorder %s490, 15
          %s492 = scalar_select %p491, %s490, 15
          %p493 = scmp.lt.s32.totalorder %s31, 0
          %s494 = scalar_select %p493, %s31, 0
          %s495 = sadd.s32 %s494, %s492
          %s496 = scalar_lea.vmem %s0, %s495
          %s497 = smul.u32 8, %s32
        $region52: #{_forward.6} parent=47 // pred_fallthru
          _
        // Predicated region
        $region53: #{_forward.6} parent=47 // pred_check
          %p498 = pneg %p88
        $region54: #{_forward.6} parent=47 // pred_check_branch
          %500 = sbr.rel (%p498) target = $region56
        $region55: #{_forward.6} parent=47 // pred_region
          %s501 = ssub.s32 1, %s32
          %s502 = smul.u32 8, %s501
          %p503 = scmp.lt.s32.totalorder %s502, 15
          %s504 = scalar_select %p503, %s502, 15
          %p505 = scmp.lt.s32.totalorder %s31, 0
          %s506 = scalar_select %p505, %s31, 0
          %s507 = sadd.s32 %s506, %s504
          %s508 = scalar_lea.vmem %s1, %s507
          %s509 = ssub.s32 1, %s32
          %s510 = smul.u32 8, %s509
        $region56: #{_forward.6} parent=47 // pred_fallthru
          _
        // Predicated region
        $region57: #{_forward.6} parent=47 // pred_check
          %p511 = pneg %p116
        $region58: #{_forward.6} parent=47 // pred_check_branch
          %513 = sbr.rel (%p511) target = $region60
        $region59: #{_forward.6} parent=47 // pred_region
          %s514 = smul.u32 8, %s32
          %p515 = scmp.lt.s32.totalorder %s514, 15
          %s516 = scalar_select %p515, %s514, 15
          %p517 = scmp.lt.s32.totalorder %s31, 0
          %s518 = scalar_select %p517, %s31, 0
          %s519 = sadd.s32 %s518, %s516
          %s520 = scalar_lea.vmem %s2, %s519
          %s521 = smul.u32 8, %s32
        $region60: #{_forward.6} parent=47 // pred_fallthru
          _
        // Predicated region
        $region61: #{_forward.6} parent=47 // pred_check
          %p522 = pneg %p146
        $region62: #{_forward.6} parent=47 // pred_check_branch
          %524 = sbr.rel (%p522) target = $region64
        $region63: #{_forward.6} parent=47 // pred_region
          %s525 = ssub.s32 1, %s32
          %s526 = smul.u32 8, %s525
          %p527 = scmp.lt.s32.totalorder %s526, 15
          %s528 = scalar_select %p527, %s526, 15
          %p529 = scmp.lt.s32.totalorder %s31, 0
          %s530 = scalar_select %p529, %s31, 0
          %s531 = sadd.s32 %s530, %s528
          %s532 = scalar_lea.vmem %s3, %s531
          %s533 = ssub.s32 1, %s32
          %s534 = smul.u32 8, %s533
        $region64: #{_forward.6} parent=47 // pred_fallthru
          _
      $region48: #{_forward.6} parent=5 // pred_fallthru
        _
      %p535 = scmp.le.s32.totalorder 1, %s24
      %p536 = scmp.lt.s32.totalorder %s24, 3
      %p537 = pnand %p535, %p536
      %p538 = pneg %p537
      // Predicated region
      $region65: #{_forward.6} parent=5 // pred_check
        _
      $region66: #{_forward.6} parent=5 // pred_check_branch
        %540 = sbr.rel (%p537) target = $region68
      $region67: #{_forward.6} parent=5 // pred_region
        %s541 = ssub.s32 %s24, 1
        // Predicated region
        $region69: #{_forward.6} parent=67 // pred_check
          %p542 = pneg %p173
        $region70: #{_forward.6} parent=67 // pred_check_branch
          %544 = sbr.rel (%p542) target = $region72
        $region71: #{_forward.6} parent=67 // pred_region
          %546 = dma.done [#allocation9], 256
        $region72: #{_forward.6} parent=67 // pred_fallthru
          _
        // Predicated region
        $region73: #{_forward.6} parent=67 // pred_check
          %p547 = pneg %p194
        $region74: #{_forward.6} parent=67 // pred_check_branch
          %549 = sbr.rel (%p547) target = $region76
        $region75: #{_forward.6} parent=67 // pred_region
          %551 = dma.done [#allocation11], 256
        $region76: #{_forward.6} parent=67 // pred_fallthru
          _
        // Predicated region
        $region77: #{_forward.6} parent=67 // pred_check
          %p552 = pneg %p215
        $region78: #{_forward.6} parent=67 // pred_check_branch
          %554 = sbr.rel (%p552) target = $region80
        $region79: #{_forward.6} parent=67 // pred_region
          %556 = dma.done [#allocation11], 256
        $region80: #{_forward.6} parent=67 // pred_fallthru
          _
        // Predicated region
        $region81: #{_forward.6} parent=67 // pred_check
          %p557 = pneg %p236
        $region82: #{_forward.6} parent=67 // pred_check_branch
          %559 = sbr.rel (%p557) target = $region84
        $region83: #{_forward.6} parent=67 // pred_region
          %561 = dma.done [#allocation14], 256
        $region84: #{_forward.6} parent=67 // pred_fallthru
          _
        // Predicated region
        $region85: #{_forward.6} parent=67 // pred_check
          %p562 = pneg %p299
        $region86: #{_forward.6} parent=67 // pred_check_branch
          %564 = sbr.rel (%p562) target = $region88
        $region87: #{_forward.6} parent=67 // pred_region
          %566 = dma.done [#allocation14], 256
        $region88: #{_forward.6} parent=67 // pred_fallthru
          _
        // Predicated region
        $region89: #{_forward.6} parent=67 // pred_check
          %p567 = pneg %p320
        $region90: #{_forward.6} parent=67 // pred_check_branch
          %569 = sbr.rel (%p567) target = $region92
        $region91: #{_forward.6} parent=67 // pred_region
          %571 = dma.done [#allocation17], 256
        $region92: #{_forward.6} parent=67 // pred_fallthru
          _
        %s572 = smul.u32 8, %s34
        %p573 = scmp.lt.s32.totalorder %s572, 15
        %s574 = scalar_select %p573, %s572, 15
        %p575 = scmp.lt.s32.totalorder %s33, 0
        %s576 = scalar_select %p575, %s33, 0
        %s577 = sadd.s32 %s576, %s574
        %s578 = scalar_lea.vmem %s0, %s577
        %p579 = pneg %p64
        %p580 = pneg %p61
        %s581 = ssub.s32 1, %s34
        %s582 = smul.u32 8, %s581
        %p583 = scmp.lt.s32.totalorder %s582, 15
        %s584 = scalar_select %p583, %s582, 15
        %p585 = scmp.lt.s32.totalorder %s33, 0
        %s586 = scalar_select %p585, %s33, 0
        %s587 = sadd.s32 %s586, %s584
        %s588 = scalar_lea.vmem %s1, %s587
        %p589 = pneg %p94
        %p590 = pneg %p91
        %s591 = smul.u32 8, %s34
        %p592 = scmp.lt.s32.totalorder %s591, 15
        %s593 = scalar_select %p592, %s591, 15
        %p594 = scmp.lt.s32.totalorder %s33, 0
        %s595 = scalar_select %p594, %s33, 0
        %s596 = sadd.s32 %s595, %s593
        %s597 = scalar_lea.vmem %s2, %s596
        %p598 = pneg %p122
        %p599 = pneg %p119
        %s600 = ssub.s32 1, %s34
        %s601 = smul.u32 8, %s600
        %p602 = scmp.lt.s32.totalorder %s601, 15
        %s603 = scalar_select %p602, %s601, 15
        %p604 = scmp.lt.s32.totalorder %s33, 0
        %s605 = scalar_select %p604, %s33, 0
        %s606 = sadd.s32 %s605, %s603
        %s607 = scalar_lea.vmem %s3, %s606
        %p608 = pneg %p152
        %p609 = pneg %p149
        %p610 = pneg %p173
        %p611 = pneg %p170
        %p612 = pneg %p194
        %p613 = pneg %p191
        %p614 = pneg %p215
        %p615 = pneg %p212
        %p616 = pneg %p236
        %p617 = pneg %p233
        %p618 = pneg %p257
        %p619 = pneg %p254
        %p620 = pneg %p278
        %p621 = pneg %p275
        %p622 = pneg %p299
        %p623 = pneg %p296
        %p624 = pneg %p320
        %p625 = pneg %p317
        %p626 = pneg %p348
        %p627 = pneg %p345
        %s628 = smul.u32 8, %s34
        %p629 = scmp.lt.s32.totalorder %s628, 15
        %s630 = scalar_select %p629, %s628, 15
        %p631 = scmp.lt.s32.totalorder %s33, 0
        %s632 = scalar_select %p631, %s33, 0
        %s633 = sadd.s32 %s632, %s630
        %s634 = scalar_lea.vmem %s12, %s633
        %p635 = pneg %p378
        %p636 = pneg %p375
        %s637 = ssub.s32 1, %s34
        %s638 = smul.u32 8, %s637
        %p639 = scmp.lt.s32.totalorder %s638, 15
        %s640 = scalar_select %p639, %s638, 15
        %p641 = scmp.lt.s32.totalorder %s33, 0
        %s642 = scalar_select %p641, %s33, 0
        %s643 = sadd.s32 %s642, %s640
        %s644 = scalar_lea.vmem %s13, %s643
        %s645 = smul.u32 8, %s34
        %p646 = scmp.lt.s32.totalorder %s645, 15
        %s647 = scalar_select %p646, %s645, 15
        %p648 = scmp.lt.s32.totalorder %s33, 0
        %s649 = scalar_select %p648, %s33, 0
        %s650 = sadd.s32 %s649, %s647
        %s651 = scalar_lea.vmem %s0, %s650
        %s652 = smul.u32 8, %s34
        %s653 = ssub.s32 1, %s34
        %s654 = smul.u32 8, %s653
        %p655 = scmp.lt.s32.totalorder %s654, 15
        %s656 = scalar_select %p655, %s654, 15
        %p657 = scmp.lt.s32.totalorder %s33, 0
        %s658 = scalar_select %p657, %s33, 0
        %s659 = sadd.s32 %s658, %s656
        %s660 = scalar_lea.vmem %s1, %s659
        %s661 = ssub.s32 1, %s34
        %s662 = smul.u32 8, %s661
        %s663 = smul.u32 8, %s34
        %p664 = scmp.lt.s32.totalorder %s663, 15
        %s665 = scalar_select %p664, %s663, 15
        %p666 = scmp.lt.s32.totalorder %s33, 0
        %s667 = scalar_select %p666, %s33, 0
        %s668 = sadd.s32 %s667, %s665
        %s669 = scalar_lea.vmem %s2, %s668
        %s670 = smul.u32 8, %s34
        %s671 = ssub.s32 1, %s34
        %s672 = smul.u32 8, %s671
        %p673 = scmp.lt.s32.totalorder %s672, 15
        %s674 = scalar_select %p673, %s672, 15
        %p675 = scmp.lt.s32.totalorder %s33, 0
        %s676 = scalar_select %p675, %s33, 0
        %s677 = sadd.s32 %s676, %s674
        %s678 = scalar_lea.vmem %s3, %s677
        %s679 = ssub.s32 1, %s34
        %s680 = smul.u32 8, %s679
        %s681 = smul.u32 8, %s34
        %p682 = scmp.lt.s32.totalorder %s681, 15
        %s683 = scalar_select %p682, %s681, 15
        %p684 = scmp.lt.s32.totalorder %s33, 0
        %s685 = scalar_select %p684, %s33, 0
        %s686 = sadd.s32 %s685, %s683
        %s687 = scalar_lea.vmem %s12, %s686
        %s688 = smul.u32 8, %s34
        %s689 = ssub.s32 1, %s34
        %s690 = smul.u32 8, %s689
        %p691 = scmp.lt.s32.totalorder %s690, 15
        %s692 = scalar_select %p691, %s690, 15
        %p693 = scmp.lt.s32.totalorder %s33, 0
        %s694 = scalar_select %p693, %s33, 0
        %s695 = sadd.s32 %s694, %s692
        %s696 = scalar_lea.vmem %s13, %s695
        %s697 = ssub.s32 1, %s34
        %s698 = smul.u32 8, %s697
        %p700 = scmp.eq.s32.totalorder %s34, 0
        // Predicated region
        $region93: #{_forward.6} parent=67 // pred_check
          %p701 = pneg %p700
        $region94: #{_forward.6} parent=67 // pred_check_branch
          %703 = sbr.rel (%p701) target = $region96
        $region95: #{_forward.6} parent=67 // pred_region
          %vm704 = vcmask 254976
          %705 = vst.msk [vmem:[#allocation4] sm:$0x3] %vm704, 0.0
          %706 = vst.msk [vmem:[#allocation5] sm:$0x3] %vm704, 0.0
          %707 = vst.msk [vmem:[#allocation6] sm:$0x3] %vm704, 0.0
          %708 = vst.msk [vmem:[#allocation7] sm:$0x3] %vm704, 0.0
        $region96: #{_forward.6} parent=67 // pred_fallthru
          _
        %v709 = vld [vmem:[%s651] sm:$0x1]
        %v710 = vld [vmem:[%s651 + $0x1] sm:$0x1]
        %v711 = vld [vmem:[%s651 + $0x2] sm:$0x1]
        %v712 = vld [vmem:[%s651 + $0x3] sm:$0x1]
        %v713 = vld [vmem:[%s651 + $0x4] sm:$0x1]
        %v714 = vld [vmem:[%s651 + $0x5] sm:$0x1]
        %v715 = vld [vmem:[%s651 + $0x6] sm:$0x1]
        %v716 = vld [vmem:[%s651 + $0x7] sm:$0x1]
        %v717 = vld [vmem:[#allocation8] sm:$0xf]
        %v718 = vld [vmem:[#allocation8 + $0x4] sm:$0xf]
        %v719 = vld [vmem:[#allocation8 + $0x8] sm:$0xf]
        %v720 = vld [vmem:[#allocation8 + $0xc] sm:$0xf]
        %v721 = vld [vmem:[%s669] sm:$0x1]
        %v722 = vld [vmem:[%s669 + $0x1] sm:$0x1]
        %v723 = vld [vmem:[%s669 + $0x2] sm:$0x1]
        %v724 = vld [vmem:[%s669 + $0x3] sm:$0x1]
        %v725 = vld [vmem:[%s669 + $0x4] sm:$0x1]
        %v726 = vld [vmem:[%s669 + $0x5] sm:$0x1]
        %v727 = vld [vmem:[%s669 + $0x6] sm:$0x1]
        %v728 = vld [vmem:[%s669 + $0x7] sm:$0x1]
        %v729 = vld [vmem:[#allocation10] sm:$0xf]
        %v730 = vld [vmem:[#allocation10 + $0x4] sm:$0xf]
        %v731 = vld [vmem:[#allocation10 + $0x8] sm:$0xf]
        %v732 = vld [vmem:[#allocation10 + $0xc] sm:$0xf]
        %734 = vst [vmem:[#allocation1] ss:$9 sm:$0xff] %v721
        %s736 = scalar_lea.vmem [#allocation1], 1
        %737 = vst [vmem:[%s736] ss:$9 sm:$0xff] %v722
        %s739 = scalar_lea.vmem [#allocation1], 2
        %740 = vst [vmem:[%s739] ss:$9 sm:$0xff] %v723
        %s742 = scalar_lea.vmem [#allocation1], 3
        %743 = vst [vmem:[%s742] ss:$9 sm:$0xff] %v724
        %s745 = scalar_lea.vmem [#allocation1], 4
        %746 = vst [vmem:[%s745] ss:$9 sm:$0xff] %v725
        %s748 = scalar_lea.vmem [#allocation1], 5
        %749 = vst [vmem:[%s748] ss:$9 sm:$0xff] %v726
        %s751 = scalar_lea.vmem [#allocation1], 6
        %752 = vst [vmem:[%s751] ss:$9 sm:$0xff] %v727
        %s754 = scalar_lea.vmem [#allocation1], 7
        %755 = vst [vmem:[%s754] ss:$9 sm:$0xff] %v728
        %v756 = vld [vmem:[#allocation1] sm:$0xff]
        %v761 = vunpack.c.l.b16 %v729
        %v762 = vunpack.c.l.b16 %v730
        %v763 = vunpack.c.l.b16 %v731
        %v764 = vunpack.c.l.b16 %v732
        %v765 = vpack.c.b16 %v762, %v761
        %v766 = vpack.c.b16 %v764, %v763
        %vm769 = vcmask 261120
        %v770 = vsel %vm769, %v756, 0
        %772 = vmatpush.bf16.msra.mxu0 0
        %773 = vmatpush.bf16.msra.mxu0 0
        %774 = vmatpush.bf16.msra.mxu0 0
        %775 = vmatpush.bf16.msra.mxu0 0
        %776 = vmatpush.bf16.msra.mxu0 0
        %777 = vmatpush.bf16.msra.mxu0 0
        %778 = vmatpush.bf16.msra.mxu0 %v766
        %779 = vmatpush.bf16.msra.mxu0 %v765
        %780 = vmatmul.bf16.gmra.mxu0 %v770
        %v781 = vpop.f32.mrf.mxu0
        %v782 = vadd.f32 0.0, %v781
        %v783 = vpop.f32.mrf.mxu0
        %v784 = vadd.f32 0.0, %v783
        %785 = vdwg.mxu0
        %787 = vst [vmem:[#allocation1] ss:$9 sm:$0xff] %v709
        %s789 = scalar_lea.vmem [#allocation1], 1
        %790 = vst [vmem:[%s789] ss:$9 sm:$0xff] %v710
        %s792 = scalar_lea.vmem [#allocation1], 2
        %793 = vst [vmem:[%s792] ss:$9 sm:$0xff] %v711
        %s795 = scalar_lea.vmem [#allocation1], 3
        %796 = vst [vmem:[%s795] ss:$9 sm:$0xff] %v712
        %s798 = scalar_lea.vmem [#allocation1], 4
        %799 = vst [vmem:[%s798] ss:$9 sm:$0xff] %v713
        %s801 = scalar_lea.vmem [#allocation1], 5
        %802 = vst [vmem:[%s801] ss:$9 sm:$0xff] %v714
        %s804 = scalar_lea.vmem [#allocation1], 6
        %805 = vst [vmem:[%s804] ss:$9 sm:$0xff] %v715
        %s807 = scalar_lea.vmem [#allocation1], 7
        %808 = vst [vmem:[%s807] ss:$9 sm:$0xff] %v716
        %v809 = vld [vmem:[#allocation1] sm:$0xff]
        %v814 = vunpack.c.l.b16 %v717
        %v815 = vunpack.c.l.b16 %v718
        %v816 = vunpack.c.l.b16 %v719
        %v817 = vunpack.c.l.b16 %v720
        %v818 = vpack.c.b16 %v815, %v814
        %v819 = vpack.c.b16 %v817, %v816
        %v822 = vsel %vm769, %v809, 0
        %824 = vmatpush.bf16.msra.mxu0 0
        %825 = vmatpush.bf16.msra.mxu0 0
        %826 = vmatpush.bf16.msra.mxu0 0
        %827 = vmatpush.bf16.msra.mxu0 0
        %828 = vmatpush.bf16.msra.mxu0 0
        %829 = vmatpush.bf16.msra.mxu0 0
        %830 = vmatpush.bf16.msra.mxu0 %v819
        %831 = vmatpush.bf16.msra.mxu0 %v818
        %832 = vmatmul.bf16.gmra.mxu0 %v822
        %v833 = vpop.f32.mrf.mxu0
        %v834 = vadd.f32 %v782, %v833
        %v835 = vpop.f32.mrf.mxu0
        %v836 = vadd.f32 %v784, %v835
        %837 = vdwg.mxu0
        %v838 = vld [vmem:[%s8] sm:$0x1]
        %v840 = vperm.slane %v838, 0
        %v842 = vadd.f32 %v834, %v840
        %v843 = vadd.f32 %v836, %v840
        %844 = vst [vmem:[#allocation2] sm:$0xff] %v842
        %845 = vst [vmem:[#allocation2 + $0x8] sm:$0xff] %v843
        %v846 = vld [vmem:[%s660] sm:$0x1]
        %v847 = vld [vmem:[%s660 + $0x1] sm:$0x1]
        %v848 = vld [vmem:[%s660 + $0x2] sm:$0x1]
        %v849 = vld [vmem:[%s660 + $0x3] sm:$0x1]
        %v850 = vld [vmem:[%s660 + $0x4] sm:$0x1]
        %v851 = vld [vmem:[%s660 + $0x5] sm:$0x1]
        %v852 = vld [vmem:[%s660 + $0x6] sm:$0x1]
        %v853 = vld [vmem:[%s660 + $0x7] sm:$0x1]
        %v854 = vld [vmem:[#allocation12] sm:$0xf]
        %v855 = vld [vmem:[#allocation12 + $0x4] sm:$0xf]
        %v856 = vld [vmem:[#allocation12 + $0x8] sm:$0xf]
        %v857 = vld [vmem:[#allocation12 + $0xc] sm:$0xf]
        %v858 = vld [vmem:[%s678] sm:$0x1]
        %v859 = vld [vmem:[%s678 + $0x1] sm:$0x1]
        %v860 = vld [vmem:[%s678 + $0x2] sm:$0x1]
        %v861 = vld [vmem:[%s678 + $0x3] sm:$0x1]
        %v862 = vld [vmem:[%s678 + $0x4] sm:$0x1]
        %v863 = vld [vmem:[%s678 + $0x5] sm:$0x1]
        %v864 = vld [vmem:[%s678 + $0x6] sm:$0x1]
        %v865 = vld [vmem:[%s678 + $0x7] sm:$0x1]
        %v866 = vld [vmem:[#allocation13] sm:$0xf]
        %v867 = vld [vmem:[#allocation13 + $0x4] sm:$0xf]
        %v868 = vld [vmem:[#allocation13 + $0x8] sm:$0xf]
        %v869 = vld [vmem:[#allocation13 + $0xc] sm:$0xf]
        %871 = vst [vmem:[#allocation1] ss:$9 sm:$0xff] %v858
        %s873 = scalar_lea.vmem [#allocation1], 1
        %874 = vst [vmem:[%s873] ss:$9 sm:$0xff] %v859
        %s876 = scalar_lea.vmem [#allocation1], 2
        %877 = vst [vmem:[%s876] ss:$9 sm:$0xff] %v860
        %s879 = scalar_lea.vmem [#allocation1], 3
        %880 = vst [vmem:[%s879] ss:$9 sm:$0xff] %v861
        %s882 = scalar_lea.vmem [#allocation1], 4
        %883 = vst [vmem:[%s882] ss:$9 sm:$0xff] %v862
        %s885 = scalar_lea.vmem [#allocation1], 5
        %886 = vst [vmem:[%s885] ss:$9 sm:$0xff] %v863
        %s888 = scalar_lea.vmem [#allocation1], 6
        %889 = vst [vmem:[%s888] ss:$9 sm:$0xff] %v864
        %s891 = scalar_lea.vmem [#allocation1], 7
        %892 = vst [vmem:[%s891] ss:$9 sm:$0xff] %v865
        %v893 = vld [vmem:[#allocation1] sm:$0xff]
        %v898 = vunpack.c.l.b16 %v866
        %v899 = vunpack.c.l.b16 %v867
        %v900 = vunpack.c.l.b16 %v868
        %v901 = vunpack.c.l.b16 %v869
        %v902 = vpack.c.b16 %v899, %v898
        %v903 = vpack.c.b16 %v901, %v900
        %v906 = vsel %vm769, %v893, 0
        %908 = vmatpush.bf16.msra.mxu0 0
        %909 = vmatpush.bf16.msra.mxu0 0
        %910 = vmatpush.bf16.msra.mxu0 0
        %911 = vmatpush.bf16.msra.mxu0 0
        %912 = vmatpush.bf16.msra.mxu0 0
        %913 = vmatpush.bf16.msra.mxu0 0
        %914 = vmatpush.bf16.msra.mxu0 %v903
        %915 = vmatpush.bf16.msra.mxu0 %v902
        %916 = vmatmul.bf16.gmra.mxu0 %v906
        %v917 = vpop.f32.mrf.mxu0
        %v918 = vadd.f32 0.0, %v917
        %v919 = vpop.f32.mrf.mxu0
        %v920 = vadd.f32 0.0, %v919
        %921 = vdwg.mxu0
        %923 = vst [vmem:[#allocation1] ss:$9 sm:$0xff] %v846
        %s925 = scalar_lea.vmem [#allocation1], 1
        %926 = vst [vmem:[%s925] ss:$9 sm:$0xff] %v847
        %s928 = scalar_lea.vmem [#allocation1], 2
        %929 = vst [vmem:[%s928] ss:$9 sm:$0xff] %v848
        %s931 = scalar_lea.vmem [#allocation1], 3
        %932 = vst [vmem:[%s931] ss:$9 sm:$0xff] %v849
        %s934 = scalar_lea.vmem [#allocation1], 4
        %935 = vst [vmem:[%s934] ss:$9 sm:$0xff] %v850
        %s937 = scalar_lea.vmem [#allocation1], 5
        %938 = vst [vmem:[%s937] ss:$9 sm:$0xff] %v851
        %s940 = scalar_lea.vmem [#allocation1], 6
        %941 = vst [vmem:[%s940] ss:$9 sm:$0xff] %v852
        %s943 = scalar_lea.vmem [#allocation1], 7
        %944 = vst [vmem:[%s943] ss:$9 sm:$0xff] %v853
        %v945 = vld [vmem:[#allocation1] sm:$0xff]
        %v950 = vunpack.c.l.b16 %v854
        %v951 = vunpack.c.l.b16 %v855
        %v952 = vunpack.c.l.b16 %v856
        %v953 = vunpack.c.l.b16 %v857
        %v954 = vpack.c.b16 %v951, %v950
        %v955 = vpack.c.b16 %v953, %v952
        %v958 = vsel %vm769, %v945, 0
        %960 = vmatpush.bf16.msra.mxu0 0
        %961 = vmatpush.bf16.msra.mxu0 0
        %962 = vmatpush.bf16.msra.mxu0 0
        %963 = vmatpush.bf16.msra.mxu0 0
        %964 = vmatpush.bf16.msra.mxu0 0
        %965 = vmatpush.bf16.msra.mxu0 0
        %966 = vmatpush.bf16.msra.mxu0 %v955
        %967 = vmatpush.bf16.msra.mxu0 %v954
        %968 = vmatmul.bf16.gmra.mxu0 %v958
        %v969 = vpop.f32.mrf.mxu0
        %v970 = vadd.f32 %v918, %v969
        %v971 = vpop.f32.mrf.mxu0
        %v972 = vadd.f32 %v920, %v971
        %973 = vdwg.mxu0
        %v974 = vld [vmem:[%s9] sm:$0x1]
        %v976 = vperm.slane %v974, 0
        %v978 = vadd.f32 %v970, %v976
        %v979 = vadd.f32 %v972, %v976
        %980 = vst [vmem:[#allocation3] sm:$0xff] %v978
        %981 = vst [vmem:[#allocation3 + $0x8] sm:$0xff] %v979
        %v982 = vld [vmem:[#allocation15] sm:$0xf]
        %v983 = vld [vmem:[#allocation15 + $0x4] sm:$0xf]
        %v984 = vld [vmem:[#allocation15 + $0x8] sm:$0xf]
        %v985 = vld [vmem:[#allocation15 + $0xc] sm:$0xf]
        %v986 = vld [vmem:[#allocation16] sm:$0xf]
        %v987 = vld [vmem:[#allocation16 + $0x4] sm:$0xf]
        %v988 = vld [vmem:[#allocation16 + $0x8] sm:$0xf]
        %v989 = vld [vmem:[#allocation16 + $0xc] sm:$0xf]
        %v990 = vld [vmem:[#allocation4] sm:$0x3]
        %v991 = vld [vmem:[#allocation5] sm:$0x3]
        %v992 = vld [vmem:[#allocation6] sm:$0x3]
        %v993 = vld [vmem:[#allocation7] sm:$0x3]
        %v994 = vld [vmem:[#allocation2] sm:$0x3]
        %v995 = vpack.c.bf16 %v990, %v990
        %v1000 = vunpack.c.l.b16 %v982
        %v1001 = vunpack.c.l.b16 %v983
        %v1002 = vunpack.c.l.b16 %v984
        %v1003 = vunpack.c.l.b16 %v985
        %v1004 = vpack.c.b16 %v1001, %v1000
        %v1005 = vpack.c.b16 %v1003, %v1002
        %v1009 = vsel %vm769, %v995, 0
        %1011 = vmatpush.bf16.msra.mxu0 0
        %1012 = vmatpush.bf16.msra.mxu0 0
        %1013 = vmatpush.bf16.msra.mxu0 0
        %1014 = vmatpush.bf16.msra.mxu0 0
        %1015 = vmatpush.bf16.msra.mxu0 0
        %1016 = vmatpush.bf16.msra.mxu0 0
        %1017 = vmatpush.bf16.msra.mxu0 %v1005
        %1018 = vmatpush.bf16.msra.mxu0 %v1004
        %1019 = vmatmul.bf16.gmra.mxu0 %v1009
        %v1020 = vpop.f32.mrf.mxu0
        %v1021 = vadd.f32 0.0, %v1020
        %v1022 = vpop.f32.mrf.mxu0
        %1023 = vdwg.mxu0
        %v1024 = vadd.f32 %v994, %v1021
        %v1025 = vld [vmem:[#allocation3 + $0xe] sm:$0x3]
        %v1026 = vpack.c.bf16 %v992, %v992
        %v1031 = vunpack.c.l.b16 %v986
        %v1032 = vunpack.c.l.b16 %v987
        %v1033 = vunpack.c.l.b16 %v988
        %v1034 = vunpack.c.l.b16 %v989
        %v1035 = vpack.c.b16 %v1032, %v1031
        %v1036 = vpack.c.b16 %v1034, %v1033
        %v1040 = vsel %vm769, %v1026, 0
        %1042 = vmatpush.bf16.msra.mxu0 0
        %1043 = vmatpush.bf16.msra.mxu0 0
        %1044 = vmatpush.bf16.msra.mxu0 0
        %1045 = vmatpush.bf16.msra.mxu0 0
        %1046 = vmatpush.bf16.msra.mxu0 0
        %1047 = vmatpush.bf16.msra.mxu0 0
        %1048 = vmatpush.bf16.msra.mxu0 %v1036
        %1049 = vmatpush.bf16.msra.mxu0 %v1035
        %1050 = vmatmul.bf16.gmra.mxu0 %v1040
        %v1051 = vpop.f32.mrf.mxu0
        %v1052 = vadd.f32 0.0, %v1051
        %v1053 = vpop.f32.mrf.mxu0
        %1054 = vdwg.mxu0
        %v1055 = vadd.f32 %v1025, %v1052
        %v1056 = vxor.u32 %v1024, 2147483648
        %v1057 = vmul.f32 %v1056, 1.442695
        %v1058 = vpow.pop %v1057
        %v1059 = vadd.f32 %v1058, 1.0
        %v1060 = vrcp.pop %v1059
        %v1061 = vmul.f32 %v1059, %v1060
        %v1062 = vsub.f32 1.0, %v1061
        %v1063 = vmul.f32 %v1060, %v1062
        %v1064 = vadd.f32 %v1060, %v1063
        %vm1065 = vweird.f32 %v1059
        %vm1066 = vweird.f32 %v1060
        %vm1067 = vmor %vm1065, %vm1066
        %v1068 = vsel %vm1067, %v1060, %v1064
        %v1069 = vand.u32 2147483647, %v1059
        %vm1070 = vcmp.eq.f32.partialorder %v1069, 8.507059e+37
        %v1071 = vand.u32 %v1059, 2147483648
        %v1072 = vor.u32 1.1754944e-38, %v1071
        %v1073 = vsel %vm1070, %v1072, %v1068
        %v1074 = vmul.f32 1.0, %v1073
        %v1075 = vtanh.pop %v1024
        %1077 = vrot.lane.b32.xlu0 %v991, 32
        %v1078 = vpop.permute.xlu0 %1077
        %v1080 = vmul.f32 %v1074, %v1078
        %1082 = vrot.lane.b32.xlu0 %v1075, 64
        %v1083 = vpop.permute.xlu0 %1082
        %v1085 = vmul.f32 %v1074, %v1083
        %1087 = vrot.lane.b32.xlu0 %v1085, 32
        %v1088 = vpop.permute.xlu0 %1087
        %v1090 = vadd.f32 %v1080, %v1088
        %v1091 = vtanh.pop %v1090
        %1093 = vrot.lane.b32.xlu0 %v1091, 64
        %v1094 = vpop.permute.xlu0 %1093
        %v1096 = vmul.f32 %v1074, %v1094
        %v1097 = vxor.u32 %v1055, 2147483648
        %v1098 = vmul.f32 %v1097, 1.442695
        %v1099 = vpow.pop %v1098
        %v1100 = vadd.f32 %v1099, 1.0
        %v1101 = vrcp.pop %v1100
        %v1102 = vmul.f32 %v1100, %v1101
        %v1103 = vsub.f32 1.0, %v1102
        %v1104 = vmul.f32 %v1101, %v1103
        %v1105 = vadd.f32 %v1101, %v1104
        %vm1106 = vweird.f32 %v1100
        %vm1107 = vweird.f32 %v1101
        %vm1108 = vmor %vm1106, %vm1107
        %v1109 = vsel %vm1108, %v1101, %v1105
        %v1110 = vand.u32 2147483647, %v1100
        %vm1111 = vcmp.eq.f32.partialorder %v1110, 8.507059e+37
        %v1112 = vand.u32 %v1100, 2147483648
        %v1113 = vor.u32 1.1754944e-38, %v1112
        %v1114 = vsel %vm1111, %v1113, %v1109
        %v1115 = vmul.f32 1.0, %v1114
        %v1116 = vtanh.pop %v1055
        %1118 = vrot.lane.b32.xlu0 %v993, 32
        %v1119 = vpop.permute.xlu0 %1118
        %v1121 = vmul.f32 %v1115, %v1119
        %1123 = vrot.lane.b32.xlu0 %v1116, 64
        %v1124 = vpop.permute.xlu0 %1123
        %v1126 = vmul.f32 %v1115, %v1124
        %1128 = vrot.lane.b32.xlu0 %v1126, 32
        %v1129 = vpop.permute.xlu0 %1128
        %v1131 = vadd.f32 %v1121, %v1129
        %v1132 = vtanh.pop %v1131
        %1134 = vrot.lane.b32.xlu0 %v1132, 64
        %v1135 = vpop.permute.xlu0 %1134
        %v1137 = vmul.f32 %v1115, %v1135
        %v1138 = vpack.c.bf16 %v1096, %v1096
        %v1140 = vrot.slane %v1138, 3
        %vm1141 = vcmask 1040384
        %v1144 = vsel %vm1141, %v1138, %v1140
        %1146 = vrot.lane.b32.xlu0 %v1144, 32
        %v1147 = vpop.permute.xlu0 %1146
        %vm1149 = vcmask 253952
        %1150 = vst.msk [vmem:[%s687] sm:$0x1] %vm1149, %v1147
        %v1151 = vpack.c.bf16 %v1137, %v1137
        %v1153 = vrot.slane %v1151, 3
        %v1156 = vsel %vm1141, %v1151, %v1153
        %1158 = vrot.lane.b32.xlu0 %v1156, 32
        %v1159 = vpop.permute.xlu0 %1158
        %s1161 = scalar_lea.vmem %s696, 7
        %1162 = vst.msk [vmem:[%s1161] sm:$0x1] %vm1149, %v1159
        %v1163 = vld [vmem:[#allocation2 + $0x2] sm:$0x3]
        %v1164 = vunpack.c.l.b16 %v1138
        %v1165 = vpack.c.b16 %v1164, %v1164
        %1166 = vrot.lane.b32.xlu0 %v1165, 32
        %v1167 = vpop.permute.xlu0 %1166
        %v1169 = vsel %vm769, %v1167, 0
        %1171 = vmatpush.bf16.msra.mxu0 0
        %1172 = vmatpush.bf16.msra.mxu0 0
        %1173 = vmatpush.bf16.msra.mxu0 0
        %1174 = vmatpush.bf16.msra.mxu0 0
        %1175 = vmatpush.bf16.msra.mxu0 0
        %1176 = vmatpush.bf16.msra.mxu0 0
        %1177 = vmatpush.bf16.msra.mxu0 %v1005
        %1178 = vmatpush.bf16.msra.mxu0 %v1004
        %1179 = vmatmul.bf16.gmra.mxu0 %v1169
        %v1180 = vpop.f32.mrf.mxu0
        %v1181 = vadd.f32 0.0, %v1180
        %v1182 = vpop.f32.mrf.mxu0
        %1183 = vdwg.mxu0
        %v1184 = vadd.f32 %v1163, %v1181
        %v1185 = vld [vmem:[#allocation3 + $0xc] sm:$0x3]
        %v1186 = vunpack.c.l.b16 %v1151
        %v1187 = vpack.c.b16 %v1186, %v1186
        %1188 = vrot.lane.b32.xlu0 %v1187, 32
        %v1189 = vpop.permute.xlu0 %1188
        %v1191 = vsel %vm769, %v1189, 0
        %1193 = vmatpush.bf16.msra.mxu0 0
        %1194 = vmatpush.bf16.msra.mxu0 0
        %1195 = vmatpush.bf16.msra.mxu0 0
        %1196 = vmatpush.bf16.msra.mxu0 0
        %1197 = vmatpush.bf16.msra.mxu0 0
        %1198 = vmatpush.bf16.msra.mxu0 0
        %1199 = vmatpush.bf16.msra.mxu0 %v1036
        %1200 = vmatpush.bf16.msra.mxu0 %v1035
        %1201 = vmatmul.bf16.gmra.mxu0 %v1191
        %v1202 = vpop.f32.mrf.mxu0
        %v1203 = vadd.f32 0.0, %v1202
        %v1204 = vpop.f32.mrf.mxu0
        %1205 = vdwg.mxu0
        %v1206 = vadd.f32 %v1185, %v1203
        %v1207 = vxor.u32 %v1184, 2147483648
        %v1208 = vmul.f32 %v1207, 1.442695
        %v1209 = vpow.pop %v1208
        %v1210 = vadd.f32 %v1209, 1.0
        %v1211 = vrcp.pop %v1210
        %v1212 = vmul.f32 %v1210, %v1211
        %v1213 = vsub.f32 1.0, %v1212
        %v1214 = vmul.f32 %v1211, %v1213
        %v1215 = vadd.f32 %v1211, %v1214
        %vm1216 = vweird.f32 %v1210
        %vm1217 = vweird.f32 %v1211
        %vm1218 = vmor %vm1216, %vm1217
        %v1219 = vsel %vm1218, %v1211, %v1215
        %v1220 = vand.u32 2147483647, %v1210
        %vm1221 = vcmp.eq.f32.partialorder %v1220, 8.507059e+37
        %v1222 = vand.u32 %v1210, 2147483648
        %v1223 = vor.u32 1.1754944e-38, %v1222
        %v1224 = vsel %vm1221, %v1223, %v1219
        %v1225 = vmul.f32 1.0, %v1224
        %v1226 = vtanh.pop %v1184
        %v1227 = vmul.f32 %v1225, %v1090
        %1229 = vrot.lane.b32.xlu0 %v1226, 64
        %v1230 = vpop.permute.xlu0 %1229
        %v1232 = vmul.f32 %v1225, %v1230
        %1234 = vrot.lane.b32.xlu0 %v1232, 32
        %v1235 = vpop.permute.xlu0 %1234
        %v1237 = vadd.f32 %v1227, %v1235
        %v1238 = vtanh.pop %v1237
        %1240 = vrot.lane.b32.xlu0 %v1238, 64
        %v1241 = vpop.permute.xlu0 %1240
        %v1243 = vmul.f32 %v1225, %v1241
        %v1244 = vxor.u32 %v1206, 2147483648
        %v1245 = vmul.f32 %v1244, 1.442695
        %v1246 = vpow.pop %v1245
        %v1247 = vadd.f32 %v1246, 1.0
        %v1248 = vrcp.pop %v1247
        %v1249 = vmul.f32 %v1247, %v1248
        %v1250 = vsub.f32 1.0, %v1249
        %v1251 = vmul.f32 %v1248, %v1250
        %v1252 = vadd.f32 %v1248, %v1251
        %vm1253 = vweird.f32 %v1247
        %vm1254 = vweird.f32 %v1248
        %vm1255 = vmor %vm1253, %vm1254
        %v1256 = vsel %vm1255, %v1248, %v1252
        %v1257 = vand.u32 2147483647, %v1247
        %vm1258 = vcmp.eq.f32.partialorder %v1257, 8.507059e+37
        %v1259 = vand.u32 %v1247, 2147483648
        %v1260 = vor.u32 1.1754944e-38, %v1259
        %v1261 = vsel %vm1258, %v1260, %v1256
        %v1262 = vmul.f32 1.0, %v1261
        %v1263 = vtanh.pop %v1206
        %v1264 = vmul.f32 %v1262, %v1131
        %1266 = vrot.lane.b32.xlu0 %v1263, 64
        %v1267 = vpop.permute.xlu0 %1266
        %v1269 = vmul.f32 %v1262, %v1267
        %1271 = vrot.lane.b32.xlu0 %v1269, 32
        %v1272 = vpop.permute.xlu0 %1271
        %v1274 = vadd.f32 %v1264, %v1272
        %v1275 = vtanh.pop %v1274
        %1277 = vrot.lane.b32.xlu0 %v1275, 64
        %v1278 = vpop.permute.xlu0 %1277
        %v1280 = vmul.f32 %v1262, %v1278
        %v1281 = vpack.c.bf16 %v1243, %v1243
        %v1283 = vrot.slane %v1281, 3
        %v1286 = vsel %vm1141, %v1281, %v1283
        %1288 = vrot.lane.b32.xlu0 %v1286, 32
        %v1289 = vpop.permute.xlu0 %1288
        %s1291 = scalar_lea.vmem %s687, 1
        %1292 = vst.msk [vmem:[%s1291] sm:$0x1] %vm1149, %v1289
        %v1293 = vpack.c.bf16 %v1280, %v1280
        %v1295 = vrot.slane %v1293, 3
        %v1298 = vsel %vm1141, %v1293, %v1295
        %1300 = vrot.lane.b32.xlu0 %v1298, 32
        %v1301 = vpop.permute.xlu0 %1300
        %s1303 = scalar_lea.vmem %s696, 6
        %1304 = vst.msk [vmem:[%s1303] sm:$0x1] %vm1149, %v1301
        %v1305 = vld [vmem:[#allocation2 + $0x4] sm:$0x3]
        %v1306 = vunpack.c.l.b16 %v1281
        %v1307 = vpack.c.b16 %v1306, %v1306
        %1308 = vrot.lane.b32.xlu0 %v1307, 32
        %v1309 = vpop.permute.xlu0 %1308
        %v1311 = vsel %vm769, %v1309, 0
        %1313 = vmatpush.bf16.msra.mxu0 0
        %1314 = vmatpush.bf16.msra.mxu0 0
        %1315 = vmatpush.bf16.msra.mxu0 0
        %1316 = vmatpush.bf16.msra.mxu0 0
        %1317 = vmatpush.bf16.msra.mxu0 0
        %1318 = vmatpush.bf16.msra.mxu0 0
        %1319 = vmatpush.bf16.msra.mxu0 %v1005
        %1320 = vmatpush.bf16.msra.mxu0 %v1004
        %1321 = vmatmul.bf16.gmra.mxu0 %v1311
        %v1322 = vpop.f32.mrf.mxu0
        %v1323 = vadd.f32 0.0, %v1322
        %v1324 = vpop.f32.mrf.mxu0
        %1325 = vdwg.mxu0
        %v1326 = vadd.f32 %v1305, %v1323
        %v1327 = vld [vmem:[#allocation3 + $0xa] sm:$0x3]
        %v1328 = vunpack.c.l.b16 %v1293
        %v1329 = vpack.c.b16 %v1328, %v1328
        %1330 = vrot.lane.b32.xlu0 %v1329, 32
        %v1331 = vpop.permute.xlu0 %1330
        %v1333 = vsel %vm769, %v1331, 0
        %1335 = vmatpush.bf16.msra.mxu0 0
        %1336 = vmatpush.bf16.msra.mxu0 0
        %1337 = vmatpush.bf16.msra.mxu0 0
        %1338 = vmatpush.bf16.msra.mxu0 0
        %1339 = vmatpush.bf16.msra.mxu0 0
        %1340 = vmatpush.bf16.msra.mxu0 0
        %1341 = vmatpush.bf16.msra.mxu0 %v1036
        %1342 = vmatpush.bf16.msra.mxu0 %v1035
        %1343 = vmatmul.bf16.gmra.mxu0 %v1333
        %v1344 = vpop.f32.mrf.mxu0
        %v1345 = vadd.f32 0.0, %v1344
        %v1346 = vpop.f32.mrf.mxu0
        %1347 = vdwg.mxu0
        %v1348 = vadd.f32 %v1327, %v1345
        %v1349 = vxor.u32 %v1326, 2147483648
        %v1350 = vmul.f32 %v1349, 1.442695
        %v1351 = vpow.pop %v1350
        %v1352 = vadd.f32 %v1351, 1.0
        %v1353 = vrcp.pop %v1352
        %v1354 = vmul.f32 %v1352, %v1353
        %v1355 = vsub.f32 1.0, %v1354
        %v1356 = vmul.f32 %v1353, %v1355
        %v1357 = vadd.f32 %v1353, %v1356
        %vm1358 = vweird.f32 %v1352
        %vm1359 = vweird.f32 %v1353
        %vm1360 = vmor %vm1358, %vm1359
        %v1361 = vsel %vm1360, %v1353, %v1357
        %v1362 = vand.u32 2147483647, %v1352
        %vm1363 = vcmp.eq.f32.partialorder %v1362, 8.507059e+37
        %v1364 = vand.u32 %v1352, 2147483648
        %v1365 = vor.u32 1.1754944e-38, %v1364
        %v1366 = vsel %vm1363, %v1365, %v1361
        %v1367 = vmul.f32 1.0, %v1366
        %v1368 = vtanh.pop %v1326
        %v1369 = vmul.f32 %v1367, %v1237
        %1371 = vrot.lane.b32.xlu0 %v1368, 64
        %v1372 = vpop.permute.xlu0 %1371
        %v1374 = vmul.f32 %v1367, %v1372
        %1376 = vrot.lane.b32.xlu0 %v1374, 32
        %v1377 = vpop.permute.xlu0 %1376
        %v1379 = vadd.f32 %v1369, %v1377
        %v1380 = vtanh.pop %v1379
        %1382 = vrot.lane.b32.xlu0 %v1380, 64
        %v1383 = vpop.permute.xlu0 %1382
        %v1385 = vmul.f32 %v1367, %v1383
        %v1386 = vxor.u32 %v1348, 2147483648
        %v1387 = vmul.f32 %v1386, 1.442695
        %v1388 = vpow.pop %v1387
        %v1389 = vadd.f32 %v1388, 1.0
        %v1390 = vrcp.pop %v1389
        %v1391 = vmul.f32 %v1389, %v1390
        %v1392 = vsub.f32 1.0, %v1391
        %v1393 = vmul.f32 %v1390, %v1392
        %v1394 = vadd.f32 %v1390, %v1393
        %vm1395 = vweird.f32 %v1389
        %vm1396 = vweird.f32 %v1390
        %vm1397 = vmor %vm1395, %vm1396
        %v1398 = vsel %vm1397, %v1390, %v1394
        %v1399 = vand.u32 2147483647, %v1389
        %vm1400 = vcmp.eq.f32.partialorder %v1399, 8.507059e+37
        %v1401 = vand.u32 %v1389, 2147483648
        %v1402 = vor.u32 1.1754944e-38, %v1401
        %v1403 = vsel %vm1400, %v1402, %v1398
        %v1404 = vmul.f32 1.0, %v1403
        %v1405 = vtanh.pop %v1348
        %v1406 = vmul.f32 %v1404, %v1274
        %1408 = vrot.lane.b32.xlu0 %v1405, 64
        %v1409 = vpop.permute.xlu0 %1408
        %v1411 = vmul.f32 %v1404, %v1409
        %1413 = vrot.lane.b32.xlu0 %v1411, 32
        %v1414 = vpop.permute.xlu0 %1413
        %v1416 = vadd.f32 %v1406, %v1414
        %v1417 = vtanh.pop %v1416
        %1419 = vrot.lane.b32.xlu0 %v1417, 64
        %v1420 = vpop.permute.xlu0 %1419
        %v1422 = vmul.f32 %v1404, %v1420
        %v1423 = vpack.c.bf16 %v1385, %v1385
        %v1425 = vrot.slane %v1423, 3
        %v1428 = vsel %vm1141, %v1423, %v1425
        %1430 = vrot.lane.b32.xlu0 %v1428, 32
        %v1431 = vpop.permute.xlu0 %1430
        %s1433 = scalar_lea.vmem %s687, 2
        %1434 = vst.msk [vmem:[%s1433] sm:$0x1] %vm1149, %v1431
        %v1435 = vpack.c.bf16 %v1422, %v1422
        %v1437 = vrot.slane %v1435, 3
        %v1440 = vsel %vm1141, %v1435, %v1437
        %1442 = vrot.lane.b32.xlu0 %v1440, 32
        %v1443 = vpop.permute.xlu0 %1442
        %s1445 = scalar_lea.vmem %s696, 5
        %1446 = vst.msk [vmem:[%s1445] sm:$0x1] %vm1149, %v1443
        %v1447 = vld [vmem:[#allocation2 + $0x6] sm:$0x3]
        %v1448 = vunpack.c.l.b16 %v1423
        %v1449 = vpack.c.b16 %v1448, %v1448
        %1450 = vrot.lane.b32.xlu0 %v1449, 32
        %v1451 = vpop.permute.xlu0 %1450
        %v1453 = vsel %vm769, %v1451, 0
        %1455 = vmatpush.bf16.msra.mxu0 0
        %1456 = vmatpush.bf16.msra.mxu0 0
        %1457 = vmatpush.bf16.msra.mxu0 0
        %1458 = vmatpush.bf16.msra.mxu0 0
        %1459 = vmatpush.bf16.msra.mxu0 0
        %1460 = vmatpush.bf16.msra.mxu0 0
        %1461 = vmatpush.bf16.msra.mxu0 %v1005
        %1462 = vmatpush.bf16.msra.mxu0 %v1004
        %1463 = vmatmul.bf16.gmra.mxu0 %v1453
        %v1464 = vpop.f32.mrf.mxu0
        %v1465 = vadd.f32 0.0, %v1464
        %v1466 = vpop.f32.mrf.mxu0
        %1467 = vdwg.mxu0
        %v1468 = vadd.f32 %v1447, %v1465
        %v1469 = vld [vmem:[#allocation3 + $0x8] sm:$0x3]
        %v1470 = vunpack.c.l.b16 %v1435
        %v1471 = vpack.c.b16 %v1470, %v1470
        %1472 = vrot.lane.b32.xlu0 %v1471, 32
        %v1473 = vpop.permute.xlu0 %1472
        %v1475 = vsel %vm769, %v1473, 0
        %1477 = vmatpush.bf16.msra.mxu0 0
        %1478 = vmatpush.bf16.msra.mxu0 0
        %1479 = vmatpush.bf16.msra.mxu0 0
        %1480 = vmatpush.bf16.msra.mxu0 0
        %1481 = vmatpush.bf16.msra.mxu0 0
        %1482 = vmatpush.bf16.msra.mxu0 0
        %1483 = vmatpush.bf16.msra.mxu0 %v1036
        %1484 = vmatpush.bf16.msra.mxu0 %v1035
        %1485 = vmatmul.bf16.gmra.mxu0 %v1475
        %v1486 = vpop.f32.mrf.mxu0
        %v1487 = vadd.f32 0.0, %v1486
        %v1488 = vpop.f32.mrf.mxu0
        %1489 = vdwg.mxu0
        %v1490 = vadd.f32 %v1469, %v1487
        %v1491 = vxor.u32 %v1468, 2147483648
        %v1492 = vmul.f32 %v1491, 1.442695
        %v1493 = vpow.pop %v1492
        %v1494 = vadd.f32 %v1493, 1.0
        %v1495 = vrcp.pop %v1494
        %v1496 = vmul.f32 %v1494, %v1495
        %v1497 = vsub.f32 1.0, %v1496
        %v1498 = vmul.f32 %v1495, %v1497
        %v1499 = vadd.f32 %v1495, %v1498
        %vm1500 = vweird.f32 %v1494
        %vm1501 = vweird.f32 %v1495
        %vm1502 = vmor %vm1500, %vm1501
        %v1503 = vsel %vm1502, %v1495, %v1499
        %v1504 = vand.u32 2147483647, %v1494
        %vm1505 = vcmp.eq.f32.partialorder %v1504, 8.507059e+37
        %v1506 = vand.u32 %v1494, 2147483648
        %v1507 = vor.u32 1.1754944e-38, %v1506
        %v1508 = vsel %vm1505, %v1507, %v1503
        %v1509 = vmul.f32 1.0, %v1508
        %v1510 = vtanh.pop %v1468
        %v1511 = vmul.f32 %v1509, %v1379
        %1513 = vrot.lane.b32.xlu0 %v1510, 64
        %v1514 = vpop.permute.xlu0 %1513
        %v1516 = vmul.f32 %v1509, %v1514
        %1518 = vrot.lane.b32.xlu0 %v1516, 32
        %v1519 = vpop.permute.xlu0 %1518
        %v1521 = vadd.f32 %v1511, %v1519
        %v1522 = vtanh.pop %v1521
        %1524 = vrot.lane.b32.xlu0 %v1522, 64
        %v1525 = vpop.permute.xlu0 %1524
        %v1527 = vmul.f32 %v1509, %v1525
        %v1528 = vxor.u32 %v1490, 2147483648
        %v1529 = vmul.f32 %v1528, 1.442695
        %v1530 = vpow.pop %v1529
        %v1531 = vadd.f32 %v1530, 1.0
        %v1532 = vrcp.pop %v1531
        %v1533 = vmul.f32 %v1531, %v1532
        %v1534 = vsub.f32 1.0, %v1533
        %v1535 = vmul.f32 %v1532, %v1534
        %v1536 = vadd.f32 %v1532, %v1535
        %vm1537 = vweird.f32 %v1531
        %vm1538 = vweird.f32 %v1532
        %vm1539 = vmor %vm1537, %vm1538
        %v1540 = vsel %vm1539, %v1532, %v1536
        %v1541 = vand.u32 2147483647, %v1531
        %vm1542 = vcmp.eq.f32.partialorder %v1541, 8.507059e+37
        %v1543 = vand.u32 %v1531, 2147483648
        %v1544 = vor.u32 1.1754944e-38, %v1543
        %v1545 = vsel %vm1542, %v1544, %v1540
        %v1546 = vmul.f32 1.0, %v1545
        %v1547 = vtanh.pop %v1490
        %v1548 = vmul.f32 %v1546, %v1416
        %1550 = vrot.lane.b32.xlu0 %v1547, 64
        %v1551 = vpop.permute.xlu0 %1550
        %v1553 = vmul.f32 %v1546, %v1551
        %1555 = vrot.lane.b32.xlu0 %v1553, 32
        %v1556 = vpop.permute.xlu0 %1555
        %v1558 = vadd.f32 %v1548, %v1556
        %v1559 = vtanh.pop %v1558
        %1561 = vrot.lane.b32.xlu0 %v1559, 64
        %v1562 = vpop.permute.xlu0 %1561
        %v1564 = vmul.f32 %v1546, %v1562
        %v1565 = vpack.c.bf16 %v1527, %v1527
        %v1567 = vrot.slane %v1565, 3
        %v1570 = vsel %vm1141, %v1565, %v1567
        %1572 = vrot.lane.b32.xlu0 %v1570, 32
        %v1573 = vpop.permute.xlu0 %1572
        %s1575 = scalar_lea.vmem %s687, 3
        %1576 = vst.msk [vmem:[%s1575] sm:$0x1] %vm1149, %v1573
        %v1577 = vpack.c.bf16 %v1564, %v1564
        %v1579 = vrot.slane %v1577, 3
        %v1582 = vsel %vm1141, %v1577, %v1579
        %1584 = vrot.lane.b32.xlu0 %v1582, 32
        %v1585 = vpop.permute.xlu0 %1584
        %s1587 = scalar_lea.vmem %s696, 4
        %1588 = vst.msk [vmem:[%s1587] sm:$0x1] %vm1149, %v1585
        %v1589 = vld [vmem:[#allocation2 + $0x8] sm:$0x3]
        %v1590 = vunpack.c.l.b16 %v1565
        %v1591 = vpack.c.b16 %v1590, %v1590
        %1592 = vrot.lane.b32.xlu0 %v1591, 32
        %v1593 = vpop.permute.xlu0 %1592
        %v1595 = vsel %vm769, %v1593, 0
        %1597 = vmatpush.bf16.msra.mxu0 0
        %1598 = vmatpush.bf16.msra.mxu0 0
        %1599 = vmatpush.bf16.msra.mxu0 0
        %1600 = vmatpush.bf16.msra.mxu0 0
        %1601 = vmatpush.bf16.msra.mxu0 0
        %1602 = vmatpush.bf16.msra.mxu0 0
        %1603 = vmatpush.bf16.msra.mxu0 %v1005
        %1604 = vmatpush.bf16.msra.mxu0 %v1004
        %1605 = vmatmul.bf16.gmra.mxu0 %v1595
        %v1606 = vpop.f32.mrf.mxu0
        %v1607 = vadd.f32 0.0, %v1606
        %v1608 = vpop.f32.mrf.mxu0
        %1609 = vdwg.mxu0
        %v1610 = vadd.f32 %v1589, %v1607
        %v1611 = vld [vmem:[#allocation3 + $0x6] sm:$0x3]
        %v1612 = vunpack.c.l.b16 %v1577
        %v1613 = vpack.c.b16 %v1612, %v1612
        %1614 = vrot.lane.b32.xlu0 %v1613, 32
        %v1615 = vpop.permute.xlu0 %1614
        %v1617 = vsel %vm769, %v1615, 0
        %1619 = vmatpush.bf16.msra.mxu0 0
        %1620 = vmatpush.bf16.msra.mxu0 0
        %1621 = vmatpush.bf16.msra.mxu0 0
        %1622 = vmatpush.bf16.msra.mxu0 0
        %1623 = vmatpush.bf16.msra.mxu0 0
        %1624 = vmatpush.bf16.msra.mxu0 0
        %1625 = vmatpush.bf16.msra.mxu0 %v1036
        %1626 = vmatpush.bf16.msra.mxu0 %v1035
        %1627 = vmatmul.bf16.gmra.mxu0 %v1617
        %v1628 = vpop.f32.mrf.mxu0
        %v1629 = vadd.f32 0.0, %v1628
        %v1630 = vpop.f32.mrf.mxu0
        %1631 = vdwg.mxu0
        %v1632 = vadd.f32 %v1611, %v1629
        %v1633 = vxor.u32 %v1610, 2147483648
        %v1634 = vmul.f32 %v1633, 1.442695
        %v1635 = vpow.pop %v1634
        %v1636 = vadd.f32 %v1635, 1.0
        %v1637 = vrcp.pop %v1636
        %v1638 = vmul.f32 %v1636, %v1637
        %v1639 = vsub.f32 1.0, %v1638
        %v1640 = vmul.f32 %v1637, %v1639
        %v1641 = vadd.f32 %v1637, %v1640
        %vm1642 = vweird.f32 %v1636
        %vm1643 = vweird.f32 %v1637
        %vm1644 = vmor %vm1642, %vm1643
        %v1645 = vsel %vm1644, %v1637, %v1641
        %v1646 = vand.u32 2147483647, %v1636
        %vm1647 = vcmp.eq.f32.partialorder %v1646, 8.507059e+37
        %v1648 = vand.u32 %v1636, 2147483648
        %v1649 = vor.u32 1.1754944e-38, %v1648
        %v1650 = vsel %vm1647, %v1649, %v1645
        %v1651 = vmul.f32 1.0, %v1650
        %v1652 = vtanh.pop %v1610
        %v1653 = vmul.f32 %v1651, %v1521
        %1655 = vrot.lane.b32.xlu0 %v1652, 64
        %v1656 = vpop.permute.xlu0 %1655
        %v1658 = vmul.f32 %v1651, %v1656
        %1660 = vrot.lane.b32.xlu0 %v1658, 32
        %v1661 = vpop.permute.xlu0 %1660
        %v1663 = vadd.f32 %v1653, %v1661
        %v1664 = vtanh.pop %v1663
        %1666 = vrot.lane.b32.xlu0 %v1664, 64
        %v1667 = vpop.permute.xlu0 %1666
        %v1669 = vmul.f32 %v1651, %v1667
        %v1670 = vxor.u32 %v1632, 2147483648
        %v1671 = vmul.f32 %v1670, 1.442695
        %v1672 = vpow.pop %v1671
        %v1673 = vadd.f32 %v1672, 1.0
        %v1674 = vrcp.pop %v1673
        %v1675 = vmul.f32 %v1673, %v1674
        %v1676 = vsub.f32 1.0, %v1675
        %v1677 = vmul.f32 %v1674, %v1676
        %v1678 = vadd.f32 %v1674, %v1677
        %vm1679 = vweird.f32 %v1673
        %vm1680 = vweird.f32 %v1674
        %vm1681 = vmor %vm1679, %vm1680
        %v1682 = vsel %vm1681, %v1674, %v1678
        %v1683 = vand.u32 2147483647, %v1673
        %vm1684 = vcmp.eq.f32.partialorder %v1683, 8.507059e+37
        %v1685 = vand.u32 %v1673, 2147483648
        %v1686 = vor.u32 1.1754944e-38, %v1685
        %v1687 = vsel %vm1684, %v1686, %v1682
        %v1688 = vmul.f32 1.0, %v1687
        %v1689 = vtanh.pop %v1632
        %v1690 = vmul.f32 %v1688, %v1558
        %1692 = vrot.lane.b32.xlu0 %v1689, 64
        %v1693 = vpop.permute.xlu0 %1692
        %v1695 = vmul.f32 %v1688, %v1693
        %1697 = vrot.lane.b32.xlu0 %v1695, 32
        %v1698 = vpop.permute.xlu0 %1697
        %v1700 = vadd.f32 %v1690, %v1698
        %v1701 = vtanh.pop %v1700
        %1703 = vrot.lane.b32.xlu0 %v1701, 64
        %v1704 = vpop.permute.xlu0 %1703
        %v1706 = vmul.f32 %v1688, %v1704
        %v1707 = vpack.c.bf16 %v1669, %v1669
        %v1709 = vrot.slane %v1707, 3
        %v1712 = vsel %vm1141, %v1707, %v1709
        %1714 = vrot.lane.b32.xlu0 %v1712, 32
        %v1715 = vpop.permute.xlu0 %1714
        %s1717 = scalar_lea.vmem %s687, 4
        %1718 = vst.msk [vmem:[%s1717] sm:$0x1] %vm1149, %v1715
        %v1719 = vpack.c.bf16 %v1706, %v1706
        %v1721 = vrot.slane %v1719, 3
        %v1724 = vsel %vm1141, %v1719, %v1721
        %1726 = vrot.lane.b32.xlu0 %v1724, 32
        %v1727 = vpop.permute.xlu0 %1726
        %s1729 = scalar_lea.vmem %s696, 3
        %1730 = vst.msk [vmem:[%s1729] sm:$0x1] %vm1149, %v1727
        %v1731 = vld [vmem:[#allocation2 + $0xa] sm:$0x3]
        %v1732 = vunpack.c.l.b16 %v1707
        %v1733 = vpack.c.b16 %v1732, %v1732
        %1734 = vrot.lane.b32.xlu0 %v1733, 32
        %v1735 = vpop.permute.xlu0 %1734
        %v1737 = vsel %vm769, %v1735, 0
        %1739 = vmatpush.bf16.msra.mxu0 0
        %1740 = vmatpush.bf16.msra.mxu0 0
        %1741 = vmatpush.bf16.msra.mxu0 0
        %1742 = vmatpush.bf16.msra.mxu0 0
        %1743 = vmatpush.bf16.msra.mxu0 0
        %1744 = vmatpush.bf16.msra.mxu0 0
        %1745 = vmatpush.bf16.msra.mxu0 %v1005
        %1746 = vmatpush.bf16.msra.mxu0 %v1004
        %1747 = vmatmul.bf16.gmra.mxu0 %v1737
        %v1748 = vpop.f32.mrf.mxu0
        %v1749 = vadd.f32 0.0, %v1748
        %v1750 = vpop.f32.mrf.mxu0
        %1751 = vdwg.mxu0
        %v1752 = vadd.f32 %v1731, %v1749
        %v1753 = vld [vmem:[#allocation3 + $0x4] sm:$0x3]
        %v1754 = vunpack.c.l.b16 %v1719
        %v1755 = vpack.c.b16 %v1754, %v1754
        %1756 = vrot.lane.b32.xlu0 %v1755, 32
        %v1757 = vpop.permute.xlu0 %1756
        %v1759 = vsel %vm769, %v1757, 0
        %1761 = vmatpush.bf16.msra.mxu0 0
        %1762 = vmatpush.bf16.msra.mxu0 0
        %1763 = vmatpush.bf16.msra.mxu0 0
        %1764 = vmatpush.bf16.msra.mxu0 0
        %1765 = vmatpush.bf16.msra.mxu0 0
        %1766 = vmatpush.bf16.msra.mxu0 0
        %1767 = vmatpush.bf16.msra.mxu0 %v1036
        %1768 = vmatpush.bf16.msra.mxu0 %v1035
        %1769 = vmatmul.bf16.gmra.mxu0 %v1759
        %v1770 = vpop.f32.mrf.mxu0
        %v1771 = vadd.f32 0.0, %v1770
        %v1772 = vpop.f32.mrf.mxu0
        %1773 = vdwg.mxu0
        %v1774 = vadd.f32 %v1753, %v1771
        %v1775 = vxor.u32 %v1752, 2147483648
        %v1776 = vmul.f32 %v1775, 1.442695
        %v1777 = vpow.pop %v1776
        %v1778 = vadd.f32 %v1777, 1.0
        %v1779 = vrcp.pop %v1778
        %v1780 = vmul.f32 %v1778, %v1779
        %v1781 = vsub.f32 1.0, %v1780
        %v1782 = vmul.f32 %v1779, %v1781
        %v1783 = vadd.f32 %v1779, %v1782
        %vm1784 = vweird.f32 %v1778
        %vm1785 = vweird.f32 %v1779
        %vm1786 = vmor %vm1784, %vm1785
        %v1787 = vsel %vm1786, %v1779, %v1783
        %v1788 = vand.u32 2147483647, %v1778
        %vm1789 = vcmp.eq.f32.partialorder %v1788, 8.507059e+37
        %v1790 = vand.u32 %v1778, 2147483648
        %v1791 = vor.u32 1.1754944e-38, %v1790
        %v1792 = vsel %vm1789, %v1791, %v1787
        %v1793 = vmul.f32 1.0, %v1792
        %v1794 = vtanh.pop %v1752
        %v1795 = vmul.f32 %v1793, %v1663
        %1797 = vrot.lane.b32.xlu0 %v1794, 64
        %v1798 = vpop.permute.xlu0 %1797
        %v1800 = vmul.f32 %v1793, %v1798
        %1802 = vrot.lane.b32.xlu0 %v1800, 32
        %v1803 = vpop.permute.xlu0 %1802
        %v1805 = vadd.f32 %v1795, %v1803
        %v1806 = vtanh.pop %v1805
        %1808 = vrot.lane.b32.xlu0 %v1806, 64
        %v1809 = vpop.permute.xlu0 %1808
        %v1811 = vmul.f32 %v1793, %v1809
        %v1812 = vxor.u32 %v1774, 2147483648
        %v1813 = vmul.f32 %v1812, 1.442695
        %v1814 = vpow.pop %v1813
        %v1815 = vadd.f32 %v1814, 1.0
        %v1816 = vrcp.pop %v1815
        %v1817 = vmul.f32 %v1815, %v1816
        %v1818 = vsub.f32 1.0, %v1817
        %v1819 = vmul.f32 %v1816, %v1818
        %v1820 = vadd.f32 %v1816, %v1819
        %vm1821 = vweird.f32 %v1815
        %vm1822 = vweird.f32 %v1816
        %vm1823 = vmor %vm1821, %vm1822
        %v1824 = vsel %vm1823, %v1816, %v1820
        %v1825 = vand.u32 2147483647, %v1815
        %vm1826 = vcmp.eq.f32.partialorder %v1825, 8.507059e+37
        %v1827 = vand.u32 %v1815, 2147483648
        %v1828 = vor.u32 1.1754944e-38, %v1827
        %v1829 = vsel %vm1826, %v1828, %v1824
        %v1830 = vmul.f32 1.0, %v1829
        %v1831 = vtanh.pop %v1774
        %v1832 = vmul.f32 %v1830, %v1700
        %1834 = vrot.lane.b32.xlu0 %v1831, 64
        %v1835 = vpop.permute.xlu0 %1834
        %v1837 = vmul.f32 %v1830, %v1835
        %1839 = vrot.lane.b32.xlu0 %v1837, 32
        %v1840 = vpop.permute.xlu0 %1839
        %v1842 = vadd.f32 %v1832, %v1840
        %v1843 = vtanh.pop %v1842
        %1845 = vrot.lane.b32.xlu0 %v1843, 64
        %v1846 = vpop.permute.xlu0 %1845
        %v1848 = vmul.f32 %v1830, %v1846
        %v1849 = vpack.c.bf16 %v1811, %v1811
        %v1851 = vrot.slane %v1849, 3
        %v1854 = vsel %vm1141, %v1849, %v1851
        %1856 = vrot.lane.b32.xlu0 %v1854, 32
        %v1857 = vpop.permute.xlu0 %1856
        %s1859 = scalar_lea.vmem %s687, 5
        %1860 = vst.msk [vmem:[%s1859] sm:$0x1] %vm1149, %v1857
        %v1861 = vpack.c.bf16 %v1848, %v1848
        %v1863 = vrot.slane %v1861, 3
        %v1866 = vsel %vm1141, %v1861, %v1863
        %1868 = vrot.lane.b32.xlu0 %v1866, 32
        %v1869 = vpop.permute.xlu0 %1868
        %s1871 = scalar_lea.vmem %s696, 2
        %1872 = vst.msk [vmem:[%s1871] sm:$0x1] %vm1149, %v1869
        %v1873 = vld [vmem:[#allocation2 + $0xc] sm:$0x3]
        %v1874 = vunpack.c.l.b16 %v1849
        %v1875 = vpack.c.b16 %v1874, %v1874
        %1876 = vrot.lane.b32.xlu0 %v1875, 32
        %v1877 = vpop.permute.xlu0 %1876
        %v1879 = vsel %vm769, %v1877, 0
        %1881 = vmatpush.bf16.msra.mxu0 0
        %1882 = vmatpush.bf16.msra.mxu0 0
        %1883 = vmatpush.bf16.msra.mxu0 0
        %1884 = vmatpush.bf16.msra.mxu0 0
        %1885 = vmatpush.bf16.msra.mxu0 0
        %1886 = vmatpush.bf16.msra.mxu0 0
        %1887 = vmatpush.bf16.msra.mxu0 %v1005
        %1888 = vmatpush.bf16.msra.mxu0 %v1004
        %1889 = vmatmul.bf16.gmra.mxu0 %v1879
        %v1890 = vpop.f32.mrf.mxu0
        %v1891 = vadd.f32 0.0, %v1890
        %v1892 = vpop.f32.mrf.mxu0
        %1893 = vdwg.mxu0
        %v1894 = vadd.f32 %v1873, %v1891
        %v1895 = vld [vmem:[#allocation3 + $0x2] sm:$0x3]
        %v1896 = vunpack.c.l.b16 %v1861
        %v1897 = vpack.c.b16 %v1896, %v1896
        %1898 = vrot.lane.b32.xlu0 %v1897, 32
        %v1899 = vpop.permute.xlu0 %1898
        %v1901 = vsel %vm769, %v1899, 0
        %1903 = vmatpush.bf16.msra.mxu0 0
        %1904 = vmatpush.bf16.msra.mxu0 0
        %1905 = vmatpush.bf16.msra.mxu0 0
        %1906 = vmatpush.bf16.msra.mxu0 0
        %1907 = vmatpush.bf16.msra.mxu0 0
        %1908 = vmatpush.bf16.msra.mxu0 0
        %1909 = vmatpush.bf16.msra.mxu0 %v1036
        %1910 = vmatpush.bf16.msra.mxu0 %v1035
        %1911 = vmatmul.bf16.gmra.mxu0 %v1901
        %v1912 = vpop.f32.mrf.mxu0
        %v1913 = vadd.f32 0.0, %v1912
        %v1914 = vpop.f32.mrf.mxu0
        %1915 = vdwg.mxu0
        %v1916 = vadd.f32 %v1895, %v1913
        %v1917 = vxor.u32 %v1894, 2147483648
        %v1918 = vmul.f32 %v1917, 1.442695
        %v1919 = vpow.pop %v1918
        %v1920 = vadd.f32 %v1919, 1.0
        %v1921 = vrcp.pop %v1920
        %v1922 = vmul.f32 %v1920, %v1921
        %v1923 = vsub.f32 1.0, %v1922
        %v1924 = vmul.f32 %v1921, %v1923
        %v1925 = vadd.f32 %v1921, %v1924
        %vm1926 = vweird.f32 %v1920
        %vm1927 = vweird.f32 %v1921
        %vm1928 = vmor %vm1926, %vm1927
        %v1929 = vsel %vm1928, %v1921, %v1925
        %v1930 = vand.u32 2147483647, %v1920
        %vm1931 = vcmp.eq.f32.partialorder %v1930, 8.507059e+37
        %v1932 = vand.u32 %v1920, 2147483648
        %v1933 = vor.u32 1.1754944e-38, %v1932
        %v1934 = vsel %vm1931, %v1933, %v1929
        %v1935 = vmul.f32 1.0, %v1934
        %v1936 = vtanh.pop %v1894
        %v1937 = vmul.f32 %v1935, %v1805
        %1939 = vrot.lane.b32.xlu0 %v1936, 64
        %v1940 = vpop.permute.xlu0 %1939
        %v1942 = vmul.f32 %v1935, %v1940
        %1944 = vrot.lane.b32.xlu0 %v1942, 32
        %v1945 = vpop.permute.xlu0 %1944
        %v1947 = vadd.f32 %v1937, %v1945
        %v1948 = vtanh.pop %v1947
        %1950 = vrot.lane.b32.xlu0 %v1948, 64
        %v1951 = vpop.permute.xlu0 %1950
        %v1953 = vmul.f32 %v1935, %v1951
        %v1954 = vxor.u32 %v1916, 2147483648
        %v1955 = vmul.f32 %v1954, 1.442695
        %v1956 = vpow.pop %v1955
        %v1957 = vadd.f32 %v1956, 1.0
        %v1958 = vrcp.pop %v1957
        %v1959 = vmul.f32 %v1957, %v1958
        %v1960 = vsub.f32 1.0, %v1959
        %v1961 = vmul.f32 %v1958, %v1960
        %v1962 = vadd.f32 %v1958, %v1961
        %vm1963 = vweird.f32 %v1957
        %vm1964 = vweird.f32 %v1958
        %vm1965 = vmor %vm1963, %vm1964
        %v1966 = vsel %vm1965, %v1958, %v1962
        %v1967 = vand.u32 2147483647, %v1957
        %vm1968 = vcmp.eq.f32.partialorder %v1967, 8.507059e+37
        %v1969 = vand.u32 %v1957, 2147483648
        %v1970 = vor.u32 1.1754944e-38, %v1969
        %v1971 = vsel %vm1968, %v1970, %v1966
        %v1972 = vmul.f32 1.0, %v1971
        %v1973 = vtanh.pop %v1916
        %v1974 = vmul.f32 %v1972, %v1842
        %1976 = vrot.lane.b32.xlu0 %v1973, 64
        %v1977 = vpop.permute.xlu0 %1976
        %v1979 = vmul.f32 %v1972, %v1977
        %1981 = vrot.lane.b32.xlu0 %v1979, 32
        %v1982 = vpop.permute.xlu0 %1981
        %v1984 = vadd.f32 %v1974, %v1982
        %v1985 = vtanh.pop %v1984
        %1987 = vrot.lane.b32.xlu0 %v1985, 64
        %v1988 = vpop.permute.xlu0 %1987
        %v1990 = vmul.f32 %v1972, %v1988
        %v1991 = vpack.c.bf16 %v1953, %v1953
        %v1993 = vrot.slane %v1991, 3
        %v1996 = vsel %vm1141, %v1991, %v1993
        %1998 = vrot.lane.b32.xlu0 %v1996, 32
        %v1999 = vpop.permute.xlu0 %1998
        %s2001 = scalar_lea.vmem %s687, 6
        %2002 = vst.msk [vmem:[%s2001] sm:$0x1] %vm1149, %v1999
        %v2003 = vpack.c.bf16 %v1990, %v1990
        %v2005 = vrot.slane %v2003, 3
        %v2008 = vsel %vm1141, %v2003, %v2005
        %2010 = vrot.lane.b32.xlu0 %v2008, 32
        %v2011 = vpop.permute.xlu0 %2010
        %s2013 = scalar_lea.vmem %s696, 1
        %2014 = vst.msk [vmem:[%s2013] sm:$0x1] %vm1149, %v2011
        %v2015 = vld [vmem:[#allocation2 + $0xe] sm:$0x3]
        %v2016 = vunpack.c.l.b16 %v1991
        %v2017 = vpack.c.b16 %v2016, %v2016
        %2018 = vrot.lane.b32.xlu0 %v2017, 32
        %v2019 = vpop.permute.xlu0 %2018
        %v2021 = vsel %vm769, %v2019, 0
        %2023 = vmatpush.bf16.msra.mxu0 0
        %2024 = vmatpush.bf16.msra.mxu0 0
        %2025 = vmatpush.bf16.msra.mxu0 0
        %2026 = vmatpush.bf16.msra.mxu0 0
        %2027 = vmatpush.bf16.msra.mxu0 0
        %2028 = vmatpush.bf16.msra.mxu0 0
        %2029 = vmatpush.bf16.msra.mxu0 %v1005
        %2030 = vmatpush.bf16.msra.mxu0 %v1004
        %2031 = vmatmul.bf16.gmra.mxu0 %v2021
        %v2032 = vpop.f32.mrf.mxu0
        %v2033 = vadd.f32 0.0, %v2032
        %v2034 = vpop.f32.mrf.mxu0
        %2035 = vdwg.mxu0
        %v2036 = vadd.f32 %v2015, %v2033
        %v2037 = vld [vmem:[#allocation3] sm:$0x3]
        %v2038 = vunpack.c.l.b16 %v2003
        %v2039 = vpack.c.b16 %v2038, %v2038
        %2040 = vrot.lane.b32.xlu0 %v2039, 32
        %v2041 = vpop.permute.xlu0 %2040
        %v2043 = vsel %vm769, %v2041, 0
        %2045 = vmatpush.bf16.msra.mxu0 0
        %2046 = vmatpush.bf16.msra.mxu0 0
        %2047 = vmatpush.bf16.msra.mxu0 0
        %2048 = vmatpush.bf16.msra.mxu0 0
        %2049 = vmatpush.bf16.msra.mxu0 0
        %2050 = vmatpush.bf16.msra.mxu0 0
        %2051 = vmatpush.bf16.msra.mxu0 %v1036
        %2052 = vmatpush.bf16.msra.mxu0 %v1035
        %2053 = vmatmul.bf16.gmra.mxu0 %v2043
        %v2054 = vpop.f32.mrf.mxu0
        %v2055 = vadd.f32 0.0, %v2054
        %v2056 = vpop.f32.mrf.mxu0
        %2057 = vdwg.mxu0
        %v2058 = vadd.f32 %v2037, %v2055
        %v2059 = vxor.u32 %v2036, 2147483648
        %v2060 = vmul.f32 %v2059, 1.442695
        %v2061 = vpow.pop %v2060
        %v2062 = vadd.f32 %v2061, 1.0
        %v2063 = vrcp.pop %v2062
        %v2064 = vmul.f32 %v2062, %v2063
        %v2065 = vsub.f32 1.0, %v2064
        %v2066 = vmul.f32 %v2063, %v2065
        %v2067 = vadd.f32 %v2063, %v2066
        %vm2068 = vweird.f32 %v2062
        %vm2069 = vweird.f32 %v2063
        %vm2070 = vmor %vm2068, %vm2069
        %v2071 = vsel %vm2070, %v2063, %v2067
        %v2072 = vand.u32 2147483647, %v2062
        %vm2073 = vcmp.eq.f32.partialorder %v2072, 8.507059e+37
        %v2074 = vand.u32 %v2062, 2147483648
        %v2075 = vor.u32 1.1754944e-38, %v2074
        %v2076 = vsel %vm2073, %v2075, %v2071
        %v2077 = vmul.f32 1.0, %v2076
        %v2078 = vtanh.pop %v2036
        %v2079 = vmul.f32 %v2077, %v1947
        %2081 = vrot.lane.b32.xlu0 %v2078, 64
        %v2082 = vpop.permute.xlu0 %2081
        %v2084 = vmul.f32 %v2077, %v2082
        %2086 = vrot.lane.b32.xlu0 %v2084, 32
        %v2087 = vpop.permute.xlu0 %2086
        %v2089 = vadd.f32 %v2079, %v2087
        %v2090 = vtanh.pop %v2089
        %2092 = vrot.lane.b32.xlu0 %v2090, 64
        %v2093 = vpop.permute.xlu0 %2092
        %v2095 = vmul.f32 %v2077, %v2093
        %v2096 = vxor.u32 %v2058, 2147483648
        %v2097 = vmul.f32 %v2096, 1.442695
        %v2098 = vpow.pop %v2097
        %v2099 = vadd.f32 %v2098, 1.0
        %v2100 = vrcp.pop %v2099
        %v2101 = vmul.f32 %v2099, %v2100
        %v2102 = vsub.f32 1.0, %v2101
        %v2103 = vmul.f32 %v2100, %v2102
        %v2104 = vadd.f32 %v2100, %v2103
        %vm2105 = vweird.f32 %v2099
        %vm2106 = vweird.f32 %v2100
        %vm2107 = vmor %vm2105, %vm2106
        %v2108 = vsel %vm2107, %v2100, %v2104
        %v2109 = vand.u32 2147483647, %v2099
        %vm2110 = vcmp.eq.f32.partialorder %v2109, 8.507059e+37
        %v2111 = vand.u32 %v2099, 2147483648
        %v2112 = vor.u32 1.1754944e-38, %v2111
        %v2113 = vsel %vm2110, %v2112, %v2108
        %v2114 = vmul.f32 1.0, %v2113
        %v2115 = vtanh.pop %v2058
        %v2116 = vmul.f32 %v2114, %v1984
        %2118 = vrot.lane.b32.xlu0 %v2115, 64
        %v2119 = vpop.permute.xlu0 %2118
        %v2121 = vmul.f32 %v2114, %v2119
        %2123 = vrot.lane.b32.xlu0 %v2121, 32
        %v2124 = vpop.permute.xlu0 %2123
        %v2126 = vadd.f32 %v2116, %v2124
        %v2127 = vtanh.pop %v2126
        %2129 = vrot.lane.b32.xlu0 %v2127, 64
        %v2130 = vpop.permute.xlu0 %2129
        %v2132 = vmul.f32 %v2114, %v2130
        %v2133 = vpack.c.bf16 %v2095, %v2095
        %v2135 = vrot.slane %v2133, 3
        %v2138 = vsel %vm1141, %v2133, %v2135
        %2140 = vrot.lane.b32.xlu0 %v2138, 32
        %v2141 = vpop.permute.xlu0 %2140
        %s2143 = scalar_lea.vmem %s687, 7
        %2144 = vst.msk [vmem:[%s2143] sm:$0x1] %vm1149, %v2141
        %v2145 = vpack.c.bf16 %v2132, %v2132
        %v2147 = vrot.slane %v2145, 3
        %v2150 = vsel %vm1141, %v2145, %v2147
        %2152 = vrot.lane.b32.xlu0 %v2150, 32
        %v2153 = vpop.permute.xlu0 %2152
        %2155 = vst.msk [vmem:[%s696] sm:$0x1] %vm1149, %v2153
        %2157 = vrot.lane.b32.xlu0 %v2095, 32
        %v2158 = vpop.permute.xlu0 %2157
        %vm2160 = vcmask 254976
        %2161 = vst.msk [vmem:[#allocation4] sm:$0x3] %vm2160, %v2158
        %2163 = vrot.lane.b32.xlu0 %v2089, 96
        %v2164 = vpop.permute.xlu0 %2163
        %2166 = vst.msk [vmem:[#allocation5] sm:$0x3] %vm2160, %v2164
        %2168 = vrot.lane.b32.xlu0 %v2132, 32
        %v2169 = vpop.permute.xlu0 %2168
        %2171 = vst.msk [vmem:[#allocation6] sm:$0x3] %vm2160, %v2169
        %2173 = vrot.lane.b32.xlu0 %v2126, 96
        %v2174 = vpop.permute.xlu0 %2173
        %2176 = vst.msk [vmem:[#allocation7] sm:$0x3] %vm2160, %v2174
        %s2177 = smul.u32 8, %s34
        %p2178 = scmp.lt.s32.totalorder %s2177, 15
        %s2179 = scalar_select %p2178, %s2177, 15
        %p2180 = scmp.lt.s32.totalorder %s33, 0
        %s2181 = scalar_select %p2180, %s33, 0
        %s2182 = sadd.s32 %s2181, %s2179
        %s2183 = scalar_lea.vmem %s12, %s2182
        %s2184 = ssub.s32 1, %s34
        %s2185 = smul.u32 8, %s2184
        %p2186 = scmp.lt.s32.totalorder %s2185, 15
        %s2187 = scalar_select %p2186, %s2185, 15
        %p2188 = scmp.lt.s32.totalorder %s33, 0
        %s2189 = scalar_select %p2188, %s33, 0
        %s2190 = sadd.s32 %s2189, %s2187
        %s2191 = scalar_lea.vmem %s13, %s2190
        // Predicated region
        $region97: #{_forward.6} parent=67 // pred_check
          %p2192 = pneg %p345
        $region98: #{_forward.6} parent=67 // pred_check_branch
          %2194 = sbr.rel (%p2192) target = $region100
        $region99: #{_forward.6} parent=67 // pred_region
          %s2195 = smul.u32 8, %s34
        $region100: #{_forward.6} parent=67 // pred_fallthru
          _
        // Predicated region
        $region101: #{_forward.6} parent=67 // pred_check
          %p2196 = pneg %p375
        $region102: #{_forward.6} parent=67 // pred_check_branch
          %2198 = sbr.rel (%p2196) target = $region104
        $region103: #{_forward.6} parent=67 // pred_region
          %s2199 = ssub.s32 1, %s34
          %s2200 = smul.u32 8, %s2199
        $region104: #{_forward.6} parent=67 // pred_fallthru
          _
      $region68: #{_forward.6} parent=5 // pred_fallthru
        _
      %p2201 = scmp.le.s32.totalorder 2, %s24
      // Predicated region
      $region105: #{_forward.6} parent=5 // pred_check
        %p2202 = pneg %p2201
      $region106: #{_forward.6} parent=5 // pred_check_branch
        %2204 = sbr.rel (%p2202) target = $region108
      $region107: #{_forward.6} parent=5 // pred_region
        %s2205 = ssub.s32 %s24, 2
        // Predicated region
        $region109: #{_forward.6} parent=107 // pred_check
          %p2206 = pneg %p351
        $region110: #{_forward.6} parent=107 // pred_check_branch
          %2208 = sbr.rel (%p2206) target = $region112
        $region111: #{_forward.6} parent=107 // pred_region
          %s2209 = smul.u32 8, %s36
          %p2210 = scmp.lt.s32.totalorder %s2209, 15
          %s2211 = scalar_select %p2210, %s2209, 15
          %p2212 = scmp.lt.s32.totalorder %s35, 0
          %s2213 = scalar_select %p2212, %s35, 0
          %s2214 = sadd.s32 %s2213, %s2211
          %s2215 = scalar_lea.vmem %s12, %s2214
        $region112: #{_forward.6} parent=107 // pred_fallthru
          _
        // Predicated region
        $region113: #{_forward.6} parent=107 // pred_check
          %p2216 = pneg %p381
        $region114: #{_forward.6} parent=107 // pred_check_branch
          %2218 = sbr.rel (%p2216) target = $region116
        $region115: #{_forward.6} parent=107 // pred_region
          %s2219 = ssub.s32 1, %s36
          %s2220 = smul.u32 8, %s2219
          %p2221 = scmp.lt.s32.totalorder %s2220, 15
          %s2222 = scalar_select %p2221, %s2220, 15
          %p2223 = scmp.lt.s32.totalorder %s35, 0
          %s2224 = scalar_select %p2223, %s35, 0
          %s2225 = sadd.s32 %s2224, %s2222
          %s2226 = scalar_lea.vmem %s13, %s2225
        $region116: #{_forward.6} parent=107 // pred_fallthru
          _
      $region108: #{_forward.6} parent=5 // pred_fallthru
        _
    $region6: #{_forward.6} parent=1 // loop_footer
      %s28 = sadd.s32 1, %s24
    $region7: #{_forward.6} parent=1 // loop_footer_branch
      %23 = sbr.rel target = $region3
    $region8: #{_forward.6} parent=1 // loop_exit
      _
    %2227 = vsyncpa [#allocation9], 1
    %s2228 = scalar_lea.sflag [#allocation9], 1
    %2229 = vsyncpa %s2228, 1
    %2230 = vsyncpa [#allocation11], 1
    %2231 = vsyncpa [#allocation14], 1
    %2232 = vsyncpa [#allocation17], 1

</llo_original>
